<compile_context>
chip_gen: v7x
topology: tpu7x:2x2x1
jax: 0.10.0
libtpu: 0.0.40
codegen_flags: <defaults>
</compile_context>

<pallas_src>
import jax
import jax.numpy as jnp
from jax.experimental import pallas as pl
from jax.experimental.pallas import tpu as pltpu

BN_EPS = 1e-5

# Logical sizes (from the PyTorch module).
D_IN, H1, H2, D_OUT = 9 * 6 * 6, 5000, 1000, 12        # 324, 5000, 1000, 12
# Padded (lane-aligned) sizes.
D_IN_P, H1_P, H2_P, D_OUT_P = 384, 5120, 1024, 128

T1 = 1024   # l1 column-tile / l2 row-chunk width   -> 5 grid steps in kernel 1
T2 = 512    # wa column-tile / wb row-chunk width   -> 2 grid steps per res block
N_RES = 4

assert H1_P % T1 == 0 and H2_P % T2 == 0

_VMEM_LIMIT = 32 << 20  # largest kernel needs < 6 MiB incl. double buffering


def _bn_train(y, gamma, beta):
    """BatchNorm1d in training mode: per-feature biased stats over the batch."""
    mean = jnp.mean(y, axis=0, keepdims=True)
    var = jnp.mean(jnp.square(y - mean), axis=0, keepdims=True)
    return (y - mean) * jax.lax.rsqrt(var + BN_EPS) * gamma + beta


# ---------------------------------------------------------------------------
# Kernel 1:  x_onehot -> l1 -> bn1 -> relu -> l2 -> bn2 -> relu
#
# Grid step j streams w1 column-tile j  ([384, T1])  and w2 row-chunk j
# ([T1, 1024]) in lockstep:
#     h1_j   = relu(bn1_j(x @ w1[:, j*T1:(j+1)*T1]))          (exact: BN is
#     acc   += h1_j @ w2[j*T1:(j+1)*T1, :]                      per-feature)
# The last step applies bn2 + relu to the f32 accumulator and emits h.
# No weight is resident, no compute is repeated, and the only exposed DMA is
# the very first tile pair.
# ---------------------------------------------------------------------------
def _l1_l2_kernel(x_ref, w1_ref, p1_ref, w2_ref, p2_ref, o_ref, acc_ref):
    j = pl.program_id(0)

    @pl.when(j == 0)
    def _():
        acc_ref[...] = jnp.zeros_like(acc_ref)

    x = x_ref[...].astype(jnp.bfloat16)                              # [B, 384]
    h1 = jnp.dot(x, w1_ref[...], preferred_element_type=jnp.float32)  # [B, T1]
    h1 = jnp.maximum(_bn_train(h1, p1_ref[0:1, :], p1_ref[1:2, :]), 0.0)
    acc_ref[...] += jnp.dot(h1.astype(jnp.bfloat16), w2_ref[...],
                            preferred_element_type=jnp.float32)       # [B, 1024]

    @pl.when(j == pl.num_programs(0) - 1)
    def _():
        h2 = _bn_train(acc_ref[...], p2_ref[0:1, :], p2_ref[1:2, :])
        o_ref[...] = jnp.maximum(h2, 0.0)


def l1_l2_forward(x, p):
    B = x.shape[0]
    n0 = H1_P // T1
    return pl.pallas_call(
        _l1_l2_kernel,
        out_shape=jax.ShapeDtypeStruct((B, H2_P), jnp.float32),
        grid_spec=pltpu.PrefetchScalarGridSpec(
            num_scalar_prefetch=0,
            grid=(n0,),
            in_specs=[
                pl.BlockSpec((B, D_IN_P), lambda j: (0, 0)),            # one-hot x
                pl.BlockSpec((None, D_IN_P, T1), lambda j: (j, 0, 0)),  # w1 col-tile
                pl.BlockSpec((None, 8, T1), lambda j: (j, 0, 0)),       # bn1 pack tile
                pl.BlockSpec((None, T1, H2_P), lambda j: (j, 0, 0)),    # w2 row-chunk
                pl.BlockSpec((8, H2_P), lambda j: (0, 0)),              # bn2 pack
            ],
            out_specs=pl.BlockSpec((B, H2_P), lambda j: (0, 0)),
            scratch_shapes=[pltpu.VMEM((B, H2_P), jnp.float32)],        # l2 accumulator
        ),
        compiler_params=pltpu.CompilerParams(
            dimension_semantics=("arbitrary",),
            vmem_limit_bytes=_VMEM_LIMIT,
        ),
    )(x, p["w1t"], p["p1t"], p["w2t"], p["p2"])


# ---------------------------------------------------------------------------
# Kernel 2:  the full residual chain (4 blocks) + output Linear, one call.
#
# Grid = (block b, tile j).  The carried activation h lives in VMEM scratch.
# Per step:
#     r_j   = relu(bn_a,j(h @ wa_b[:, j*T2:(j+1)*T2]))     (wa col-tile streamed)
#     acc  += r_j @ wb_b[j*T2:(j+1)*T2, :]                 (wb row-chunk streamed)
# Last tile of a block:   h = relu(bn_b(acc + bias_b) + h)   (skip add)
# Very last step:         logits = h @ wo + bo              (fused output layer)
# ---------------------------------------------------------------------------
def _res_chain_kernel(h0_ref, wa_ref, pa_ref, wb_ref, pb_ref, wo_ref, bo_ref,
                      out_ref, h_ref, acc_ref):
    b = pl.program_id(0)
    j = pl.program_id(1)
    nb = pl.num_programs(0)
    nj = pl.num_programs(1)

    @pl.when(jnp.logical_and(b == 0, j == 0))
    def _():
        h_ref[...] = h0_ref[...]

    @pl.when(j == 0)
    def _():
        acc_ref[...] = jnp.zeros_like(acc_ref)

    # First half (Linear no-bias -> BN -> ReLU), feature tile j only.
    r = jnp.dot(h_ref[...].astype(jnp.bfloat16), wa_ref[...],
                preferred_element_type=jnp.float32)                    # [B, T2]
    r = jnp.maximum(_bn_train(r, pa_ref[0:1, :], pa_ref[1:2, :]), 0.0)
    # Partial second matmul (sum over the features of tile j).
    acc_ref[...] += jnp.dot(r.astype(jnp.bfloat16), wb_ref[...],
                            preferred_element_type=jnp.float32)        # [B, 1024]

    @pl.when(j == nj - 1)
    def _():
        y = _bn_train(acc_ref[...] + pb_ref[2:3, :],                   # + bias_b
                      pb_ref[0:1, :], pb_ref[1:2, :])
        h_ref[...] = jnp.maximum(y + h_ref[...], 0.0)                  # skip + relu

    @pl.when(jnp.logical_and(b == nb - 1, j == nj - 1))
    def _():
        out_ref[...] = (jnp.dot(h_ref[...].astype(jnp.bfloat16), wo_ref[...],
                                preferred_element_type=jnp.float32)
                        + bo_ref[...])


def res_chain_forward(h0, p):
    B = h0.shape[0]
    nj = H2_P // T2
    return pl.pallas_call(
        _res_chain_kernel,
        out_shape=jax.ShapeDtypeStruct((B, D_OUT_P), jnp.float32),
        grid_spec=pltpu.PrefetchScalarGridSpec(
            num_scalar_prefetch=0,
            grid=(N_RES, nj),
            in_specs=[
                pl.BlockSpec((B, H2_P), lambda b, j: (0, 0)),                    # h0
                pl.BlockSpec((None, None, H2_P, T2), lambda b, j: (b, j, 0, 0)),  # wa col-tile
                pl.BlockSpec((None, None, 8, T2), lambda b, j: (b, j, 0, 0)),     # bn_a pack tile
                pl.BlockSpec((None, None, T2, H2_P), lambda b, j: (b, j, 0, 0)),  # wb row-chunk
                pl.BlockSpec((None, 8, H2_P), lambda b, j: (b, 0, 0)),            # bn_b/bias pack
                pl.BlockSpec((H2_P, D_OUT_P), lambda b, j: (0, 0)),               # wo
                pl.BlockSpec((1, D_OUT_P), lambda b, j: (0, 0)),                  # bo
            ],
            out_specs=pl.BlockSpec((B, D_OUT_P), lambda b, j: (0, 0)),
            scratch_shapes=[
                pltpu.VMEM((B, H2_P), jnp.float32),   # carried activation h
                pltpu.VMEM((B, H2_P), jnp.float32),   # second-matmul accumulator
            ],
        ),
        compiler_params=pltpu.CompilerParams(
            dimension_semantics=("arbitrary", "arbitrary"),
            vmem_limit_bytes=_VMEM_LIMIT,
        ),
    )(h0, p["wat"], p["pat"], p["wbt"], p["pb"], p["wo"], p["bo"])


# ---------------------------------------------------------------------------
# Parameter init: xavier-uniform weights, zero biases, BN gamma=1 / beta=0.
# Weights are zero-padded to lane-aligned sizes, cast to bf16 and PRE-TILED so
# every streamed block is one contiguous DMA.  BN packs stay f32; padded
# columns get gamma=0 / beta=0 so they remain exact zeros everywhere.
# ---------------------------------------------------------------------------
def _xavier(key, fan_in, fan_out):
    bound = (6.0 / (fan_in + fan_out)) ** 0.5
    return jax.random.uniform(key, (fan_in, fan_out), jnp.float32, -bound, bound)


def _pad2(a, rows, cols):
    return jnp.pad(a, ((0, rows - a.shape[0]), (0, cols - a.shape[1])))


def _col_tiles(w, tile):
    """[R, C] -> [C//tile, R, tile]  (each tile contiguous in HBM)."""
    r, c = w.shape
    return jnp.transpose(w.reshape(r, c // tile, tile), (1, 0, 2))


def _row_chunks(w, chunk):
    """[R, C] -> [R//chunk, chunk, C]  (each chunk contiguous in HBM)."""
    r, c = w.shape
    return w.reshape(r // chunk, chunk, c)


def _bn_pack(width, valid):
    """(8, width) pack: row0=gamma (1 on valid cols), row1=beta, row2=bias."""
    pack = jnp.zeros((8, width), jnp.float32)
    return pack.at[0, :valid].set(1.0)


def init_params(key):
    ks = jax.random.split(key, 8)
    p = {}
    # l1 (no bias) / bn1   — column-tiled for streaming
    w1 = _pad2(_xavier(ks[0], D_IN, H1), D_IN_P, H1_P).astype(jnp.bfloat16)
    p["w1t"] = _col_tiles(w1, T1)                              # [5, 384, 1024]
    p["p1t"] = _col_tiles(_bn_pack(H1_P, H1), T1)              # [5, 8, 1024]
    # l2 (no bias) / bn2   — row-chunked for streaming
    w2 = _pad2(_xavier(ks[1], H1, H2), H1_P, H2_P).astype(jnp.bfloat16)
    p["w2t"] = _row_chunks(w2, T1)                             # [5, 1024, 1024]
    p["p2"] = _bn_pack(H2_P, H2)                               # [8, 1024]
    # 4 residual blocks: Linear(no bias)+BN+ReLU+Linear(bias)+BN
    wat, pat, wbt, pb = [], [], [], []
    for i in range(N_RES):
        ka, kb = jax.random.split(ks[2 + i])
        wa = _pad2(_xavier(ka, H2, H2), H2_P, H2_P).astype(jnp.bfloat16)
        wb = _pad2(_xavier(kb, H2, H2), H2_P, H2_P).astype(jnp.bfloat16)
        wat.append(_col_tiles(wa, T2))                         # [2, 1024, 512]
        pat.append(_col_tiles(_bn_pack(H2_P, H2), T2))         # [2, 8, 512]
        wbt.append(_row_chunks(wb, T2))                        # [2, 512, 1024]
        pb.append(_bn_pack(H2_P, H2))      # bias row (2) stays 0 (xavier+zeros)
    p["wat"] = jnp.stack(wat)                                  # [4, 2, 1024, 512]
    p["pat"] = jnp.stack(pat)                                  # [4, 2, 8, 512]
    p["wbt"] = jnp.stack(wbt)                                  # [4, 2, 512, 1024]
    p["pb"] = jnp.stack(pb)                                    # [4, 8, 1024]
    # output layer (with bias, zero-initialized)
    p["wo"] = _pad2(_xavier(ks[6], H2, D_OUT), H2_P, D_OUT_P).astype(jnp.bfloat16)
    p["bo"] = jnp.zeros((1, D_OUT_P), jnp.float32)
    return p


# ---------------------------------------------------------------------------
# Forward pass: one-hot featurization in plain JAX (trivially small), then
# the two fused Pallas kernels.  NOTE: BatchNorm statistics require the whole
# batch in one block, i.e. B is never tiled (true for this small-batch model).
# ---------------------------------------------------------------------------
def network_forward(params, x_int):
    B = x_int.shape[0]
    # one_hot(x.reshape(B, -1), 6).reshape(B, -1).float(), padded to 384 lanes.
    oh = jax.nn.one_hot(x_int.reshape(B, -1).astype(jnp.int32), 6,
                        dtype=jnp.float32)
    x = jnp.pad(oh.reshape(B, -1), ((0, 0), (0, D_IN_P - D_IN)))   # [B, 384]

    h = l1_l2_forward(x, params)            # [B, 1024]  (padded hidden)
    logits = res_chain_forward(h, params)   # [B, 128]   (padded logits)
    return logits[:, :D_OUT]                # [B, 12]


if __name__ == "__main__":
    key = jax.random.PRNGKey(0)
    k_param, k_data = jax.random.split(key)
    params = init_params(k_param)
    # Input: [B, 9, 6] integer grid with values in [0, 6) (one-hot depth 6).
    x = jax.random.randint(k_data, (8, 9, 6), 0, 6, dtype=jnp.int32)
    out = jax.jit(network_forward)(params, x)
    out = jax.block_until_ready(out)
    assert out.shape == (8, 12) and out.dtype == jnp.float32
    assert bool(jnp.all(jnp.isfinite(out)))
    print("KERNEL_OK")
</pallas_src>

<mosaic_0001>
module attributes {stable_mosaic.version = 11 : i64} {
  func.func @_res_chain_kernel(%arg0: i32, %arg1: i32, %arg2: memref<8x1024xf32, #tpu.memory_space<vmem>>, %arg3: memref<1x1x1024x512xbf16, #tpu.memory_space<vmem>>, %arg4: memref<1x1x8x512xf32, #tpu.memory_space<vmem>>, %arg5: memref<1x1x512x1024xbf16, #tpu.memory_space<vmem>>, %arg6: memref<1x8x1024xf32, #tpu.memory_space<vmem>>, %arg7: memref<1024x128xbf16, #tpu.memory_space<vmem>>, %arg8: memref<1x128xf32, #tpu.memory_space<vmem>>, %arg9: memref<8x128xf32, #tpu.memory_space<vmem>>, %arg10: memref<8x1024xf32, #tpu.memory_space<vmem>>, %arg11: memref<8x1024xf32, #tpu.memory_space<vmem>>) attributes {dimension_semantics = [#tpu.dimension_semantics<arbitrary>, #tpu.dimension_semantics<arbitrary>], iteration_bounds = array<i64: 4, 2>, scalar_prefetch = 0 : i64, scratch_operands = 2 : i64, tpu.core_type = #tpu.core_type<tc>, window_params = [{pipeline_mode = #tpu.pipeline_mode<synchronous>, transform_indices = @transform_0, window_bounds = array<i64: 8, 1024>}, {transform_indices = @transform_1, window_bounds = array<i64: 1, 1, 1024, 512>}, {transform_indices = @transform_2, window_bounds = array<i64: 1, 1, 8, 512>}, {transform_indices = @transform_3, window_bounds = array<i64: 1, 1, 512, 1024>}, {transform_indices = @transform_4, window_bounds = array<i64: 1, 8, 1024>}, {pipeline_mode = #tpu.pipeline_mode<synchronous>, transform_indices = @transform_5, window_bounds = array<i64: 1024, 128>}, {pipeline_mode = #tpu.pipeline_mode<synchronous>, transform_indices = @transform_6, window_bounds = array<i64: 1, 128>}, {pipeline_mode = #tpu.pipeline_mode<synchronous>, transform_indices = @transform_7, window_bounds = array<i64: 8, 128>}]} {
    %c0_i32 = arith.constant 0 : i32
    %0 = arith.cmpi eq, %arg0, %c0_i32 : i32
    %c0_i32_0 = arith.constant 0 : i32
    %1 = arith.cmpi eq, %arg1, %c0_i32_0 : i32
    %2 = arith.andi %0, %1 : i1
    %3 = arith.extui %2 : i1 to i32
    %c0_i32_1 = arith.constant 0 : i32
    %4 = arith.cmpi ne, %3, %c0_i32_1 : i32
    scf.if %4 {
      %c0_34 = arith.constant 0 : index
      %c0_35 = arith.constant 0 : index
      %56 = vector.load %arg2[%c0_34, %c0_35] : memref<8x1024xf32, #tpu.memory_space<vmem>>, vector<8x1024xf32>
      %c0_36 = arith.constant 0 : index
      %c0_37 = arith.constant 0 : index
      %57 = vector.load %arg10[%c0_36, %c0_37] : memref<8x1024xf32, #tpu.memory_space<vmem>>, vector<8x1024xf32>
      tpu.vector_store %arg10[%c0_36, %c0_37], %56 {strides = array<i32>} : memref<8x1024xf32, #tpu.memory_space<vmem>>, vector<8x1024xf32>,
    } else {
    }
    %c0_i32_2 = arith.constant 0 : i32
    %5 = arith.cmpi eq, %arg1, %c0_i32_2 : i32
    %6 = arith.extui %5 : i1 to i32
    %c0_i32_3 = arith.constant 0 : i32
    %7 = arith.cmpi ne, %6, %c0_i32_3 : i32
    scf.if %7 {
      %cst_34 = arith.constant 0.000000e+00 : f32
      %56 = vector.broadcast %cst_34 : f32 to vector<8x1024xf32>
      %c0_35 = arith.constant 0 : index
      %c0_36 = arith.constant 0 : index
      %57 = vector.load %arg11[%c0_35, %c0_36] : memref<8x1024xf32, #tpu.memory_space<vmem>>, vector<8x1024xf32>
      tpu.vector_store %arg11[%c0_35, %c0_36], %56 {strides = array<i32>} : memref<8x1024xf32, #tpu.memory_space<vmem>>, vector<8x1024xf32>,
    } else {
    }
    %c0 = arith.constant 0 : index
    %c0_4 = arith.constant 0 : index
    %8 = vector.load %arg10[%c0, %c0_4] : memref<8x1024xf32, #tpu.memory_space<vmem>>, vector<8x1024xf32>
    %9 = arith.truncf %8 : vector<8x1024xf32> to vector<8x1024xbf16>
    %c0_5 = arith.constant 0 : index
    %c0_6 = arith.constant 0 : index
    %c0_7 = arith.constant 0 : index
    %c0_8 = arith.constant 0 : index
    %10 = vector.load %arg3[%c0_5, %c0_6, %c0_7, %c0_8] : memref<1x1x1024x512xbf16, #tpu.memory_space<vmem>>, vector<1x1x1024x512xbf16>
    %11 = vector.shape_cast %10 : vector<1x1x1024x512xbf16> to vector<1024x512xbf16>
    %cst = arith.constant dense<0.000000e+00> : vector<8x512xf32>
    %12 = tpu.matmul %9, %11, %cst {dimension_numbers = #tpu.dot_dimension_numbers<[1], [0], [0], [1], [0, 0, 1, 1], [], []>} : vector<8x1024xbf16>, vector<1024x512xbf16>, vector<8x512xf32> -> vector<8x512xf32>
    %c0_9 = arith.constant 0 : index
    %c0_10 = arith.constant 0 : index
    %c0_11 = arith.constant 0 : index
    %c0_12 = arith.constant 0 : index
    %13 = vector.load %arg4[%c0_9, %c0_10, %c0_11, %c0_12] : memref<1x1x8x512xf32, #tpu.memory_space<vmem>>, vector<1x1x1x512xf32>
    %14 = vector.shape_cast %13 : vector<1x1x1x512xf32> to vector<1x512xf32>
    %c0_13 = arith.constant 0 : index
    %c0_14 = arith.constant 0 : index
    %c1 = arith.constant 1 : index
    %c0_15 = arith.constant 0 : index
    %15 = vector.load %arg4[%c0_13, %c0_14, %c1, %c0_15] : memref<1x1x8x512xf32, #tpu.memory_space<vmem>>, vector<1x1x1x512xf32>
    %16 = vector.shape_cast %15 : vector<1x1x1x512xf32> to vector<1x512xf32>
    %cst_16 = arith.constant dense<0.000000e+00> : vector<512xf32>
    %17 = vector.multi_reduction <add>, %12, %cst_16 [0] : vector<8x512xf32> to vector<512xf32>
    %18 = vector.shape_cast %17 : vector<512xf32> to vector<1x512xf32>
    %cst_17 = arith.constant 8.000000e+00 : f32
    %19 = vector.broadcast %cst_17 : f32 to vector<1x512xf32>
    %20 = arith.divf %18, %19 : vector<1x512xf32>
    %21 = vector.broadcast %20 : vector<1x512xf32> to vector<8x512xf32>
    %22 = arith.subf %12, %21 : vector<8x512xf32>
    %23 = arith.mulf %22, %22 : vector<8x512xf32>
    %cst_18 = arith.constant dense<0.000000e+00> : vector<512xf32>
    %24 = vector.multi_reduction <add>, %23, %cst_18 [0] : vector<8x512xf32> to vector<512xf32>
    %25 = vector.shape_cast %24 : vector<512xf32> to vector<1x512xf32>
    %cst_19 = arith.constant 8.000000e+00 : f32
    %26 = vector.broadcast %cst_19 : f32 to vector<1x512xf32>
    %27 = arith.divf %25, %26 : vector<1x512xf32>
    %28 = vector.broadcast %20 : vector<1x512xf32> to vector<8x512xf32>
    %29 = arith.subf %12, %28 : vector<8x512xf32>
    %cst_20 = arith.constant 9.99999974E-6 : f32
    %30 = vector.broadcast %cst_20 : f32 to vector<1x512xf32>
    %31 = arith.addf %27, %30 : vector<1x512xf32>
    %32 = math.rsqrt %31 : vector<1x512xf32>
    %33 = vector.broadcast %32 : vector<1x512xf32> to vector<8x512xf32>
    %34 = arith.mulf %29, %33 : vector<8x512xf32>
    %35 = vector.broadcast %14 : vector<1x512xf32> to vector<8x512xf32>
    %36 = arith.mulf %34, %35 : vector<8x512xf32>
    %37 = vector.broadcast %16 : vector<1x512xf32> to vector<8x512xf32>
    %38 = arith.addf %36, %37 : vector<8x512xf32>
    %cst_21 = arith.constant 0.000000e+00 : f32
    %39 = vector.broadcast %cst_21 : f32 to vector<8x512xf32>
    %40 = arith.maximumf %38, %39 : vector<8x512xf32>
    %c0_22 = arith.constant 0 : index
    %c0_23 = arith.constant 0 : index
    %41 = vector.load %arg11[%c0_22, %c0_23] : memref<8x1024xf32, #tpu.memory_space<vmem>>, vector<8x1024xf32>
    %42 = arith.truncf %40 : vector<8x512xf32> to vector<8x512xbf16>
    %c0_24 = arith.constant 0 : index
    %c0_25 = arith.constant 0 : index
    %c0_26 = arith.constant 0 : index
    %c0_27 = arith.constant 0 : index
    %43 = vector.load %arg5[%c0_24, %c0_25, %c0_26, %c0_27] : memref<1x1x512x1024xbf16, #tpu.memory_space<vmem>>, vector<1x1x512x1024xbf16>
    %44 = vector.shape_cast %43 : vector<1x1x512x1024xbf16> to vector<512x1024xbf16>
    %cst_28 = arith.constant dense<0.000000e+00> : vector<8x1024xf32>
    %45 = tpu.matmul %42, %44, %cst_28 {dimension_numbers = #tpu.dot_dimension_numbers<[1], [0], [0], [1], [0, 0, 1, 1], [], []>} : vector<8x512xbf16>, vector<512x1024xbf16>, vector<8x1024xf32> -> vector<8x1024xf32>
    %46 = arith.addf %41, %45 : vector<8x1024xf32>
    %c0_29 = arith.constant 0 : index
    %c0_30 = arith.constant 0 : index
    %47 = vector.load %arg11[%c0_29, %c0_30] : memref<8x1024xf32, #tpu.memory_space<vmem>>, vector<8x1024xf32>
    tpu.vector_store %arg11[%c0_29, %c0_30], %46 {strides = array<i32>} : memref<8x1024xf32, #tpu.memory_space<vmem>>, vector<8x1024xf32>,
    %c1_i32 = arith.constant 1 : i32
    %48 = arith.cmpi eq, %arg1, %c1_i32 : i32
    %49 = arith.extui %48 : i1 to i32
    %c0_i32_31 = arith.constant 0 : i32
    %50 = arith.cmpi ne, %49, %c0_i32_31 : i32
    scf.if %50 {
      %c0_34 = arith.constant 0 : index
      %c0_35 = arith.constant 0 : index
      %56 = vector.load %arg11[%c0_34, %c0_35] : memref<8x1024xf32, #tpu.memory_space<vmem>>, vector<8x1024xf32>
      %c0_36 = arith.constant 0 : index
      %c2 = arith.constant 2 : index
      %c0_37 = arith.constant 0 : index
      %57 = vector.load %arg6[%c0_36, %c2, %c0_37] : memref<1x8x1024xf32, #tpu.memory_space<vmem>>, vector<1x1x1024xf32>
      %58 = vector.shape_cast %57 : vector<1x1x1024xf32> to vector<1x1024xf32>
      %59 = vector.broadcast %58 : vector<1x1024xf32> to vector<8x1024xf32>
      %60 = arith.addf %56, %59 : vector<8x1024xf32>
      %c0_38 = arith.constant 0 : index
      %c0_39 = arith.constant 0 : index
      %c0_40 = arith.constant 0 : index
      %61 = vector.load %arg6[%c0_38, %c0_39, %c0_40] : memref<1x8x1024xf32, #tpu.memory_space<vmem>>, vector<1x1x1024xf32>
      %62 = vector.shape_cast %61 : vector<1x1x1024xf32> to vector<1x1024xf32>
      %c0_41 = arith.constant 0 : index
      %c1_42 = arith.constant 1 : index
      %c0_43 = arith.constant 0 : index
      %63 = vector.load %arg6[%c0_41, %c1_42, %c0_43] : memref<1x8x1024xf32, #tpu.memory_space<vmem>>, vector<1x1x1024xf32>
      %64 = vector.shape_cast %63 : vector<1x1x1024xf32> to vector<1x1024xf32>
      %cst_44 = arith.constant dense<0.000000e+00> : vector<1024xf32>
      %65 = vector.multi_reduction <add>, %60, %cst_44 [0] : vector<8x1024xf32> to vector<1024xf32>
      %66 = vector.shape_cast %65 : vector<1024xf32> to vector<1x1024xf32>
      %cst_45 = arith.constant 8.000000e+00 : f32
      %67 = vector.broadcast %cst_45 : f32 to vector<1x1024xf32>
      %68 = arith.divf %66, %67 : vector<1x1024xf32>
      %69 = vector.broadcast %68 : vector<1x1024xf32> to vector<8x1024xf32>
      %70 = arith.subf %60, %69 : vector<8x1024xf32>
      %71 = arith.mulf %70, %70 : vector<8x1024xf32>
      %cst_46 = arith.constant dense<0.000000e+00> : vector<1024xf32>
      %72 = vector.multi_reduction <add>, %71, %cst_46 [0] : vector<8x1024xf32> to vector<1024xf32>
      %73 = vector.shape_cast %72 : vector<1024xf32> to vector<1x1024xf32>
      %cst_47 = arith.constant 8.000000e+00 : f32
      %74 = vector.broadcast %cst_47 : f32 to vector<1x1024xf32>
      %75 = arith.divf %73, %74 : vector<1x1024xf32>
      %76 = vector.broadcast %68 : vector<1x1024xf32> to vector<8x1024xf32>
      %77 = arith.subf %60, %76 : vector<8x1024xf32>
      %cst_48 = arith.constant 9.99999974E-6 : f32
      %78 = vector.broadcast %cst_48 : f32 to vector<1x1024xf32>
      %79 = arith.addf %75, %78 : vector<1x1024xf32>
      %80 = math.rsqrt %79 : vector<1x1024xf32>
      %81 = vector.broadcast %80 : vector<1x1024xf32> to vector<8x1024xf32>
      %82 = arith.mulf %77, %81 : vector<8x1024xf32>
      %83 = vector.broadcast %62 : vector<1x1024xf32> to vector<8x1024xf32>
      %84 = arith.mulf %82, %83 : vector<8x1024xf32>
      %85 = vector.broadcast %64 : vector<1x1024xf32> to vector<8x1024xf32>
      %86 = arith.addf %84, %85 : vector<8x1024xf32>
      %c0_49 = arith.constant 0 : index
      %c0_50 = arith.constant 0 : index
      %87 = vector.load %arg10[%c0_49, %c0_50] : memref<8x1024xf32, #tpu.memory_space<vmem>>, vector<8x1024xf32>
      %88 = arith.addf %86, %87 : vector<8x1024xf32>
      %cst_51 = arith.constant 0.000000e+00 : f32
      %89 = vector.broadcast %cst_51 : f32 to vector<8x1024xf32>
      %90 = arith.maximumf %88, %89 : vector<8x1024xf32>
      %c0_52 = arith.constant 0 : index
      %c0_53 = arith.constant 0 : index
      %91 = vector.load %arg10[%c0_52, %c0_53] : memref<8x1024xf32, #tpu.memory_space<vmem>>, vector<8x1024xf32>
      tpu.vector_store %arg10[%c0_52, %c0_53], %90 {strides = array<i32>} : memref<8x1024xf32, #tpu.memory_space<vmem>>, vector<8x1024xf32>,
    } else {
    }
    %c3_i32 = arith.constant 3 : i32
    %51 = arith.cmpi eq, %arg0, %c3_i32 : i32
    %c1_i32_32 = arith.constant 1 : i32
    %52 = arith.cmpi eq, %arg1, %c1_i32_32 : i32
    %53 = arith.andi %51, %52 : i1
    %54 = arith.extui %53 : i1 to i32
    %c0_i32_33 = arith.constant 0 : i32
    %55 = arith.cmpi ne, %54, %c0_i32_33 : i32
    scf.if %55 {
      %c0_34 = arith.constant 0 : index
      %c0_35 = arith.constant 0 : index
      %56 = vector.load %arg10[%c0_34, %c0_35] : memref<8x1024xf32, #tpu.memory_space<vmem>>, vector<8x1024xf32>
      %57 = arith.truncf %56 : vector<8x1024xf32> to vector<8x1024xbf16>
      %c0_36 = arith.constant 0 : index
      %c0_37 = arith.constant 0 : index
      %58 = vector.load %arg7[%c0_36, %c0_37] : memref<1024x128xbf16, #tpu.memory_space<vmem>>, vector<1024x128xbf16>
      %cst_38 = arith.constant dense<0.000000e+00> : vector<8x128xf32>
      %59 = tpu.matmul %57, %58, %cst_38 {dimension_numbers = #tpu.dot_dimension_numbers<[1], [0], [0], [1], [0, 0, 1, 1], [], []>} : vector<8x1024xbf16>, vector<1024x128xbf16>, vector<8x128xf32> -> vector<8x128xf32>
      %c0_39 = arith.constant 0 : index
      %c0_40 = arith.constant 0 : index
      %60 = vector.load %arg8[%c0_39, %c0_40] : memref<1x128xf32, #tpu.memory_space<vmem>>, vector<1x128xf32>
      %61 = vector.broadcast %60 : vector<1x128xf32> to vector<8x128xf32>
      %62 = arith.addf %59, %61 : vector<8x128xf32>
      %c0_41 = arith.constant 0 : index
      %c0_42 = arith.constant 0 : index
      %63 = vector.load %arg9[%c0_41, %c0_42] : memref<8x128xf32, #tpu.memory_space<vmem>>, vector<8x128xf32>
      tpu.vector_store %arg9[%c0_41, %c0_42], %62 {strides = array<i32>} : memref<8x128xf32, #tpu.memory_space<vmem>>, vector<8x128xf32>,
    } else {
    }
    return
  }
  func.func @transform_0(%arg0: i32, %arg1: i32) -> (i32, i32) {
    %c0_i32 = arith.constant 0 : i32
    %c0_i32_0 = arith.constant 0 : i32
    %c0_i32_1 = arith.constant 0 : i32
    return %c0_i32, %c0_i32_0 : i32, i32
  }
  func.func @transform_1(%arg0: i32, %arg1: i32) -> (i32, i32, i32, i32) {
    %c0_i32 = arith.constant 0 : i32
    %c0_i32_0 = arith.constant 0 : i32
    %c0_i32_1 = arith.constant 0 : i32
    return %arg0, %arg1, %c0_i32, %c0_i32_0 : i32, i32, i32, i32
  }
  func.func @transform_2(%arg0: i32, %arg1: i32) -> (i32, i32, i32, i32) {
    %c0_i32 = arith.constant 0 : i32
    %c0_i32_0 = arith.constant 0 : i32
    %c0_i32_1 = arith.constant 0 : i32
    return %arg0, %arg1, %c0_i32, %c0_i32_0 : i32, i32, i32, i32
  }
  func.func @transform_3(%arg0: i32, %arg1: i32) -> (i32, i32, i32, i32) {
    %c0_i32 = arith.constant 0 : i32
    %c0_i32_0 = arith.constant 0 : i32
    %c0_i32_1 = arith.constant 0 : i32
    return %arg0, %arg1, %c0_i32, %c0_i32_0 : i32, i32, i32, i32
  }
  func.func @transform_4(%arg0: i32, %arg1: i32) -> (i32, i32, i32) {
    %c0_i32 = arith.constant 0 : i32
    %c0_i32_0 = arith.constant 0 : i32
    %c0_i32_1 = arith.constant 0 : i32
    return %arg0, %c0_i32, %c0_i32_0 : i32, i32, i32
  }
  func.func @transform_5(%arg0: i32, %arg1: i32) -> (i32, i32) {
    %c0_i32 = arith.constant 0 : i32
    %c0_i32_0 = arith.constant 0 : i32
    %c0_i32_1 = arith.constant 0 : i32
    return %c0_i32, %c0_i32_0 : i32, i32
  }
  func.func @transform_6(%arg0: i32, %arg1: i32) -> (i32, i32) {
    %c0_i32 = arith.constant 0 : i32
    %c0_i32_0 = arith.constant 0 : i32
    %c0_i32_1 = arith.constant 0 : i32
    return %c0_i32, %c0_i32_0 : i32, i32
  }
  func.func @transform_7(%arg0: i32, %arg1: i32) -> (i32, i32) {
    %c0_i32 = arith.constant 0 : i32
    %c0_i32_0 = arith.constant 0 : i32
    %c0_i32_1 = arith.constant 0 : i32
    return %c0_i32, %c0_i32_0 : i32, i32
  }
}

module attributes {stable_mosaic.version = 11 : i64} {
  func.func @_l1_l2_kernel(%arg0: i32, %arg1: memref<8x384xf32, #tpu.memory_space<vmem>>, %arg2: memref<1x384x1024xbf16, #tpu.memory_space<vmem>>, %arg3: memref<1x8x1024xf32, #tpu.memory_space<vmem>>, %arg4: memref<1x1024x1024xbf16, #tpu.memory_space<vmem>>, %arg5: memref<8x1024xf32, #tpu.memory_space<vmem>>, %arg6: memref<8x1024xf32, #tpu.memory_space<vmem>>, %arg7: memref<8x1024xf32, #tpu.memory_space<vmem>>) attributes {dimension_semantics = [#tpu.dimension_semantics<arbitrary>], iteration_bounds = array<i64: 5>, scalar_prefetch = 0 : i64, scratch_operands = 1 : i64, tpu.core_type = #tpu.core_type<tc>, window_params = [{pipeline_mode = #tpu.pipeline_mode<synchronous>, transform_indices = @transform_0, window_bounds = array<i64: 8, 384>}, {transform_indices = @transform_1, window_bounds = array<i64: 1, 384, 1024>}, {transform_indices = @transform_2, window_bounds = array<i64: 1, 8, 1024>}, {transform_indices = @transform_3, window_bounds = array<i64: 1, 1024, 1024>}, {pipeline_mode = #tpu.pipeline_mode<synchronous>, transform_indices = @transform_4, window_bounds = array<i64: 8, 1024>}, {pipeline_mode = #tpu.pipeline_mode<synchronous>, transform_indices = @transform_5, window_bounds = array<i64: 8, 1024>}]} {
    %c0_i32 = arith.constant 0 : i32
    %0 = arith.cmpi eq, %arg0, %c0_i32 : i32
    %1 = arith.extui %0 : i1 to i32
    %c0_i32_0 = arith.constant 0 : i32
    %2 = arith.cmpi ne, %1, %c0_i32_0 : i32
    scf.if %2 {
      %cst_25 = arith.constant 0.000000e+00 : f32
      %46 = vector.broadcast %cst_25 : f32 to vector<8x1024xf32>
      %c0_26 = arith.constant 0 : index
      %c0_27 = arith.constant 0 : index
      %47 = vector.load %arg7[%c0_26, %c0_27] : memref<8x1024xf32, #tpu.memory_space<vmem>>, vector<8x1024xf32>
      tpu.vector_store %arg7[%c0_26, %c0_27], %46 {strides = array<i32>} : memref<8x1024xf32, #tpu.memory_space<vmem>>, vector<8x1024xf32>,
    } else {
    }
    %c0 = arith.constant 0 : index
    %c0_1 = arith.constant 0 : index
    %3 = vector.load %arg1[%c0, %c0_1] : memref<8x384xf32, #tpu.memory_space<vmem>>, vector<8x384xf32>
    %4 = arith.truncf %3 : vector<8x384xf32> to vector<8x384xbf16>
    %c0_2 = arith.constant 0 : index
    %c0_3 = arith.constant 0 : index
    %c0_4 = arith.constant 0 : index
    %5 = vector.load %arg2[%c0_2, %c0_3, %c0_4] : memref<1x384x1024xbf16, #tpu.memory_space<vmem>>, vector<1x384x1024xbf16>
    %6 = vector.shape_cast %5 : vector<1x384x1024xbf16> to vector<384x1024xbf16>
    %cst = arith.constant dense<0.000000e+00> : vector<8x1024xf32>
    %7 = tpu.matmul %4, %6, %cst {dimension_numbers = #tpu.dot_dimension_numbers<[1], [0], [0], [1], [0, 0, 1, 1], [], []>} : vector<8x384xbf16>, vector<384x1024xbf16>, vector<8x1024xf32> -> vector<8x1024xf32>
    %c0_5 = arith.constant 0 : index
    %c0_6 = arith.constant 0 : index
    %c0_7 = arith.constant 0 : index
    %8 = vector.load %arg3[%c0_5, %c0_6, %c0_7] : memref<1x8x1024xf32, #tpu.memory_space<vmem>>, vector<1x1x1024xf32>
    %9 = vector.shape_cast %8 : vector<1x1x1024xf32> to vector<1x1024xf32>
    %c0_8 = arith.constant 0 : index
    %c1 = arith.constant 1 : index
    %c0_9 = arith.constant 0 : index
    %10 = vector.load %arg3[%c0_8, %c1, %c0_9] : memref<1x8x1024xf32, #tpu.memory_space<vmem>>, vector<1x1x1024xf32>
    %11 = vector.shape_cast %10 : vector<1x1x1024xf32> to vector<1x1024xf32>
    %cst_10 = arith.constant dense<0.000000e+00> : vector<1024xf32>
    %12 = vector.multi_reduction <add>, %7, %cst_10 [0] : vector<8x1024xf32> to vector<1024xf32>
    %13 = vector.shape_cast %12 : vector<1024xf32> to vector<1x1024xf32>
    %cst_11 = arith.constant 8.000000e+00 : f32
    %14 = vector.broadcast %cst_11 : f32 to vector<1x1024xf32>
    %15 = arith.divf %13, %14 : vector<1x1024xf32>
    %16 = vector.broadcast %15 : vector<1x1024xf32> to vector<8x1024xf32>
    %17 = arith.subf %7, %16 : vector<8x1024xf32>
    %18 = arith.mulf %17, %17 : vector<8x1024xf32>
    %cst_12 = arith.constant dense<0.000000e+00> : vector<1024xf32>
    %19 = vector.multi_reduction <add>, %18, %cst_12 [0] : vector<8x1024xf32> to vector<1024xf32>
    %20 = vector.shape_cast %19 : vector<1024xf32> to vector<1x1024xf32>
    %cst_13 = arith.constant 8.000000e+00 : f32
    %21 = vector.broadcast %cst_13 : f32 to vector<1x1024xf32>
    %22 = arith.divf %20, %21 : vector<1x1024xf32>
    %23 = vector.broadcast %15 : vector<1x1024xf32> to vector<8x1024xf32>
    %24 = arith.subf %7, %23 : vector<8x1024xf32>
    %cst_14 = arith.constant 9.99999974E-6 : f32
    %25 = vector.broadcast %cst_14 : f32 to vector<1x1024xf32>
    %26 = arith.addf %22, %25 : vector<1x1024xf32>
    %27 = math.rsqrt %26 : vector<1x1024xf32>
    %28 = vector.broadcast %27 : vector<1x1024xf32> to vector<8x1024xf32>
    %29 = arith.mulf %24, %28 : vector<8x1024xf32>
    %30 = vector.broadcast %9 : vector<1x1024xf32> to vector<8x1024xf32>
    %31 = arith.mulf %29, %30 : vector<8x1024xf32>
    %32 = vector.broadcast %11 : vector<1x1024xf32> to vector<8x1024xf32>
    %33 = arith.addf %31, %32 : vector<8x1024xf32>
    %cst_15 = arith.constant 0.000000e+00 : f32
    %34 = vector.broadcast %cst_15 : f32 to vector<8x1024xf32>
    %35 = arith.maximumf %33, %34 : vector<8x1024xf32>
    %c0_16 = arith.constant 0 : index
    %c0_17 = arith.constant 0 : index
    %36 = vector.load %arg7[%c0_16, %c0_17] : memref<8x1024xf32, #tpu.memory_space<vmem>>, vector<8x1024xf32>
    %37 = arith.truncf %35 : vector<8x1024xf32> to vector<8x1024xbf16>
    %c0_18 = arith.constant 0 : index
    %c0_19 = arith.constant 0 : index
    %c0_20 = arith.constant 0 : index
    %38 = vector.load %arg4[%c0_18, %c0_19, %c0_20] : memref<1x1024x1024xbf16, #tpu.memory_space<vmem>>, vector<1x1024x1024xbf16>
    %39 = vector.shape_cast %38 : vector<1x1024x1024xbf16> to vector<1024x1024xbf16>
    %cst_21 = arith.constant dense<0.000000e+00> : vector<8x1024xf32>
    %40 = tpu.matmul %37, %39, %cst_21 {dimension_numbers = #tpu.dot_dimension_numbers<[1], [0], [0], [1], [0, 0, 1, 1], [], []>} : vector<8x1024xbf16>, vector<1024x1024xbf16>, vector<8x1024xf32> -> vector<8x1024xf32>
    %41 = arith.addf %36, %40 : vector<8x1024xf32>
    %c0_22 = arith.constant 0 : index
    %c0_23 = arith.constant 0 : index
    %42 = vector.load %arg7[%c0_22, %c0_23] : memref<8x1024xf32, #tpu.memory_space<vmem>>, vector<8x1024xf32>
    tpu.vector_store %arg7[%c0_22, %c0_23], %41 {strides = array<i32>} : memref<8x1024xf32, #tpu.memory_space<vmem>>, vector<8x1024xf32>,
    %c4_i32 = arith.constant 4 : i32
    %43 = arith.cmpi eq, %arg0, %c4_i32 : i32
    %44 = arith.extui %43 : i1 to i32
    %c0_i32_24 = arith.constant 0 : i32
    %45 = arith.cmpi ne, %44, %c0_i32_24 : i32
    scf.if %45 {
      %c0_25 = arith.constant 0 : index
      %c0_26 = arith.constant 0 : index
      %46 = vector.load %arg7[%c0_25, %c0_26] : memref<8x1024xf32, #tpu.memory_space<vmem>>, vector<8x1024xf32>
      %c0_27 = arith.constant 0 : index
      %c0_28 = arith.constant 0 : index
      %47 = vector.load %arg5[%c0_27, %c0_28] : memref<8x1024xf32, #tpu.memory_space<vmem>>, vector<1x1024xf32>
      %c1_29 = arith.constant 1 : index
      %c0_30 = arith.constant 0 : index
      %48 = vector.load %arg5[%c1_29, %c0_30] : memref<8x1024xf32, #tpu.memory_space<vmem>>, vector<1x1024xf32>
      %cst_31 = arith.constant dense<0.000000e+00> : vector<1024xf32>
      %49 = vector.multi_reduction <add>, %46, %cst_31 [0] : vector<8x1024xf32> to vector<1024xf32>
      %50 = vector.shape_cast %49 : vector<1024xf32> to vector<1x1024xf32>
      %cst_32 = arith.constant 8.000000e+00 : f32
      %51 = vector.broadcast %cst_32 : f32 to vector<1x1024xf32>
      %52 = arith.divf %50, %51 : vector<1x1024xf32>
      %53 = vector.broadcast %52 : vector<1x1024xf32> to vector<8x1024xf32>
      %54 = arith.subf %46, %53 : vector<8x1024xf32>
      %55 = arith.mulf %54, %54 : vector<8x1024xf32>
      %cst_33 = arith.constant dense<0.000000e+00> : vector<1024xf32>
      %56 = vector.multi_reduction <add>, %55, %cst_33 [0] : vector<8x1024xf32> to vector<1024xf32>
      %57 = vector.shape_cast %56 : vector<1024xf32> to vector<1x1024xf32>
      %cst_34 = arith.constant 8.000000e+00 : f32
      %58 = vector.broadcast %cst_34 : f32 to vector<1x1024xf32>
      %59 = arith.divf %57, %58 : vector<1x1024xf32>
      %60 = vector.broadcast %52 : vector<1x1024xf32> to vector<8x1024xf32>
      %61 = arith.subf %46, %60 : vector<8x1024xf32>
      %cst_35 = arith.constant 9.99999974E-6 : f32
      %62 = vector.broadcast %cst_35 : f32 to vector<1x1024xf32>
      %63 = arith.addf %59, %62 : vector<1x1024xf32>
      %64 = math.rsqrt %63 : vector<1x1024xf32>
      %65 = vector.broadcast %64 : vector<1x1024xf32> to vector<8x1024xf32>
      %66 = arith.mulf %61, %65 : vector<8x1024xf32>
      %67 = vector.broadcast %47 : vector<1x1024xf32> to vector<8x1024xf32>
      %68 = arith.mulf %66, %67 : vector<8x1024xf32>
      %69 = vector.broadcast %48 : vector<1x1024xf32> to vector<8x1024xf32>
      %70 = arith.addf %68, %69 : vector<8x1024xf32>
      %cst_36 = arith.constant 0.000000e+00 : f32
      %71 = vector.broadcast %cst_36 : f32 to vector<8x1024xf32>
      %72 = arith.maximumf %70, %71 : vector<8x1024xf32>
      %c0_37 = arith.constant 0 : index
      %c0_38 = arith.constant 0 : index
      %73 = vector.load %arg6[%c0_37, %c0_38] : memref<8x1024xf32, #tpu.memory_space<vmem>>, vector<8x1024xf32>
      tpu.vector_store %arg6[%c0_37, %c0_38], %72 {strides = array<i32>} : memref<8x1024xf32, #tpu.memory_space<vmem>>, vector<8x1024xf32>,
    } else {
    }
    return
  }
  func.func @transform_0(%arg0: i32) -> (i32, i32) {
    %c0_i32 = arith.constant 0 : i32
    %c0_i32_0 = arith.constant 0 : i32
    %c0_i32_1 = arith.constant 0 : i32
    return %c0_i32, %c0_i32_0 : i32, i32
  }
  func.func @transform_1(%arg0: i32) -> (i32, i32, i32) {
    %c0_i32 = arith.constant 0 : i32
    %c0_i32_0 = arith.constant 0 : i32
    %c0_i32_1 = arith.constant 0 : i32
    return %arg0, %c0_i32, %c0_i32_0 : i32, i32, i32
  }
  func.func @transform_2(%arg0: i32) -> (i32, i32, i32) {
    %c0_i32 = arith.constant 0 : i32
    %c0_i32_0 = arith.constant 0 : i32
    %c0_i32_1 = arith.constant 0 : i32
    return %arg0, %c0_i32, %c0_i32_0 : i32, i32, i32
  }
  func.func @transform_3(%arg0: i32) -> (i32, i32, i32) {
    %c0_i32 = arith.constant 0 : i32
    %c0_i32_0 = arith.constant 0 : i32
    %c0_i32_1 = arith.constant 0 : i32
    return %arg0, %c0_i32, %c0_i32_0 : i32, i32, i32
  }
  func.func @transform_4(%arg0: i32) -> (i32, i32) {
    %c0_i32 = arith.constant 0 : i32
    %c0_i32_0 = arith.constant 0 : i32
    %c0_i32_1 = arith.constant 0 : i32
    return %c0_i32, %c0_i32_0 : i32, i32
  }
  func.func @transform_5(%arg0: i32) -> (i32, i32) {
    %c0_i32 = arith.constant 0 : i32
    %c0_i32_0 = arith.constant 0 : i32
    %c0_i32_1 = arith.constant 0 : i32
    return %c0_i32, %c0_i32_0 : i32, i32
  }
}

</mosaic_0001>

<llo_original>
// kernel: network_forward.3
$region0: #{network_forward.3}
  #allocation0 [shape = 'u32[]', space=smem, size = 0x4, offset = 0x4, fixed_abs, tag = 'smem constant byte address 0x4 - core index']
  #allocation1 [shape = 'u32[144,128]{1,0:T(1,128)}', space=vmem, size = 0x12000, scoped, tag = 'internal scratch']
  #allocation2 [shape = 'f32[8,1024]{1,0:T(8,128)}', space=vmem, size = 0x8000, scoped, tag = 'scratch operand']
  #allocation3 [shape = 'f32[8,1024]{1,0:T(8,128)}', space=vmem, size = 0x8000, scoped, tag = 'scratch operand']
  %s0 = inlined_call_operand.vmem [shape: f32[8,1024], index: 0, kind: input, shape index: {}]
  %s1 = inlined_call_operand.vmem [shape: bf16[4,2,1024,512], index: 1, kind: input, shape index: {}]
  %s2 = inlined_call_operand.vmem [shape: f32[4,2,8,512], index: 2, kind: input, shape index: {}]
  %s3 = inlined_call_operand.hbm [shape: bf16[4,2,512,1024], index: 3, kind: input, shape index: {}]
  %s4 = inlined_call_operand.vmem [shape: f32[4,8,1024], index: 4, kind: input, shape index: {}]
  %s5 = inlined_call_operand.vmem [shape: bf16[1024,128], index: 5, kind: input, shape index: {}]
  %s6 = inlined_call_operand.vmem [shape: f32[1,128], index: 6, kind: input, shape index: {}]
  %s7 = inlined_call_operand.hbm [shape: f32[8,128], index: 7, kind: output, shape index: {}]
  %s8 = sld [smem:[#allocation0]]
  $region81: #{network_forward.3} parent=0
    _
  %s10 = ssub.s32 1, %s8
  %s11 = scalar_select 0, %s10, %s8
  $region1: #{network_forward.3} parent=0
    #allocation4 [shape = 'u8[2097152]{0}', space=vmem, size = 0x200000, scoped, tag = 'input window, operand 3']
    #allocation5 [shape = 's32[2]{0}', space=sflag, size = 0x8, scoped, tag = 'scoped memory for network_forward.3']
    #allocation6 [shape = 's32[2]{0}', space=sflag, size = 0x8, scoped, tag = 'scoped memory for network_forward.3']
    #allocation7 [shape = 'u8[4096]{0}', space=vmem, size = 0x1000, scoped, tag = 'output window, operand 0, single buffered']
    %12 = vsyncpa [#allocation5], 0
    %s13 = scalar_lea.sflag [#allocation5], 1
    %14 = vsyncpa %s13, 0
    %15 = vsyncpa [#allocation6], 0
    loop: start=0, step=1, limit=10
    $region2: #{network_forward.3} parent=1 // loop_pre_header
      _
    $region3: #{network_forward.3} parent=1 // loop_header
      %s17 = sphi 0, %s21
      %p18 = scmp.ge.s32.totalorder %s17, 10
      %s24 = sphi 0, %s36
      %s25 = sphi 0, %s32
      %s26 = sphi 0, %s24
      %s27 = sphi 0, %s25
      %s28 = sphi 0, %s26
      %s29 = sphi 0, %s27
      %s37 = sphi 0, %s37
      %s39 = sphi 0, %s37
      %s40 = sphi 0, %s39
      %s54 = sphi 0, %s40
      %s62 = sphi 0, %s64
      %s65 = sphi 0, %s62
      %s66 = sphi 0, %s65
      %s82 = sphi 0, %s66
      %s90 = sphi 0, %s92
      %s93 = sphi 0, %s90
      %s94 = sphi 0, %s93
      %s110 = sphi 0, %s94
      %s118 = sphi 0, %s120
      %s121 = sphi 0, %s118
      %s122 = sphi 0, %s121
      %s138 = sphi 0, %s122
      %s144 = sphi 0, %s146
      %s147 = sphi 0, %s144
      %s148 = sphi 0, %s147
      %s164 = sphi 0, %s148
      %s168 = sphi 0, %s168
      %s170 = sphi 0, %s168
      %s171 = sphi 0, %s170
      %s185 = sphi 0, %s171
      %s189 = sphi 0, %s189
      %s191 = sphi 0, %s189
      %s192 = sphi 0, %s191
      %s206 = sphi 0, %s192
      %s210 = sphi 0, %s210
      %s212 = sphi 0, %s210
      %s213 = sphi 0, %s212
      %s227 = sphi 0, %s213
    $region4: #{network_forward.3} parent=1 // loop_header_branch
      %20 = sbr.rel (%p18) target = $region8
    $region5: #{network_forward.3} parent=1 // loop_body
      %s22 = ssub.s32 %s17, 1
      %s23 = ssub.s32 %s17, 2
      %s30 = sadd.s32 1, %s25
      %p31 = scmp.ge.s32.totalorder %s30, 2
      %s32 = scalar_select %p31, 0, %s30
      %s33 = sadd.s32 1, %s24
      %s34 = scalar_select %p31, %s33, %s24
      %p35 = scmp.ge.s32.totalorder %s34, 4
      %s36 = scalar_select %p35, 0, %s34
      %s38 = sadd.s32 %s37, 1
      %p41 = scmp.eq.s32.totalorder %s17, 7
      %p42 = scmp.ne.s32.totalorder %s37, %s39
      %p43 = scmp.eq.s32.totalorder %s17, 0
      %p44 = por %p42, %p43
      %p45 = scmp.ne.s32.totalorder %s37, %s39
      %p46 = scmp.eq.s32.totalorder %s22, 7
      %p47 = por %p45, %p46
      %p48 = scmp.ne.s32.totalorder %s39, %s40
      %p49 = scmp.eq.s32.totalorder %s22, 0
      %p50 = por %p48, %p49
      %p51 = scmp.ne.s32.totalorder %s39, %s40
      %p52 = scmp.eq.s32.totalorder %s23, 7
      %p53 = por %p51, %p52
      %p55 = scmp.ne.s32.totalorder %s40, %s54
      %p56 = scmp.eq.s32.totalorder %s23, 0
      %p57 = por %p55, %p56
      %s58 = ssub.s32 %s24, %s36
      %s59 = ssub.s32 %s25, %s32
      %s60 = sor.u32 %s58, %s59
      %p61 = scmp.eq.s32.totalorder %s60, 0
      %s63 = sadd.s32 %s62, 1
      %s64 = scalar_select %p61, %s62, %s63
      %p67 = pneg %p61
      %p68 = scmp.eq.s32.totalorder %s17, 7
      %p69 = por %p67, %p68
      %p70 = scmp.ne.s32.totalorder %s62, %s65
      %p71 = scmp.eq.s32.totalorder %s17, 0
      %p72 = por %p70, %p71
      %p73 = scmp.ne.s32.totalorder %s62, %s65
      %p74 = scmp.eq.s32.totalorder %s22, 7
      %p75 = por %p73, %p74
      %p76 = scmp.ne.s32.totalorder %s65, %s66
      %p77 = scmp.eq.s32.totalorder %s22, 0
      %p78 = por %p76, %p77
      %p79 = scmp.ne.s32.totalorder %s65, %s66
      %p80 = scmp.eq.s32.totalorder %s23, 7
      %p81 = por %p79, %p80
      %p83 = scmp.ne.s32.totalorder %s66, %s82
      %p84 = scmp.eq.s32.totalorder %s23, 0
      %p85 = por %p83, %p84
      %s86 = ssub.s32 %s24, %s36
      %s87 = ssub.s32 %s25, %s32
      %s88 = sor.u32 %s86, %s87
      %p89 = scmp.eq.s32.totalorder %s88, 0
      %s91 = sadd.s32 %s90, 1
      %s92 = scalar_select %p89, %s90, %s91
      %p95 = pneg %p89
      %p96 = scmp.eq.s32.totalorder %s17, 7
      %p97 = por %p95, %p96
      %p98 = scmp.ne.s32.totalorder %s90, %s93
      %p99 = scmp.eq.s32.totalorder %s17, 0
      %p100 = por %p98, %p99
      %p101 = scmp.ne.s32.totalorder %s90, %s93
      %p102 = scmp.eq.s32.totalorder %s22, 7
      %p103 = por %p101, %p102
      %p104 = scmp.ne.s32.totalorder %s93, %s94
      %p105 = scmp.eq.s32.totalorder %s22, 0
      %p106 = por %p104, %p105
      %p107 = scmp.ne.s32.totalorder %s93, %s94
      %p108 = scmp.eq.s32.totalorder %s23, 7
      %p109 = por %p107, %p108
      %p111 = scmp.ne.s32.totalorder %s94, %s110
      %p112 = scmp.eq.s32.totalorder %s23, 0
      %p113 = por %p111, %p112
      %s114 = ssub.s32 %s24, %s36
      %s115 = ssub.s32 %s25, %s32
      %s116 = sor.u32 %s114, %s115
      %p117 = scmp.eq.s32.totalorder %s116, 0
      %s119 = sadd.s32 %s118, 1
      %s120 = scalar_select %p117, %s118, %s119
      %p123 = pneg %p117
      %p124 = scmp.eq.s32.totalorder %s17, 7
      %p125 = por %p123, %p124
      %p126 = scmp.ne.s32.totalorder %s118, %s121
      %p127 = scmp.eq.s32.totalorder %s17, 0
      %p128 = por %p126, %p127
      %p129 = scmp.ne.s32.totalorder %s118, %s121
      %p130 = scmp.eq.s32.totalorder %s22, 7
      %p131 = por %p129, %p130
      %p132 = scmp.ne.s32.totalorder %s121, %s122
      %p133 = scmp.eq.s32.totalorder %s22, 0
      %p134 = por %p132, %p133
      %p135 = scmp.ne.s32.totalorder %s121, %s122
      %p136 = scmp.eq.s32.totalorder %s23, 7
      %p137 = por %p135, %p136
      %p139 = scmp.ne.s32.totalorder %s122, %s138
      %p140 = scmp.eq.s32.totalorder %s23, 0
      %p141 = por %p139, %p140
      %s142 = ssub.s32 %s24, %s36
      %p143 = scmp.eq.s32.totalorder %s142, 0
      %s145 = sadd.s32 %s144, 1
      %s146 = scalar_select %p143, %s144, %s145
      %p149 = pneg %p143
      %p150 = scmp.eq.s32.totalorder %s17, 7
      %p151 = por %p149, %p150
      %p152 = scmp.ne.s32.totalorder %s144, %s147
      %p153 = scmp.eq.s32.totalorder %s17, 0
      %p154 = por %p152, %p153
      %p155 = scmp.ne.s32.totalorder %s144, %s147
      %p156 = scmp.eq.s32.totalorder %s22, 7
      %p157 = por %p155, %p156
      %p158 = scmp.ne.s32.totalorder %s147, %s148
      %p159 = scmp.eq.s32.totalorder %s22, 0
      %p160 = por %p158, %p159
      %p161 = scmp.ne.s32.totalorder %s147, %s148
      %p162 = scmp.eq.s32.totalorder %s23, 7
      %p163 = por %p161, %p162
      %p165 = scmp.ne.s32.totalorder %s148, %s164
      %p166 = scmp.eq.s32.totalorder %s23, 0
      %p167 = por %p165, %p166
      %s169 = sadd.s32 %s168, 1
      %p172 = scmp.eq.s32.totalorder %s17, 7
      %p173 = scmp.ne.s32.totalorder %s168, %s170
      %p174 = scmp.eq.s32.totalorder %s17, 0
      %p175 = por %p173, %p174
      %p176 = scmp.ne.s32.totalorder %s168, %s170
      %p177 = scmp.eq.s32.totalorder %s22, 7
      %p178 = por %p176, %p177
      %p179 = scmp.ne.s32.totalorder %s170, %s171
      %p180 = scmp.eq.s32.totalorder %s22, 0
      %p181 = por %p179, %p180
      %p182 = scmp.ne.s32.totalorder %s170, %s171
      %p183 = scmp.eq.s32.totalorder %s23, 7
      %p184 = por %p182, %p183
      %p186 = scmp.ne.s32.totalorder %s171, %s185
      %p187 = scmp.eq.s32.totalorder %s23, 0
      %p188 = por %p186, %p187
      %s190 = sadd.s32 %s189, 1
      %p193 = scmp.eq.s32.totalorder %s17, 7
      %p194 = scmp.ne.s32.totalorder %s189, %s191
      %p195 = scmp.eq.s32.totalorder %s17, 0
      %p196 = por %p194, %p195
      %p197 = scmp.ne.s32.totalorder %s189, %s191
      %p198 = scmp.eq.s32.totalorder %s22, 7
      %p199 = por %p197, %p198
      %p200 = scmp.ne.s32.totalorder %s191, %s192
      %p201 = scmp.eq.s32.totalorder %s22, 0
      %p202 = por %p200, %p201
      %p203 = scmp.ne.s32.totalorder %s191, %s192
      %p204 = scmp.eq.s32.totalorder %s23, 7
      %p205 = por %p203, %p204
      %p207 = scmp.ne.s32.totalorder %s192, %s206
      %p208 = scmp.eq.s32.totalorder %s23, 0
      %p209 = por %p207, %p208
      %s211 = sadd.s32 %s210, 1
      %p214 = scmp.eq.s32.totalorder %s17, 7
      %p215 = scmp.ne.s32.totalorder %s210, %s212
      %p216 = scmp.eq.s32.totalorder %s17, 0
      %p217 = por %p215, %p216
      %p218 = scmp.ne.s32.totalorder %s210, %s212
      %p219 = scmp.eq.s32.totalorder %s22, 7
      %p220 = por %p218, %p219
      %p221 = scmp.ne.s32.totalorder %s212, %s213
      %p222 = scmp.eq.s32.totalorder %s22, 0
      %p223 = por %p221, %p222
      %p224 = scmp.ne.s32.totalorder %s212, %s213
      %p225 = scmp.eq.s32.totalorder %s23, 7
      %p226 = por %p224, %p225
      %p228 = scmp.ne.s32.totalorder %s213, %s227
      %p229 = scmp.eq.s32.totalorder %s23, 0
      %p230 = por %p228, %p229
      %p231 = scmp.le.s32.totalorder 1, %s17
      %p232 = scmp.lt.s32.totalorder %s17, 9
      %p233 = pnand %p231, %p232
      %p234 = pneg %p233
      // Predicated region
      $region9: #{network_forward.3} parent=5 // pred_check
        _
      $region10: #{network_forward.3} parent=5 // pred_check_branch
        %236 = sbr.rel (%p233) target = $region12
      $region11: #{network_forward.3} parent=5 // pred_region
        %s237 = ssub.s32 %s17, 1
        // Predicated region
        $region13: #{network_forward.3} parent=11 // pred_check
          %p238 = pneg %p50
        $region14: #{network_forward.3} parent=11 // pred_check_branch
          %240 = sbr.rel (%p238) target = $region16
        $region15: #{network_forward.3} parent=11 // pred_region
          _
        $region16: #{network_forward.3} parent=11 // pred_fallthru
          _
        // Predicated region
        $region17: #{network_forward.3} parent=11 // pred_check
          %p241 = pneg %p181
        $region18: #{network_forward.3} parent=11 // pred_check_branch
          %243 = sbr.rel (%p241) target = $region20
        $region19: #{network_forward.3} parent=11 // pred_region
          _
        $region20: #{network_forward.3} parent=11 // pred_fallthru
          _
        // Predicated region
        $region21: #{network_forward.3} parent=11 // pred_check
          %p244 = pneg %p202
        $region22: #{network_forward.3} parent=11 // pred_check_branch
          %246 = sbr.rel (%p244) target = $region24
        $region23: #{network_forward.3} parent=11 // pred_region
          _
        $region24: #{network_forward.3} parent=11 // pred_fallthru
          _
      $region12: #{network_forward.3} parent=5 // pred_fallthru
        _
      %p247 = scmp.lt.s32.totalorder %s17, 8
      // Predicated region
      $region25: #{network_forward.3} parent=5 // pred_check
        %p248 = pneg %p247
      $region26: #{network_forward.3} parent=5 // pred_check_branch
        %250 = sbr.rel (%p248) target = $region28
      $region27: #{network_forward.3} parent=5 // pred_region
        // Predicated region
        $region29: #{network_forward.3} parent=27 // pred_check
          %p251 = pneg %p72
        $region30: #{network_forward.3} parent=27 // pred_check_branch
          %253 = sbr.rel (%p251) target = $region32
        $region31: #{network_forward.3} parent=27 // pred_region
          %p254 = scmp.lt.s32.totalorder %s24, 3
          %s255 = scalar_select %p254, %s24, 3
          %p256 = scmp.lt.s32.totalorder %s25, 1
          %s257 = scalar_select %p256, %s25, 1
          %s258 = smul.addr %s257, 512
          %s259 = smul.addr %s255, 1024
          %s260 = sadd.s32 %s258, %s259
          %s261 = smul.addr %s260, 4
          %s262 = scalar_lea.vmem %s1, %s261
        $region32: #{network_forward.3} parent=27 // pred_fallthru
          _
        // Predicated region
        $region33: #{network_forward.3} parent=27 // pred_check
          %p263 = pneg %p100
        $region34: #{network_forward.3} parent=27 // pred_check_branch
          %265 = sbr.rel (%p263) target = $region36
        $region35: #{network_forward.3} parent=27 // pred_region
          %p266 = scmp.lt.s32.totalorder %s24, 3
          %s267 = scalar_select %p266, %s24, 3
          %p268 = scmp.lt.s32.totalorder %s25, 1
          %s269 = scalar_select %p268, %s25, 1
          %s270 = smul.addr %s269, 4
          %s271 = smul.addr %s267, 8
          %s272 = sadd.s32 %s270, %s271
          %s273 = smul.addr %s272, 8
          %s274 = scalar_lea.vmem %s2, %s273
        $region36: #{network_forward.3} parent=27 // pred_fallthru
          _
        // Predicated region
        $region37: #{network_forward.3} parent=27 // pred_check
          %p275 = pneg %p128
        $region38: #{network_forward.3} parent=27 // pred_check_branch
          %277 = sbr.rel (%p275) target = $region40
        $region39: #{network_forward.3} parent=27 // pred_region
          %s278 = sand.u32 %s118, 1
          %s279 = scalar_lea.sflag [#allocation5], %s278
          %s280 = sand.u32 %s118, 1
          %s281 = smul.addr %s280, 2048
          %s282 = scalar_lea.vmem [#allocation4], %s281
          %s284 = ssub.s32 32768, 32768
          %285 = vsyncadd %s279, %s284
          %s286 = smul.addr %s25, 512
          %s287 = smul.addr %s24, 1024
          %s288 = sadd.s32 %s286, %s287
          %s289 = smul.addr %s288, 64
          %s290 = scalar_lea.hbm %s3, %s289
          %s291 = sshll.u32 %s282, 4
          %s292 = int_to_ptr.vmem [resolvable:$true] %s291
          %297 = dma.hbm_to_vmem [thread:$0]  %s290, 32768, %s292, %s279, 512, 512, 32
        $region40: #{network_forward.3} parent=27 // pred_fallthru
          _
        // Predicated region
        $region41: #{network_forward.3} parent=27 // pred_check
          %p298 = pneg %p154
        $region42: #{network_forward.3} parent=27 // pred_check_branch
          %300 = sbr.rel (%p298) target = $region44
        $region43: #{network_forward.3} parent=27 // pred_region
          %p301 = scmp.lt.s32.totalorder %s24, 3
          %s302 = scalar_select %p301, %s24, 3
          %s303 = smul.addr %s302, 8
          %s304 = smul.addr %s303, 8
          %s305 = scalar_lea.vmem %s4, %s304
        $region44: #{network_forward.3} parent=27 // pred_fallthru
          _
      $region28: #{network_forward.3} parent=5 // pred_fallthru
        _
      %p306 = scmp.le.s32.totalorder 1, %s17
      %p307 = scmp.lt.s32.totalorder %s17, 9
      %p308 = pnand %p306, %p307
      %p309 = pneg %p308
      // Predicated region
      $region45: #{network_forward.3} parent=5 // pred_check
        _
      $region46: #{network_forward.3} parent=5 // pred_check_branch
        %311 = sbr.rel (%p308) target = $region48
      $region47: #{network_forward.3} parent=5 // pred_region
        %s312 = ssub.s32 %s17, 1
        %s313 = sand.u32 %s121, 1
        %s314 = scalar_lea.sflag [#allocation5], %s313
        %s315 = sand.u32 %s121, 1
        %s316 = smul.addr %s315, 2048
        %s317 = scalar_lea.vmem [#allocation4], %s316
        // Predicated region
        $region49: #{network_forward.3} parent=47 // pred_check
          %p318 = pneg %p134
        $region50: #{network_forward.3} parent=47 // pred_check_branch
          %320 = sbr.rel (%p318) target = $region52
        $region51: #{network_forward.3} parent=47 // pred_region
          %321 = dma.done %s314, 32768
        $region52: #{network_forward.3} parent=47 // pred_fallthru
          _
        %p322 = pneg %p50
        %p323 = pneg %p47
        %p324 = scmp.lt.s32.totalorder %s26, 3
        %s325 = scalar_select %p324, %s26, 3
        %p326 = scmp.lt.s32.totalorder %s27, 1
        %s327 = scalar_select %p326, %s27, 1
        %s328 = smul.addr %s327, 512
        %s329 = smul.addr %s325, 1024
        %s330 = sadd.s32 %s328, %s329
        %s331 = smul.addr %s330, 4
        %s332 = scalar_lea.vmem %s1, %s331
        %p333 = pneg %p78
        %p334 = pneg %p75
        %p335 = scmp.lt.s32.totalorder %s26, 3
        %s336 = scalar_select %p335, %s26, 3
        %p337 = scmp.lt.s32.totalorder %s27, 1
        %s338 = scalar_select %p337, %s27, 1
        %s339 = smul.addr %s338, 4
        %s340 = smul.addr %s336, 8
        %s341 = sadd.s32 %s339, %s340
        %s342 = smul.addr %s341, 8
        %s343 = scalar_lea.vmem %s2, %s342
        %p344 = pneg %p106
        %p345 = pneg %p103
        %s346 = sand.u32 %s121, 1
        %s347 = scalar_lea.sflag [#allocation5], %s346
        %s348 = sand.u32 %s121, 1
        %s349 = smul.addr %s348, 2048
        %s350 = scalar_lea.vmem [#allocation4], %s349
        %p351 = pneg %p134
        %p352 = pneg %p131
        %p353 = scmp.lt.s32.totalorder %s26, 3
        %s354 = scalar_select %p353, %s26, 3
        %s355 = smul.addr %s354, 8
        %s356 = smul.addr %s355, 8
        %s357 = scalar_lea.vmem %s4, %s356
        %p358 = pneg %p160
        %p359 = pneg %p157
        %p360 = pneg %p181
        %p361 = pneg %p178
        %p362 = pneg %p202
        %p363 = pneg %p199
        %p364 = pneg %p223
        %p365 = pneg %p220
        %p366 = scmp.lt.s32.totalorder %s26, 3
        %s367 = scalar_select %p366, %s26, 3
        %p368 = scmp.lt.s32.totalorder %s27, 1
        %s369 = scalar_select %p368, %s27, 1
        %s370 = smul.addr %s369, 512
        %s371 = smul.addr %s367, 1024
        %s372 = sadd.s32 %s370, %s371
        %s373 = smul.addr %s372, 4
        %s374 = scalar_lea.vmem %s1, %s373
        %p375 = scmp.lt.s32.totalorder %s26, 3
        %s376 = scalar_select %p375, %s26, 3
        %p377 = scmp.lt.s32.totalorder %s27, 1
        %s378 = scalar_select %p377, %s27, 1
        %s379 = smul.addr %s378, 4
        %s380 = smul.addr %s376, 8
        %s381 = sadd.s32 %s379, %s380
        %s382 = smul.addr %s381, 8
        %s383 = scalar_lea.vmem %s2, %s382
        %p384 = scmp.lt.s32.totalorder %s26, 3
        %s385 = scalar_select %p384, %s26, 3
        %s386 = smul.addr %s385, 8
        %s387 = smul.addr %s386, 8
        %s388 = scalar_lea.vmem %s4, %s387
        %p390 = scmp.eq.s32.totalorder %s26, 0
        %p391 = scmp.eq.s32.totalorder %s27, 0
        %p392 = pnand %p390, %p391
        %p393 = pneg %p392
        // Predicated region
        $region53: #{network_forward.3} parent=47 // pred_check
          _
        $region54: #{network_forward.3} parent=47 // pred_check_branch
          %395 = sbr.rel (%p392) target = $region56
        $region55: #{network_forward.3} parent=47 // pred_region
          %v396 = vld [vmem:[%s0] sm:$0xff]
          %v397 = vld [vmem:[%s0 + $0x8] sm:$0xff]
          %v398 = vld [vmem:[%s0 + $0x10] sm:$0xff]
          %v399 = vld [vmem:[%s0 + $0x18] sm:$0xff]
          %v400 = vld [vmem:[%s0 + $0x20] sm:$0xff]
          %v401 = vld [vmem:[%s0 + $0x28] sm:$0xff]
          %v402 = vld [vmem:[%s0 + $0x30] sm:$0xff]
          %v403 = vld [vmem:[%s0 + $0x38] sm:$0xff]
          %404 = vst [vmem:[#allocation2] sm:$0xff] %v396
          %405 = vst [vmem:[#allocation2 + $0x8] sm:$0xff] %v397
          %406 = vst [vmem:[#allocation2 + $0x10] sm:$0xff] %v398
          %407 = vst [vmem:[#allocation2 + $0x18] sm:$0xff] %v399
          %408 = vst [vmem:[#allocation2 + $0x20] sm:$0xff] %v400
          %409 = vst [vmem:[#allocation2 + $0x28] sm:$0xff] %v401
          %410 = vst [vmem:[#allocation2 + $0x30] sm:$0xff] %v402
          %411 = vst [vmem:[#allocation2 + $0x38] sm:$0xff] %v403
        $region56: #{network_forward.3} parent=47 // pred_fallthru
          _
        // Predicated region
        $region57: #{network_forward.3} parent=47 // pred_check
          %p412 = pneg %p391
        $region58: #{network_forward.3} parent=47 // pred_check_branch
          %414 = sbr.rel (%p412) target = $region60
        $region59: #{network_forward.3} parent=47 // pred_region
          %415 = vst [vmem:[#allocation3] sm:$0xff] 0.0
          %416 = vst [vmem:[#allocation3 + $0x8] sm:$0xff] 0.0
          %417 = vst [vmem:[#allocation3 + $0x10] sm:$0xff] 0.0
          %418 = vst [vmem:[#allocation3 + $0x18] sm:$0xff] 0.0
          %419 = vst [vmem:[#allocation3 + $0x20] sm:$0xff] 0.0
          %420 = vst [vmem:[#allocation3 + $0x28] sm:$0xff] 0.0
          %421 = vst [vmem:[#allocation3 + $0x30] sm:$0xff] 0.0
          %422 = vst [vmem:[#allocation3 + $0x38] sm:$0xff] 0.0
        $region60: #{network_forward.3} parent=47 // pred_fallthru
          _
        %v423 = vld [vmem:[#allocation2] sm:$0xff]
        %v424 = vld [vmem:[#allocation2 + $0x8] sm:$0xff]
        %v425 = vld [vmem:[#allocation2 + $0x10] sm:$0xff]
        %v426 = vld [vmem:[#allocation2 + $0x18] sm:$0xff]
        %v427 = vld [vmem:[#allocation2 + $0x20] sm:$0xff]
        %v428 = vld [vmem:[#allocation2 + $0x28] sm:$0xff]
        %v429 = vld [vmem:[#allocation2 + $0x30] sm:$0xff]
        %v430 = vld [vmem:[#allocation2 + $0x38] sm:$0xff]
        %v431 = vpack.c.bf16 %v423, %v423
        %v432 = vpack.c.bf16 %v424, %v424
        %v433 = vpack.c.bf16 %v425, %v425
        %v434 = vpack.c.bf16 %v426, %v426
        %v435 = vpack.c.bf16 %v427, %v427
        %v436 = vpack.c.bf16 %v428, %v428
        %v437 = vpack.c.bf16 %v429, %v429
        %v438 = vpack.c.bf16 %v430, %v430
        %v439 = vld [vmem:[%s374] sm:$0xff]
        %v440 = vld [vmem:[%s374 + $0x8] sm:$0xff]
        %v441 = vld [vmem:[%s374 + $0x10] sm:$0xff]
        %v442 = vld [vmem:[%s374 + $0x18] sm:$0xff]
        %v443 = vld [vmem:[%s374 + $0x20] sm:$0xff]
        %v444 = vld [vmem:[%s374 + $0x28] sm:$0xff]
        %v445 = vld [vmem:[%s374 + $0x30] sm:$0xff]
        %v446 = vld [vmem:[%s374 + $0x38] sm:$0xff]
        %v447 = vld [vmem:[%s374 + $0x40] sm:$0xff]
        %v448 = vld [vmem:[%s374 + $0x48] sm:$0xff]
        %v449 = vld [vmem:[%s374 + $0x50] sm:$0xff]
        %v450 = vld [vmem:[%s374 + $0x58] sm:$0xff]
        %v451 = vld [vmem:[%s374 + $0x60] sm:$0xff]
        %v452 = vld [vmem:[%s374 + $0x68] sm:$0xff]
        %v453 = vld [vmem:[%s374 + $0x70] sm:$0xff]
        %v454 = vld [vmem:[%s374 + $0x78] sm:$0xff]
        %v455 = vld [vmem:[%s374 + $0x80] sm:$0xff]
        %v456 = vld [vmem:[%s374 + $0x88] sm:$0xff]
        %v457 = vld [vmem:[%s374 + $0x90] sm:$0xff]
        %v458 = vld [vmem:[%s374 + $0x98] sm:$0xff]
        %v459 = vld [vmem:[%s374 + $0xa0] sm:$0xff]
        %v460 = vld [vmem:[%s374 + $0xa8] sm:$0xff]
        %v461 = vld [vmem:[%s374 + $0xb0] sm:$0xff]
        %v462 = vld [vmem:[%s374 + $0xb8] sm:$0xff]
        %v463 = vld [vmem:[%s374 + $0xc0] sm:$0xff]
        %v464 = vld [vmem:[%s374 + $0xc8] sm:$0xff]
        %v465 = vld [vmem:[%s374 + $0xd0] sm:$0xff]
        %v466 = vld [vmem:[%s374 + $0xd8] sm:$0xff]
        %v467 = vld [vmem:[%s374 + $0xe0] sm:$0xff]
        %v468 = vld [vmem:[%s374 + $0xe8] sm:$0xff]
        %v469 = vld [vmem:[%s374 + $0xf0] sm:$0xff]
        %v470 = vld [vmem:[%s374 + $0xf8] sm:$0xff]
        %v471 = vld [vmem:[%s374 + $0x100] sm:$0xff]
        %v472 = vld [vmem:[%s374 + $0x108] sm:$0xff]
        %v473 = vld [vmem:[%s374 + $0x110] sm:$0xff]
        %v474 = vld [vmem:[%s374 + $0x118] sm:$0xff]
        %v475 = vld [vmem:[%s374 + $0x120] sm:$0xff]
        %v476 = vld [vmem:[%s374 + $0x128] sm:$0xff]
        %v477 = vld [vmem:[%s374 + $0x130] sm:$0xff]
        %v478 = vld [vmem:[%s374 + $0x138] sm:$0xff]
        %v479 = vld [vmem:[%s374 + $0x140] sm:$0xff]
        %v480 = vld [vmem:[%s374 + $0x148] sm:$0xff]
        %v481 = vld [vmem:[%s374 + $0x150] sm:$0xff]
        %v482 = vld [vmem:[%s374 + $0x158] sm:$0xff]
        %v483 = vld [vmem:[%s374 + $0x160] sm:$0xff]
        %v484 = vld [vmem:[%s374 + $0x168] sm:$0xff]
        %v485 = vld [vmem:[%s374 + $0x170] sm:$0xff]
        %v486 = vld [vmem:[%s374 + $0x178] sm:$0xff]
        %v487 = vld [vmem:[%s374 + $0x180] sm:$0xff]
        %v488 = vld [vmem:[%s374 + $0x188] sm:$0xff]
        %v489 = vld [vmem:[%s374 + $0x190] sm:$0xff]
        %v490 = vld [vmem:[%s374 + $0x198] sm:$0xff]
        %v491 = vld [vmem:[%s374 + $0x1a0] sm:$0xff]
        %v492 = vld [vmem:[%s374 + $0x1a8] sm:$0xff]
        %v493 = vld [vmem:[%s374 + $0x1b0] sm:$0xff]
        %v494 = vld [vmem:[%s374 + $0x1b8] sm:$0xff]
        %v495 = vld [vmem:[%s374 + $0x1c0] sm:$0xff]
        %v496 = vld [vmem:[%s374 + $0x1c8] sm:$0xff]
        %v497 = vld [vmem:[%s374 + $0x1d0] sm:$0xff]
        %v498 = vld [vmem:[%s374 + $0x1d8] sm:$0xff]
        %v499 = vld [vmem:[%s374 + $0x1e0] sm:$0xff]
        %v500 = vld [vmem:[%s374 + $0x1e8] sm:$0xff]
        %v501 = vld [vmem:[%s374 + $0x1f0] sm:$0xff]
        %v502 = vld [vmem:[%s374 + $0x1f8] sm:$0xff]
        %v503 = vld [vmem:[%s374 + $0x200] sm:$0xff]
        %v504 = vld [vmem:[%s374 + $0x208] sm:$0xff]
        %v505 = vld [vmem:[%s374 + $0x210] sm:$0xff]
        %v506 = vld [vmem:[%s374 + $0x218] sm:$0xff]
        %v507 = vld [vmem:[%s374 + $0x220] sm:$0xff]
        %v508 = vld [vmem:[%s374 + $0x228] sm:$0xff]
        %v509 = vld [vmem:[%s374 + $0x230] sm:$0xff]
        %v510 = vld [vmem:[%s374 + $0x238] sm:$0xff]
        %v511 = vld [vmem:[%s374 + $0x240] sm:$0xff]
        %v512 = vld [vmem:[%s374 + $0x248] sm:$0xff]
        %v513 = vld [vmem:[%s374 + $0x250] sm:$0xff]
        %v514 = vld [vmem:[%s374 + $0x258] sm:$0xff]
        %v515 = vld [vmem:[%s374 + $0x260] sm:$0xff]
        %v516 = vld [vmem:[%s374 + $0x268] sm:$0xff]
        %v517 = vld [vmem:[%s374 + $0x270] sm:$0xff]
        %v518 = vld [vmem:[%s374 + $0x278] sm:$0xff]
        %v519 = vld [vmem:[%s374 + $0x280] sm:$0xff]
        %v520 = vld [vmem:[%s374 + $0x288] sm:$0xff]
        %v521 = vld [vmem:[%s374 + $0x290] sm:$0xff]
        %v522 = vld [vmem:[%s374 + $0x298] sm:$0xff]
        %v523 = vld [vmem:[%s374 + $0x2a0] sm:$0xff]
        %v524 = vld [vmem:[%s374 + $0x2a8] sm:$0xff]
        %v525 = vld [vmem:[%s374 + $0x2b0] sm:$0xff]
        %v526 = vld [vmem:[%s374 + $0x2b8] sm:$0xff]
        %v527 = vld [vmem:[%s374 + $0x2c0] sm:$0xff]
        %v528 = vld [vmem:[%s374 + $0x2c8] sm:$0xff]
        %v529 = vld [vmem:[%s374 + $0x2d0] sm:$0xff]
        %v530 = vld [vmem:[%s374 + $0x2d8] sm:$0xff]
        %v531 = vld [vmem:[%s374 + $0x2e0] sm:$0xff]
        %v532 = vld [vmem:[%s374 + $0x2e8] sm:$0xff]
        %v533 = vld [vmem:[%s374 + $0x2f0] sm:$0xff]
        %v534 = vld [vmem:[%s374 + $0x2f8] sm:$0xff]
        %v535 = vld [vmem:[%s374 + $0x300] sm:$0xff]
        %v536 = vld [vmem:[%s374 + $0x308] sm:$0xff]
        %v537 = vld [vmem:[%s374 + $0x310] sm:$0xff]
        %v538 = vld [vmem:[%s374 + $0x318] sm:$0xff]
        %v539 = vld [vmem:[%s374 + $0x320] sm:$0xff]
        %v540 = vld [vmem:[%s374 + $0x328] sm:$0xff]
        %v541 = vld [vmem:[%s374 + $0x330] sm:$0xff]
        %v542 = vld [vmem:[%s374 + $0x338] sm:$0xff]
        %v543 = vld [vmem:[%s374 + $0x340] sm:$0xff]
        %v544 = vld [vmem:[%s374 + $0x348] sm:$0xff]
        %v545 = vld [vmem:[%s374 + $0x350] sm:$0xff]
        %v546 = vld [vmem:[%s374 + $0x358] sm:$0xff]
        %v547 = vld [vmem:[%s374 + $0x360] sm:$0xff]
        %v548 = vld [vmem:[%s374 + $0x368] sm:$0xff]
        %v549 = vld [vmem:[%s374 + $0x370] sm:$0xff]
        %v550 = vld [vmem:[%s374 + $0x378] sm:$0xff]
        %v551 = vld [vmem:[%s374 + $0x380] sm:$0xff]
        %v552 = vld [vmem:[%s374 + $0x388] sm:$0xff]
        %v553 = vld [vmem:[%s374 + $0x390] sm:$0xff]
        %v554 = vld [vmem:[%s374 + $0x398] sm:$0xff]
        %v555 = vld [vmem:[%s374 + $0x3a0] sm:$0xff]
        %v556 = vld [vmem:[%s374 + $0x3a8] sm:$0xff]
        %v557 = vld [vmem:[%s374 + $0x3b0] sm:$0xff]
        %v558 = vld [vmem:[%s374 + $0x3b8] sm:$0xff]
        %v559 = vld [vmem:[%s374 + $0x3c0] sm:$0xff]
        %v560 = vld [vmem:[%s374 + $0x3c8] sm:$0xff]
        %v561 = vld [vmem:[%s374 + $0x3d0] sm:$0xff]
        %v562 = vld [vmem:[%s374 + $0x3d8] sm:$0xff]
        %v563 = vld [vmem:[%s374 + $0x3e0] sm:$0xff]
        %v564 = vld [vmem:[%s374 + $0x3e8] sm:$0xff]
        %v565 = vld [vmem:[%s374 + $0x3f0] sm:$0xff]
        %v566 = vld [vmem:[%s374 + $0x3f8] sm:$0xff]
        %v567 = vld [vmem:[%s374 + $0x400] sm:$0xff]
        %v568 = vld [vmem:[%s374 + $0x408] sm:$0xff]
        %v569 = vld [vmem:[%s374 + $0x410] sm:$0xff]
        %v570 = vld [vmem:[%s374 + $0x418] sm:$0xff]
        %v571 = vld [vmem:[%s374 + $0x420] sm:$0xff]
        %v572 = vld [vmem:[%s374 + $0x428] sm:$0xff]
        %v573 = vld [vmem:[%s374 + $0x430] sm:$0xff]
        %v574 = vld [vmem:[%s374 + $0x438] sm:$0xff]
        %v575 = vld [vmem:[%s374 + $0x440] sm:$0xff]
        %v576 = vld [vmem:[%s374 + $0x448] sm:$0xff]
        %v577 = vld [vmem:[%s374 + $0x450] sm:$0xff]
        %v578 = vld [vmem:[%s374 + $0x458] sm:$0xff]
        %v579 = vld [vmem:[%s374 + $0x460] sm:$0xff]
        %v580 = vld [vmem:[%s374 + $0x468] sm:$0xff]
        %v581 = vld [vmem:[%s374 + $0x470] sm:$0xff]
        %v582 = vld [vmem:[%s374 + $0x478] sm:$0xff]
        %v583 = vld [vmem:[%s374 + $0x480] sm:$0xff]
        %v584 = vld [vmem:[%s374 + $0x488] sm:$0xff]
        %v585 = vld [vmem:[%s374 + $0x490] sm:$0xff]
        %v586 = vld [vmem:[%s374 + $0x498] sm:$0xff]
        %v587 = vld [vmem:[%s374 + $0x4a0] sm:$0xff]
        %v588 = vld [vmem:[%s374 + $0x4a8] sm:$0xff]
        %v589 = vld [vmem:[%s374 + $0x4b0] sm:$0xff]
        %v590 = vld [vmem:[%s374 + $0x4b8] sm:$0xff]
        %v591 = vld [vmem:[%s374 + $0x4c0] sm:$0xff]
        %v592 = vld [vmem:[%s374 + $0x4c8] sm:$0xff]
        %v593 = vld [vmem:[%s374 + $0x4d0] sm:$0xff]
        %v594 = vld [vmem:[%s374 + $0x4d8] sm:$0xff]
        %v595 = vld [vmem:[%s374 + $0x4e0] sm:$0xff]
        %v596 = vld [vmem:[%s374 + $0x4e8] sm:$0xff]
        %v597 = vld [vmem:[%s374 + $0x4f0] sm:$0xff]
        %v598 = vld [vmem:[%s374 + $0x4f8] sm:$0xff]
        %v599 = vld [vmem:[%s374 + $0x500] sm:$0xff]
        %v600 = vld [vmem:[%s374 + $0x508] sm:$0xff]
        %v601 = vld [vmem:[%s374 + $0x510] sm:$0xff]
        %v602 = vld [vmem:[%s374 + $0x518] sm:$0xff]
        %v603 = vld [vmem:[%s374 + $0x520] sm:$0xff]
        %v604 = vld [vmem:[%s374 + $0x528] sm:$0xff]
        %v605 = vld [vmem:[%s374 + $0x530] sm:$0xff]
        %v606 = vld [vmem:[%s374 + $0x538] sm:$0xff]
        %v607 = vld [vmem:[%s374 + $0x540] sm:$0xff]
        %v608 = vld [vmem:[%s374 + $0x548] sm:$0xff]
        %v609 = vld [vmem:[%s374 + $0x550] sm:$0xff]
        %v610 = vld [vmem:[%s374 + $0x558] sm:$0xff]
        %v611 = vld [vmem:[%s374 + $0x560] sm:$0xff]
        %v612 = vld [vmem:[%s374 + $0x568] sm:$0xff]
        %v613 = vld [vmem:[%s374 + $0x570] sm:$0xff]
        %v614 = vld [vmem:[%s374 + $0x578] sm:$0xff]
        %v615 = vld [vmem:[%s374 + $0x580] sm:$0xff]
        %v616 = vld [vmem:[%s374 + $0x588] sm:$0xff]
        %v617 = vld [vmem:[%s374 + $0x590] sm:$0xff]
        %v618 = vld [vmem:[%s374 + $0x598] sm:$0xff]
        %v619 = vld [vmem:[%s374 + $0x5a0] sm:$0xff]
        %v620 = vld [vmem:[%s374 + $0x5a8] sm:$0xff]
        %v621 = vld [vmem:[%s374 + $0x5b0] sm:$0xff]
        %v622 = vld [vmem:[%s374 + $0x5b8] sm:$0xff]
        %v623 = vld [vmem:[%s374 + $0x5c0] sm:$0xff]
        %v624 = vld [vmem:[%s374 + $0x5c8] sm:$0xff]
        %v625 = vld [vmem:[%s374 + $0x5d0] sm:$0xff]
        %v626 = vld [vmem:[%s374 + $0x5d8] sm:$0xff]
        %v627 = vld [vmem:[%s374 + $0x5e0] sm:$0xff]
        %v628 = vld [vmem:[%s374 + $0x5e8] sm:$0xff]
        %v629 = vld [vmem:[%s374 + $0x5f0] sm:$0xff]
        %v630 = vld [vmem:[%s374 + $0x5f8] sm:$0xff]
        %v631 = vld [vmem:[%s374 + $0x600] sm:$0xff]
        %v632 = vld [vmem:[%s374 + $0x608] sm:$0xff]
        %v633 = vld [vmem:[%s374 + $0x610] sm:$0xff]
        %v634 = vld [vmem:[%s374 + $0x618] sm:$0xff]
        %v635 = vld [vmem:[%s374 + $0x620] sm:$0xff]
        %v636 = vld [vmem:[%s374 + $0x628] sm:$0xff]
        %v637 = vld [vmem:[%s374 + $0x630] sm:$0xff]
        %v638 = vld [vmem:[%s374 + $0x638] sm:$0xff]
        %v639 = vld [vmem:[%s374 + $0x640] sm:$0xff]
        %v640 = vld [vmem:[%s374 + $0x648] sm:$0xff]
        %v641 = vld [vmem:[%s374 + $0x650] sm:$0xff]
        %v642 = vld [vmem:[%s374 + $0x658] sm:$0xff]
        %v643 = vld [vmem:[%s374 + $0x660] sm:$0xff]
        %v644 = vld [vmem:[%s374 + $0x668] sm:$0xff]
        %v645 = vld [vmem:[%s374 + $0x670] sm:$0xff]
        %v646 = vld [vmem:[%s374 + $0x678] sm:$0xff]
        %v647 = vld [vmem:[%s374 + $0x680] sm:$0xff]
        %v648 = vld [vmem:[%s374 + $0x688] sm:$0xff]
        %v649 = vld [vmem:[%s374 + $0x690] sm:$0xff]
        %v650 = vld [vmem:[%s374 + $0x698] sm:$0xff]
        %v651 = vld [vmem:[%s374 + $0x6a0] sm:$0xff]
        %v652 = vld [vmem:[%s374 + $0x6a8] sm:$0xff]
        %v653 = vld [vmem:[%s374 + $0x6b0] sm:$0xff]
        %v654 = vld [vmem:[%s374 + $0x6b8] sm:$0xff]
        %v655 = vld [vmem:[%s374 + $0x6c0] sm:$0xff]
        %v656 = vld [vmem:[%s374 + $0x6c8] sm:$0xff]
        %v657 = vld [vmem:[%s374 + $0x6d0] sm:$0xff]
        %v658 = vld [vmem:[%s374 + $0x6d8] sm:$0xff]
        %v659 = vld [vmem:[%s374 + $0x6e0] sm:$0xff]
        %v660 = vld [vmem:[%s374 + $0x6e8] sm:$0xff]
        %v661 = vld [vmem:[%s374 + $0x6f0] sm:$0xff]
        %v662 = vld [vmem:[%s374 + $0x6f8] sm:$0xff]
        %v663 = vld [vmem:[%s374 + $0x700] sm:$0xff]
        %v664 = vld [vmem:[%s374 + $0x708] sm:$0xff]
        %v665 = vld [vmem:[%s374 + $0x710] sm:$0xff]
        %v666 = vld [vmem:[%s374 + $0x718] sm:$0xff]
        %v667 = vld [vmem:[%s374 + $0x720] sm:$0xff]
        %v668 = vld [vmem:[%s374 + $0x728] sm:$0xff]
        %v669 = vld [vmem:[%s374 + $0x730] sm:$0xff]
        %v670 = vld [vmem:[%s374 + $0x738] sm:$0xff]
        %v671 = vld [vmem:[%s374 + $0x740] sm:$0xff]
        %v672 = vld [vmem:[%s374 + $0x748] sm:$0xff]
        %v673 = vld [vmem:[%s374 + $0x750] sm:$0xff]
        %v674 = vld [vmem:[%s374 + $0x758] sm:$0xff]
        %v675 = vld [vmem:[%s374 + $0x760] sm:$0xff]
        %v676 = vld [vmem:[%s374 + $0x768] sm:$0xff]
        %v677 = vld [vmem:[%s374 + $0x770] sm:$0xff]
        %v678 = vld [vmem:[%s374 + $0x778] sm:$0xff]
        %v679 = vld [vmem:[%s374 + $0x780] sm:$0xff]
        %v680 = vld [vmem:[%s374 + $0x788] sm:$0xff]
        %v681 = vld [vmem:[%s374 + $0x790] sm:$0xff]
        %v682 = vld [vmem:[%s374 + $0x798] sm:$0xff]
        %v683 = vld [vmem:[%s374 + $0x7a0] sm:$0xff]
        %v684 = vld [vmem:[%s374 + $0x7a8] sm:$0xff]
        %v685 = vld [vmem:[%s374 + $0x7b0] sm:$0xff]
        %v686 = vld [vmem:[%s374 + $0x7b8] sm:$0xff]
        %v687 = vld [vmem:[%s374 + $0x7c0] sm:$0xff]
        %v688 = vld [vmem:[%s374 + $0x7c8] sm:$0xff]
        %v689 = vld [vmem:[%s374 + $0x7d0] sm:$0xff]
        %v690 = vld [vmem:[%s374 + $0x7d8] sm:$0xff]
        %v691 = vld [vmem:[%s374 + $0x7e0] sm:$0xff]
        %v692 = vld [vmem:[%s374 + $0x7e8] sm:$0xff]
        %v693 = vld [vmem:[%s374 + $0x7f0] sm:$0xff]
        %v694 = vld [vmem:[%s374 + $0x7f8] sm:$0xff]
        %v951 = vunpack.c.l.b16 %v439
        %v952 = vunpack.c.h.b16 %v439
        %v953 = vunpack.c.l.b16 %v440
        %v954 = vunpack.c.h.b16 %v440
        %v955 = vunpack.c.l.b16 %v441
        %v956 = vunpack.c.h.b16 %v441
        %v957 = vunpack.c.l.b16 %v442
        %v958 = vunpack.c.h.b16 %v442
        %v959 = vunpack.c.l.b16 %v443
        %v960 = vunpack.c.h.b16 %v443
        %v961 = vunpack.c.l.b16 %v444
        %v962 = vunpack.c.h.b16 %v444
        %v963 = vunpack.c.l.b16 %v445
        %v964 = vunpack.c.h.b16 %v445
        %v965 = vunpack.c.l.b16 %v446
        %v966 = vunpack.c.h.b16 %v446
        %v967 = vunpack.c.l.b16 %v447
        %v968 = vunpack.c.h.b16 %v447
        %v969 = vunpack.c.l.b16 %v448
        %v970 = vunpack.c.h.b16 %v448
        %v971 = vunpack.c.l.b16 %v449
        %v972 = vunpack.c.h.b16 %v449
        %v973 = vunpack.c.l.b16 %v450
        %v974 = vunpack.c.h.b16 %v450
        %v975 = vunpack.c.l.b16 %v451
        %v976 = vunpack.c.h.b16 %v451
        %v977 = vunpack.c.l.b16 %v452
        %v978 = vunpack.c.h.b16 %v452
        %v979 = vunpack.c.l.b16 %v453
        %v980 = vunpack.c.h.b16 %v453
        %v981 = vunpack.c.l.b16 %v454
        %v982 = vunpack.c.h.b16 %v454
        %v983 = vunpack.c.l.b16 %v455
        %v984 = vunpack.c.h.b16 %v455
        %v985 = vunpack.c.l.b16 %v456
        %v986 = vunpack.c.h.b16 %v456
        %v987 = vunpack.c.l.b16 %v457
        %v988 = vunpack.c.h.b16 %v457
        %v989 = vunpack.c.l.b16 %v458
        %v990 = vunpack.c.h.b16 %v458
        %v991 = vunpack.c.l.b16 %v459
        %v992 = vunpack.c.h.b16 %v459
        %v993 = vunpack.c.l.b16 %v460
        %v994 = vunpack.c.h.b16 %v460
        %v995 = vunpack.c.l.b16 %v461
        %v996 = vunpack.c.h.b16 %v461
        %v997 = vunpack.c.l.b16 %v462
        %v998 = vunpack.c.h.b16 %v462
        %v999 = vunpack.c.l.b16 %v463
        %v1000 = vunpack.c.h.b16 %v463
        %v1001 = vunpack.c.l.b16 %v464
        %v1002 = vunpack.c.h.b16 %v464
        %v1003 = vunpack.c.l.b16 %v465
        %v1004 = vunpack.c.h.b16 %v465
        %v1005 = vunpack.c.l.b16 %v466
        %v1006 = vunpack.c.h.b16 %v466
        %v1007 = vunpack.c.l.b16 %v467
        %v1008 = vunpack.c.h.b16 %v467
        %v1009 = vunpack.c.l.b16 %v468
        %v1010 = vunpack.c.h.b16 %v468
        %v1011 = vunpack.c.l.b16 %v469
        %v1012 = vunpack.c.h.b16 %v469
        %v1013 = vunpack.c.l.b16 %v470
        %v1014 = vunpack.c.h.b16 %v470
        %v1015 = vunpack.c.l.b16 %v471
        %v1016 = vunpack.c.h.b16 %v471
        %v1017 = vunpack.c.l.b16 %v472
        %v1018 = vunpack.c.h.b16 %v472
        %v1019 = vunpack.c.l.b16 %v473
        %v1020 = vunpack.c.h.b16 %v473
        %v1021 = vunpack.c.l.b16 %v474
        %v1022 = vunpack.c.h.b16 %v474
        %v1023 = vunpack.c.l.b16 %v475
        %v1024 = vunpack.c.h.b16 %v475
        %v1025 = vunpack.c.l.b16 %v476
        %v1026 = vunpack.c.h.b16 %v476
        %v1027 = vunpack.c.l.b16 %v477
        %v1028 = vunpack.c.h.b16 %v477
        %v1029 = vunpack.c.l.b16 %v478
        %v1030 = vunpack.c.h.b16 %v478
        %v1031 = vunpack.c.l.b16 %v479
        %v1032 = vunpack.c.h.b16 %v479
        %v1033 = vunpack.c.l.b16 %v480
        %v1034 = vunpack.c.h.b16 %v480
        %v1035 = vunpack.c.l.b16 %v481
        %v1036 = vunpack.c.h.b16 %v481
        %v1037 = vunpack.c.l.b16 %v482
        %v1038 = vunpack.c.h.b16 %v482
        %v1039 = vunpack.c.l.b16 %v483
        %v1040 = vunpack.c.h.b16 %v483
        %v1041 = vunpack.c.l.b16 %v484
        %v1042 = vunpack.c.h.b16 %v484
        %v1043 = vunpack.c.l.b16 %v485
        %v1044 = vunpack.c.h.b16 %v485
        %v1045 = vunpack.c.l.b16 %v486
        %v1046 = vunpack.c.h.b16 %v486
        %v1047 = vunpack.c.l.b16 %v487
        %v1048 = vunpack.c.h.b16 %v487
        %v1049 = vunpack.c.l.b16 %v488
        %v1050 = vunpack.c.h.b16 %v488
        %v1051 = vunpack.c.l.b16 %v489
        %v1052 = vunpack.c.h.b16 %v489
        %v1053 = vunpack.c.l.b16 %v490
        %v1054 = vunpack.c.h.b16 %v490
        %v1055 = vunpack.c.l.b16 %v491
        %v1056 = vunpack.c.h.b16 %v491
        %v1057 = vunpack.c.l.b16 %v492
        %v1058 = vunpack.c.h.b16 %v492
        %v1059 = vunpack.c.l.b16 %v493
        %v1060 = vunpack.c.h.b16 %v493
        %v1061 = vunpack.c.l.b16 %v494
        %v1062 = vunpack.c.h.b16 %v494
        %v1063 = vunpack.c.l.b16 %v495
        %v1064 = vunpack.c.h.b16 %v495
        %v1065 = vunpack.c.l.b16 %v496
        %v1066 = vunpack.c.h.b16 %v496
        %v1067 = vunpack.c.l.b16 %v497
        %v1068 = vunpack.c.h.b16 %v497
        %v1069 = vunpack.c.l.b16 %v498
        %v1070 = vunpack.c.h.b16 %v498
        %v1071 = vunpack.c.l.b16 %v499
        %v1072 = vunpack.c.h.b16 %v499
        %v1073 = vunpack.c.l.b16 %v500
        %v1074 = vunpack.c.h.b16 %v500
        %v1075 = vunpack.c.l.b16 %v501
        %v1076 = vunpack.c.h.b16 %v501
        %v1077 = vunpack.c.l.b16 %v502
        %v1078 = vunpack.c.h.b16 %v502
        %v1079 = vunpack.c.l.b16 %v503
        %v1080 = vunpack.c.h.b16 %v503
        %v1081 = vunpack.c.l.b16 %v504
        %v1082 = vunpack.c.h.b16 %v504
        %v1083 = vunpack.c.l.b16 %v505
        %v1084 = vunpack.c.h.b16 %v505
        %v1085 = vunpack.c.l.b16 %v506
        %v1086 = vunpack.c.h.b16 %v506
        %v1087 = vunpack.c.l.b16 %v507
        %v1088 = vunpack.c.h.b16 %v507
        %v1089 = vunpack.c.l.b16 %v508
        %v1090 = vunpack.c.h.b16 %v508
        %v1091 = vunpack.c.l.b16 %v509
        %v1092 = vunpack.c.h.b16 %v509
        %v1093 = vunpack.c.l.b16 %v510
        %v1094 = vunpack.c.h.b16 %v510
        %v1095 = vunpack.c.l.b16 %v511
        %v1096 = vunpack.c.h.b16 %v511
        %v1097 = vunpack.c.l.b16 %v512
        %v1098 = vunpack.c.h.b16 %v512
        %v1099 = vunpack.c.l.b16 %v513
        %v1100 = vunpack.c.h.b16 %v513
        %v1101 = vunpack.c.l.b16 %v514
        %v1102 = vunpack.c.h.b16 %v514
        %v1103 = vunpack.c.l.b16 %v515
        %v1104 = vunpack.c.h.b16 %v515
        %v1105 = vunpack.c.l.b16 %v516
        %v1106 = vunpack.c.h.b16 %v516
        %v1107 = vunpack.c.l.b16 %v517
        %v1108 = vunpack.c.h.b16 %v517
        %v1109 = vunpack.c.l.b16 %v518
        %v1110 = vunpack.c.h.b16 %v518
        %v1111 = vunpack.c.l.b16 %v519
        %v1112 = vunpack.c.h.b16 %v519
        %v1113 = vunpack.c.l.b16 %v520
        %v1114 = vunpack.c.h.b16 %v520
        %v1115 = vunpack.c.l.b16 %v521
        %v1116 = vunpack.c.h.b16 %v521
        %v1117 = vunpack.c.l.b16 %v522
        %v1118 = vunpack.c.h.b16 %v522
        %v1119 = vunpack.c.l.b16 %v523
        %v1120 = vunpack.c.h.b16 %v523
        %v1121 = vunpack.c.l.b16 %v524
        %v1122 = vunpack.c.h.b16 %v524
        %v1123 = vunpack.c.l.b16 %v525
        %v1124 = vunpack.c.h.b16 %v525
        %v1125 = vunpack.c.l.b16 %v526
        %v1126 = vunpack.c.h.b16 %v526
        %v1127 = vunpack.c.l.b16 %v527
        %v1128 = vunpack.c.h.b16 %v527
        %v1129 = vunpack.c.l.b16 %v528
        %v1130 = vunpack.c.h.b16 %v528
        %v1131 = vunpack.c.l.b16 %v529
        %v1132 = vunpack.c.h.b16 %v529
        %v1133 = vunpack.c.l.b16 %v530
        %v1134 = vunpack.c.h.b16 %v530
        %v1135 = vunpack.c.l.b16 %v531
        %v1136 = vunpack.c.h.b16 %v531
        %v1137 = vunpack.c.l.b16 %v532
        %v1138 = vunpack.c.h.b16 %v532
        %v1139 = vunpack.c.l.b16 %v533
        %v1140 = vunpack.c.h.b16 %v533
        %v1141 = vunpack.c.l.b16 %v534
        %v1142 = vunpack.c.h.b16 %v534
        %v1143 = vunpack.c.l.b16 %v535
        %v1144 = vunpack.c.h.b16 %v535
        %v1145 = vunpack.c.l.b16 %v536
        %v1146 = vunpack.c.h.b16 %v536
        %v1147 = vunpack.c.l.b16 %v537
        %v1148 = vunpack.c.h.b16 %v537
        %v1149 = vunpack.c.l.b16 %v538
        %v1150 = vunpack.c.h.b16 %v538
        %v1151 = vunpack.c.l.b16 %v539
        %v1152 = vunpack.c.h.b16 %v539
        %v1153 = vunpack.c.l.b16 %v540
        %v1154 = vunpack.c.h.b16 %v540
        %v1155 = vunpack.c.l.b16 %v541
        %v1156 = vunpack.c.h.b16 %v541
        %v1157 = vunpack.c.l.b16 %v542
        %v1158 = vunpack.c.h.b16 %v542
        %v1159 = vunpack.c.l.b16 %v543
        %v1160 = vunpack.c.h.b16 %v543
        %v1161 = vunpack.c.l.b16 %v544
        %v1162 = vunpack.c.h.b16 %v544
        %v1163 = vunpack.c.l.b16 %v545
        %v1164 = vunpack.c.h.b16 %v545
        %v1165 = vunpack.c.l.b16 %v546
        %v1166 = vunpack.c.h.b16 %v546
        %v1167 = vunpack.c.l.b16 %v547
        %v1168 = vunpack.c.h.b16 %v547
        %v1169 = vunpack.c.l.b16 %v548
        %v1170 = vunpack.c.h.b16 %v548
        %v1171 = vunpack.c.l.b16 %v549
        %v1172 = vunpack.c.h.b16 %v549
        %v1173 = vunpack.c.l.b16 %v550
        %v1174 = vunpack.c.h.b16 %v550
        %v1175 = vunpack.c.l.b16 %v551
        %v1176 = vunpack.c.h.b16 %v551
        %v1177 = vunpack.c.l.b16 %v552
        %v1178 = vunpack.c.h.b16 %v552
        %v1179 = vunpack.c.l.b16 %v553
        %v1180 = vunpack.c.h.b16 %v553
        %v1181 = vunpack.c.l.b16 %v554
        %v1182 = vunpack.c.h.b16 %v554
        %v1183 = vunpack.c.l.b16 %v555
        %v1184 = vunpack.c.h.b16 %v555
        %v1185 = vunpack.c.l.b16 %v556
        %v1186 = vunpack.c.h.b16 %v556
        %v1187 = vunpack.c.l.b16 %v557
        %v1188 = vunpack.c.h.b16 %v557
        %v1189 = vunpack.c.l.b16 %v558
        %v1190 = vunpack.c.h.b16 %v558
        %v1191 = vunpack.c.l.b16 %v559
        %v1192 = vunpack.c.h.b16 %v559
        %v1193 = vunpack.c.l.b16 %v560
        %v1194 = vunpack.c.h.b16 %v560
        %v1195 = vunpack.c.l.b16 %v561
        %v1196 = vunpack.c.h.b16 %v561
        %v1197 = vunpack.c.l.b16 %v562
        %v1198 = vunpack.c.h.b16 %v562
        %v1199 = vunpack.c.l.b16 %v563
        %v1200 = vunpack.c.h.b16 %v563
        %v1201 = vunpack.c.l.b16 %v564
        %v1202 = vunpack.c.h.b16 %v564
        %v1203 = vunpack.c.l.b16 %v565
        %v1204 = vunpack.c.h.b16 %v565
        %v1205 = vunpack.c.l.b16 %v566
        %v1206 = vunpack.c.h.b16 %v566
        %v1207 = vunpack.c.l.b16 %v567
        %v1208 = vunpack.c.h.b16 %v567
        %v1209 = vunpack.c.l.b16 %v568
        %v1210 = vunpack.c.h.b16 %v568
        %v1211 = vunpack.c.l.b16 %v569
        %v1212 = vunpack.c.h.b16 %v569
        %v1213 = vunpack.c.l.b16 %v570
        %v1214 = vunpack.c.h.b16 %v570
        %v1215 = vunpack.c.l.b16 %v571
        %v1216 = vunpack.c.h.b16 %v571
        %v1217 = vunpack.c.l.b16 %v572
        %v1218 = vunpack.c.h.b16 %v572
        %v1219 = vunpack.c.l.b16 %v573
        %v1220 = vunpack.c.h.b16 %v573
        %v1221 = vunpack.c.l.b16 %v574
        %v1222 = vunpack.c.h.b16 %v574
        %v1223 = vunpack.c.l.b16 %v575
        %v1224 = vunpack.c.h.b16 %v575
        %v1225 = vunpack.c.l.b16 %v576
        %v1226 = vunpack.c.h.b16 %v576
        %v1227 = vunpack.c.l.b16 %v577
        %v1228 = vunpack.c.h.b16 %v577
        %v1229 = vunpack.c.l.b16 %v578
        %v1230 = vunpack.c.h.b16 %v578
        %v1231 = vunpack.c.l.b16 %v579
        %v1232 = vunpack.c.h.b16 %v579
        %v1233 = vunpack.c.l.b16 %v580
        %v1234 = vunpack.c.h.b16 %v580
        %v1235 = vunpack.c.l.b16 %v581
        %v1236 = vunpack.c.h.b16 %v581
        %v1237 = vunpack.c.l.b16 %v582
        %v1238 = vunpack.c.h.b16 %v582
        %v1239 = vunpack.c.l.b16 %v583
        %v1240 = vunpack.c.h.b16 %v583
        %v1241 = vunpack.c.l.b16 %v584
        %v1242 = vunpack.c.h.b16 %v584
        %v1243 = vunpack.c.l.b16 %v585
        %v1244 = vunpack.c.h.b16 %v585
        %v1245 = vunpack.c.l.b16 %v586
        %v1246 = vunpack.c.h.b16 %v586
        %v1247 = vunpack.c.l.b16 %v587
        %v1248 = vunpack.c.h.b16 %v587
        %v1249 = vunpack.c.l.b16 %v588
        %v1250 = vunpack.c.h.b16 %v588
        %v1251 = vunpack.c.l.b16 %v589
        %v1252 = vunpack.c.h.b16 %v589
        %v1253 = vunpack.c.l.b16 %v590
        %v1254 = vunpack.c.h.b16 %v590
        %v1255 = vunpack.c.l.b16 %v591
        %v1256 = vunpack.c.h.b16 %v591
        %v1257 = vunpack.c.l.b16 %v592
        %v1258 = vunpack.c.h.b16 %v592
        %v1259 = vunpack.c.l.b16 %v593
        %v1260 = vunpack.c.h.b16 %v593
        %v1261 = vunpack.c.l.b16 %v594
        %v1262 = vunpack.c.h.b16 %v594
        %v1263 = vunpack.c.l.b16 %v595
        %v1264 = vunpack.c.h.b16 %v595
        %v1265 = vunpack.c.l.b16 %v596
        %v1266 = vunpack.c.h.b16 %v596
        %v1267 = vunpack.c.l.b16 %v597
        %v1268 = vunpack.c.h.b16 %v597
        %v1269 = vunpack.c.l.b16 %v598
        %v1270 = vunpack.c.h.b16 %v598
        %v1271 = vunpack.c.l.b16 %v599
        %v1272 = vunpack.c.h.b16 %v599
        %v1273 = vunpack.c.l.b16 %v600
        %v1274 = vunpack.c.h.b16 %v600
        %v1275 = vunpack.c.l.b16 %v601
        %v1276 = vunpack.c.h.b16 %v601
        %v1277 = vunpack.c.l.b16 %v602
        %v1278 = vunpack.c.h.b16 %v602
        %v1279 = vunpack.c.l.b16 %v603
        %v1280 = vunpack.c.h.b16 %v603
        %v1281 = vunpack.c.l.b16 %v604
        %v1282 = vunpack.c.h.b16 %v604
        %v1283 = vunpack.c.l.b16 %v605
        %v1284 = vunpack.c.h.b16 %v605
        %v1285 = vunpack.c.l.b16 %v606
        %v1286 = vunpack.c.h.b16 %v606
        %v1287 = vunpack.c.l.b16 %v607
        %v1288 = vunpack.c.h.b16 %v607
        %v1289 = vunpack.c.l.b16 %v608
        %v1290 = vunpack.c.h.b16 %v608
        %v1291 = vunpack.c.l.b16 %v609
        %v1292 = vunpack.c.h.b16 %v609
        %v1293 = vunpack.c.l.b16 %v610
        %v1294 = vunpack.c.h.b16 %v610
        %v1295 = vunpack.c.l.b16 %v611
        %v1296 = vunpack.c.h.b16 %v611
        %v1297 = vunpack.c.l.b16 %v612
        %v1298 = vunpack.c.h.b16 %v612
        %v1299 = vunpack.c.l.b16 %v613
        %v1300 = vunpack.c.h.b16 %v613
        %v1301 = vunpack.c.l.b16 %v614
        %v1302 = vunpack.c.h.b16 %v614
        %v1303 = vunpack.c.l.b16 %v615
        %v1304 = vunpack.c.h.b16 %v615
        %v1305 = vunpack.c.l.b16 %v616
        %v1306 = vunpack.c.h.b16 %v616
        %v1307 = vunpack.c.l.b16 %v617
        %v1308 = vunpack.c.h.b16 %v617
        %v1309 = vunpack.c.l.b16 %v618
        %v1310 = vunpack.c.h.b16 %v618
        %v1311 = vunpack.c.l.b16 %v619
        %v1312 = vunpack.c.h.b16 %v619
        %v1313 = vunpack.c.l.b16 %v620
        %v1314 = vunpack.c.h.b16 %v620
        %v1315 = vunpack.c.l.b16 %v621
        %v1316 = vunpack.c.h.b16 %v621
        %v1317 = vunpack.c.l.b16 %v622
        %v1318 = vunpack.c.h.b16 %v622
        %v1319 = vunpack.c.l.b16 %v623
        %v1320 = vunpack.c.h.b16 %v623
        %v1321 = vunpack.c.l.b16 %v624
        %v1322 = vunpack.c.h.b16 %v624
        %v1323 = vunpack.c.l.b16 %v625
        %v1324 = vunpack.c.h.b16 %v625
        %v1325 = vunpack.c.l.b16 %v626
        %v1326 = vunpack.c.h.b16 %v626
        %v1327 = vunpack.c.l.b16 %v627
        %v1328 = vunpack.c.h.b16 %v627
        %v1329 = vunpack.c.l.b16 %v628
        %v1330 = vunpack.c.h.b16 %v628
        %v1331 = vunpack.c.l.b16 %v629
        %v1332 = vunpack.c.h.b16 %v629
        %v1333 = vunpack.c.l.b16 %v630
        %v1334 = vunpack.c.h.b16 %v630
        %v1335 = vunpack.c.l.b16 %v631
        %v1336 = vunpack.c.h.b16 %v631
        %v1337 = vunpack.c.l.b16 %v632
        %v1338 = vunpack.c.h.b16 %v632
        %v1339 = vunpack.c.l.b16 %v633
        %v1340 = vunpack.c.h.b16 %v633
        %v1341 = vunpack.c.l.b16 %v634
        %v1342 = vunpack.c.h.b16 %v634
        %v1343 = vunpack.c.l.b16 %v635
        %v1344 = vunpack.c.h.b16 %v635
        %v1345 = vunpack.c.l.b16 %v636
        %v1346 = vunpack.c.h.b16 %v636
        %v1347 = vunpack.c.l.b16 %v637
        %v1348 = vunpack.c.h.b16 %v637
        %v1349 = vunpack.c.l.b16 %v638
        %v1350 = vunpack.c.h.b16 %v638
        %v1351 = vunpack.c.l.b16 %v639
        %v1352 = vunpack.c.h.b16 %v639
        %v1353 = vunpack.c.l.b16 %v640
        %v1354 = vunpack.c.h.b16 %v640
        %v1355 = vunpack.c.l.b16 %v641
        %v1356 = vunpack.c.h.b16 %v641
        %v1357 = vunpack.c.l.b16 %v642
        %v1358 = vunpack.c.h.b16 %v642
        %v1359 = vunpack.c.l.b16 %v643
        %v1360 = vunpack.c.h.b16 %v643
        %v1361 = vunpack.c.l.b16 %v644
        %v1362 = vunpack.c.h.b16 %v644
        %v1363 = vunpack.c.l.b16 %v645
        %v1364 = vunpack.c.h.b16 %v645
        %v1365 = vunpack.c.l.b16 %v646
        %v1366 = vunpack.c.h.b16 %v646
        %v1367 = vunpack.c.l.b16 %v647
        %v1368 = vunpack.c.h.b16 %v647
        %v1369 = vunpack.c.l.b16 %v648
        %v1370 = vunpack.c.h.b16 %v648
        %v1371 = vunpack.c.l.b16 %v649
        %v1372 = vunpack.c.h.b16 %v649
        %v1373 = vunpack.c.l.b16 %v650
        %v1374 = vunpack.c.h.b16 %v650
        %v1375 = vunpack.c.l.b16 %v651
        %v1376 = vunpack.c.h.b16 %v651
        %v1377 = vunpack.c.l.b16 %v652
        %v1378 = vunpack.c.h.b16 %v652
        %v1379 = vunpack.c.l.b16 %v653
        %v1380 = vunpack.c.h.b16 %v653
        %v1381 = vunpack.c.l.b16 %v654
        %v1382 = vunpack.c.h.b16 %v654
        %v1383 = vunpack.c.l.b16 %v655
        %v1384 = vunpack.c.h.b16 %v655
        %v1385 = vunpack.c.l.b16 %v656
        %v1386 = vunpack.c.h.b16 %v656
        %v1387 = vunpack.c.l.b16 %v657
        %v1388 = vunpack.c.h.b16 %v657
        %v1389 = vunpack.c.l.b16 %v658
        %v1390 = vunpack.c.h.b16 %v658
        %v1391 = vunpack.c.l.b16 %v659
        %v1392 = vunpack.c.h.b16 %v659
        %v1393 = vunpack.c.l.b16 %v660
        %v1394 = vunpack.c.h.b16 %v660
        %v1395 = vunpack.c.l.b16 %v661
        %v1396 = vunpack.c.h.b16 %v661
        %v1397 = vunpack.c.l.b16 %v662
        %v1398 = vunpack.c.h.b16 %v662
        %v1399 = vunpack.c.l.b16 %v663
        %v1400 = vunpack.c.h.b16 %v663
        %v1401 = vunpack.c.l.b16 %v664
        %v1402 = vunpack.c.h.b16 %v664
        %v1403 = vunpack.c.l.b16 %v665
        %v1404 = vunpack.c.h.b16 %v665
        %v1405 = vunpack.c.l.b16 %v666
        %v1406 = vunpack.c.h.b16 %v666
        %v1407 = vunpack.c.l.b16 %v667
        %v1408 = vunpack.c.h.b16 %v667
        %v1409 = vunpack.c.l.b16 %v668
        %v1410 = vunpack.c.h.b16 %v668
        %v1411 = vunpack.c.l.b16 %v669
        %v1412 = vunpack.c.h.b16 %v669
        %v1413 = vunpack.c.l.b16 %v670
        %v1414 = vunpack.c.h.b16 %v670
        %v1415 = vunpack.c.l.b16 %v671
        %v1416 = vunpack.c.h.b16 %v671
        %v1417 = vunpack.c.l.b16 %v672
        %v1418 = vunpack.c.h.b16 %v672
        %v1419 = vunpack.c.l.b16 %v673
        %v1420 = vunpack.c.h.b16 %v673
        %v1421 = vunpack.c.l.b16 %v674
        %v1422 = vunpack.c.h.b16 %v674
        %v1423 = vunpack.c.l.b16 %v675
        %v1424 = vunpack.c.h.b16 %v675
        %v1425 = vunpack.c.l.b16 %v676
        %v1426 = vunpack.c.h.b16 %v676
        %v1427 = vunpack.c.l.b16 %v677
        %v1428 = vunpack.c.h.b16 %v677
        %v1429 = vunpack.c.l.b16 %v678
        %v1430 = vunpack.c.h.b16 %v678
        %v1431 = vunpack.c.l.b16 %v679
        %v1432 = vunpack.c.h.b16 %v679
        %v1433 = vunpack.c.l.b16 %v680
        %v1434 = vunpack.c.h.b16 %v680
        %v1435 = vunpack.c.l.b16 %v681
        %v1436 = vunpack.c.h.b16 %v681
        %v1437 = vunpack.c.l.b16 %v682
        %v1438 = vunpack.c.h.b16 %v682
        %v1439 = vunpack.c.l.b16 %v683
        %v1440 = vunpack.c.h.b16 %v683
        %v1441 = vunpack.c.l.b16 %v684
        %v1442 = vunpack.c.h.b16 %v684
        %v1443 = vunpack.c.l.b16 %v685
        %v1444 = vunpack.c.h.b16 %v685
        %v1445 = vunpack.c.l.b16 %v686
        %v1446 = vunpack.c.h.b16 %v686
        %v1447 = vunpack.c.l.b16 %v687
        %v1448 = vunpack.c.h.b16 %v687
        %v1449 = vunpack.c.l.b16 %v688
        %v1450 = vunpack.c.h.b16 %v688
        %v1451 = vunpack.c.l.b16 %v689
        %v1452 = vunpack.c.h.b16 %v689
        %v1453 = vunpack.c.l.b16 %v690
        %v1454 = vunpack.c.h.b16 %v690
        %v1455 = vunpack.c.l.b16 %v691
        %v1456 = vunpack.c.h.b16 %v691
        %v1457 = vunpack.c.l.b16 %v692
        %v1458 = vunpack.c.h.b16 %v692
        %v1459 = vunpack.c.l.b16 %v693
        %v1460 = vunpack.c.h.b16 %v693
        %v1461 = vunpack.c.l.b16 %v694
        %v1462 = vunpack.c.h.b16 %v694
        %v1463 = vpack.c.b16 %v955, %v951
        %v1464 = vpack.c.b16 %v956, %v952
        %v1465 = vpack.c.b16 %v957, %v953
        %v1466 = vpack.c.b16 %v958, %v954
        %v1467 = vpack.c.b16 %v963, %v959
        %v1468 = vpack.c.b16 %v964, %v960
        %v1469 = vpack.c.b16 %v965, %v961
        %v1470 = vpack.c.b16 %v966, %v962
        %v1471 = vpack.c.b16 %v971, %v967
        %v1472 = vpack.c.b16 %v972, %v968
        %v1473 = vpack.c.b16 %v973, %v969
        %v1474 = vpack.c.b16 %v974, %v970
        %v1475 = vpack.c.b16 %v979, %v975
        %v1476 = vpack.c.b16 %v980, %v976
        %v1477 = vpack.c.b16 %v981, %v977
        %v1478 = vpack.c.b16 %v982, %v978
        %v1479 = vpack.c.b16 %v987, %v983
        %v1480 = vpack.c.b16 %v988, %v984
        %v1481 = vpack.c.b16 %v989, %v985
        %v1482 = vpack.c.b16 %v990, %v986
        %v1483 = vpack.c.b16 %v995, %v991
        %v1484 = vpack.c.b16 %v996, %v992
        %v1485 = vpack.c.b16 %v997, %v993
        %v1486 = vpack.c.b16 %v998, %v994
        %v1487 = vpack.c.b16 %v1003, %v999
        %v1488 = vpack.c.b16 %v1004, %v1000
        %v1489 = vpack.c.b16 %v1005, %v1001
        %v1490 = vpack.c.b16 %v1006, %v1002
        %v1491 = vpack.c.b16 %v1011, %v1007
        %v1492 = vpack.c.b16 %v1012, %v1008
        %v1493 = vpack.c.b16 %v1013, %v1009
        %v1494 = vpack.c.b16 %v1014, %v1010
        %v1495 = vpack.c.b16 %v1019, %v1015
        %v1496 = vpack.c.b16 %v1020, %v1016
        %v1497 = vpack.c.b16 %v1021, %v1017
        %v1498 = vpack.c.b16 %v1022, %v1018
        %v1499 = vpack.c.b16 %v1027, %v1023
        %v1500 = vpack.c.b16 %v1028, %v1024
        %v1501 = vpack.c.b16 %v1029, %v1025
        %v1502 = vpack.c.b16 %v1030, %v1026
        %v1503 = vpack.c.b16 %v1035, %v1031
        %v1504 = vpack.c.b16 %v1036, %v1032
        %v1505 = vpack.c.b16 %v1037, %v1033
        %v1506 = vpack.c.b16 %v1038, %v1034
        %v1507 = vpack.c.b16 %v1043, %v1039
        %v1508 = vpack.c.b16 %v1044, %v1040
        %v1509 = vpack.c.b16 %v1045, %v1041
        %v1510 = vpack.c.b16 %v1046, %v1042
        %v1511 = vpack.c.b16 %v1051, %v1047
        %v1512 = vpack.c.b16 %v1052, %v1048
        %v1513 = vpack.c.b16 %v1053, %v1049
        %v1514 = vpack.c.b16 %v1054, %v1050
        %v1515 = vpack.c.b16 %v1059, %v1055
        %v1516 = vpack.c.b16 %v1060, %v1056
        %v1517 = vpack.c.b16 %v1061, %v1057
        %v1518 = vpack.c.b16 %v1062, %v1058
        %v1519 = vpack.c.b16 %v1067, %v1063
        %v1520 = vpack.c.b16 %v1068, %v1064
        %v1521 = vpack.c.b16 %v1069, %v1065
        %v1522 = vpack.c.b16 %v1070, %v1066
        %v1523 = vpack.c.b16 %v1075, %v1071
        %v1524 = vpack.c.b16 %v1076, %v1072
        %v1525 = vpack.c.b16 %v1077, %v1073
        %v1526 = vpack.c.b16 %v1078, %v1074
        %v1527 = vpack.c.b16 %v1083, %v1079
        %v1528 = vpack.c.b16 %v1084, %v1080
        %v1529 = vpack.c.b16 %v1085, %v1081
        %v1530 = vpack.c.b16 %v1086, %v1082
        %v1531 = vpack.c.b16 %v1091, %v1087
        %v1532 = vpack.c.b16 %v1092, %v1088
        %v1533 = vpack.c.b16 %v1093, %v1089
        %v1534 = vpack.c.b16 %v1094, %v1090
        %v1535 = vpack.c.b16 %v1099, %v1095
        %v1536 = vpack.c.b16 %v1100, %v1096
        %v1537 = vpack.c.b16 %v1101, %v1097
        %v1538 = vpack.c.b16 %v1102, %v1098
        %v1539 = vpack.c.b16 %v1107, %v1103
        %v1540 = vpack.c.b16 %v1108, %v1104
        %v1541 = vpack.c.b16 %v1109, %v1105
        %v1542 = vpack.c.b16 %v1110, %v1106
        %v1543 = vpack.c.b16 %v1115, %v1111
        %v1544 = vpack.c.b16 %v1116, %v1112
        %v1545 = vpack.c.b16 %v1117, %v1113
        %v1546 = vpack.c.b16 %v1118, %v1114
        %v1547 = vpack.c.b16 %v1123, %v1119
        %v1548 = vpack.c.b16 %v1124, %v1120
        %v1549 = vpack.c.b16 %v1125, %v1121
        %v1550 = vpack.c.b16 %v1126, %v1122
        %v1551 = vpack.c.b16 %v1131, %v1127
        %v1552 = vpack.c.b16 %v1132, %v1128
        %v1553 = vpack.c.b16 %v1133, %v1129
        %v1554 = vpack.c.b16 %v1134, %v1130
        %v1555 = vpack.c.b16 %v1139, %v1135
        %v1556 = vpack.c.b16 %v1140, %v1136
        %v1557 = vpack.c.b16 %v1141, %v1137
        %v1558 = vpack.c.b16 %v1142, %v1138
        %v1559 = vpack.c.b16 %v1147, %v1143
        %v1560 = vpack.c.b16 %v1148, %v1144
        %v1561 = vpack.c.b16 %v1149, %v1145
        %v1562 = vpack.c.b16 %v1150, %v1146
        %v1563 = vpack.c.b16 %v1155, %v1151
        %v1564 = vpack.c.b16 %v1156, %v1152
        %v1565 = vpack.c.b16 %v1157, %v1153
        %v1566 = vpack.c.b16 %v1158, %v1154
        %v1567 = vpack.c.b16 %v1163, %v1159
        %v1568 = vpack.c.b16 %v1164, %v1160
        %v1569 = vpack.c.b16 %v1165, %v1161
        %v1570 = vpack.c.b16 %v1166, %v1162
        %v1571 = vpack.c.b16 %v1171, %v1167
        %v1572 = vpack.c.b16 %v1172, %v1168
        %v1573 = vpack.c.b16 %v1173, %v1169
        %v1574 = vpack.c.b16 %v1174, %v1170
        %v1575 = vpack.c.b16 %v1179, %v1175
        %v1576 = vpack.c.b16 %v1180, %v1176
        %v1577 = vpack.c.b16 %v1181, %v1177
        %v1578 = vpack.c.b16 %v1182, %v1178
        %v1579 = vpack.c.b16 %v1187, %v1183
        %v1580 = vpack.c.b16 %v1188, %v1184
        %v1581 = vpack.c.b16 %v1189, %v1185
        %v1582 = vpack.c.b16 %v1190, %v1186
        %v1583 = vpack.c.b16 %v1195, %v1191
        %v1584 = vpack.c.b16 %v1196, %v1192
        %v1585 = vpack.c.b16 %v1197, %v1193
        %v1586 = vpack.c.b16 %v1198, %v1194
        %v1587 = vpack.c.b16 %v1203, %v1199
        %v1588 = vpack.c.b16 %v1204, %v1200
        %v1589 = vpack.c.b16 %v1205, %v1201
        %v1590 = vpack.c.b16 %v1206, %v1202
        %v1591 = vpack.c.b16 %v1211, %v1207
        %v1592 = vpack.c.b16 %v1212, %v1208
        %v1593 = vpack.c.b16 %v1213, %v1209
        %v1594 = vpack.c.b16 %v1214, %v1210
        %v1595 = vpack.c.b16 %v1219, %v1215
        %v1596 = vpack.c.b16 %v1220, %v1216
        %v1597 = vpack.c.b16 %v1221, %v1217
        %v1598 = vpack.c.b16 %v1222, %v1218
        %v1599 = vpack.c.b16 %v1227, %v1223
        %v1600 = vpack.c.b16 %v1228, %v1224
        %v1601 = vpack.c.b16 %v1229, %v1225
        %v1602 = vpack.c.b16 %v1230, %v1226
        %v1603 = vpack.c.b16 %v1235, %v1231
        %v1604 = vpack.c.b16 %v1236, %v1232
        %v1605 = vpack.c.b16 %v1237, %v1233
        %v1606 = vpack.c.b16 %v1238, %v1234
        %v1607 = vpack.c.b16 %v1243, %v1239
        %v1608 = vpack.c.b16 %v1244, %v1240
        %v1609 = vpack.c.b16 %v1245, %v1241
        %v1610 = vpack.c.b16 %v1246, %v1242
        %v1611 = vpack.c.b16 %v1251, %v1247
        %v1612 = vpack.c.b16 %v1252, %v1248
        %v1613 = vpack.c.b16 %v1253, %v1249
        %v1614 = vpack.c.b16 %v1254, %v1250
        %v1615 = vpack.c.b16 %v1259, %v1255
        %v1616 = vpack.c.b16 %v1260, %v1256
        %v1617 = vpack.c.b16 %v1261, %v1257
        %v1618 = vpack.c.b16 %v1262, %v1258
        %v1619 = vpack.c.b16 %v1267, %v1263
        %v1620 = vpack.c.b16 %v1268, %v1264
        %v1621 = vpack.c.b16 %v1269, %v1265
        %v1622 = vpack.c.b16 %v1270, %v1266
        %v1623 = vpack.c.b16 %v1275, %v1271
        %v1624 = vpack.c.b16 %v1276, %v1272
        %v1625 = vpack.c.b16 %v1277, %v1273
        %v1626 = vpack.c.b16 %v1278, %v1274
        %v1627 = vpack.c.b16 %v1283, %v1279
        %v1628 = vpack.c.b16 %v1284, %v1280
        %v1629 = vpack.c.b16 %v1285, %v1281
        %v1630 = vpack.c.b16 %v1286, %v1282
        %v1631 = vpack.c.b16 %v1291, %v1287
        %v1632 = vpack.c.b16 %v1292, %v1288
        %v1633 = vpack.c.b16 %v1293, %v1289
        %v1634 = vpack.c.b16 %v1294, %v1290
        %v1635 = vpack.c.b16 %v1299, %v1295
        %v1636 = vpack.c.b16 %v1300, %v1296
        %v1637 = vpack.c.b16 %v1301, %v1297
        %v1638 = vpack.c.b16 %v1302, %v1298
        %v1639 = vpack.c.b16 %v1307, %v1303
        %v1640 = vpack.c.b16 %v1308, %v1304
        %v1641 = vpack.c.b16 %v1309, %v1305
        %v1642 = vpack.c.b16 %v1310, %v1306
        %v1643 = vpack.c.b16 %v1315, %v1311
        %v1644 = vpack.c.b16 %v1316, %v1312
        %v1645 = vpack.c.b16 %v1317, %v1313
        %v1646 = vpack.c.b16 %v1318, %v1314
        %v1647 = vpack.c.b16 %v1323, %v1319
        %v1648 = vpack.c.b16 %v1324, %v1320
        %v1649 = vpack.c.b16 %v1325, %v1321
        %v1650 = vpack.c.b16 %v1326, %v1322
        %v1651 = vpack.c.b16 %v1331, %v1327
        %v1652 = vpack.c.b16 %v1332, %v1328
        %v1653 = vpack.c.b16 %v1333, %v1329
        %v1654 = vpack.c.b16 %v1334, %v1330
        %v1655 = vpack.c.b16 %v1339, %v1335
        %v1656 = vpack.c.b16 %v1340, %v1336
        %v1657 = vpack.c.b16 %v1341, %v1337
        %v1658 = vpack.c.b16 %v1342, %v1338
        %v1659 = vpack.c.b16 %v1347, %v1343
        %v1660 = vpack.c.b16 %v1348, %v1344
        %v1661 = vpack.c.b16 %v1349, %v1345
        %v1662 = vpack.c.b16 %v1350, %v1346
        %v1663 = vpack.c.b16 %v1355, %v1351
        %v1664 = vpack.c.b16 %v1356, %v1352
        %v1665 = vpack.c.b16 %v1357, %v1353
        %v1666 = vpack.c.b16 %v1358, %v1354
        %v1667 = vpack.c.b16 %v1363, %v1359
        %v1668 = vpack.c.b16 %v1364, %v1360
        %v1669 = vpack.c.b16 %v1365, %v1361
        %v1670 = vpack.c.b16 %v1366, %v1362
        %v1671 = vpack.c.b16 %v1371, %v1367
        %v1672 = vpack.c.b16 %v1372, %v1368
        %v1673 = vpack.c.b16 %v1373, %v1369
        %v1674 = vpack.c.b16 %v1374, %v1370
        %v1675 = vpack.c.b16 %v1379, %v1375
        %v1676 = vpack.c.b16 %v1380, %v1376
        %v1677 = vpack.c.b16 %v1381, %v1377
        %v1678 = vpack.c.b16 %v1382, %v1378
        %v1679 = vpack.c.b16 %v1387, %v1383
        %v1680 = vpack.c.b16 %v1388, %v1384
        %v1681 = vpack.c.b16 %v1389, %v1385
        %v1682 = vpack.c.b16 %v1390, %v1386
        %v1683 = vpack.c.b16 %v1395, %v1391
        %v1684 = vpack.c.b16 %v1396, %v1392
        %v1685 = vpack.c.b16 %v1397, %v1393
        %v1686 = vpack.c.b16 %v1398, %v1394
        %v1687 = vpack.c.b16 %v1403, %v1399
        %v1688 = vpack.c.b16 %v1404, %v1400
        %v1689 = vpack.c.b16 %v1405, %v1401
        %v1690 = vpack.c.b16 %v1406, %v1402
        %v1691 = vpack.c.b16 %v1411, %v1407
        %v1692 = vpack.c.b16 %v1412, %v1408
        %v1693 = vpack.c.b16 %v1413, %v1409
        %v1694 = vpack.c.b16 %v1414, %v1410
        %v1695 = vpack.c.b16 %v1419, %v1415
        %v1696 = vpack.c.b16 %v1420, %v1416
        %v1697 = vpack.c.b16 %v1421, %v1417
        %v1698 = vpack.c.b16 %v1422, %v1418
        %v1699 = vpack.c.b16 %v1427, %v1423
        %v1700 = vpack.c.b16 %v1428, %v1424
        %v1701 = vpack.c.b16 %v1429, %v1425
        %v1702 = vpack.c.b16 %v1430, %v1426
        %v1703 = vpack.c.b16 %v1435, %v1431
        %v1704 = vpack.c.b16 %v1436, %v1432
        %v1705 = vpack.c.b16 %v1437, %v1433
        %v1706 = vpack.c.b16 %v1438, %v1434
        %v1707 = vpack.c.b16 %v1443, %v1439
        %v1708 = vpack.c.b16 %v1444, %v1440
        %v1709 = vpack.c.b16 %v1445, %v1441
        %v1710 = vpack.c.b16 %v1446, %v1442
        %v1711 = vpack.c.b16 %v1451, %v1447
        %v1712 = vpack.c.b16 %v1452, %v1448
        %v1713 = vpack.c.b16 %v1453, %v1449
        %v1714 = vpack.c.b16 %v1454, %v1450
        %v1715 = vpack.c.b16 %v1459, %v1455
        %v1716 = vpack.c.b16 %v1460, %v1456
        %v1717 = vpack.c.b16 %v1461, %v1457
        %v1718 = vpack.c.b16 %v1462, %v1458
        %1975 = vmatprep.subr.bf16.mxu0 %v1464
        %1976 = vmatpush1.bf16.msra.mxu0 %v1463
        %1977 = vmatprep.subr.bf16.mxu0 %v1468
        %1978 = vmatpush1.bf16.msra.mxu0 %v1467
        %1979 = vmatprep.subr.bf16.mxu0 %v1472
        %1980 = vmatpush1.bf16.msra.mxu0 %v1471
        %1981 = vmatprep.subr.bf16.mxu0 %v1476
        %1982 = vmatpush1.bf16.msra.mxu0 %v1475
        %1983 = vmatprep.subr.bf16.mxu0 %v1480
        %1984 = vmatpush1.bf16.msra.mxu0 %v1479
        %1985 = vmatprep.subr.bf16.mxu0 %v1484
        %1986 = vmatpush1.bf16.msra.mxu0 %v1483
        %1987 = vmatprep.subr.bf16.mxu0 %v1488
        %1988 = vmatpush1.bf16.msra.mxu0 %v1487
        %1989 = vmatprep.subr.bf16.mxu0 %v1492
        %1990 = vmatpush1.bf16.msra.mxu0 %v1491
        %1991 = vmatprep.subr.bf16.mxu0 %v1496
        %1992 = vmatpush1.bf16.msra.mxu0 %v1495
        %1993 = vmatprep.subr.bf16.mxu0 %v1500
        %1994 = vmatpush1.bf16.msra.mxu0 %v1499
        %1995 = vmatprep.subr.bf16.mxu0 %v1504
        %1996 = vmatpush1.bf16.msra.mxu0 %v1503
        %1997 = vmatprep.subr.bf16.mxu0 %v1508
        %1998 = vmatpush1.bf16.msra.mxu0 %v1507
        %1999 = vmatprep.subr.bf16.mxu0 %v1512
        %2000 = vmatpush1.bf16.msra.mxu0 %v1511
        %2001 = vmatprep.subr.bf16.mxu0 %v1516
        %2002 = vmatpush1.bf16.msra.mxu0 %v1515
        %2003 = vmatprep.subr.bf16.mxu0 %v1520
        %2004 = vmatpush1.bf16.msra.mxu0 %v1519
        %2005 = vmatprep.subr.bf16.mxu0 %v1524
        %2006 = vmatpush1.bf16.msra.mxu0 %v1523
        %2007 = vmatprep.mubr.bf16.mxu0 %v432
        %2008 = vmatmul.mubr.bf16.gmra.mrb[0].mxu0 %v431
        %v2009 = vpop.f32.mrb[0].mxu0
        %v2010 = vadd.f32 0.0, %v2009
        %v2011 = vpop.f32.mrb[0].mxu0
        %v2012 = vadd.f32 0.0, %v2011
        %v2013 = vpop.f32.mrb[0].mxu0
        %v2014 = vpop.f32.mrb[0].mxu0
        %2015 = vdwg.mxu0
        %2016 = vmatprep.subr.bf16.mxu0 %v1528
        %2017 = vmatpush1.bf16.msra.mxu0 %v1527
        %2018 = vmatprep.subr.bf16.mxu0 %v1532
        %2019 = vmatpush1.bf16.msra.mxu0 %v1531
        %2020 = vmatprep.subr.bf16.mxu0 %v1536
        %2021 = vmatpush1.bf16.msra.mxu0 %v1535
        %2022 = vmatprep.subr.bf16.mxu0 %v1540
        %2023 = vmatpush1.bf16.msra.mxu0 %v1539
        %2024 = vmatprep.subr.bf16.mxu0 %v1544
        %2025 = vmatpush1.bf16.msra.mxu0 %v1543
        %2026 = vmatprep.subr.bf16.mxu0 %v1548
        %2027 = vmatpush1.bf16.msra.mxu0 %v1547
        %2028 = vmatprep.subr.bf16.mxu0 %v1552
        %2029 = vmatpush1.bf16.msra.mxu0 %v1551
        %2030 = vmatprep.subr.bf16.mxu0 %v1556
        %2031 = vmatpush1.bf16.msra.mxu0 %v1555
        %2032 = vmatprep.subr.bf16.mxu0 %v1560
        %2033 = vmatpush1.bf16.msra.mxu0 %v1559
        %2034 = vmatprep.subr.bf16.mxu0 %v1564
        %2035 = vmatpush1.bf16.msra.mxu0 %v1563
        %2036 = vmatprep.subr.bf16.mxu0 %v1568
        %2037 = vmatpush1.bf16.msra.mxu0 %v1567
        %2038 = vmatprep.subr.bf16.mxu0 %v1572
        %2039 = vmatpush1.bf16.msra.mxu0 %v1571
        %2040 = vmatprep.subr.bf16.mxu0 %v1576
        %2041 = vmatpush1.bf16.msra.mxu0 %v1575
        %2042 = vmatprep.subr.bf16.mxu0 %v1580
        %2043 = vmatpush1.bf16.msra.mxu0 %v1579
        %2044 = vmatprep.subr.bf16.mxu0 %v1584
        %2045 = vmatpush1.bf16.msra.mxu0 %v1583
        %2046 = vmatprep.subr.bf16.mxu0 %v1588
        %2047 = vmatpush1.bf16.msra.mxu0 %v1587
        %2048 = vmatprep.mubr.bf16.mxu0 %v434
        %2049 = vmatmul.mubr.bf16.gmra.mrb[0].mxu0 %v433
        %v2050 = vpop.f32.mrb[0].mxu0
        %v2051 = vadd.f32 %v2010, %v2050
        %v2052 = vpop.f32.mrb[0].mxu0
        %v2053 = vadd.f32 %v2012, %v2052
        %v2054 = vpop.f32.mrb[0].mxu0
        %v2055 = vpop.f32.mrb[0].mxu0
        %2056 = vdwg.mxu0
        %2057 = vmatprep.subr.bf16.mxu0 %v1592
        %2058 = vmatpush1.bf16.msra.mxu0 %v1591
        %2059 = vmatprep.subr.bf16.mxu0 %v1596
        %2060 = vmatpush1.bf16.msra.mxu0 %v1595
        %2061 = vmatprep.subr.bf16.mxu0 %v1600
        %2062 = vmatpush1.bf16.msra.mxu0 %v1599
        %2063 = vmatprep.subr.bf16.mxu0 %v1604
        %2064 = vmatpush1.bf16.msra.mxu0 %v1603
        %2065 = vmatprep.subr.bf16.mxu0 %v1608
        %2066 = vmatpush1.bf16.msra.mxu0 %v1607
        %2067 = vmatprep.subr.bf16.mxu0 %v1612
        %2068 = vmatpush1.bf16.msra.mxu0 %v1611
        %2069 = vmatprep.subr.bf16.mxu0 %v1616
        %2070 = vmatpush1.bf16.msra.mxu0 %v1615
        %2071 = vmatprep.subr.bf16.mxu0 %v1620
        %2072 = vmatpush1.bf16.msra.mxu0 %v1619
        %2073 = vmatprep.subr.bf16.mxu0 %v1624
        %2074 = vmatpush1.bf16.msra.mxu0 %v1623
        %2075 = vmatprep.subr.bf16.mxu0 %v1628
        %2076 = vmatpush1.bf16.msra.mxu0 %v1627
        %2077 = vmatprep.subr.bf16.mxu0 %v1632
        %2078 = vmatpush1.bf16.msra.mxu0 %v1631
        %2079 = vmatprep.subr.bf16.mxu0 %v1636
        %2080 = vmatpush1.bf16.msra.mxu0 %v1635
        %2081 = vmatprep.subr.bf16.mxu0 %v1640
        %2082 = vmatpush1.bf16.msra.mxu0 %v1639
        %2083 = vmatprep.subr.bf16.mxu0 %v1644
        %2084 = vmatpush1.bf16.msra.mxu0 %v1643
        %2085 = vmatprep.subr.bf16.mxu0 %v1648
        %2086 = vmatpush1.bf16.msra.mxu0 %v1647
        %2087 = vmatprep.subr.bf16.mxu0 %v1652
        %2088 = vmatpush1.bf16.msra.mxu0 %v1651
        %2089 = vmatprep.mubr.bf16.mxu0 %v436
        %2090 = vmatmul.mubr.bf16.gmra.mrb[0].mxu0 %v435
        %v2091 = vpop.f32.mrb[0].mxu0
        %v2092 = vadd.f32 %v2051, %v2091
        %v2093 = vpop.f32.mrb[0].mxu0
        %v2094 = vadd.f32 %v2053, %v2093
        %v2095 = vpop.f32.mrb[0].mxu0
        %v2096 = vpop.f32.mrb[0].mxu0
        %2097 = vdwg.mxu0
        %2098 = vmatprep.subr.bf16.mxu0 %v1656
        %2099 = vmatpush1.bf16.msra.mxu0 %v1655
        %2100 = vmatprep.subr.bf16.mxu0 %v1660
        %2101 = vmatpush1.bf16.msra.mxu0 %v1659
        %2102 = vmatprep.subr.bf16.mxu0 %v1664
        %2103 = vmatpush1.bf16.msra.mxu0 %v1663
        %2104 = vmatprep.subr.bf16.mxu0 %v1668
        %2105 = vmatpush1.bf16.msra.mxu0 %v1667
        %2106 = vmatprep.subr.bf16.mxu0 %v1672
        %2107 = vmatpush1.bf16.msra.mxu0 %v1671
        %2108 = vmatprep.subr.bf16.mxu0 %v1676
        %2109 = vmatpush1.bf16.msra.mxu0 %v1675
        %2110 = vmatprep.subr.bf16.mxu0 %v1680
        %2111 = vmatpush1.bf16.msra.mxu0 %v1679
        %2112 = vmatprep.subr.bf16.mxu0 %v1684
        %2113 = vmatpush1.bf16.msra.mxu0 %v1683
        %2114 = vmatprep.subr.bf16.mxu0 %v1688
        %2115 = vmatpush1.bf16.msra.mxu0 %v1687
        %2116 = vmatprep.subr.bf16.mxu0 %v1692
        %2117 = vmatpush1.bf16.msra.mxu0 %v1691
        %2118 = vmatprep.subr.bf16.mxu0 %v1696
        %2119 = vmatpush1.bf16.msra.mxu0 %v1695
        %2120 = vmatprep.subr.bf16.mxu0 %v1700
        %2121 = vmatpush1.bf16.msra.mxu0 %v1699
        %2122 = vmatprep.subr.bf16.mxu0 %v1704
        %2123 = vmatpush1.bf16.msra.mxu0 %v1703
        %2124 = vmatprep.subr.bf16.mxu0 %v1708
        %2125 = vmatpush1.bf16.msra.mxu0 %v1707
        %2126 = vmatprep.subr.bf16.mxu0 %v1712
        %2127 = vmatpush1.bf16.msra.mxu0 %v1711
        %2128 = vmatprep.subr.bf16.mxu0 %v1716
        %2129 = vmatpush1.bf16.msra.mxu0 %v1715
        %2130 = vmatprep.mubr.bf16.mxu0 %v438
        %2131 = vmatmul.mubr.bf16.gmra.mrb[0].mxu0 %v437
        %v2132 = vpop.f32.mrb[0].mxu0
        %v2133 = vadd.f32 %v2092, %v2132
        %v2134 = vpop.f32.mrb[0].mxu0
        %v2135 = vadd.f32 %v2094, %v2134
        %v2136 = vpop.f32.mrb[0].mxu0
        %v2137 = vpop.f32.mrb[0].mxu0
        %2138 = vdwg.mxu0
        %2139 = vmatprep.subr.bf16.mxu0 %v1466
        %2140 = vmatpush1.bf16.msra.mxu0 %v1465
        %2141 = vmatprep.subr.bf16.mxu0 %v1470
        %2142 = vmatpush1.bf16.msra.mxu0 %v1469
        %2143 = vmatprep.subr.bf16.mxu0 %v1474
        %2144 = vmatpush1.bf16.msra.mxu0 %v1473
        %2145 = vmatprep.subr.bf16.mxu0 %v1478
        %2146 = vmatpush1.bf16.msra.mxu0 %v1477
        %2147 = vmatprep.subr.bf16.mxu0 %v1482
        %2148 = vmatpush1.bf16.msra.mxu0 %v1481
        %2149 = vmatprep.subr.bf16.mxu0 %v1486
        %2150 = vmatpush1.bf16.msra.mxu0 %v1485
        %2151 = vmatprep.subr.bf16.mxu0 %v1490
        %2152 = vmatpush1.bf16.msra.mxu0 %v1489
        %2153 = vmatprep.subr.bf16.mxu0 %v1494
        %2154 = vmatpush1.bf16.msra.mxu0 %v1493
        %2155 = vmatprep.subr.bf16.mxu0 %v1498
        %2156 = vmatpush1.bf16.msra.mxu0 %v1497
        %2157 = vmatprep.subr.bf16.mxu0 %v1502
        %2158 = vmatpush1.bf16.msra.mxu0 %v1501
        %2159 = vmatprep.subr.bf16.mxu0 %v1506
        %2160 = vmatpush1.bf16.msra.mxu0 %v1505
        %2161 = vmatprep.subr.bf16.mxu0 %v1510
        %2162 = vmatpush1.bf16.msra.mxu0 %v1509
        %2163 = vmatprep.subr.bf16.mxu0 %v1514
        %2164 = vmatpush1.bf16.msra.mxu0 %v1513
        %2165 = vmatprep.subr.bf16.mxu0 %v1518
        %2166 = vmatpush1.bf16.msra.mxu0 %v1517
        %2167 = vmatprep.subr.bf16.mxu0 %v1522
        %2168 = vmatpush1.bf16.msra.mxu0 %v1521
        %2169 = vmatprep.subr.bf16.mxu0 %v1526
        %2170 = vmatpush1.bf16.msra.mxu0 %v1525
        %2171 = vmatprep.mubr.bf16.mxu0 %v432
        %2172 = vmatmul.mubr.bf16.gmra.mrb[0].mxu0 %v431
        %v2173 = vpop.f32.mrb[0].mxu0
        %v2174 = vadd.f32 0.0, %v2173
        %v2175 = vpop.f32.mrb[0].mxu0
        %v2176 = vadd.f32 0.0, %v2175
        %v2177 = vpop.f32.mrb[0].mxu0
        %v2178 = vpop.f32.mrb[0].mxu0
        %2179 = vdwg.mxu0
        %2180 = vmatprep.subr.bf16.mxu0 %v1530
        %2181 = vmatpush1.bf16.msra.mxu0 %v1529
        %2182 = vmatprep.subr.bf16.mxu0 %v1534
        %2183 = vmatpush1.bf16.msra.mxu0 %v1533
        %2184 = vmatprep.subr.bf16.mxu0 %v1538
        %2185 = vmatpush1.bf16.msra.mxu0 %v1537
        %2186 = vmatprep.subr.bf16.mxu0 %v1542
        %2187 = vmatpush1.bf16.msra.mxu0 %v1541
        %2188 = vmatprep.subr.bf16.mxu0 %v1546
        %2189 = vmatpush1.bf16.msra.mxu0 %v1545
        %2190 = vmatprep.subr.bf16.mxu0 %v1550
        %2191 = vmatpush1.bf16.msra.mxu0 %v1549
        %2192 = vmatprep.subr.bf16.mxu0 %v1554
        %2193 = vmatpush1.bf16.msra.mxu0 %v1553
        %2194 = vmatprep.subr.bf16.mxu0 %v1558
        %2195 = vmatpush1.bf16.msra.mxu0 %v1557
        %2196 = vmatprep.subr.bf16.mxu0 %v1562
        %2197 = vmatpush1.bf16.msra.mxu0 %v1561
        %2198 = vmatprep.subr.bf16.mxu0 %v1566
        %2199 = vmatpush1.bf16.msra.mxu0 %v1565
        %2200 = vmatprep.subr.bf16.mxu0 %v1570
        %2201 = vmatpush1.bf16.msra.mxu0 %v1569
        %2202 = vmatprep.subr.bf16.mxu0 %v1574
        %2203 = vmatpush1.bf16.msra.mxu0 %v1573
        %2204 = vmatprep.subr.bf16.mxu0 %v1578
        %2205 = vmatpush1.bf16.msra.mxu0 %v1577
        %2206 = vmatprep.subr.bf16.mxu0 %v1582
        %2207 = vmatpush1.bf16.msra.mxu0 %v1581
        %2208 = vmatprep.subr.bf16.mxu0 %v1586
        %2209 = vmatpush1.bf16.msra.mxu0 %v1585
        %2210 = vmatprep.subr.bf16.mxu0 %v1590
        %2211 = vmatpush1.bf16.msra.mxu0 %v1589
        %2212 = vmatprep.mubr.bf16.mxu0 %v434
        %2213 = vmatmul.mubr.bf16.gmra.mrb[0].mxu0 %v433
        %v2214 = vpop.f32.mrb[0].mxu0
        %v2215 = vadd.f32 %v2174, %v2214
        %v2216 = vpop.f32.mrb[0].mxu0
        %v2217 = vadd.f32 %v2176, %v2216
        %v2218 = vpop.f32.mrb[0].mxu0
        %v2219 = vpop.f32.mrb[0].mxu0
        %2220 = vdwg.mxu0
        %2221 = vmatprep.subr.bf16.mxu0 %v1594
        %2222 = vmatpush1.bf16.msra.mxu0 %v1593
        %2223 = vmatprep.subr.bf16.mxu0 %v1598
        %2224 = vmatpush1.bf16.msra.mxu0 %v1597
        %2225 = vmatprep.subr.bf16.mxu0 %v1602
        %2226 = vmatpush1.bf16.msra.mxu0 %v1601
        %2227 = vmatprep.subr.bf16.mxu0 %v1606
        %2228 = vmatpush1.bf16.msra.mxu0 %v1605
        %2229 = vmatprep.subr.bf16.mxu0 %v1610
        %2230 = vmatpush1.bf16.msra.mxu0 %v1609
        %2231 = vmatprep.subr.bf16.mxu0 %v1614
        %2232 = vmatpush1.bf16.msra.mxu0 %v1613
        %2233 = vmatprep.subr.bf16.mxu0 %v1618
        %2234 = vmatpush1.bf16.msra.mxu0 %v1617
        %2235 = vmatprep.subr.bf16.mxu0 %v1622
        %2236 = vmatpush1.bf16.msra.mxu0 %v1621
        %2237 = vmatprep.subr.bf16.mxu0 %v1626
        %2238 = vmatpush1.bf16.msra.mxu0 %v1625
        %2239 = vmatprep.subr.bf16.mxu0 %v1630
        %2240 = vmatpush1.bf16.msra.mxu0 %v1629
        %2241 = vmatprep.subr.bf16.mxu0 %v1634
        %2242 = vmatpush1.bf16.msra.mxu0 %v1633
        %2243 = vmatprep.subr.bf16.mxu0 %v1638
        %2244 = vmatpush1.bf16.msra.mxu0 %v1637
        %2245 = vmatprep.subr.bf16.mxu0 %v1642
        %2246 = vmatpush1.bf16.msra.mxu0 %v1641
        %2247 = vmatprep.subr.bf16.mxu0 %v1646
        %2248 = vmatpush1.bf16.msra.mxu0 %v1645
        %2249 = vmatprep.subr.bf16.mxu0 %v1650
        %2250 = vmatpush1.bf16.msra.mxu0 %v1649
        %2251 = vmatprep.subr.bf16.mxu0 %v1654
        %2252 = vmatpush1.bf16.msra.mxu0 %v1653
        %2253 = vmatprep.mubr.bf16.mxu0 %v436
        %2254 = vmatmul.mubr.bf16.gmra.mrb[0].mxu0 %v435
        %v2255 = vpop.f32.mrb[0].mxu0
        %v2256 = vadd.f32 %v2215, %v2255
        %v2257 = vpop.f32.mrb[0].mxu0
        %v2258 = vadd.f32 %v2217, %v2257
        %v2259 = vpop.f32.mrb[0].mxu0
        %v2260 = vpop.f32.mrb[0].mxu0
        %2261 = vdwg.mxu0
        %2262 = vmatprep.subr.bf16.mxu0 %v1658
        %2263 = vmatpush1.bf16.msra.mxu0 %v1657
        %2264 = vmatprep.subr.bf16.mxu0 %v1662
        %2265 = vmatpush1.bf16.msra.mxu0 %v1661
        %2266 = vmatprep.subr.bf16.mxu0 %v1666
        %2267 = vmatpush1.bf16.msra.mxu0 %v1665
        %2268 = vmatprep.subr.bf16.mxu0 %v1670
        %2269 = vmatpush1.bf16.msra.mxu0 %v1669
        %2270 = vmatprep.subr.bf16.mxu0 %v1674
        %2271 = vmatpush1.bf16.msra.mxu0 %v1673
        %2272 = vmatprep.subr.bf16.mxu0 %v1678
        %2273 = vmatpush1.bf16.msra.mxu0 %v1677
        %2274 = vmatprep.subr.bf16.mxu0 %v1682
        %2275 = vmatpush1.bf16.msra.mxu0 %v1681
        %2276 = vmatprep.subr.bf16.mxu0 %v1686
        %2277 = vmatpush1.bf16.msra.mxu0 %v1685
        %2278 = vmatprep.subr.bf16.mxu0 %v1690
        %2279 = vmatpush1.bf16.msra.mxu0 %v1689
        %2280 = vmatprep.subr.bf16.mxu0 %v1694
        %2281 = vmatpush1.bf16.msra.mxu0 %v1693
        %2282 = vmatprep.subr.bf16.mxu0 %v1698
        %2283 = vmatpush1.bf16.msra.mxu0 %v1697
        %2284 = vmatprep.subr.bf16.mxu0 %v1702
        %2285 = vmatpush1.bf16.msra.mxu0 %v1701
        %2286 = vmatprep.subr.bf16.mxu0 %v1706
        %2287 = vmatpush1.bf16.msra.mxu0 %v1705
        %2288 = vmatprep.subr.bf16.mxu0 %v1710
        %2289 = vmatpush1.bf16.msra.mxu0 %v1709
        %2290 = vmatprep.subr.bf16.mxu0 %v1714
        %2291 = vmatpush1.bf16.msra.mxu0 %v1713
        %2292 = vmatprep.subr.bf16.mxu0 %v1718
        %2293 = vmatpush1.bf16.msra.mxu0 %v1717
        %2294 = vmatprep.mubr.bf16.mxu0 %v438
        %2295 = vmatmul.mubr.bf16.gmra.mrb[0].mxu0 %v437
        %v2296 = vpop.f32.mrb[0].mxu0
        %v2297 = vadd.f32 %v2256, %v2296
        %v2298 = vpop.f32.mrb[0].mxu0
        %v2299 = vadd.f32 %v2258, %v2298
        %v2300 = vpop.f32.mrb[0].mxu0
        %v2301 = vpop.f32.mrb[0].mxu0
        %2302 = vdwg.mxu0
        %v2303 = vld [vmem:[%s383] ss:$8 sm:$0xf]
        %s2304 = scalar_lea.vmem %s383, 1
        %v2305 = vld [vmem:[%s2304] ss:$8 sm:$0xf]
        %v2306 = vrot.slane %v2133, 4
        %v2307 = vadd.f32 %v2133, %v2306
        %v2308 = vrot.slane %v2307, 2
        %v2309 = vadd.f32 %v2307, %v2308
        %v2310 = vrot.slane %v2309, 1
        %v2311 = vadd.f32 %v2309, %v2310
        %v2312 = vrot.slane %v2135, 4
        %v2313 = vadd.f32 %v2135, %v2312
        %v2314 = vrot.slane %v2313, 2
        %v2315 = vadd.f32 %v2313, %v2314
        %v2316 = vrot.slane %v2315, 1
        %v2317 = vadd.f32 %v2315, %v2316
        %v2318 = vrot.slane %v2297, 4
        %v2319 = vadd.f32 %v2297, %v2318
        %v2320 = vrot.slane %v2319, 2
        %v2321 = vadd.f32 %v2319, %v2320
        %v2322 = vrot.slane %v2321, 1
        %v2323 = vadd.f32 %v2321, %v2322
        %v2324 = vrot.slane %v2299, 4
        %v2325 = vadd.f32 %v2299, %v2324
        %v2326 = vrot.slane %v2325, 2
        %v2327 = vadd.f32 %v2325, %v2326
        %v2328 = vrot.slane %v2327, 1
        %v2329 = vadd.f32 %v2327, %v2328
        %v2330 = vrcp.pop 8.0
        %v2331 = vmul.f32 %v2311, %v2330
        %v2332 = vmul.f32 %v2317, %v2330
        %v2333 = vmul.f32 %v2323, %v2330
        %v2334 = vmul.f32 %v2329, %v2330
        %v2335 = vsub.f32 %v2133, %v2331
        %v2336 = vsub.f32 %v2135, %v2332
        %v2337 = vsub.f32 %v2297, %v2333
        %v2338 = vsub.f32 %v2299, %v2334
        %v2339 = vmul.f32 %v2335, %v2335
        %v2340 = vmul.f32 %v2336, %v2336
        %v2341 = vmul.f32 %v2337, %v2337
        %v2342 = vmul.f32 %v2338, %v2338
        %v2343 = vrot.slane %v2339, 4
        %v2344 = vadd.f32 %v2339, %v2343
        %v2345 = vrot.slane %v2344, 2
        %v2346 = vadd.f32 %v2344, %v2345
        %v2347 = vrot.slane %v2346, 1
        %v2348 = vadd.f32 %v2346, %v2347
        %v2349 = vrot.slane %v2340, 4
        %v2350 = vadd.f32 %v2340, %v2349
        %v2351 = vrot.slane %v2350, 2
        %v2352 = vadd.f32 %v2350, %v2351
        %v2353 = vrot.slane %v2352, 1
        %v2354 = vadd.f32 %v2352, %v2353
        %v2355 = vrot.slane %v2341, 4
        %v2356 = vadd.f32 %v2341, %v2355
        %v2357 = vrot.slane %v2356, 2
        %v2358 = vadd.f32 %v2356, %v2357
        %v2359 = vrot.slane %v2358, 1
        %v2360 = vadd.f32 %v2358, %v2359
        %v2361 = vrot.slane %v2342, 4
        %v2362 = vadd.f32 %v2342, %v2361
        %v2363 = vrot.slane %v2362, 2
        %v2364 = vadd.f32 %v2362, %v2363
        %v2365 = vrot.slane %v2364, 1
        %v2366 = vadd.f32 %v2364, %v2365
        %v2367 = vmul.f32 %v2348, %v2330
        %v2368 = vmul.f32 %v2354, %v2330
        %v2369 = vmul.f32 %v2360, %v2330
        %v2370 = vmul.f32 %v2366, %v2330
        %v2371 = vadd.f32 %v2367, 1e-05
        %v2372 = vadd.f32 %v2368, 1e-05
        %v2373 = vadd.f32 %v2369, 1e-05
        %v2374 = vadd.f32 %v2370, 1e-05
        %v2375 = vrsqrt.pop %v2371
        %v2376 = vrsqrt.pop %v2372
        %v2377 = vrsqrt.pop %v2373
        %v2378 = vrsqrt.pop %v2374
        %v2379 = vmul.f32 %v2335, %v2375
        %v2380 = vmul.f32 %v2336, %v2376
        %v2381 = vmul.f32 %v2337, %v2377
        %v2382 = vmul.f32 %v2338, %v2378
        %v2384 = vlaneseq
        %v2385 = vshrl.u32 %v2384, 7
        %v2386 = vsub.s32 0, %v2385
        %v2387 = vrot.slane %v2303, %v2386
        %v2388 = vlaneseq
        %v2389 = vshrl.u32 %v2388, 7
        %v2390 = vsub.s32 1, %v2389
        %v2391 = vrot.slane %v2303, %v2390
        %v2392 = vlaneseq
        %v2393 = vshrl.u32 %v2392, 7
        %v2394 = vsub.s32 2, %v2393
        %v2395 = vrot.slane %v2303, %v2394
        %v2396 = vlaneseq
        %v2397 = vshrl.u32 %v2396, 7
        %v2398 = vsub.s32 3, %v2397
        %v2399 = vrot.slane %v2303, %v2398
        %v2404 = vmul.f32 %v2379, %v2387
        %v2405 = vmul.f32 %v2380, %v2391
        %v2406 = vmul.f32 %v2381, %v2395
        %v2407 = vmul.f32 %v2382, %v2399
        %v2409 = vlaneseq
        %v2410 = vshrl.u32 %v2409, 7
        %v2411 = vsub.s32 0, %v2410
        %v2412 = vrot.slane %v2305, %v2411
        %v2413 = vlaneseq
        %v2414 = vshrl.u32 %v2413, 7
        %v2415 = vsub.s32 1, %v2414
        %v2416 = vrot.slane %v2305, %v2415
        %v2417 = vlaneseq
        %v2418 = vshrl.u32 %v2417, 7
        %v2419 = vsub.s32 2, %v2418
        %v2420 = vrot.slane %v2305, %v2419
        %v2421 = vlaneseq
        %v2422 = vshrl.u32 %v2421, 7
        %v2423 = vsub.s32 3, %v2422
        %v2424 = vrot.slane %v2305, %v2423
        %v2429 = vadd.f32 %v2404, %v2412
        %v2430 = vadd.f32 %v2405, %v2416
        %v2431 = vadd.f32 %v2406, %v2420
        %v2432 = vadd.f32 %v2407, %v2424
        %v2433 = vmax.f32 %v2429, 0.0
        %v2434 = vmax.f32 %v2430, 0.0
        %v2435 = vmax.f32 %v2431, 0.0
        %v2436 = vmax.f32 %v2432, 0.0
        %v2437 = vld [vmem:[#allocation3] sm:$0xff]
        %v2438 = vld [vmem:[#allocation3 + $0x8] sm:$0xff]
        %v2439 = vld [vmem:[#allocation3 + $0x10] sm:$0xff]
        %v2440 = vld [vmem:[#allocation3 + $0x18] sm:$0xff]
        %v2441 = vld [vmem:[#allocation3 + $0x20] sm:$0xff]
        %v2442 = vld [vmem:[#allocation3 + $0x28] sm:$0xff]
        %v2443 = vld [vmem:[#allocation3 + $0x30] sm:$0xff]
        %v2444 = vld [vmem:[#allocation3 + $0x38] sm:$0xff]
        %v2445 = vpack.c.bf16 %v2433, %v2433
        %v2446 = vpack.c.bf16 %v2434, %v2434
        %v2447 = vpack.c.bf16 %v2435, %v2435
        %v2448 = vpack.c.bf16 %v2436, %v2436
        %v2449 = vld [vmem:[%s317] sm:$0xff]
        %v2450 = vld [vmem:[%s317 + $0x8] sm:$0xff]
        %v2451 = vld [vmem:[%s317 + $0x10] sm:$0xff]
        %v2452 = vld [vmem:[%s317 + $0x18] sm:$0xff]
        %v2453 = vld [vmem:[%s317 + $0x20] sm:$0xff]
        %v2454 = vld [vmem:[%s317 + $0x28] sm:$0xff]
        %v2455 = vld [vmem:[%s317 + $0x30] sm:$0xff]
        %v2456 = vld [vmem:[%s317 + $0x38] sm:$0xff]
        %v2457 = vld [vmem:[%s317 + $0x40] sm:$0xff]
        %v2458 = vld [vmem:[%s317 + $0x48] sm:$0xff]
        %v2459 = vld [vmem:[%s317 + $0x50] sm:$0xff]
        %v2460 = vld [vmem:[%s317 + $0x58] sm:$0xff]
        %v2461 = vld [vmem:[%s317 + $0x60] sm:$0xff]
        %v2462 = vld [vmem:[%s317 + $0x68] sm:$0xff]
        %v2463 = vld [vmem:[%s317 + $0x70] sm:$0xff]
        %v2464 = vld [vmem:[%s317 + $0x78] sm:$0xff]
        %v2465 = vld [vmem:[%s317 + $0x80] sm:$0xff]
        %v2466 = vld [vmem:[%s317 + $0x88] sm:$0xff]
        %v2467 = vld [vmem:[%s317 + $0x90] sm:$0xff]
        %v2468 = vld [vmem:[%s317 + $0x98] sm:$0xff]
        %v2469 = vld [vmem:[%s317 + $0xa0] sm:$0xff]
        %v2470 = vld [vmem:[%s317 + $0xa8] sm:$0xff]
        %v2471 = vld [vmem:[%s317 + $0xb0] sm:$0xff]
        %v2472 = vld [vmem:[%s317 + $0xb8] sm:$0xff]
        %v2473 = vld [vmem:[%s317 + $0xc0] sm:$0xff]
        %v2474 = vld [vmem:[%s317 + $0xc8] sm:$0xff]
        %v2475 = vld [vmem:[%s317 + $0xd0] sm:$0xff]
        %v2476 = vld [vmem:[%s317 + $0xd8] sm:$0xff]
        %v2477 = vld [vmem:[%s317 + $0xe0] sm:$0xff]
        %v2478 = vld [vmem:[%s317 + $0xe8] sm:$0xff]
        %v2479 = vld [vmem:[%s317 + $0xf0] sm:$0xff]
        %v2480 = vld [vmem:[%s317 + $0xf8] sm:$0xff]
        %v2481 = vld [vmem:[%s317 + $0x100] sm:$0xff]
        %v2482 = vld [vmem:[%s317 + $0x108] sm:$0xff]
        %v2483 = vld [vmem:[%s317 + $0x110] sm:$0xff]
        %v2484 = vld [vmem:[%s317 + $0x118] sm:$0xff]
        %v2485 = vld [vmem:[%s317 + $0x120] sm:$0xff]
        %v2486 = vld [vmem:[%s317 + $0x128] sm:$0xff]
        %v2487 = vld [vmem:[%s317 + $0x130] sm:$0xff]
        %v2488 = vld [vmem:[%s317 + $0x138] sm:$0xff]
        %v2489 = vld [vmem:[%s317 + $0x140] sm:$0xff]
        %v2490 = vld [vmem:[%s317 + $0x148] sm:$0xff]
        %v2491 = vld [vmem:[%s317 + $0x150] sm:$0xff]
        %v2492 = vld [vmem:[%s317 + $0x158] sm:$0xff]
        %v2493 = vld [vmem:[%s317 + $0x160] sm:$0xff]
        %v2494 = vld [vmem:[%s317 + $0x168] sm:$0xff]
        %v2495 = vld [vmem:[%s317 + $0x170] sm:$0xff]
        %v2496 = vld [vmem:[%s317 + $0x178] sm:$0xff]
        %v2497 = vld [vmem:[%s317 + $0x180] sm:$0xff]
        %v2498 = vld [vmem:[%s317 + $0x188] sm:$0xff]
        %v2499 = vld [vmem:[%s317 + $0x190] sm:$0xff]
        %v2500 = vld [vmem:[%s317 + $0x198] sm:$0xff]
        %v2501 = vld [vmem:[%s317 + $0x1a0] sm:$0xff]
        %v2502 = vld [vmem:[%s317 + $0x1a8] sm:$0xff]
        %v2503 = vld [vmem:[%s317 + $0x1b0] sm:$0xff]
        %v2504 = vld [vmem:[%s317 + $0x1b8] sm:$0xff]
        %v2505 = vld [vmem:[%s317 + $0x1c0] sm:$0xff]
        %v2506 = vld [vmem:[%s317 + $0x1c8] sm:$0xff]
        %v2507 = vld [vmem:[%s317 + $0x1d0] sm:$0xff]
        %v2508 = vld [vmem:[%s317 + $0x1d8] sm:$0xff]
        %v2509 = vld [vmem:[%s317 + $0x1e0] sm:$0xff]
        %v2510 = vld [vmem:[%s317 + $0x1e8] sm:$0xff]
        %v2511 = vld [vmem:[%s317 + $0x1f0] sm:$0xff]
        %v2512 = vld [vmem:[%s317 + $0x1f8] sm:$0xff]
        %v2513 = vld [vmem:[%s317 + $0x200] sm:$0xff]
        %v2514 = vld [vmem:[%s317 + $0x208] sm:$0xff]
        %v2515 = vld [vmem:[%s317 + $0x210] sm:$0xff]
        %v2516 = vld [vmem:[%s317 + $0x218] sm:$0xff]
        %v2517 = vld [vmem:[%s317 + $0x220] sm:$0xff]
        %v2518 = vld [vmem:[%s317 + $0x228] sm:$0xff]
        %v2519 = vld [vmem:[%s317 + $0x230] sm:$0xff]
        %v2520 = vld [vmem:[%s317 + $0x238] sm:$0xff]
        %v2521 = vld [vmem:[%s317 + $0x240] sm:$0xff]
        %v2522 = vld [vmem:[%s317 + $0x248] sm:$0xff]
        %v2523 = vld [vmem:[%s317 + $0x250] sm:$0xff]
        %v2524 = vld [vmem:[%s317 + $0x258] sm:$0xff]
        %v2525 = vld [vmem:[%s317 + $0x260] sm:$0xff]
        %v2526 = vld [vmem:[%s317 + $0x268] sm:$0xff]
        %v2527 = vld [vmem:[%s317 + $0x270] sm:$0xff]
        %v2528 = vld [vmem:[%s317 + $0x278] sm:$0xff]
        %v2529 = vld [vmem:[%s317 + $0x280] sm:$0xff]
        %v2530 = vld [vmem:[%s317 + $0x288] sm:$0xff]
        %v2531 = vld [vmem:[%s317 + $0x290] sm:$0xff]
        %v2532 = vld [vmem:[%s317 + $0x298] sm:$0xff]
        %v2533 = vld [vmem:[%s317 + $0x2a0] sm:$0xff]
        %v2534 = vld [vmem:[%s317 + $0x2a8] sm:$0xff]
        %v2535 = vld [vmem:[%s317 + $0x2b0] sm:$0xff]
        %v2536 = vld [vmem:[%s317 + $0x2b8] sm:$0xff]
        %v2537 = vld [vmem:[%s317 + $0x2c0] sm:$0xff]
        %v2538 = vld [vmem:[%s317 + $0x2c8] sm:$0xff]
        %v2539 = vld [vmem:[%s317 + $0x2d0] sm:$0xff]
        %v2540 = vld [vmem:[%s317 + $0x2d8] sm:$0xff]
        %v2541 = vld [vmem:[%s317 + $0x2e0] sm:$0xff]
        %v2542 = vld [vmem:[%s317 + $0x2e8] sm:$0xff]
        %v2543 = vld [vmem:[%s317 + $0x2f0] sm:$0xff]
        %v2544 = vld [vmem:[%s317 + $0x2f8] sm:$0xff]
        %v2545 = vld [vmem:[%s317 + $0x300] sm:$0xff]
        %v2546 = vld [vmem:[%s317 + $0x308] sm:$0xff]
        %v2547 = vld [vmem:[%s317 + $0x310] sm:$0xff]
        %v2548 = vld [vmem:[%s317 + $0x318] sm:$0xff]
        %v2549 = vld [vmem:[%s317 + $0x320] sm:$0xff]
        %v2550 = vld [vmem:[%s317 + $0x328] sm:$0xff]
        %v2551 = vld [vmem:[%s317 + $0x330] sm:$0xff]
        %v2552 = vld [vmem:[%s317 + $0x338] sm:$0xff]
        %v2553 = vld [vmem:[%s317 + $0x340] sm:$0xff]
        %v2554 = vld [vmem:[%s317 + $0x348] sm:$0xff]
        %v2555 = vld [vmem:[%s317 + $0x350] sm:$0xff]
        %v2556 = vld [vmem:[%s317 + $0x358] sm:$0xff]
        %v2557 = vld [vmem:[%s317 + $0x360] sm:$0xff]
        %v2558 = vld [vmem:[%s317 + $0x368] sm:$0xff]
        %v2559 = vld [vmem:[%s317 + $0x370] sm:$0xff]
        %v2560 = vld [vmem:[%s317 + $0x378] sm:$0xff]
        %v2561 = vld [vmem:[%s317 + $0x380] sm:$0xff]
        %v2562 = vld [vmem:[%s317 + $0x388] sm:$0xff]
        %v2563 = vld [vmem:[%s317 + $0x390] sm:$0xff]
        %v2564 = vld [vmem:[%s317 + $0x398] sm:$0xff]
        %v2565 = vld [vmem:[%s317 + $0x3a0] sm:$0xff]
        %v2566 = vld [vmem:[%s317 + $0x3a8] sm:$0xff]
        %v2567 = vld [vmem:[%s317 + $0x3b0] sm:$0xff]
        %v2568 = vld [vmem:[%s317 + $0x3b8] sm:$0xff]
        %v2569 = vld [vmem:[%s317 + $0x3c0] sm:$0xff]
        %v2570 = vld [vmem:[%s317 + $0x3c8] sm:$0xff]
        %v2571 = vld [vmem:[%s317 + $0x3d0] sm:$0xff]
        %v2572 = vld [vmem:[%s317 + $0x3d8] sm:$0xff]
        %v2573 = vld [vmem:[%s317 + $0x3e0] sm:$0xff]
        %v2574 = vld [vmem:[%s317 + $0x3e8] sm:$0xff]
        %v2575 = vld [vmem:[%s317 + $0x3f0] sm:$0xff]
        %v2576 = vld [vmem:[%s317 + $0x3f8] sm:$0xff]
        %v2577 = vld [vmem:[%s317 + $0x400] sm:$0xff]
        %v2578 = vld [vmem:[%s317 + $0x408] sm:$0xff]
        %v2579 = vld [vmem:[%s317 + $0x410] sm:$0xff]
        %v2580 = vld [vmem:[%s317 + $0x418] sm:$0xff]
        %v2581 = vld [vmem:[%s317 + $0x420] sm:$0xff]
        %v2582 = vld [vmem:[%s317 + $0x428] sm:$0xff]
        %v2583 = vld [vmem:[%s317 + $0x430] sm:$0xff]
        %v2584 = vld [vmem:[%s317 + $0x438] sm:$0xff]
        %v2585 = vld [vmem:[%s317 + $0x440] sm:$0xff]
        %v2586 = vld [vmem:[%s317 + $0x448] sm:$0xff]
        %v2587 = vld [vmem:[%s317 + $0x450] sm:$0xff]
        %v2588 = vld [vmem:[%s317 + $0x458] sm:$0xff]
        %v2589 = vld [vmem:[%s317 + $0x460] sm:$0xff]
        %v2590 = vld [vmem:[%s317 + $0x468] sm:$0xff]
        %v2591 = vld [vmem:[%s317 + $0x470] sm:$0xff]
        %v2592 = vld [vmem:[%s317 + $0x478] sm:$0xff]
        %v2593 = vld [vmem:[%s317 + $0x480] sm:$0xff]
        %v2594 = vld [vmem:[%s317 + $0x488] sm:$0xff]
        %v2595 = vld [vmem:[%s317 + $0x490] sm:$0xff]
        %v2596 = vld [vmem:[%s317 + $0x498] sm:$0xff]
        %v2597 = vld [vmem:[%s317 + $0x4a0] sm:$0xff]
        %v2598 = vld [vmem:[%s317 + $0x4a8] sm:$0xff]
        %v2599 = vld [vmem:[%s317 + $0x4b0] sm:$0xff]
        %v2600 = vld [vmem:[%s317 + $0x4b8] sm:$0xff]
        %v2601 = vld [vmem:[%s317 + $0x4c0] sm:$0xff]
        %v2602 = vld [vmem:[%s317 + $0x4c8] sm:$0xff]
        %v2603 = vld [vmem:[%s317 + $0x4d0] sm:$0xff]
        %v2604 = vld [vmem:[%s317 + $0x4d8] sm:$0xff]
        %v2605 = vld [vmem:[%s317 + $0x4e0] sm:$0xff]
        %v2606 = vld [vmem:[%s317 + $0x4e8] sm:$0xff]
        %v2607 = vld [vmem:[%s317 + $0x4f0] sm:$0xff]
        %v2608 = vld [vmem:[%s317 + $0x4f8] sm:$0xff]
        %v2609 = vld [vmem:[%s317 + $0x500] sm:$0xff]
        %v2610 = vld [vmem:[%s317 + $0x508] sm:$0xff]
        %v2611 = vld [vmem:[%s317 + $0x510] sm:$0xff]
        %v2612 = vld [vmem:[%s317 + $0x518] sm:$0xff]
        %v2613 = vld [vmem:[%s317 + $0x520] sm:$0xff]
        %v2614 = vld [vmem:[%s317 + $0x528] sm:$0xff]
        %v2615 = vld [vmem:[%s317 + $0x530] sm:$0xff]
        %v2616 = vld [vmem:[%s317 + $0x538] sm:$0xff]
        %v2617 = vld [vmem:[%s317 + $0x540] sm:$0xff]
        %v2618 = vld [vmem:[%s317 + $0x548] sm:$0xff]
        %v2619 = vld [vmem:[%s317 + $0x550] sm:$0xff]
        %v2620 = vld [vmem:[%s317 + $0x558] sm:$0xff]
        %v2621 = vld [vmem:[%s317 + $0x560] sm:$0xff]
        %v2622 = vld [vmem:[%s317 + $0x568] sm:$0xff]
        %v2623 = vld [vmem:[%s317 + $0x570] sm:$0xff]
        %v2624 = vld [vmem:[%s317 + $0x578] sm:$0xff]
        %v2625 = vld [vmem:[%s317 + $0x580] sm:$0xff]
        %v2626 = vld [vmem:[%s317 + $0x588] sm:$0xff]
        %v2627 = vld [vmem:[%s317 + $0x590] sm:$0xff]
        %v2628 = vld [vmem:[%s317 + $0x598] sm:$0xff]
        %v2629 = vld [vmem:[%s317 + $0x5a0] sm:$0xff]
        %v2630 = vld [vmem:[%s317 + $0x5a8] sm:$0xff]
        %v2631 = vld [vmem:[%s317 + $0x5b0] sm:$0xff]
        %v2632 = vld [vmem:[%s317 + $0x5b8] sm:$0xff]
        %v2633 = vld [vmem:[%s317 + $0x5c0] sm:$0xff]
        %v2634 = vld [vmem:[%s317 + $0x5c8] sm:$0xff]
        %v2635 = vld [vmem:[%s317 + $0x5d0] sm:$0xff]
        %v2636 = vld [vmem:[%s317 + $0x5d8] sm:$0xff]
        %v2637 = vld [vmem:[%s317 + $0x5e0] sm:$0xff]
        %v2638 = vld [vmem:[%s317 + $0x5e8] sm:$0xff]
        %v2639 = vld [vmem:[%s317 + $0x5f0] sm:$0xff]
        %v2640 = vld [vmem:[%s317 + $0x5f8] sm:$0xff]
        %v2641 = vld [vmem:[%s317 + $0x600] sm:$0xff]
        %v2642 = vld [vmem:[%s317 + $0x608] sm:$0xff]
        %v2643 = vld [vmem:[%s317 + $0x610] sm:$0xff]
        %v2644 = vld [vmem:[%s317 + $0x618] sm:$0xff]
        %v2645 = vld [vmem:[%s317 + $0x620] sm:$0xff]
        %v2646 = vld [vmem:[%s317 + $0x628] sm:$0xff]
        %v2647 = vld [vmem:[%s317 + $0x630] sm:$0xff]
        %v2648 = vld [vmem:[%s317 + $0x638] sm:$0xff]
        %v2649 = vld [vmem:[%s317 + $0x640] sm:$0xff]
        %v2650 = vld [vmem:[%s317 + $0x648] sm:$0xff]
        %v2651 = vld [vmem:[%s317 + $0x650] sm:$0xff]
        %v2652 = vld [vmem:[%s317 + $0x658] sm:$0xff]
        %v2653 = vld [vmem:[%s317 + $0x660] sm:$0xff]
        %v2654 = vld [vmem:[%s317 + $0x668] sm:$0xff]
        %v2655 = vld [vmem:[%s317 + $0x670] sm:$0xff]
        %v2656 = vld [vmem:[%s317 + $0x678] sm:$0xff]
        %v2657 = vld [vmem:[%s317 + $0x680] sm:$0xff]
        %v2658 = vld [vmem:[%s317 + $0x688] sm:$0xff]
        %v2659 = vld [vmem:[%s317 + $0x690] sm:$0xff]
        %v2660 = vld [vmem:[%s317 + $0x698] sm:$0xff]
        %v2661 = vld [vmem:[%s317 + $0x6a0] sm:$0xff]
        %v2662 = vld [vmem:[%s317 + $0x6a8] sm:$0xff]
        %v2663 = vld [vmem:[%s317 + $0x6b0] sm:$0xff]
        %v2664 = vld [vmem:[%s317 + $0x6b8] sm:$0xff]
        %v2665 = vld [vmem:[%s317 + $0x6c0] sm:$0xff]
        %v2666 = vld [vmem:[%s317 + $0x6c8] sm:$0xff]
        %v2667 = vld [vmem:[%s317 + $0x6d0] sm:$0xff]
        %v2668 = vld [vmem:[%s317 + $0x6d8] sm:$0xff]
        %v2669 = vld [vmem:[%s317 + $0x6e0] sm:$0xff]
        %v2670 = vld [vmem:[%s317 + $0x6e8] sm:$0xff]
        %v2671 = vld [vmem:[%s317 + $0x6f0] sm:$0xff]
        %v2672 = vld [vmem:[%s317 + $0x6f8] sm:$0xff]
        %v2673 = vld [vmem:[%s317 + $0x700] sm:$0xff]
        %v2674 = vld [vmem:[%s317 + $0x708] sm:$0xff]
        %v2675 = vld [vmem:[%s317 + $0x710] sm:$0xff]
        %v2676 = vld [vmem:[%s317 + $0x718] sm:$0xff]
        %v2677 = vld [vmem:[%s317 + $0x720] sm:$0xff]
        %v2678 = vld [vmem:[%s317 + $0x728] sm:$0xff]
        %v2679 = vld [vmem:[%s317 + $0x730] sm:$0xff]
        %v2680 = vld [vmem:[%s317 + $0x738] sm:$0xff]
        %v2681 = vld [vmem:[%s317 + $0x740] sm:$0xff]
        %v2682 = vld [vmem:[%s317 + $0x748] sm:$0xff]
        %v2683 = vld [vmem:[%s317 + $0x750] sm:$0xff]
        %v2684 = vld [vmem:[%s317 + $0x758] sm:$0xff]
        %v2685 = vld [vmem:[%s317 + $0x760] sm:$0xff]
        %v2686 = vld [vmem:[%s317 + $0x768] sm:$0xff]
        %v2687 = vld [vmem:[%s317 + $0x770] sm:$0xff]
        %v2688 = vld [vmem:[%s317 + $0x778] sm:$0xff]
        %v2689 = vld [vmem:[%s317 + $0x780] sm:$0xff]
        %v2690 = vld [vmem:[%s317 + $0x788] sm:$0xff]
        %v2691 = vld [vmem:[%s317 + $0x790] sm:$0xff]
        %v2692 = vld [vmem:[%s317 + $0x798] sm:$0xff]
        %v2693 = vld [vmem:[%s317 + $0x7a0] sm:$0xff]
        %v2694 = vld [vmem:[%s317 + $0x7a8] sm:$0xff]
        %v2695 = vld [vmem:[%s317 + $0x7b0] sm:$0xff]
        %v2696 = vld [vmem:[%s317 + $0x7b8] sm:$0xff]
        %v2697 = vld [vmem:[%s317 + $0x7c0] sm:$0xff]
        %v2698 = vld [vmem:[%s317 + $0x7c8] sm:$0xff]
        %v2699 = vld [vmem:[%s317 + $0x7d0] sm:$0xff]
        %v2700 = vld [vmem:[%s317 + $0x7d8] sm:$0xff]
        %v2701 = vld [vmem:[%s317 + $0x7e0] sm:$0xff]
        %v2702 = vld [vmem:[%s317 + $0x7e8] sm:$0xff]
        %v2703 = vld [vmem:[%s317 + $0x7f0] sm:$0xff]
        %v2704 = vld [vmem:[%s317 + $0x7f8] sm:$0xff]
        %v2961 = vunpack.c.l.b16 %v2449
        %v2962 = vunpack.c.h.b16 %v2449
        %v2963 = vunpack.c.l.b16 %v2450
        %v2964 = vunpack.c.h.b16 %v2450
        %v2965 = vunpack.c.l.b16 %v2451
        %v2966 = vunpack.c.h.b16 %v2451
        %v2967 = vunpack.c.l.b16 %v2452
        %v2968 = vunpack.c.h.b16 %v2452
        %v2969 = vunpack.c.l.b16 %v2453
        %v2970 = vunpack.c.h.b16 %v2453
        %v2971 = vunpack.c.l.b16 %v2454
        %v2972 = vunpack.c.h.b16 %v2454
        %v2973 = vunpack.c.l.b16 %v2455
        %v2974 = vunpack.c.h.b16 %v2455
        %v2975 = vunpack.c.l.b16 %v2456
        %v2976 = vunpack.c.h.b16 %v2456
        %v2977 = vunpack.c.l.b16 %v2457
        %v2978 = vunpack.c.h.b16 %v2457
        %v2979 = vunpack.c.l.b16 %v2458
        %v2980 = vunpack.c.h.b16 %v2458
        %v2981 = vunpack.c.l.b16 %v2459
        %v2982 = vunpack.c.h.b16 %v2459
        %v2983 = vunpack.c.l.b16 %v2460
        %v2984 = vunpack.c.h.b16 %v2460
        %v2985 = vunpack.c.l.b16 %v2461
        %v2986 = vunpack.c.h.b16 %v2461
        %v2987 = vunpack.c.l.b16 %v2462
        %v2988 = vunpack.c.h.b16 %v2462
        %v2989 = vunpack.c.l.b16 %v2463
        %v2990 = vunpack.c.h.b16 %v2463
        %v2991 = vunpack.c.l.b16 %v2464
        %v2992 = vunpack.c.h.b16 %v2464
        %v2993 = vunpack.c.l.b16 %v2465
        %v2994 = vunpack.c.h.b16 %v2465
        %v2995 = vunpack.c.l.b16 %v2466
        %v2996 = vunpack.c.h.b16 %v2466
        %v2997 = vunpack.c.l.b16 %v2467
        %v2998 = vunpack.c.h.b16 %v2467
        %v2999 = vunpack.c.l.b16 %v2468
        %v3000 = vunpack.c.h.b16 %v2468
        %v3001 = vunpack.c.l.b16 %v2469
        %v3002 = vunpack.c.h.b16 %v2469
        %v3003 = vunpack.c.l.b16 %v2470
        %v3004 = vunpack.c.h.b16 %v2470
        %v3005 = vunpack.c.l.b16 %v2471
        %v3006 = vunpack.c.h.b16 %v2471
        %v3007 = vunpack.c.l.b16 %v2472
        %v3008 = vunpack.c.h.b16 %v2472
        %v3009 = vunpack.c.l.b16 %v2473
        %v3010 = vunpack.c.h.b16 %v2473
        %v3011 = vunpack.c.l.b16 %v2474
        %v3012 = vunpack.c.h.b16 %v2474
        %v3013 = vunpack.c.l.b16 %v2475
        %v3014 = vunpack.c.h.b16 %v2475
        %v3015 = vunpack.c.l.b16 %v2476
        %v3016 = vunpack.c.h.b16 %v2476
        %v3017 = vunpack.c.l.b16 %v2477
        %v3018 = vunpack.c.h.b16 %v2477
        %v3019 = vunpack.c.l.b16 %v2478
        %v3020 = vunpack.c.h.b16 %v2478
        %v3021 = vunpack.c.l.b16 %v2479
        %v3022 = vunpack.c.h.b16 %v2479
        %v3023 = vunpack.c.l.b16 %v2480
        %v3024 = vunpack.c.h.b16 %v2480
        %v3025 = vunpack.c.l.b16 %v2481
        %v3026 = vunpack.c.h.b16 %v2481
        %v3027 = vunpack.c.l.b16 %v2482
        %v3028 = vunpack.c.h.b16 %v2482
        %v3029 = vunpack.c.l.b16 %v2483
        %v3030 = vunpack.c.h.b16 %v2483
        %v3031 = vunpack.c.l.b16 %v2484
        %v3032 = vunpack.c.h.b16 %v2484
        %v3033 = vunpack.c.l.b16 %v2485
        %v3034 = vunpack.c.h.b16 %v2485
        %v3035 = vunpack.c.l.b16 %v2486
        %v3036 = vunpack.c.h.b16 %v2486
        %v3037 = vunpack.c.l.b16 %v2487
        %v3038 = vunpack.c.h.b16 %v2487
        %v3039 = vunpack.c.l.b16 %v2488
        %v3040 = vunpack.c.h.b16 %v2488
        %v3041 = vunpack.c.l.b16 %v2489
        %v3042 = vunpack.c.h.b16 %v2489
        %v3043 = vunpack.c.l.b16 %v2490
        %v3044 = vunpack.c.h.b16 %v2490
        %v3045 = vunpack.c.l.b16 %v2491
        %v3046 = vunpack.c.h.b16 %v2491
        %v3047 = vunpack.c.l.b16 %v2492
        %v3048 = vunpack.c.h.b16 %v2492
        %v3049 = vunpack.c.l.b16 %v2493
        %v3050 = vunpack.c.h.b16 %v2493
        %v3051 = vunpack.c.l.b16 %v2494
        %v3052 = vunpack.c.h.b16 %v2494
        %v3053 = vunpack.c.l.b16 %v2495
        %v3054 = vunpack.c.h.b16 %v2495
        %v3055 = vunpack.c.l.b16 %v2496
        %v3056 = vunpack.c.h.b16 %v2496
        %v3057 = vunpack.c.l.b16 %v2497
        %v3058 = vunpack.c.h.b16 %v2497
        %v3059 = vunpack.c.l.b16 %v2498
        %v3060 = vunpack.c.h.b16 %v2498
        %v3061 = vunpack.c.l.b16 %v2499
        %v3062 = vunpack.c.h.b16 %v2499
        %v3063 = vunpack.c.l.b16 %v2500
        %v3064 = vunpack.c.h.b16 %v2500
        %v3065 = vunpack.c.l.b16 %v2501
        %v3066 = vunpack.c.h.b16 %v2501
        %v3067 = vunpack.c.l.b16 %v2502
        %v3068 = vunpack.c.h.b16 %v2502
        %v3069 = vunpack.c.l.b16 %v2503
        %v3070 = vunpack.c.h.b16 %v2503
        %v3071 = vunpack.c.l.b16 %v2504
        %v3072 = vunpack.c.h.b16 %v2504
        %v3073 = vunpack.c.l.b16 %v2505
        %v3074 = vunpack.c.h.b16 %v2505
        %v3075 = vunpack.c.l.b16 %v2506
        %v3076 = vunpack.c.h.b16 %v2506
        %v3077 = vunpack.c.l.b16 %v2507
        %v3078 = vunpack.c.h.b16 %v2507
        %v3079 = vunpack.c.l.b16 %v2508
        %v3080 = vunpack.c.h.b16 %v2508
        %v3081 = vunpack.c.l.b16 %v2509
        %v3082 = vunpack.c.h.b16 %v2509
        %v3083 = vunpack.c.l.b16 %v2510
        %v3084 = vunpack.c.h.b16 %v2510
        %v3085 = vunpack.c.l.b16 %v2511
        %v3086 = vunpack.c.h.b16 %v2511
        %v3087 = vunpack.c.l.b16 %v2512
        %v3088 = vunpack.c.h.b16 %v2512
        %v3089 = vunpack.c.l.b16 %v2513
        %v3090 = vunpack.c.h.b16 %v2513
        %v3091 = vunpack.c.l.b16 %v2514
        %v3092 = vunpack.c.h.b16 %v2514
        %v3093 = vunpack.c.l.b16 %v2515
        %v3094 = vunpack.c.h.b16 %v2515
        %v3095 = vunpack.c.l.b16 %v2516
        %v3096 = vunpack.c.h.b16 %v2516
        %v3097 = vunpack.c.l.b16 %v2517
        %v3098 = vunpack.c.h.b16 %v2517
        %v3099 = vunpack.c.l.b16 %v2518
        %v3100 = vunpack.c.h.b16 %v2518
        %v3101 = vunpack.c.l.b16 %v2519
        %v3102 = vunpack.c.h.b16 %v2519
        %v3103 = vunpack.c.l.b16 %v2520
        %v3104 = vunpack.c.h.b16 %v2520
        %v3105 = vunpack.c.l.b16 %v2521
        %v3106 = vunpack.c.h.b16 %v2521
        %v3107 = vunpack.c.l.b16 %v2522
        %v3108 = vunpack.c.h.b16 %v2522
        %v3109 = vunpack.c.l.b16 %v2523
        %v3110 = vunpack.c.h.b16 %v2523
        %v3111 = vunpack.c.l.b16 %v2524
        %v3112 = vunpack.c.h.b16 %v2524
        %v3113 = vunpack.c.l.b16 %v2525
        %v3114 = vunpack.c.h.b16 %v2525
        %v3115 = vunpack.c.l.b16 %v2526
        %v3116 = vunpack.c.h.b16 %v2526
        %v3117 = vunpack.c.l.b16 %v2527
        %v3118 = vunpack.c.h.b16 %v2527
        %v3119 = vunpack.c.l.b16 %v2528
        %v3120 = vunpack.c.h.b16 %v2528
        %v3121 = vunpack.c.l.b16 %v2529
        %v3122 = vunpack.c.h.b16 %v2529
        %v3123 = vunpack.c.l.b16 %v2530
        %v3124 = vunpack.c.h.b16 %v2530
        %v3125 = vunpack.c.l.b16 %v2531
        %v3126 = vunpack.c.h.b16 %v2531
        %v3127 = vunpack.c.l.b16 %v2532
        %v3128 = vunpack.c.h.b16 %v2532
        %v3129 = vunpack.c.l.b16 %v2533
        %v3130 = vunpack.c.h.b16 %v2533
        %v3131 = vunpack.c.l.b16 %v2534
        %v3132 = vunpack.c.h.b16 %v2534
        %v3133 = vunpack.c.l.b16 %v2535
        %v3134 = vunpack.c.h.b16 %v2535
        %v3135 = vunpack.c.l.b16 %v2536
        %v3136 = vunpack.c.h.b16 %v2536
        %v3137 = vunpack.c.l.b16 %v2537
        %v3138 = vunpack.c.h.b16 %v2537
        %v3139 = vunpack.c.l.b16 %v2538
        %v3140 = vunpack.c.h.b16 %v2538
        %v3141 = vunpack.c.l.b16 %v2539
        %v3142 = vunpack.c.h.b16 %v2539
        %v3143 = vunpack.c.l.b16 %v2540
        %v3144 = vunpack.c.h.b16 %v2540
        %v3145 = vunpack.c.l.b16 %v2541
        %v3146 = vunpack.c.h.b16 %v2541
        %v3147 = vunpack.c.l.b16 %v2542
        %v3148 = vunpack.c.h.b16 %v2542
        %v3149 = vunpack.c.l.b16 %v2543
        %v3150 = vunpack.c.h.b16 %v2543
        %v3151 = vunpack.c.l.b16 %v2544
        %v3152 = vunpack.c.h.b16 %v2544
        %v3153 = vunpack.c.l.b16 %v2545
        %v3154 = vunpack.c.h.b16 %v2545
        %v3155 = vunpack.c.l.b16 %v2546
        %v3156 = vunpack.c.h.b16 %v2546
        %v3157 = vunpack.c.l.b16 %v2547
        %v3158 = vunpack.c.h.b16 %v2547
        %v3159 = vunpack.c.l.b16 %v2548
        %v3160 = vunpack.c.h.b16 %v2548
        %v3161 = vunpack.c.l.b16 %v2549
        %v3162 = vunpack.c.h.b16 %v2549
        %v3163 = vunpack.c.l.b16 %v2550
        %v3164 = vunpack.c.h.b16 %v2550
        %v3165 = vunpack.c.l.b16 %v2551
        %v3166 = vunpack.c.h.b16 %v2551
        %v3167 = vunpack.c.l.b16 %v2552
        %v3168 = vunpack.c.h.b16 %v2552
        %v3169 = vunpack.c.l.b16 %v2553
        %v3170 = vunpack.c.h.b16 %v2553
        %v3171 = vunpack.c.l.b16 %v2554
        %v3172 = vunpack.c.h.b16 %v2554
        %v3173 = vunpack.c.l.b16 %v2555
        %v3174 = vunpack.c.h.b16 %v2555
        %v3175 = vunpack.c.l.b16 %v2556
        %v3176 = vunpack.c.h.b16 %v2556
        %v3177 = vunpack.c.l.b16 %v2557
        %v3178 = vunpack.c.h.b16 %v2557
        %v3179 = vunpack.c.l.b16 %v2558
        %v3180 = vunpack.c.h.b16 %v2558
        %v3181 = vunpack.c.l.b16 %v2559
        %v3182 = vunpack.c.h.b16 %v2559
        %v3183 = vunpack.c.l.b16 %v2560
        %v3184 = vunpack.c.h.b16 %v2560
        %v3185 = vunpack.c.l.b16 %v2561
        %v3186 = vunpack.c.h.b16 %v2561
        %v3187 = vunpack.c.l.b16 %v2562
        %v3188 = vunpack.c.h.b16 %v2562
        %v3189 = vunpack.c.l.b16 %v2563
        %v3190 = vunpack.c.h.b16 %v2563
        %v3191 = vunpack.c.l.b16 %v2564
        %v3192 = vunpack.c.h.b16 %v2564
        %v3193 = vunpack.c.l.b16 %v2565
        %v3194 = vunpack.c.h.b16 %v2565
        %v3195 = vunpack.c.l.b16 %v2566
        %v3196 = vunpack.c.h.b16 %v2566
        %v3197 = vunpack.c.l.b16 %v2567
        %v3198 = vunpack.c.h.b16 %v2567
        %v3199 = vunpack.c.l.b16 %v2568
        %v3200 = vunpack.c.h.b16 %v2568
        %v3201 = vunpack.c.l.b16 %v2569
        %v3202 = vunpack.c.h.b16 %v2569
        %v3203 = vunpack.c.l.b16 %v2570
        %v3204 = vunpack.c.h.b16 %v2570
        %v3205 = vunpack.c.l.b16 %v2571
        %v3206 = vunpack.c.h.b16 %v2571
        %v3207 = vunpack.c.l.b16 %v2572
        %v3208 = vunpack.c.h.b16 %v2572
        %v3209 = vunpack.c.l.b16 %v2573
        %v3210 = vunpack.c.h.b16 %v2573
        %v3211 = vunpack.c.l.b16 %v2574
        %v3212 = vunpack.c.h.b16 %v2574
        %v3213 = vunpack.c.l.b16 %v2575
        %v3214 = vunpack.c.h.b16 %v2575
        %v3215 = vunpack.c.l.b16 %v2576
        %v3216 = vunpack.c.h.b16 %v2576
        %v3217 = vunpack.c.l.b16 %v2577
        %v3218 = vunpack.c.h.b16 %v2577
        %v3219 = vunpack.c.l.b16 %v2578
        %v3220 = vunpack.c.h.b16 %v2578
        %v3221 = vunpack.c.l.b16 %v2579
        %v3222 = vunpack.c.h.b16 %v2579
        %v3223 = vunpack.c.l.b16 %v2580
        %v3224 = vunpack.c.h.b16 %v2580
        %v3225 = vunpack.c.l.b16 %v2581
        %v3226 = vunpack.c.h.b16 %v2581
        %v3227 = vunpack.c.l.b16 %v2582
        %v3228 = vunpack.c.h.b16 %v2582
        %v3229 = vunpack.c.l.b16 %v2583
        %v3230 = vunpack.c.h.b16 %v2583
        %v3231 = vunpack.c.l.b16 %v2584
        %v3232 = vunpack.c.h.b16 %v2584
        %v3233 = vunpack.c.l.b16 %v2585
        %v3234 = vunpack.c.h.b16 %v2585
        %v3235 = vunpack.c.l.b16 %v2586
        %v3236 = vunpack.c.h.b16 %v2586
        %v3237 = vunpack.c.l.b16 %v2587
        %v3238 = vunpack.c.h.b16 %v2587
        %v3239 = vunpack.c.l.b16 %v2588
        %v3240 = vunpack.c.h.b16 %v2588
        %v3241 = vunpack.c.l.b16 %v2589
        %v3242 = vunpack.c.h.b16 %v2589
        %v3243 = vunpack.c.l.b16 %v2590
        %v3244 = vunpack.c.h.b16 %v2590
        %v3245 = vunpack.c.l.b16 %v2591
        %v3246 = vunpack.c.h.b16 %v2591
        %v3247 = vunpack.c.l.b16 %v2592
        %v3248 = vunpack.c.h.b16 %v2592
        %v3249 = vunpack.c.l.b16 %v2593
        %v3250 = vunpack.c.h.b16 %v2593
        %v3251 = vunpack.c.l.b16 %v2594
        %v3252 = vunpack.c.h.b16 %v2594
        %v3253 = vunpack.c.l.b16 %v2595
        %v3254 = vunpack.c.h.b16 %v2595
        %v3255 = vunpack.c.l.b16 %v2596
        %v3256 = vunpack.c.h.b16 %v2596
        %v3257 = vunpack.c.l.b16 %v2597
        %v3258 = vunpack.c.h.b16 %v2597
        %v3259 = vunpack.c.l.b16 %v2598
        %v3260 = vunpack.c.h.b16 %v2598
        %v3261 = vunpack.c.l.b16 %v2599
        %v3262 = vunpack.c.h.b16 %v2599
        %v3263 = vunpack.c.l.b16 %v2600
        %v3264 = vunpack.c.h.b16 %v2600
        %v3265 = vunpack.c.l.b16 %v2601
        %v3266 = vunpack.c.h.b16 %v2601
        %v3267 = vunpack.c.l.b16 %v2602
        %v3268 = vunpack.c.h.b16 %v2602
        %v3269 = vunpack.c.l.b16 %v2603
        %v3270 = vunpack.c.h.b16 %v2603
        %v3271 = vunpack.c.l.b16 %v2604
        %v3272 = vunpack.c.h.b16 %v2604
        %v3273 = vunpack.c.l.b16 %v2605
        %v3274 = vunpack.c.h.b16 %v2605
        %v3275 = vunpack.c.l.b16 %v2606
        %v3276 = vunpack.c.h.b16 %v2606
        %v3277 = vunpack.c.l.b16 %v2607
        %v3278 = vunpack.c.h.b16 %v2607
        %v3279 = vunpack.c.l.b16 %v2608
        %v3280 = vunpack.c.h.b16 %v2608
        %v3281 = vunpack.c.l.b16 %v2609
        %v3282 = vunpack.c.h.b16 %v2609
        %v3283 = vunpack.c.l.b16 %v2610
        %v3284 = vunpack.c.h.b16 %v2610
        %v3285 = vunpack.c.l.b16 %v2611
        %v3286 = vunpack.c.h.b16 %v2611
        %v3287 = vunpack.c.l.b16 %v2612
        %v3288 = vunpack.c.h.b16 %v2612
        %v3289 = vunpack.c.l.b16 %v2613
        %v3290 = vunpack.c.h.b16 %v2613
        %v3291 = vunpack.c.l.b16 %v2614
        %v3292 = vunpack.c.h.b16 %v2614
        %v3293 = vunpack.c.l.b16 %v2615
        %v3294 = vunpack.c.h.b16 %v2615
        %v3295 = vunpack.c.l.b16 %v2616
        %v3296 = vunpack.c.h.b16 %v2616
        %v3297 = vunpack.c.l.b16 %v2617
        %v3298 = vunpack.c.h.b16 %v2617
        %v3299 = vunpack.c.l.b16 %v2618
        %v3300 = vunpack.c.h.b16 %v2618
        %v3301 = vunpack.c.l.b16 %v2619
        %v3302 = vunpack.c.h.b16 %v2619
        %v3303 = vunpack.c.l.b16 %v2620
        %v3304 = vunpack.c.h.b16 %v2620
        %v3305 = vunpack.c.l.b16 %v2621
        %v3306 = vunpack.c.h.b16 %v2621
        %v3307 = vunpack.c.l.b16 %v2622
        %v3308 = vunpack.c.h.b16 %v2622
        %v3309 = vunpack.c.l.b16 %v2623
        %v3310 = vunpack.c.h.b16 %v2623
        %v3311 = vunpack.c.l.b16 %v2624
        %v3312 = vunpack.c.h.b16 %v2624
        %v3313 = vunpack.c.l.b16 %v2625
        %v3314 = vunpack.c.h.b16 %v2625
        %v3315 = vunpack.c.l.b16 %v2626
        %v3316 = vunpack.c.h.b16 %v2626
        %v3317 = vunpack.c.l.b16 %v2627
        %v3318 = vunpack.c.h.b16 %v2627
        %v3319 = vunpack.c.l.b16 %v2628
        %v3320 = vunpack.c.h.b16 %v2628
        %v3321 = vunpack.c.l.b16 %v2629
        %v3322 = vunpack.c.h.b16 %v2629
        %v3323 = vunpack.c.l.b16 %v2630
        %v3324 = vunpack.c.h.b16 %v2630
        %v3325 = vunpack.c.l.b16 %v2631
        %v3326 = vunpack.c.h.b16 %v2631
        %v3327 = vunpack.c.l.b16 %v2632
        %v3328 = vunpack.c.h.b16 %v2632
        %v3329 = vunpack.c.l.b16 %v2633
        %v3330 = vunpack.c.h.b16 %v2633
        %v3331 = vunpack.c.l.b16 %v2634
        %v3332 = vunpack.c.h.b16 %v2634
        %v3333 = vunpack.c.l.b16 %v2635
        %v3334 = vunpack.c.h.b16 %v2635
        %v3335 = vunpack.c.l.b16 %v2636
        %v3336 = vunpack.c.h.b16 %v2636
        %v3337 = vunpack.c.l.b16 %v2637
        %v3338 = vunpack.c.h.b16 %v2637
        %v3339 = vunpack.c.l.b16 %v2638
        %v3340 = vunpack.c.h.b16 %v2638
        %v3341 = vunpack.c.l.b16 %v2639
        %v3342 = vunpack.c.h.b16 %v2639
        %v3343 = vunpack.c.l.b16 %v2640
        %v3344 = vunpack.c.h.b16 %v2640
        %v3345 = vunpack.c.l.b16 %v2641
        %v3346 = vunpack.c.h.b16 %v2641
        %v3347 = vunpack.c.l.b16 %v2642
        %v3348 = vunpack.c.h.b16 %v2642
        %v3349 = vunpack.c.l.b16 %v2643
        %v3350 = vunpack.c.h.b16 %v2643
        %v3351 = vunpack.c.l.b16 %v2644
        %v3352 = vunpack.c.h.b16 %v2644
        %v3353 = vunpack.c.l.b16 %v2645
        %v3354 = vunpack.c.h.b16 %v2645
        %v3355 = vunpack.c.l.b16 %v2646
        %v3356 = vunpack.c.h.b16 %v2646
        %v3357 = vunpack.c.l.b16 %v2647
        %v3358 = vunpack.c.h.b16 %v2647
        %v3359 = vunpack.c.l.b16 %v2648
        %v3360 = vunpack.c.h.b16 %v2648
        %v3361 = vunpack.c.l.b16 %v2649
        %v3362 = vunpack.c.h.b16 %v2649
        %v3363 = vunpack.c.l.b16 %v2650
        %v3364 = vunpack.c.h.b16 %v2650
        %v3365 = vunpack.c.l.b16 %v2651
        %v3366 = vunpack.c.h.b16 %v2651
        %v3367 = vunpack.c.l.b16 %v2652
        %v3368 = vunpack.c.h.b16 %v2652
        %v3369 = vunpack.c.l.b16 %v2653
        %v3370 = vunpack.c.h.b16 %v2653
        %v3371 = vunpack.c.l.b16 %v2654
        %v3372 = vunpack.c.h.b16 %v2654
        %v3373 = vunpack.c.l.b16 %v2655
        %v3374 = vunpack.c.h.b16 %v2655
        %v3375 = vunpack.c.l.b16 %v2656
        %v3376 = vunpack.c.h.b16 %v2656
        %v3377 = vunpack.c.l.b16 %v2657
        %v3378 = vunpack.c.h.b16 %v2657
        %v3379 = vunpack.c.l.b16 %v2658
        %v3380 = vunpack.c.h.b16 %v2658
        %v3381 = vunpack.c.l.b16 %v2659
        %v3382 = vunpack.c.h.b16 %v2659
        %v3383 = vunpack.c.l.b16 %v2660
        %v3384 = vunpack.c.h.b16 %v2660
        %v3385 = vunpack.c.l.b16 %v2661
        %v3386 = vunpack.c.h.b16 %v2661
        %v3387 = vunpack.c.l.b16 %v2662
        %v3388 = vunpack.c.h.b16 %v2662
        %v3389 = vunpack.c.l.b16 %v2663
        %v3390 = vunpack.c.h.b16 %v2663
        %v3391 = vunpack.c.l.b16 %v2664
        %v3392 = vunpack.c.h.b16 %v2664
        %v3393 = vunpack.c.l.b16 %v2665
        %v3394 = vunpack.c.h.b16 %v2665
        %v3395 = vunpack.c.l.b16 %v2666
        %v3396 = vunpack.c.h.b16 %v2666
        %v3397 = vunpack.c.l.b16 %v2667
        %v3398 = vunpack.c.h.b16 %v2667
        %v3399 = vunpack.c.l.b16 %v2668
        %v3400 = vunpack.c.h.b16 %v2668
        %v3401 = vunpack.c.l.b16 %v2669
        %v3402 = vunpack.c.h.b16 %v2669
        %v3403 = vunpack.c.l.b16 %v2670
        %v3404 = vunpack.c.h.b16 %v2670
        %v3405 = vunpack.c.l.b16 %v2671
        %v3406 = vunpack.c.h.b16 %v2671
        %v3407 = vunpack.c.l.b16 %v2672
        %v3408 = vunpack.c.h.b16 %v2672
        %v3409 = vunpack.c.l.b16 %v2673
        %v3410 = vunpack.c.h.b16 %v2673
        %v3411 = vunpack.c.l.b16 %v2674
        %v3412 = vunpack.c.h.b16 %v2674
        %v3413 = vunpack.c.l.b16 %v2675
        %v3414 = vunpack.c.h.b16 %v2675
        %v3415 = vunpack.c.l.b16 %v2676
        %v3416 = vunpack.c.h.b16 %v2676
        %v3417 = vunpack.c.l.b16 %v2677
        %v3418 = vunpack.c.h.b16 %v2677
        %v3419 = vunpack.c.l.b16 %v2678
        %v3420 = vunpack.c.h.b16 %v2678
        %v3421 = vunpack.c.l.b16 %v2679
        %v3422 = vunpack.c.h.b16 %v2679
        %v3423 = vunpack.c.l.b16 %v2680
        %v3424 = vunpack.c.h.b16 %v2680
        %v3425 = vunpack.c.l.b16 %v2681
        %v3426 = vunpack.c.h.b16 %v2681
        %v3427 = vunpack.c.l.b16 %v2682
        %v3428 = vunpack.c.h.b16 %v2682
        %v3429 = vunpack.c.l.b16 %v2683
        %v3430 = vunpack.c.h.b16 %v2683
        %v3431 = vunpack.c.l.b16 %v2684
        %v3432 = vunpack.c.h.b16 %v2684
        %v3433 = vunpack.c.l.b16 %v2685
        %v3434 = vunpack.c.h.b16 %v2685
        %v3435 = vunpack.c.l.b16 %v2686
        %v3436 = vunpack.c.h.b16 %v2686
        %v3437 = vunpack.c.l.b16 %v2687
        %v3438 = vunpack.c.h.b16 %v2687
        %v3439 = vunpack.c.l.b16 %v2688
        %v3440 = vunpack.c.h.b16 %v2688
        %v3441 = vunpack.c.l.b16 %v2689
        %v3442 = vunpack.c.h.b16 %v2689
        %v3443 = vunpack.c.l.b16 %v2690
        %v3444 = vunpack.c.h.b16 %v2690
        %v3445 = vunpack.c.l.b16 %v2691
        %v3446 = vunpack.c.h.b16 %v2691
        %v3447 = vunpack.c.l.b16 %v2692
        %v3448 = vunpack.c.h.b16 %v2692
        %v3449 = vunpack.c.l.b16 %v2693
        %v3450 = vunpack.c.h.b16 %v2693
        %v3451 = vunpack.c.l.b16 %v2694
        %v3452 = vunpack.c.h.b16 %v2694
        %v3453 = vunpack.c.l.b16 %v2695
        %v3454 = vunpack.c.h.b16 %v2695
        %v3455 = vunpack.c.l.b16 %v2696
        %v3456 = vunpack.c.h.b16 %v2696
        %v3457 = vunpack.c.l.b16 %v2697
        %v3458 = vunpack.c.h.b16 %v2697
        %v3459 = vunpack.c.l.b16 %v2698
        %v3460 = vunpack.c.h.b16 %v2698
        %v3461 = vunpack.c.l.b16 %v2699
        %v3462 = vunpack.c.h.b16 %v2699
        %v3463 = vunpack.c.l.b16 %v2700
        %v3464 = vunpack.c.h.b16 %v2700
        %v3465 = vunpack.c.l.b16 %v2701
        %v3466 = vunpack.c.h.b16 %v2701
        %v3467 = vunpack.c.l.b16 %v2702
        %v3468 = vunpack.c.h.b16 %v2702
        %v3469 = vunpack.c.l.b16 %v2703
        %v3470 = vunpack.c.h.b16 %v2703
        %v3471 = vunpack.c.l.b16 %v2704
        %v3472 = vunpack.c.h.b16 %v2704
        %v3473 = vpack.c.b16 %v2969, %v2961
        %v3474 = vpack.c.b16 %v2970, %v2962
        %v3475 = vpack.c.b16 %v2971, %v2963
        %v3476 = vpack.c.b16 %v2972, %v2964
        %v3477 = vpack.c.b16 %v2973, %v2965
        %v3478 = vpack.c.b16 %v2974, %v2966
        %v3479 = vpack.c.b16 %v2975, %v2967
        %v3480 = vpack.c.b16 %v2976, %v2968
        %v3481 = vpack.c.b16 %v2985, %v2977
        %v3482 = vpack.c.b16 %v2986, %v2978
        %v3483 = vpack.c.b16 %v2987, %v2979
        %v3484 = vpack.c.b16 %v2988, %v2980
        %v3485 = vpack.c.b16 %v2989, %v2981
        %v3486 = vpack.c.b16 %v2990, %v2982
        %v3487 = vpack.c.b16 %v2991, %v2983
        %v3488 = vpack.c.b16 %v2992, %v2984
        %v3489 = vpack.c.b16 %v3001, %v2993
        %v3490 = vpack.c.b16 %v3002, %v2994
        %v3491 = vpack.c.b16 %v3003, %v2995
        %v3492 = vpack.c.b16 %v3004, %v2996
        %v3493 = vpack.c.b16 %v3005, %v2997
        %v3494 = vpack.c.b16 %v3006, %v2998
        %v3495 = vpack.c.b16 %v3007, %v2999
        %v3496 = vpack.c.b16 %v3008, %v3000
        %v3497 = vpack.c.b16 %v3017, %v3009
        %v3498 = vpack.c.b16 %v3018, %v3010
        %v3499 = vpack.c.b16 %v3019, %v3011
        %v3500 = vpack.c.b16 %v3020, %v3012
        %v3501 = vpack.c.b16 %v3021, %v3013
        %v3502 = vpack.c.b16 %v3022, %v3014
        %v3503 = vpack.c.b16 %v3023, %v3015
        %v3504 = vpack.c.b16 %v3024, %v3016
        %v3505 = vpack.c.b16 %v3033, %v3025
        %v3506 = vpack.c.b16 %v3034, %v3026
        %v3507 = vpack.c.b16 %v3035, %v3027
        %v3508 = vpack.c.b16 %v3036, %v3028
        %v3509 = vpack.c.b16 %v3037, %v3029
        %v3510 = vpack.c.b16 %v3038, %v3030
        %v3511 = vpack.c.b16 %v3039, %v3031
        %v3512 = vpack.c.b16 %v3040, %v3032
        %v3513 = vpack.c.b16 %v3049, %v3041
        %v3514 = vpack.c.b16 %v3050, %v3042
        %v3515 = vpack.c.b16 %v3051, %v3043
        %v3516 = vpack.c.b16 %v3052, %v3044
        %v3517 = vpack.c.b16 %v3053, %v3045
        %v3518 = vpack.c.b16 %v3054, %v3046
        %v3519 = vpack.c.b16 %v3055, %v3047
        %v3520 = vpack.c.b16 %v3056, %v3048
        %v3521 = vpack.c.b16 %v3065, %v3057
        %v3522 = vpack.c.b16 %v3066, %v3058
        %v3523 = vpack.c.b16 %v3067, %v3059
        %v3524 = vpack.c.b16 %v3068, %v3060
        %v3525 = vpack.c.b16 %v3069, %v3061
        %v3526 = vpack.c.b16 %v3070, %v3062
        %v3527 = vpack.c.b16 %v3071, %v3063
        %v3528 = vpack.c.b16 %v3072, %v3064
        %v3529 = vpack.c.b16 %v3081, %v3073
        %v3530 = vpack.c.b16 %v3082, %v3074
        %v3531 = vpack.c.b16 %v3083, %v3075
        %v3532 = vpack.c.b16 %v3084, %v3076
        %v3533 = vpack.c.b16 %v3085, %v3077
        %v3534 = vpack.c.b16 %v3086, %v3078
        %v3535 = vpack.c.b16 %v3087, %v3079
        %v3536 = vpack.c.b16 %v3088, %v3080
        %v3537 = vpack.c.b16 %v3097, %v3089
        %v3538 = vpack.c.b16 %v3098, %v3090
        %v3539 = vpack.c.b16 %v3099, %v3091
        %v3540 = vpack.c.b16 %v3100, %v3092
        %v3541 = vpack.c.b16 %v3101, %v3093
        %v3542 = vpack.c.b16 %v3102, %v3094
        %v3543 = vpack.c.b16 %v3103, %v3095
        %v3544 = vpack.c.b16 %v3104, %v3096
        %v3545 = vpack.c.b16 %v3113, %v3105
        %v3546 = vpack.c.b16 %v3114, %v3106
        %v3547 = vpack.c.b16 %v3115, %v3107
        %v3548 = vpack.c.b16 %v3116, %v3108
        %v3549 = vpack.c.b16 %v3117, %v3109
        %v3550 = vpack.c.b16 %v3118, %v3110
        %v3551 = vpack.c.b16 %v3119, %v3111
        %v3552 = vpack.c.b16 %v3120, %v3112
        %v3553 = vpack.c.b16 %v3129, %v3121
        %v3554 = vpack.c.b16 %v3130, %v3122
        %v3555 = vpack.c.b16 %v3131, %v3123
        %v3556 = vpack.c.b16 %v3132, %v3124
        %v3557 = vpack.c.b16 %v3133, %v3125
        %v3558 = vpack.c.b16 %v3134, %v3126
        %v3559 = vpack.c.b16 %v3135, %v3127
        %v3560 = vpack.c.b16 %v3136, %v3128
        %v3561 = vpack.c.b16 %v3145, %v3137
        %v3562 = vpack.c.b16 %v3146, %v3138
        %v3563 = vpack.c.b16 %v3147, %v3139
        %v3564 = vpack.c.b16 %v3148, %v3140
        %v3565 = vpack.c.b16 %v3149, %v3141
        %v3566 = vpack.c.b16 %v3150, %v3142
        %v3567 = vpack.c.b16 %v3151, %v3143
        %v3568 = vpack.c.b16 %v3152, %v3144
        %v3569 = vpack.c.b16 %v3161, %v3153
        %v3570 = vpack.c.b16 %v3162, %v3154
        %v3571 = vpack.c.b16 %v3163, %v3155
        %v3572 = vpack.c.b16 %v3164, %v3156
        %v3573 = vpack.c.b16 %v3165, %v3157
        %v3574 = vpack.c.b16 %v3166, %v3158
        %v3575 = vpack.c.b16 %v3167, %v3159
        %v3576 = vpack.c.b16 %v3168, %v3160
        %v3577 = vpack.c.b16 %v3177, %v3169
        %v3578 = vpack.c.b16 %v3178, %v3170
        %v3579 = vpack.c.b16 %v3179, %v3171
        %v3580 = vpack.c.b16 %v3180, %v3172
        %v3581 = vpack.c.b16 %v3181, %v3173
        %v3582 = vpack.c.b16 %v3182, %v3174
        %v3583 = vpack.c.b16 %v3183, %v3175
        %v3584 = vpack.c.b16 %v3184, %v3176
        %v3585 = vpack.c.b16 %v3193, %v3185
        %v3586 = vpack.c.b16 %v3194, %v3186
        %v3587 = vpack.c.b16 %v3195, %v3187
        %v3588 = vpack.c.b16 %v3196, %v3188
        %v3589 = vpack.c.b16 %v3197, %v3189
        %v3590 = vpack.c.b16 %v3198, %v3190
        %v3591 = vpack.c.b16 %v3199, %v3191
        %v3592 = vpack.c.b16 %v3200, %v3192
        %v3593 = vpack.c.b16 %v3209, %v3201
        %v3594 = vpack.c.b16 %v3210, %v3202
        %v3595 = vpack.c.b16 %v3211, %v3203
        %v3596 = vpack.c.b16 %v3212, %v3204
        %v3597 = vpack.c.b16 %v3213, %v3205
        %v3598 = vpack.c.b16 %v3214, %v3206
        %v3599 = vpack.c.b16 %v3215, %v3207
        %v3600 = vpack.c.b16 %v3216, %v3208
        %v3601 = vpack.c.b16 %v3225, %v3217
        %v3602 = vpack.c.b16 %v3226, %v3218
        %v3603 = vpack.c.b16 %v3227, %v3219
        %v3604 = vpack.c.b16 %v3228, %v3220
        %v3605 = vpack.c.b16 %v3229, %v3221
        %v3606 = vpack.c.b16 %v3230, %v3222
        %v3607 = vpack.c.b16 %v3231, %v3223
        %v3608 = vpack.c.b16 %v3232, %v3224
        %v3609 = vpack.c.b16 %v3241, %v3233
        %v3610 = vpack.c.b16 %v3242, %v3234
        %v3611 = vpack.c.b16 %v3243, %v3235
        %v3612 = vpack.c.b16 %v3244, %v3236
        %v3613 = vpack.c.b16 %v3245, %v3237
        %v3614 = vpack.c.b16 %v3246, %v3238
        %v3615 = vpack.c.b16 %v3247, %v3239
        %v3616 = vpack.c.b16 %v3248, %v3240
        %v3617 = vpack.c.b16 %v3257, %v3249
        %v3618 = vpack.c.b16 %v3258, %v3250
        %v3619 = vpack.c.b16 %v3259, %v3251
        %v3620 = vpack.c.b16 %v3260, %v3252
        %v3621 = vpack.c.b16 %v3261, %v3253
        %v3622 = vpack.c.b16 %v3262, %v3254
        %v3623 = vpack.c.b16 %v3263, %v3255
        %v3624 = vpack.c.b16 %v3264, %v3256
        %v3625 = vpack.c.b16 %v3273, %v3265
        %v3626 = vpack.c.b16 %v3274, %v3266
        %v3627 = vpack.c.b16 %v3275, %v3267
        %v3628 = vpack.c.b16 %v3276, %v3268
        %v3629 = vpack.c.b16 %v3277, %v3269
        %v3630 = vpack.c.b16 %v3278, %v3270
        %v3631 = vpack.c.b16 %v3279, %v3271
        %v3632 = vpack.c.b16 %v3280, %v3272
        %v3633 = vpack.c.b16 %v3289, %v3281
        %v3634 = vpack.c.b16 %v3290, %v3282
        %v3635 = vpack.c.b16 %v3291, %v3283
        %v3636 = vpack.c.b16 %v3292, %v3284
        %v3637 = vpack.c.b16 %v3293, %v3285
        %v3638 = vpack.c.b16 %v3294, %v3286
        %v3639 = vpack.c.b16 %v3295, %v3287
        %v3640 = vpack.c.b16 %v3296, %v3288
        %v3641 = vpack.c.b16 %v3305, %v3297
        %v3642 = vpack.c.b16 %v3306, %v3298
        %v3643 = vpack.c.b16 %v3307, %v3299
        %v3644 = vpack.c.b16 %v3308, %v3300
        %v3645 = vpack.c.b16 %v3309, %v3301
        %v3646 = vpack.c.b16 %v3310, %v3302
        %v3647 = vpack.c.b16 %v3311, %v3303
        %v3648 = vpack.c.b16 %v3312, %v3304
        %v3649 = vpack.c.b16 %v3321, %v3313
        %v3650 = vpack.c.b16 %v3322, %v3314
        %v3651 = vpack.c.b16 %v3323, %v3315
        %v3652 = vpack.c.b16 %v3324, %v3316
        %v3653 = vpack.c.b16 %v3325, %v3317
        %v3654 = vpack.c.b16 %v3326, %v3318
        %v3655 = vpack.c.b16 %v3327, %v3319
        %v3656 = vpack.c.b16 %v3328, %v3320
        %v3657 = vpack.c.b16 %v3337, %v3329
        %v3658 = vpack.c.b16 %v3338, %v3330
        %v3659 = vpack.c.b16 %v3339, %v3331
        %v3660 = vpack.c.b16 %v3340, %v3332
        %v3661 = vpack.c.b16 %v3341, %v3333
        %v3662 = vpack.c.b16 %v3342, %v3334
        %v3663 = vpack.c.b16 %v3343, %v3335
        %v3664 = vpack.c.b16 %v3344, %v3336
        %v3665 = vpack.c.b16 %v3353, %v3345
        %v3666 = vpack.c.b16 %v3354, %v3346
        %v3667 = vpack.c.b16 %v3355, %v3347
        %v3668 = vpack.c.b16 %v3356, %v3348
        %v3669 = vpack.c.b16 %v3357, %v3349
        %v3670 = vpack.c.b16 %v3358, %v3350
        %v3671 = vpack.c.b16 %v3359, %v3351
        %v3672 = vpack.c.b16 %v3360, %v3352
        %v3673 = vpack.c.b16 %v3369, %v3361
        %v3674 = vpack.c.b16 %v3370, %v3362
        %v3675 = vpack.c.b16 %v3371, %v3363
        %v3676 = vpack.c.b16 %v3372, %v3364
        %v3677 = vpack.c.b16 %v3373, %v3365
        %v3678 = vpack.c.b16 %v3374, %v3366
        %v3679 = vpack.c.b16 %v3375, %v3367
        %v3680 = vpack.c.b16 %v3376, %v3368
        %v3681 = vpack.c.b16 %v3385, %v3377
        %v3682 = vpack.c.b16 %v3386, %v3378
        %v3683 = vpack.c.b16 %v3387, %v3379
        %v3684 = vpack.c.b16 %v3388, %v3380
        %v3685 = vpack.c.b16 %v3389, %v3381
        %v3686 = vpack.c.b16 %v3390, %v3382
        %v3687 = vpack.c.b16 %v3391, %v3383
        %v3688 = vpack.c.b16 %v3392, %v3384
        %v3689 = vpack.c.b16 %v3401, %v3393
        %v3690 = vpack.c.b16 %v3402, %v3394
        %v3691 = vpack.c.b16 %v3403, %v3395
        %v3692 = vpack.c.b16 %v3404, %v3396
        %v3693 = vpack.c.b16 %v3405, %v3397
        %v3694 = vpack.c.b16 %v3406, %v3398
        %v3695 = vpack.c.b16 %v3407, %v3399
        %v3696 = vpack.c.b16 %v3408, %v3400
        %v3697 = vpack.c.b16 %v3417, %v3409
        %v3698 = vpack.c.b16 %v3418, %v3410
        %v3699 = vpack.c.b16 %v3419, %v3411
        %v3700 = vpack.c.b16 %v3420, %v3412
        %v3701 = vpack.c.b16 %v3421, %v3413
        %v3702 = vpack.c.b16 %v3422, %v3414
        %v3703 = vpack.c.b16 %v3423, %v3415
        %v3704 = vpack.c.b16 %v3424, %v3416
        %v3705 = vpack.c.b16 %v3433, %v3425
        %v3706 = vpack.c.b16 %v3434, %v3426
        %v3707 = vpack.c.b16 %v3435, %v3427
        %v3708 = vpack.c.b16 %v3436, %v3428
        %v3709 = vpack.c.b16 %v3437, %v3429
        %v3710 = vpack.c.b16 %v3438, %v3430
        %v3711 = vpack.c.b16 %v3439, %v3431
        %v3712 = vpack.c.b16 %v3440, %v3432
        %v3713 = vpack.c.b16 %v3449, %v3441
        %v3714 = vpack.c.b16 %v3450, %v3442
        %v3715 = vpack.c.b16 %v3451, %v3443
        %v3716 = vpack.c.b16 %v3452, %v3444
        %v3717 = vpack.c.b16 %v3453, %v3445
        %v3718 = vpack.c.b16 %v3454, %v3446
        %v3719 = vpack.c.b16 %v3455, %v3447
        %v3720 = vpack.c.b16 %v3456, %v3448
        %v3721 = vpack.c.b16 %v3465, %v3457
        %v3722 = vpack.c.b16 %v3466, %v3458
        %v3723 = vpack.c.b16 %v3467, %v3459
        %v3724 = vpack.c.b16 %v3468, %v3460
        %v3725 = vpack.c.b16 %v3469, %v3461
        %v3726 = vpack.c.b16 %v3470, %v3462
        %v3727 = vpack.c.b16 %v3471, %v3463
        %v3728 = vpack.c.b16 %v3472, %v3464
        %3985 = vmatprep.subr.bf16.mxu0 %v3474
        %3986 = vmatpush1.bf16.msra.mxu0 %v3473
        %3987 = vmatprep.subr.bf16.mxu0 %v3482
        %3988 = vmatpush1.bf16.msra.mxu0 %v3481
        %3989 = vmatprep.subr.bf16.mxu0 %v3490
        %3990 = vmatpush1.bf16.msra.mxu0 %v3489
        %3991 = vmatprep.subr.bf16.mxu0 %v3498
        %3992 = vmatpush1.bf16.msra.mxu0 %v3497
        %3993 = vmatprep.subr.bf16.mxu0 %v3506
        %3994 = vmatpush1.bf16.msra.mxu0 %v3505
        %3995 = vmatprep.subr.bf16.mxu0 %v3514
        %3996 = vmatpush1.bf16.msra.mxu0 %v3513
        %3997 = vmatprep.subr.bf16.mxu0 %v3522
        %3998 = vmatpush1.bf16.msra.mxu0 %v3521
        %3999 = vmatprep.subr.bf16.mxu0 %v3530
        %4000 = vmatpush1.bf16.msra.mxu0 %v3529
        %4001 = vmatprep.subr.bf16.mxu0 %v3538
        %4002 = vmatpush1.bf16.msra.mxu0 %v3537
        %4003 = vmatprep.subr.bf16.mxu0 %v3546
        %4004 = vmatpush1.bf16.msra.mxu0 %v3545
        %4005 = vmatprep.subr.bf16.mxu0 %v3554
        %4006 = vmatpush1.bf16.msra.mxu0 %v3553
        %4007 = vmatprep.subr.bf16.mxu0 %v3562
        %4008 = vmatpush1.bf16.msra.mxu0 %v3561
        %4009 = vmatprep.subr.bf16.mxu0 %v3570
        %4010 = vmatpush1.bf16.msra.mxu0 %v3569
        %4011 = vmatprep.subr.bf16.mxu0 %v3578
        %4012 = vmatpush1.bf16.msra.mxu0 %v3577
        %4013 = vmatprep.subr.bf16.mxu0 %v3586
        %4014 = vmatpush1.bf16.msra.mxu0 %v3585
        %4015 = vmatprep.subr.bf16.mxu0 %v3594
        %4016 = vmatpush1.bf16.msra.mxu0 %v3593
        %4017 = vmatprep.mubr.bf16.mxu0 %v2446
        %4018 = vmatmul.mubr.bf16.gmra.mrb[0].mxu0 %v2445
        %v4019 = vpop.f32.mrb[0].mxu0
        %v4020 = vadd.f32 0.0, %v4019
        %v4021 = vpop.f32.mrb[0].mxu0
        %v4022 = vadd.f32 0.0, %v4021
        %v4023 = vpop.f32.mrb[0].mxu0
        %v4024 = vpop.f32.mrb[0].mxu0
        %4025 = vdwg.mxu0
        %4026 = vmatprep.subr.bf16.mxu0 %v3602
        %4027 = vmatpush1.bf16.msra.mxu0 %v3601
        %4028 = vmatprep.subr.bf16.mxu0 %v3610
        %4029 = vmatpush1.bf16.msra.mxu0 %v3609
        %4030 = vmatprep.subr.bf16.mxu0 %v3618
        %4031 = vmatpush1.bf16.msra.mxu0 %v3617
        %4032 = vmatprep.subr.bf16.mxu0 %v3626
        %4033 = vmatpush1.bf16.msra.mxu0 %v3625
        %4034 = vmatprep.subr.bf16.mxu0 %v3634
        %4035 = vmatpush1.bf16.msra.mxu0 %v3633
        %4036 = vmatprep.subr.bf16.mxu0 %v3642
        %4037 = vmatpush1.bf16.msra.mxu0 %v3641
        %4038 = vmatprep.subr.bf16.mxu0 %v3650
        %4039 = vmatpush1.bf16.msra.mxu0 %v3649
        %4040 = vmatprep.subr.bf16.mxu0 %v3658
        %4041 = vmatpush1.bf16.msra.mxu0 %v3657
        %4042 = vmatprep.subr.bf16.mxu0 %v3666
        %4043 = vmatpush1.bf16.msra.mxu0 %v3665
        %4044 = vmatprep.subr.bf16.mxu0 %v3674
        %4045 = vmatpush1.bf16.msra.mxu0 %v3673
        %4046 = vmatprep.subr.bf16.mxu0 %v3682
        %4047 = vmatpush1.bf16.msra.mxu0 %v3681
        %4048 = vmatprep.subr.bf16.mxu0 %v3690
        %4049 = vmatpush1.bf16.msra.mxu0 %v3689
        %4050 = vmatprep.subr.bf16.mxu0 %v3698
        %4051 = vmatpush1.bf16.msra.mxu0 %v3697
        %4052 = vmatprep.subr.bf16.mxu0 %v3706
        %4053 = vmatpush1.bf16.msra.mxu0 %v3705
        %4054 = vmatprep.subr.bf16.mxu0 %v3714
        %4055 = vmatpush1.bf16.msra.mxu0 %v3713
        %4056 = vmatprep.subr.bf16.mxu0 %v3722
        %4057 = vmatpush1.bf16.msra.mxu0 %v3721
        %4058 = vmatprep.mubr.bf16.mxu0 %v2448
        %4059 = vmatmul.mubr.bf16.gmra.mrb[0].mxu0 %v2447
        %v4060 = vpop.f32.mrb[0].mxu0
        %v4061 = vadd.f32 %v4020, %v4060
        %v4062 = vpop.f32.mrb[0].mxu0
        %v4063 = vadd.f32 %v4022, %v4062
        %v4064 = vpop.f32.mrb[0].mxu0
        %v4065 = vpop.f32.mrb[0].mxu0
        %4066 = vdwg.mxu0
        %4067 = vmatprep.subr.bf16.mxu0 %v3476
        %4068 = vmatpush1.bf16.msra.mxu0 %v3475
        %4069 = vmatprep.subr.bf16.mxu0 %v3484
        %4070 = vmatpush1.bf16.msra.mxu0 %v3483
        %4071 = vmatprep.subr.bf16.mxu0 %v3492
        %4072 = vmatpush1.bf16.msra.mxu0 %v3491
        %4073 = vmatprep.subr.bf16.mxu0 %v3500
        %4074 = vmatpush1.bf16.msra.mxu0 %v3499
        %4075 = vmatprep.subr.bf16.mxu0 %v3508
        %4076 = vmatpush1.bf16.msra.mxu0 %v3507
        %4077 = vmatprep.subr.bf16.mxu0 %v3516
        %4078 = vmatpush1.bf16.msra.mxu0 %v3515
        %4079 = vmatprep.subr.bf16.mxu0 %v3524
        %4080 = vmatpush1.bf16.msra.mxu0 %v3523
        %4081 = vmatprep.subr.bf16.mxu0 %v3532
        %4082 = vmatpush1.bf16.msra.mxu0 %v3531
        %4083 = vmatprep.subr.bf16.mxu0 %v3540
        %4084 = vmatpush1.bf16.msra.mxu0 %v3539
        %4085 = vmatprep.subr.bf16.mxu0 %v3548
        %4086 = vmatpush1.bf16.msra.mxu0 %v3547
        %4087 = vmatprep.subr.bf16.mxu0 %v3556
        %4088 = vmatpush1.bf16.msra.mxu0 %v3555
        %4089 = vmatprep.subr.bf16.mxu0 %v3564
        %4090 = vmatpush1.bf16.msra.mxu0 %v3563
        %4091 = vmatprep.subr.bf16.mxu0 %v3572
        %4092 = vmatpush1.bf16.msra.mxu0 %v3571
        %4093 = vmatprep.subr.bf16.mxu0 %v3580
        %4094 = vmatpush1.bf16.msra.mxu0 %v3579
        %4095 = vmatprep.subr.bf16.mxu0 %v3588
        %4096 = vmatpush1.bf16.msra.mxu0 %v3587
        %4097 = vmatprep.subr.bf16.mxu0 %v3596
        %4098 = vmatpush1.bf16.msra.mxu0 %v3595
        %4099 = vmatprep.mubr.bf16.mxu0 %v2446
        %4100 = vmatmul.mubr.bf16.gmra.mrb[0].mxu0 %v2445
        %v4101 = vpop.f32.mrb[0].mxu0
        %v4102 = vadd.f32 0.0, %v4101
        %v4103 = vpop.f32.mrb[0].mxu0
        %v4104 = vadd.f32 0.0, %v4103
        %v4105 = vpop.f32.mrb[0].mxu0
        %v4106 = vpop.f32.mrb[0].mxu0
        %4107 = vdwg.mxu0
        %4108 = vmatprep.subr.bf16.mxu0 %v3604
        %4109 = vmatpush1.bf16.msra.mxu0 %v3603
        %4110 = vmatprep.subr.bf16.mxu0 %v3612
        %4111 = vmatpush1.bf16.msra.mxu0 %v3611
        %4112 = vmatprep.subr.bf16.mxu0 %v3620
        %4113 = vmatpush1.bf16.msra.mxu0 %v3619
        %4114 = vmatprep.subr.bf16.mxu0 %v3628
        %4115 = vmatpush1.bf16.msra.mxu0 %v3627
        %4116 = vmatprep.subr.bf16.mxu0 %v3636
        %4117 = vmatpush1.bf16.msra.mxu0 %v3635
        %4118 = vmatprep.subr.bf16.mxu0 %v3644
        %4119 = vmatpush1.bf16.msra.mxu0 %v3643
        %4120 = vmatprep.subr.bf16.mxu0 %v3652
        %4121 = vmatpush1.bf16.msra.mxu0 %v3651
        %4122 = vmatprep.subr.bf16.mxu0 %v3660
        %4123 = vmatpush1.bf16.msra.mxu0 %v3659
        %4124 = vmatprep.subr.bf16.mxu0 %v3668
        %4125 = vmatpush1.bf16.msra.mxu0 %v3667
        %4126 = vmatprep.subr.bf16.mxu0 %v3676
        %4127 = vmatpush1.bf16.msra.mxu0 %v3675
        %4128 = vmatprep.subr.bf16.mxu0 %v3684
        %4129 = vmatpush1.bf16.msra.mxu0 %v3683
        %4130 = vmatprep.subr.bf16.mxu0 %v3692
        %4131 = vmatpush1.bf16.msra.mxu0 %v3691
        %4132 = vmatprep.subr.bf16.mxu0 %v3700
        %4133 = vmatpush1.bf16.msra.mxu0 %v3699
        %4134 = vmatprep.subr.bf16.mxu0 %v3708
        %4135 = vmatpush1.bf16.msra.mxu0 %v3707
        %4136 = vmatprep.subr.bf16.mxu0 %v3716
        %4137 = vmatpush1.bf16.msra.mxu0 %v3715
        %4138 = vmatprep.subr.bf16.mxu0 %v3724
        %4139 = vmatpush1.bf16.msra.mxu0 %v3723
        %4140 = vmatprep.mubr.bf16.mxu0 %v2448
        %4141 = vmatmul.mubr.bf16.gmra.mrb[0].mxu0 %v2447
        %v4142 = vpop.f32.mrb[0].mxu0
        %v4143 = vadd.f32 %v4102, %v4142
        %v4144 = vpop.f32.mrb[0].mxu0
        %v4145 = vadd.f32 %v4104, %v4144
        %v4146 = vpop.f32.mrb[0].mxu0
        %v4147 = vpop.f32.mrb[0].mxu0
        %4148 = vdwg.mxu0
        %4149 = vmatprep.subr.bf16.mxu0 %v3478
        %4150 = vmatpush1.bf16.msra.mxu0 %v3477
        %4151 = vmatprep.subr.bf16.mxu0 %v3486
        %4152 = vmatpush1.bf16.msra.mxu0 %v3485
        %4153 = vmatprep.subr.bf16.mxu0 %v3494
        %4154 = vmatpush1.bf16.msra.mxu0 %v3493
        %4155 = vmatprep.subr.bf16.mxu0 %v3502
        %4156 = vmatpush1.bf16.msra.mxu0 %v3501
        %4157 = vmatprep.subr.bf16.mxu0 %v3510
        %4158 = vmatpush1.bf16.msra.mxu0 %v3509
        %4159 = vmatprep.subr.bf16.mxu0 %v3518
        %4160 = vmatpush1.bf16.msra.mxu0 %v3517
        %4161 = vmatprep.subr.bf16.mxu0 %v3526
        %4162 = vmatpush1.bf16.msra.mxu0 %v3525
        %4163 = vmatprep.subr.bf16.mxu0 %v3534
        %4164 = vmatpush1.bf16.msra.mxu0 %v3533
        %4165 = vmatprep.subr.bf16.mxu0 %v3542
        %4166 = vmatpush1.bf16.msra.mxu0 %v3541
        %4167 = vmatprep.subr.bf16.mxu0 %v3550
        %4168 = vmatpush1.bf16.msra.mxu0 %v3549
        %4169 = vmatprep.subr.bf16.mxu0 %v3558
        %4170 = vmatpush1.bf16.msra.mxu0 %v3557
        %4171 = vmatprep.subr.bf16.mxu0 %v3566
        %4172 = vmatpush1.bf16.msra.mxu0 %v3565
        %4173 = vmatprep.subr.bf16.mxu0 %v3574
        %4174 = vmatpush1.bf16.msra.mxu0 %v3573
        %4175 = vmatprep.subr.bf16.mxu0 %v3582
        %4176 = vmatpush1.bf16.msra.mxu0 %v3581
        %4177 = vmatprep.subr.bf16.mxu0 %v3590
        %4178 = vmatpush1.bf16.msra.mxu0 %v3589
        %4179 = vmatprep.subr.bf16.mxu0 %v3598
        %4180 = vmatpush1.bf16.msra.mxu0 %v3597
        %4181 = vmatprep.mubr.bf16.mxu0 %v2446
        %4182 = vmatmul.mubr.bf16.gmra.mrb[0].mxu0 %v2445
        %v4183 = vpop.f32.mrb[0].mxu0
        %v4184 = vadd.f32 0.0, %v4183
        %v4185 = vpop.f32.mrb[0].mxu0
        %v4186 = vadd.f32 0.0, %v4185
        %v4187 = vpop.f32.mrb[0].mxu0
        %v4188 = vpop.f32.mrb[0].mxu0
        %4189 = vdwg.mxu0
        %4190 = vmatprep.subr.bf16.mxu0 %v3606
        %4191 = vmatpush1.bf16.msra.mxu0 %v3605
        %4192 = vmatprep.subr.bf16.mxu0 %v3614
        %4193 = vmatpush1.bf16.msra.mxu0 %v3613
        %4194 = vmatprep.subr.bf16.mxu0 %v3622
        %4195 = vmatpush1.bf16.msra.mxu0 %v3621
        %4196 = vmatprep.subr.bf16.mxu0 %v3630
        %4197 = vmatpush1.bf16.msra.mxu0 %v3629
        %4198 = vmatprep.subr.bf16.mxu0 %v3638
        %4199 = vmatpush1.bf16.msra.mxu0 %v3637
        %4200 = vmatprep.subr.bf16.mxu0 %v3646
        %4201 = vmatpush1.bf16.msra.mxu0 %v3645
        %4202 = vmatprep.subr.bf16.mxu0 %v3654
        %4203 = vmatpush1.bf16.msra.mxu0 %v3653
        %4204 = vmatprep.subr.bf16.mxu0 %v3662
        %4205 = vmatpush1.bf16.msra.mxu0 %v3661
        %4206 = vmatprep.subr.bf16.mxu0 %v3670
        %4207 = vmatpush1.bf16.msra.mxu0 %v3669
        %4208 = vmatprep.subr.bf16.mxu0 %v3678
        %4209 = vmatpush1.bf16.msra.mxu0 %v3677
        %4210 = vmatprep.subr.bf16.mxu0 %v3686
        %4211 = vmatpush1.bf16.msra.mxu0 %v3685
        %4212 = vmatprep.subr.bf16.mxu0 %v3694
        %4213 = vmatpush1.bf16.msra.mxu0 %v3693
        %4214 = vmatprep.subr.bf16.mxu0 %v3702
        %4215 = vmatpush1.bf16.msra.mxu0 %v3701
        %4216 = vmatprep.subr.bf16.mxu0 %v3710
        %4217 = vmatpush1.bf16.msra.mxu0 %v3709
        %4218 = vmatprep.subr.bf16.mxu0 %v3718
        %4219 = vmatpush1.bf16.msra.mxu0 %v3717
        %4220 = vmatprep.subr.bf16.mxu0 %v3726
        %4221 = vmatpush1.bf16.msra.mxu0 %v3725
        %4222 = vmatprep.mubr.bf16.mxu0 %v2448
        %4223 = vmatmul.mubr.bf16.gmra.mrb[0].mxu0 %v2447
        %v4224 = vpop.f32.mrb[0].mxu0
        %v4225 = vadd.f32 %v4184, %v4224
        %v4226 = vpop.f32.mrb[0].mxu0
        %v4227 = vadd.f32 %v4186, %v4226
        %v4228 = vpop.f32.mrb[0].mxu0
        %v4229 = vpop.f32.mrb[0].mxu0
        %4230 = vdwg.mxu0
        %4231 = vmatprep.subr.bf16.mxu0 %v3480
        %4232 = vmatpush1.bf16.msra.mxu0 %v3479
        %4233 = vmatprep.subr.bf16.mxu0 %v3488
        %4234 = vmatpush1.bf16.msra.mxu0 %v3487
        %4235 = vmatprep.subr.bf16.mxu0 %v3496
        %4236 = vmatpush1.bf16.msra.mxu0 %v3495
        %4237 = vmatprep.subr.bf16.mxu0 %v3504
        %4238 = vmatpush1.bf16.msra.mxu0 %v3503
        %4239 = vmatprep.subr.bf16.mxu0 %v3512
        %4240 = vmatpush1.bf16.msra.mxu0 %v3511
        %4241 = vmatprep.subr.bf16.mxu0 %v3520
        %4242 = vmatpush1.bf16.msra.mxu0 %v3519
        %4243 = vmatprep.subr.bf16.mxu0 %v3528
        %4244 = vmatpush1.bf16.msra.mxu0 %v3527
        %4245 = vmatprep.subr.bf16.mxu0 %v3536
        %4246 = vmatpush1.bf16.msra.mxu0 %v3535
        %4247 = vmatprep.subr.bf16.mxu0 %v3544
        %4248 = vmatpush1.bf16.msra.mxu0 %v3543
        %4249 = vmatprep.subr.bf16.mxu0 %v3552
        %4250 = vmatpush1.bf16.msra.mxu0 %v3551
        %4251 = vmatprep.subr.bf16.mxu0 %v3560
        %4252 = vmatpush1.bf16.msra.mxu0 %v3559
        %4253 = vmatprep.subr.bf16.mxu0 %v3568
        %4254 = vmatpush1.bf16.msra.mxu0 %v3567
        %4255 = vmatprep.subr.bf16.mxu0 %v3576
        %4256 = vmatpush1.bf16.msra.mxu0 %v3575
        %4257 = vmatprep.subr.bf16.mxu0 %v3584
        %4258 = vmatpush1.bf16.msra.mxu0 %v3583
        %4259 = vmatprep.subr.bf16.mxu0 %v3592
        %4260 = vmatpush1.bf16.msra.mxu0 %v3591
        %4261 = vmatprep.subr.bf16.mxu0 %v3600
        %4262 = vmatpush1.bf16.msra.mxu0 %v3599
        %4263 = vmatprep.mubr.bf16.mxu0 %v2446
        %4264 = vmatmul.mubr.bf16.gmra.mrb[0].mxu0 %v2445
        %v4265 = vpop.f32.mrb[0].mxu0
        %v4266 = vadd.f32 0.0, %v4265
        %v4267 = vpop.f32.mrb[0].mxu0
        %v4268 = vadd.f32 0.0, %v4267
        %v4269 = vpop.f32.mrb[0].mxu0
        %v4270 = vpop.f32.mrb[0].mxu0
        %4271 = vdwg.mxu0
        %4272 = vmatprep.subr.bf16.mxu0 %v3608
        %4273 = vmatpush1.bf16.msra.mxu0 %v3607
        %4274 = vmatprep.subr.bf16.mxu0 %v3616
        %4275 = vmatpush1.bf16.msra.mxu0 %v3615
        %4276 = vmatprep.subr.bf16.mxu0 %v3624
        %4277 = vmatpush1.bf16.msra.mxu0 %v3623
        %4278 = vmatprep.subr.bf16.mxu0 %v3632
        %4279 = vmatpush1.bf16.msra.mxu0 %v3631
        %4280 = vmatprep.subr.bf16.mxu0 %v3640
        %4281 = vmatpush1.bf16.msra.mxu0 %v3639
        %4282 = vmatprep.subr.bf16.mxu0 %v3648
        %4283 = vmatpush1.bf16.msra.mxu0 %v3647
        %4284 = vmatprep.subr.bf16.mxu0 %v3656
        %4285 = vmatpush1.bf16.msra.mxu0 %v3655
        %4286 = vmatprep.subr.bf16.mxu0 %v3664
        %4287 = vmatpush1.bf16.msra.mxu0 %v3663
        %4288 = vmatprep.subr.bf16.mxu0 %v3672
        %4289 = vmatpush1.bf16.msra.mxu0 %v3671
        %4290 = vmatprep.subr.bf16.mxu0 %v3680
        %4291 = vmatpush1.bf16.msra.mxu0 %v3679
        %4292 = vmatprep.subr.bf16.mxu0 %v3688
        %4293 = vmatpush1.bf16.msra.mxu0 %v3687
        %4294 = vmatprep.subr.bf16.mxu0 %v3696
        %4295 = vmatpush1.bf16.msra.mxu0 %v3695
        %4296 = vmatprep.subr.bf16.mxu0 %v3704
        %4297 = vmatpush1.bf16.msra.mxu0 %v3703
        %4298 = vmatprep.subr.bf16.mxu0 %v3712
        %4299 = vmatpush1.bf16.msra.mxu0 %v3711
        %4300 = vmatprep.subr.bf16.mxu0 %v3720
        %4301 = vmatpush1.bf16.msra.mxu0 %v3719
        %4302 = vmatprep.subr.bf16.mxu0 %v3728
        %4303 = vmatpush1.bf16.msra.mxu0 %v3727
        %4304 = vmatprep.mubr.bf16.mxu0 %v2448
        %4305 = vmatmul.mubr.bf16.gmra.mrb[0].mxu0 %v2447
        %v4306 = vpop.f32.mrb[0].mxu0
        %v4307 = vadd.f32 %v4266, %v4306
        %v4308 = vpop.f32.mrb[0].mxu0
        %v4309 = vadd.f32 %v4268, %v4308
        %v4310 = vpop.f32.mrb[0].mxu0
        %v4311 = vpop.f32.mrb[0].mxu0
        %4312 = vdwg.mxu0
        %v4313 = vadd.f32 %v2437, %v4061
        %v4314 = vadd.f32 %v2438, %v4063
        %v4315 = vadd.f32 %v2439, %v4143
        %v4316 = vadd.f32 %v2440, %v4145
        %v4317 = vadd.f32 %v2441, %v4225
        %v4318 = vadd.f32 %v2442, %v4227
        %v4319 = vadd.f32 %v2443, %v4307
        %v4320 = vadd.f32 %v2444, %v4309
        %4321 = vst [vmem:[#allocation3] sm:$0xff] %v4313
        %4322 = vst [vmem:[#allocation3 + $0x8] sm:$0xff] %v4314
        %4323 = vst [vmem:[#allocation3 + $0x10] sm:$0xff] %v4315
        %4324 = vst [vmem:[#allocation3 + $0x18] sm:$0xff] %v4316
        %4325 = vst [vmem:[#allocation3 + $0x20] sm:$0xff] %v4317
        %4326 = vst [vmem:[#allocation3 + $0x28] sm:$0xff] %v4318
        %4327 = vst [vmem:[#allocation3 + $0x30] sm:$0xff] %v4319
        %4328 = vst [vmem:[#allocation3 + $0x38] sm:$0xff] %v4320
        %p4329 = scmp.eq.s32.totalorder %s27, 1
        // Predicated region
        $region61: #{network_forward.3} parent=47 // pred_check
          %p4330 = pneg %p4329
        $region62: #{network_forward.3} parent=47 // pred_check_branch
          %4332 = sbr.rel (%p4330) target = $region64
        $region63: #{network_forward.3} parent=47 // pred_region
          %v4333 = vld [vmem:[#allocation3] sm:$0xff]
          %v4334 = vld [vmem:[#allocation3 + $0x8] sm:$0xff]
          %v4335 = vld [vmem:[#allocation3 + $0x10] sm:$0xff]
          %v4336 = vld [vmem:[#allocation3 + $0x18] sm:$0xff]
          %v4337 = vld [vmem:[#allocation3 + $0x20] sm:$0xff]
          %v4338 = vld [vmem:[#allocation3 + $0x28] sm:$0xff]
          %v4339 = vld [vmem:[#allocation3 + $0x30] sm:$0xff]
          %v4340 = vld [vmem:[#allocation3 + $0x38] sm:$0xff]
          %s4341 = scalar_lea.vmem %s388, 2
          %v4342 = vld [vmem:[%s4341] ss:$8 sm:$0xf]
          %v4343 = vld [vmem:[%s4341] ss:$8 sm:$0xf0]
          %v4344 = vor.u32 %v4342, %v4343
          %v4346 = vlaneseq
          %v4347 = vshrl.u32 %v4346, 7
          %v4348 = vsub.s32 0, %v4347
          %v4349 = vrot.slane %v4344, %v4348
          %v4350 = vlaneseq
          %v4351 = vshrl.u32 %v4350, 7
          %v4352 = vsub.s32 1, %v4351
          %v4353 = vrot.slane %v4344, %v4352
          %v4354 = vlaneseq
          %v4355 = vshrl.u32 %v4354, 7
          %v4356 = vsub.s32 2, %v4355
          %v4357 = vrot.slane %v4344, %v4356
          %v4358 = vlaneseq
          %v4359 = vshrl.u32 %v4358, 7
          %v4360 = vsub.s32 3, %v4359
          %v4361 = vrot.slane %v4344, %v4360
          %v4362 = vlaneseq
          %v4363 = vshrl.u32 %v4362, 7
          %v4364 = vsub.s32 4, %v4363
          %v4365 = vrot.slane %v4344, %v4364
          %v4366 = vlaneseq
          %v4367 = vshrl.u32 %v4366, 7
          %v4368 = vsub.s32 5, %v4367
          %v4369 = vrot.slane %v4344, %v4368
          %v4370 = vlaneseq
          %v4371 = vshrl.u32 %v4370, 7
          %v4372 = vsub.s32 6, %v4371
          %v4373 = vrot.slane %v4344, %v4372
          %v4374 = vlaneseq
          %v4375 = vshrl.u32 %v4374, 7
          %v4376 = vsub.s32 7, %v4375
          %v4377 = vrot.slane %v4344, %v4376
          %v4386 = vadd.f32 %v4333, %v4349
          %v4387 = vadd.f32 %v4334, %v4353
          %v4388 = vadd.f32 %v4335, %v4357
          %v4389 = vadd.f32 %v4336, %v4361
          %v4390 = vadd.f32 %v4337, %v4365
          %v4391 = vadd.f32 %v4338, %v4369
          %v4392 = vadd.f32 %v4339, %v4373
          %v4393 = vadd.f32 %v4340, %v4377
          %v4394 = vld [vmem:[%s388] ss:$8 sm:$0xf]
          %v4395 = vld [vmem:[%s388] ss:$8 sm:$0xf0]
          %v4396 = vor.u32 %v4394, %v4395
          %s4397 = scalar_lea.vmem %s388, 1
          %v4398 = vld [vmem:[%s4397] ss:$8 sm:$0xf]
          %v4399 = vld [vmem:[%s4397] ss:$8 sm:$0xf0]
          %v4400 = vor.u32 %v4398, %v4399
          %v4401 = vrot.slane %v4386, 4
          %v4402 = vadd.f32 %v4386, %v4401
          %v4403 = vrot.slane %v4402, 2
          %v4404 = vadd.f32 %v4402, %v4403
          %v4405 = vrot.slane %v4404, 1
          %v4406 = vadd.f32 %v4404, %v4405
          %v4407 = vrot.slane %v4387, 4
          %v4408 = vadd.f32 %v4387, %v4407
          %v4409 = vrot.slane %v4408, 2
          %v4410 = vadd.f32 %v4408, %v4409
          %v4411 = vrot.slane %v4410, 1
          %v4412 = vadd.f32 %v4410, %v4411
          %v4413 = vrot.slane %v4388, 4
          %v4414 = vadd.f32 %v4388, %v4413
          %v4415 = vrot.slane %v4414, 2
          %v4416 = vadd.f32 %v4414, %v4415
          %v4417 = vrot.slane %v4416, 1
          %v4418 = vadd.f32 %v4416, %v4417
          %v4419 = vrot.slane %v4389, 4
          %v4420 = vadd.f32 %v4389, %v4419
          %v4421 = vrot.slane %v4420, 2
          %v4422 = vadd.f32 %v4420, %v4421
          %v4423 = vrot.slane %v4422, 1
          %v4424 = vadd.f32 %v4422, %v4423
          %v4425 = vrot.slane %v4390, 4
          %v4426 = vadd.f32 %v4390, %v4425
          %v4427 = vrot.slane %v4426, 2
          %v4428 = vadd.f32 %v4426, %v4427
          %v4429 = vrot.slane %v4428, 1
          %v4430 = vadd.f32 %v4428, %v4429
          %v4431 = vrot.slane %v4391, 4
          %v4432 = vadd.f32 %v4391, %v4431
          %v4433 = vrot.slane %v4432, 2
          %v4434 = vadd.f32 %v4432, %v4433
          %v4435 = vrot.slane %v4434, 1
          %v4436 = vadd.f32 %v4434, %v4435
          %v4437 = vrot.slane %v4392, 4
          %v4438 = vadd.f32 %v4392, %v4437
          %v4439 = vrot.slane %v4438, 2
          %v4440 = vadd.f32 %v4438, %v4439
          %v4441 = vrot.slane %v4440, 1
          %v4442 = vadd.f32 %v4440, %v4441
          %v4443 = vrot.slane %v4393, 4
          %v4444 = vadd.f32 %v4393, %v4443
          %v4445 = vrot.slane %v4444, 2
          %v4446 = vadd.f32 %v4444, %v4445
          %v4447 = vrot.slane %v4446, 1
          %v4448 = vadd.f32 %v4446, %v4447
          %v4449 = vmul.f32 %v4406, %v2330
          %v4450 = vmul.f32 %v4412, %v2330
          %v4451 = vmul.f32 %v4418, %v2330
          %v4452 = vmul.f32 %v4424, %v2330
          %v4453 = vmul.f32 %v4430, %v2330
          %v4454 = vmul.f32 %v4436, %v2330
          %v4455 = vmul.f32 %v4442, %v2330
          %v4456 = vmul.f32 %v4448, %v2330
          %v4457 = vsub.f32 %v4386, %v4449
          %v4458 = vsub.f32 %v4387, %v4450
          %v4459 = vsub.f32 %v4388, %v4451
          %v4460 = vsub.f32 %v4389, %v4452
          %v4461 = vsub.f32 %v4390, %v4453
          %v4462 = vsub.f32 %v4391, %v4454
          %v4463 = vsub.f32 %v4392, %v4455
          %v4464 = vsub.f32 %v4393, %v4456
          %v4465 = vmul.f32 %v4457, %v4457
          %v4466 = vmul.f32 %v4458, %v4458
          %v4467 = vmul.f32 %v4459, %v4459
          %v4468 = vmul.f32 %v4460, %v4460
          %v4469 = vmul.f32 %v4461, %v4461
          %v4470 = vmul.f32 %v4462, %v4462
          %v4471 = vmul.f32 %v4463, %v4463
          %v4472 = vmul.f32 %v4464, %v4464
          %v4473 = vrot.slane %v4465, 4
          %v4474 = vadd.f32 %v4465, %v4473
          %v4475 = vrot.slane %v4474, 2
          %v4476 = vadd.f32 %v4474, %v4475
          %v4477 = vrot.slane %v4476, 1
          %v4478 = vadd.f32 %v4476, %v4477
          %v4479 = vrot.slane %v4466, 4
          %v4480 = vadd.f32 %v4466, %v4479
          %v4481 = vrot.slane %v4480, 2
          %v4482 = vadd.f32 %v4480, %v4481
          %v4483 = vrot.slane %v4482, 1
          %v4484 = vadd.f32 %v4482, %v4483
          %v4485 = vrot.slane %v4467, 4
          %v4486 = vadd.f32 %v4467, %v4485
          %v4487 = vrot.slane %v4486, 2
          %v4488 = vadd.f32 %v4486, %v4487
          %v4489 = vrot.slane %v4488, 1
          %v4490 = vadd.f32 %v4488, %v4489
          %v4491 = vrot.slane %v4468, 4
          %v4492 = vadd.f32 %v4468, %v4491
          %v4493 = vrot.slane %v4492, 2
          %v4494 = vadd.f32 %v4492, %v4493
          %v4495 = vrot.slane %v4494, 1
          %v4496 = vadd.f32 %v4494, %v4495
          %v4497 = vrot.slane %v4469, 4
          %v4498 = vadd.f32 %v4469, %v4497
          %v4499 = vrot.slane %v4498, 2
          %v4500 = vadd.f32 %v4498, %v4499
          %v4501 = vrot.slane %v4500, 1
          %v4502 = vadd.f32 %v4500, %v4501
          %v4503 = vrot.slane %v4470, 4
          %v4504 = vadd.f32 %v4470, %v4503
          %v4505 = vrot.slane %v4504, 2
          %v4506 = vadd.f32 %v4504, %v4505
          %v4507 = vrot.slane %v4506, 1
          %v4508 = vadd.f32 %v4506, %v4507
          %v4509 = vrot.slane %v4471, 4
          %v4510 = vadd.f32 %v4471, %v4509
          %v4511 = vrot.slane %v4510, 2
          %v4512 = vadd.f32 %v4510, %v4511
          %v4513 = vrot.slane %v4512, 1
          %v4514 = vadd.f32 %v4512, %v4513
          %v4515 = vrot.slane %v4472, 4
          %v4516 = vadd.f32 %v4472, %v4515
          %v4517 = vrot.slane %v4516, 2
          %v4518 = vadd.f32 %v4516, %v4517
          %v4519 = vrot.slane %v4518, 1
          %v4520 = vadd.f32 %v4518, %v4519
          %v4521 = vmul.f32 %v4478, %v2330
          %v4522 = vmul.f32 %v4484, %v2330
          %v4523 = vmul.f32 %v4490, %v2330
          %v4524 = vmul.f32 %v4496, %v2330
          %v4525 = vmul.f32 %v4502, %v2330
          %v4526 = vmul.f32 %v4508, %v2330
          %v4527 = vmul.f32 %v4514, %v2330
          %v4528 = vmul.f32 %v4520, %v2330
          %v4529 = vadd.f32 %v4521, 1e-05
          %v4530 = vadd.f32 %v4522, 1e-05
          %v4531 = vadd.f32 %v4523, 1e-05
          %v4532 = vadd.f32 %v4524, 1e-05
          %v4533 = vadd.f32 %v4525, 1e-05
          %v4534 = vadd.f32 %v4526, 1e-05
          %v4535 = vadd.f32 %v4527, 1e-05
          %v4536 = vadd.f32 %v4528, 1e-05
          %v4537 = vrsqrt.pop %v4529
          %v4538 = vrsqrt.pop %v4530
          %v4539 = vrsqrt.pop %v4531
          %v4540 = vrsqrt.pop %v4532
          %v4541 = vrsqrt.pop %v4533
          %v4542 = vrsqrt.pop %v4534
          %v4543 = vrsqrt.pop %v4535
          %v4544 = vrsqrt.pop %v4536
          %v4545 = vmul.f32 %v4457, %v4537
          %v4546 = vmul.f32 %v4458, %v4538
          %v4547 = vmul.f32 %v4459, %v4539
          %v4548 = vmul.f32 %v4460, %v4540
          %v4549 = vmul.f32 %v4461, %v4541
          %v4550 = vmul.f32 %v4462, %v4542
          %v4551 = vmul.f32 %v4463, %v4543
          %v4552 = vmul.f32 %v4464, %v4544
          %v4554 = vlaneseq
          %v4555 = vshrl.u32 %v4554, 7
          %v4556 = vsub.s32 0, %v4555
          %v4557 = vrot.slane %v4396, %v4556
          %v4558 = vlaneseq
          %v4559 = vshrl.u32 %v4558, 7
          %v4560 = vsub.s32 1, %v4559
          %v4561 = vrot.slane %v4396, %v4560
          %v4562 = vlaneseq
          %v4563 = vshrl.u32 %v4562, 7
          %v4564 = vsub.s32 2, %v4563
          %v4565 = vrot.slane %v4396, %v4564
          %v4566 = vlaneseq
          %v4567 = vshrl.u32 %v4566, 7
          %v4568 = vsub.s32 3, %v4567
          %v4569 = vrot.slane %v4396, %v4568
          %v4570 = vlaneseq
          %v4571 = vshrl.u32 %v4570, 7
          %v4572 = vsub.s32 4, %v4571
          %v4573 = vrot.slane %v4396, %v4572
          %v4574 = vlaneseq
          %v4575 = vshrl.u32 %v4574, 7
          %v4576 = vsub.s32 5, %v4575
          %v4577 = vrot.slane %v4396, %v4576
          %v4578 = vlaneseq
          %v4579 = vshrl.u32 %v4578, 7
          %v4580 = vsub.s32 6, %v4579
          %v4581 = vrot.slane %v4396, %v4580
          %v4582 = vlaneseq
          %v4583 = vshrl.u32 %v4582, 7
          %v4584 = vsub.s32 7, %v4583
          %v4585 = vrot.slane %v4396, %v4584
          %v4594 = vmul.f32 %v4545, %v4557
          %v4595 = vmul.f32 %v4546, %v4561
          %v4596 = vmul.f32 %v4547, %v4565
          %v4597 = vmul.f32 %v4548, %v4569
          %v4598 = vmul.f32 %v4549, %v4573
          %v4599 = vmul.f32 %v4550, %v4577
          %v4600 = vmul.f32 %v4551, %v4581
          %v4601 = vmul.f32 %v4552, %v4585
          %v4603 = vlaneseq
          %v4604 = vshrl.u32 %v4603, 7
          %v4605 = vsub.s32 0, %v4604
          %v4606 = vrot.slane %v4400, %v4605
          %v4607 = vlaneseq
          %v4608 = vshrl.u32 %v4607, 7
          %v4609 = vsub.s32 1, %v4608
          %v4610 = vrot.slane %v4400, %v4609
          %v4611 = vlaneseq
          %v4612 = vshrl.u32 %v4611, 7
          %v4613 = vsub.s32 2, %v4612
          %v4614 = vrot.slane %v4400, %v4613
          %v4615 = vlaneseq
          %v4616 = vshrl.u32 %v4615, 7
          %v4617 = vsub.s32 3, %v4616
          %v4618 = vrot.slane %v4400, %v4617
          %v4619 = vlaneseq
          %v4620 = vshrl.u32 %v4619, 7
          %v4621 = vsub.s32 4, %v4620
          %v4622 = vrot.slane %v4400, %v4621
          %v4623 = vlaneseq
          %v4624 = vshrl.u32 %v4623, 7
          %v4625 = vsub.s32 5, %v4624
          %v4626 = vrot.slane %v4400, %v4625
          %v4627 = vlaneseq
          %v4628 = vshrl.u32 %v4627, 7
          %v4629 = vsub.s32 6, %v4628
          %v4630 = vrot.slane %v4400, %v4629
          %v4631 = vlaneseq
          %v4632 = vshrl.u32 %v4631, 7
          %v4633 = vsub.s32 7, %v4632
          %v4634 = vrot.slane %v4400, %v4633
          %v4643 = vadd.f32 %v4594, %v4606
          %v4644 = vadd.f32 %v4595, %v4610
          %v4645 = vadd.f32 %v4596, %v4614
          %v4646 = vadd.f32 %v4597, %v4618
          %v4647 = vadd.f32 %v4598, %v4622
          %v4648 = vadd.f32 %v4599, %v4626
          %v4649 = vadd.f32 %v4600, %v4630
          %v4650 = vadd.f32 %v4601, %v4634
          %v4651 = vld [vmem:[#allocation2] sm:$0xff]
          %v4652 = vld [vmem:[#allocation2 + $0x8] sm:$0xff]
          %v4653 = vld [vmem:[#allocation2 + $0x10] sm:$0xff]
          %v4654 = vld [vmem:[#allocation2 + $0x18] sm:$0xff]
          %v4655 = vld [vmem:[#allocation2 + $0x20] sm:$0xff]
          %v4656 = vld [vmem:[#allocation2 + $0x28] sm:$0xff]
          %v4657 = vld [vmem:[#allocation2 + $0x30] sm:$0xff]
          %v4658 = vld [vmem:[#allocation2 + $0x38] sm:$0xff]
          %v4659 = vadd.f32 %v4643, %v4651
          %v4660 = vadd.f32 %v4644, %v4652
          %v4661 = vadd.f32 %v4645, %v4653
          %v4662 = vadd.f32 %v4646, %v4654
          %v4663 = vadd.f32 %v4647, %v4655
          %v4664 = vadd.f32 %v4648, %v4656
          %v4665 = vadd.f32 %v4649, %v4657
          %v4666 = vadd.f32 %v4650, %v4658
          %v4667 = vmax.f32 %v4659, 0.0
          %v4668 = vmax.f32 %v4660, 0.0
          %v4669 = vmax.f32 %v4661, 0.0
          %v4670 = vmax.f32 %v4662, 0.0
          %v4671 = vmax.f32 %v4663, 0.0
          %v4672 = vmax.f32 %v4664, 0.0
          %v4673 = vmax.f32 %v4665, 0.0
          %v4674 = vmax.f32 %v4666, 0.0
          %4675 = vst [vmem:[#allocation2] sm:$0xff] %v4667
          %4676 = vst [vmem:[#allocation2 + $0x8] sm:$0xff] %v4668
          %4677 = vst [vmem:[#allocation2 + $0x10] sm:$0xff] %v4669
          %4678 = vst [vmem:[#allocation2 + $0x18] sm:$0xff] %v4670
          %4679 = vst [vmem:[#allocation2 + $0x20] sm:$0xff] %v4671
          %4680 = vst [vmem:[#allocation2 + $0x28] sm:$0xff] %v4672
          %4681 = vst [vmem:[#allocation2 + $0x30] sm:$0xff] %v4673
          %4682 = vst [vmem:[#allocation2 + $0x38] sm:$0xff] %v4674
        $region64: #{network_forward.3} parent=47 // pred_fallthru
          _
        %p4683 = scmp.eq.s32.totalorder %s26, 3
        %p4684 = pnand %p4683, %p4329
        %p4685 = pneg %p4684
        // Predicated region
        $region65: #{network_forward.3} parent=47 // pred_check
          _
        $region66: #{network_forward.3} parent=47 // pred_check_branch
          %4687 = sbr.rel (%p4684) target = $region68
        $region67: #{network_forward.3} parent=47 // pred_region
          %v4688 = vld [vmem:[#allocation2] sm:$0xff]
          %v4689 = vld [vmem:[#allocation2 + $0x8] sm:$0xff]
          %v4690 = vld [vmem:[#allocation2 + $0x10] sm:$0xff]
          %v4691 = vld [vmem:[#allocation2 + $0x18] sm:$0xff]
          %v4692 = vld [vmem:[#allocation2 + $0x20] sm:$0xff]
          %v4693 = vld [vmem:[#allocation2 + $0x28] sm:$0xff]
          %v4694 = vld [vmem:[#allocation2 + $0x30] sm:$0xff]
          %v4695 = vld [vmem:[#allocation2 + $0x38] sm:$0xff]
          %v4696 = vpack.c.bf16 %v4688, %v4688
          %v4697 = vpack.c.bf16 %v4689, %v4689
          %v4698 = vpack.c.bf16 %v4690, %v4690
          %v4699 = vpack.c.bf16 %v4691, %v4691
          %v4700 = vpack.c.bf16 %v4692, %v4692
          %v4701 = vpack.c.bf16 %v4693, %v4693
          %v4702 = vpack.c.bf16 %v4694, %v4694
          %v4703 = vpack.c.bf16 %v4695, %v4695
          %v4704 = vld [vmem:[%s5] sm:$0xf]
          %v4705 = vld [vmem:[%s5 + $0x4] sm:$0xf]
          %v4706 = vld [vmem:[%s5 + $0x8] sm:$0xf]
          %v4707 = vld [vmem:[%s5 + $0xc] sm:$0xf]
          %v4708 = vld [vmem:[%s5 + $0x10] sm:$0xf]
          %v4709 = vld [vmem:[%s5 + $0x14] sm:$0xf]
          %v4710 = vld [vmem:[%s5 + $0x18] sm:$0xf]
          %v4711 = vld [vmem:[%s5 + $0x1c] sm:$0xf]
          %v4712 = vld [vmem:[%s5 + $0x20] sm:$0xf]
          %v4713 = vld [vmem:[%s5 + $0x24] sm:$0xf]
          %v4714 = vld [vmem:[%s5 + $0x28] sm:$0xf]
          %v4715 = vld [vmem:[%s5 + $0x2c] sm:$0xf]
          %v4716 = vld [vmem:[%s5 + $0x30] sm:$0xf]
          %v4717 = vld [vmem:[%s5 + $0x34] sm:$0xf]
          %v4718 = vld [vmem:[%s5 + $0x38] sm:$0xf]
          %v4719 = vld [vmem:[%s5 + $0x3c] sm:$0xf]
          %v4720 = vld [vmem:[%s5 + $0x40] sm:$0xf]
          %v4721 = vld [vmem:[%s5 + $0x44] sm:$0xf]
          %v4722 = vld [vmem:[%s5 + $0x48] sm:$0xf]
          %v4723 = vld [vmem:[%s5 + $0x4c] sm:$0xf]
          %v4724 = vld [vmem:[%s5 + $0x50] sm:$0xf]
          %v4725 = vld [vmem:[%s5 + $0x54] sm:$0xf]
          %v4726 = vld [vmem:[%s5 + $0x58] sm:$0xf]
          %v4727 = vld [vmem:[%s5 + $0x5c] sm:$0xf]
          %v4728 = vld [vmem:[%s5 + $0x60] sm:$0xf]
          %v4729 = vld [vmem:[%s5 + $0x64] sm:$0xf]
          %v4730 = vld [vmem:[%s5 + $0x68] sm:$0xf]
          %v4731 = vld [vmem:[%s5 + $0x6c] sm:$0xf]
          %v4732 = vld [vmem:[%s5 + $0x70] sm:$0xf]
          %v4733 = vld [vmem:[%s5 + $0x74] sm:$0xf]
          %v4734 = vld [vmem:[%s5 + $0x78] sm:$0xf]
          %v4735 = vld [vmem:[%s5 + $0x7c] sm:$0xf]
          %v4736 = vld [vmem:[%s5 + $0x80] sm:$0xf]
          %v4737 = vld [vmem:[%s5 + $0x84] sm:$0xf]
          %v4738 = vld [vmem:[%s5 + $0x88] sm:$0xf]
          %v4739 = vld [vmem:[%s5 + $0x8c] sm:$0xf]
          %v4740 = vld [vmem:[%s5 + $0x90] sm:$0xf]
          %v4741 = vld [vmem:[%s5 + $0x94] sm:$0xf]
          %v4742 = vld [vmem:[%s5 + $0x98] sm:$0xf]
          %v4743 = vld [vmem:[%s5 + $0x9c] sm:$0xf]
          %v4744 = vld [vmem:[%s5 + $0xa0] sm:$0xf]
          %v4745 = vld [vmem:[%s5 + $0xa4] sm:$0xf]
          %v4746 = vld [vmem:[%s5 + $0xa8] sm:$0xf]
          %v4747 = vld [vmem:[%s5 + $0xac] sm:$0xf]
          %v4748 = vld [vmem:[%s5 + $0xb0] sm:$0xf]
          %v4749 = vld [vmem:[%s5 + $0xb4] sm:$0xf]
          %v4750 = vld [vmem:[%s5 + $0xb8] sm:$0xf]
          %v4751 = vld [vmem:[%s5 + $0xbc] sm:$0xf]
          %v4752 = vld [vmem:[%s5 + $0xc0] sm:$0xf]
          %v4753 = vld [vmem:[%s5 + $0xc4] sm:$0xf]
          %v4754 = vld [vmem:[%s5 + $0xc8] sm:$0xf]
          %v4755 = vld [vmem:[%s5 + $0xcc] sm:$0xf]
          %v4756 = vld [vmem:[%s5 + $0xd0] sm:$0xf]
          %v4757 = vld [vmem:[%s5 + $0xd4] sm:$0xf]
          %v4758 = vld [vmem:[%s5 + $0xd8] sm:$0xf]
          %v4759 = vld [vmem:[%s5 + $0xdc] sm:$0xf]
          %v4760 = vld [vmem:[%s5 + $0xe0] sm:$0xf]
          %v4761 = vld [vmem:[%s5 + $0xe4] sm:$0xf]
          %v4762 = vld [vmem:[%s5 + $0xe8] sm:$0xf]
          %v4763 = vld [vmem:[%s5 + $0xec] sm:$0xf]
          %v4764 = vld [vmem:[%s5 + $0xf0] sm:$0xf]
          %v4765 = vld [vmem:[%s5 + $0xf4] sm:$0xf]
          %v4766 = vld [vmem:[%s5 + $0xf8] sm:$0xf]
          %v4767 = vld [vmem:[%s5 + $0xfc] sm:$0xf]
          %v4768 = vld [vmem:[%s5 + $0x100] sm:$0xf]
          %v4769 = vld [vmem:[%s5 + $0x104] sm:$0xf]
          %v4770 = vld [vmem:[%s5 + $0x108] sm:$0xf]
          %v4771 = vld [vmem:[%s5 + $0x10c] sm:$0xf]
          %v4772 = vld [vmem:[%s5 + $0x110] sm:$0xf]
          %v4773 = vld [vmem:[%s5 + $0x114] sm:$0xf]
          %v4774 = vld [vmem:[%s5 + $0x118] sm:$0xf]
          %v4775 = vld [vmem:[%s5 + $0x11c] sm:$0xf]
          %v4776 = vld [vmem:[%s5 + $0x120] sm:$0xf]
          %v4777 = vld [vmem:[%s5 + $0x124] sm:$0xf]
          %v4778 = vld [vmem:[%s5 + $0x128] sm:$0xf]
          %v4779 = vld [vmem:[%s5 + $0x12c] sm:$0xf]
          %v4780 = vld [vmem:[%s5 + $0x130] sm:$0xf]
          %v4781 = vld [vmem:[%s5 + $0x134] sm:$0xf]
          %v4782 = vld [vmem:[%s5 + $0x138] sm:$0xf]
          %v4783 = vld [vmem:[%s5 + $0x13c] sm:$0xf]
          %v4784 = vld [vmem:[%s5 + $0x140] sm:$0xf]
          %v4785 = vld [vmem:[%s5 + $0x144] sm:$0xf]
          %v4786 = vld [vmem:[%s5 + $0x148] sm:$0xf]
          %v4787 = vld [vmem:[%s5 + $0x14c] sm:$0xf]
          %v4788 = vld [vmem:[%s5 + $0x150] sm:$0xf]
          %v4789 = vld [vmem:[%s5 + $0x154] sm:$0xf]
          %v4790 = vld [vmem:[%s5 + $0x158] sm:$0xf]
          %v4791 = vld [vmem:[%s5 + $0x15c] sm:$0xf]
          %v4792 = vld [vmem:[%s5 + $0x160] sm:$0xf]
          %v4793 = vld [vmem:[%s5 + $0x164] sm:$0xf]
          %v4794 = vld [vmem:[%s5 + $0x168] sm:$0xf]
          %v4795 = vld [vmem:[%s5 + $0x16c] sm:$0xf]
          %v4796 = vld [vmem:[%s5 + $0x170] sm:$0xf]
          %v4797 = vld [vmem:[%s5 + $0x174] sm:$0xf]
          %v4798 = vld [vmem:[%s5 + $0x178] sm:$0xf]
          %v4799 = vld [vmem:[%s5 + $0x17c] sm:$0xf]
          %v4800 = vld [vmem:[%s5 + $0x180] sm:$0xf]
          %v4801 = vld [vmem:[%s5 + $0x184] sm:$0xf]
          %v4802 = vld [vmem:[%s5 + $0x188] sm:$0xf]
          %v4803 = vld [vmem:[%s5 + $0x18c] sm:$0xf]
          %v4804 = vld [vmem:[%s5 + $0x190] sm:$0xf]
          %v4805 = vld [vmem:[%s5 + $0x194] sm:$0xf]
          %v4806 = vld [vmem:[%s5 + $0x198] sm:$0xf]
          %v4807 = vld [vmem:[%s5 + $0x19c] sm:$0xf]
          %v4808 = vld [vmem:[%s5 + $0x1a0] sm:$0xf]
          %v4809 = vld [vmem:[%s5 + $0x1a4] sm:$0xf]
          %v4810 = vld [vmem:[%s5 + $0x1a8] sm:$0xf]
          %v4811 = vld [vmem:[%s5 + $0x1ac] sm:$0xf]
          %v4812 = vld [vmem:[%s5 + $0x1b0] sm:$0xf]
          %v4813 = vld [vmem:[%s5 + $0x1b4] sm:$0xf]
          %v4814 = vld [vmem:[%s5 + $0x1b8] sm:$0xf]
          %v4815 = vld [vmem:[%s5 + $0x1bc] sm:$0xf]
          %v4816 = vld [vmem:[%s5 + $0x1c0] sm:$0xf]
          %v4817 = vld [vmem:[%s5 + $0x1c4] sm:$0xf]
          %v4818 = vld [vmem:[%s5 + $0x1c8] sm:$0xf]
          %v4819 = vld [vmem:[%s5 + $0x1cc] sm:$0xf]
          %v4820 = vld [vmem:[%s5 + $0x1d0] sm:$0xf]
          %v4821 = vld [vmem:[%s5 + $0x1d4] sm:$0xf]
          %v4822 = vld [vmem:[%s5 + $0x1d8] sm:$0xf]
          %v4823 = vld [vmem:[%s5 + $0x1dc] sm:$0xf]
          %v4824 = vld [vmem:[%s5 + $0x1e0] sm:$0xf]
          %v4825 = vld [vmem:[%s5 + $0x1e4] sm:$0xf]
          %v4826 = vld [vmem:[%s5 + $0x1e8] sm:$0xf]
          %v4827 = vld [vmem:[%s5 + $0x1ec] sm:$0xf]
          %v4828 = vld [vmem:[%s5 + $0x1f0] sm:$0xf]
          %v4829 = vld [vmem:[%s5 + $0x1f4] sm:$0xf]
          %v4830 = vld [vmem:[%s5 + $0x1f8] sm:$0xf]
          %v4831 = vld [vmem:[%s5 + $0x1fc] sm:$0xf]
          %v4832 = vld [vmem:[%s6] sm:$0x1]
          %v4834 = vlaneseq
          %v4835 = vshrl.u32 %v4834, 7
          %v4836 = vsub.s32 0, %v4835
          %v4837 = vrot.slane %v4832, %v4836
          %v4967 = vunpack.c.l.b16 %v4704
          %v4968 = vunpack.c.l.b16 %v4705
          %v4969 = vunpack.c.l.b16 %v4706
          %v4970 = vunpack.c.l.b16 %v4707
          %v4971 = vunpack.c.l.b16 %v4708
          %v4972 = vunpack.c.l.b16 %v4709
          %v4973 = vunpack.c.l.b16 %v4710
          %v4974 = vunpack.c.l.b16 %v4711
          %v4975 = vunpack.c.l.b16 %v4712
          %v4976 = vunpack.c.l.b16 %v4713
          %v4977 = vunpack.c.l.b16 %v4714
          %v4978 = vunpack.c.l.b16 %v4715
          %v4979 = vunpack.c.l.b16 %v4716
          %v4980 = vunpack.c.l.b16 %v4717
          %v4981 = vunpack.c.l.b16 %v4718
          %v4982 = vunpack.c.l.b16 %v4719
          %v4983 = vunpack.c.l.b16 %v4720
          %v4984 = vunpack.c.l.b16 %v4721
          %v4985 = vunpack.c.l.b16 %v4722
          %v4986 = vunpack.c.l.b16 %v4723
          %v4987 = vunpack.c.l.b16 %v4724
          %v4988 = vunpack.c.l.b16 %v4725
          %v4989 = vunpack.c.l.b16 %v4726
          %v4990 = vunpack.c.l.b16 %v4727
          %v4991 = vunpack.c.l.b16 %v4728
          %v4992 = vunpack.c.l.b16 %v4729
          %v4993 = vunpack.c.l.b16 %v4730
          %v4994 = vunpack.c.l.b16 %v4731
          %v4995 = vunpack.c.l.b16 %v4732
          %v4996 = vunpack.c.l.b16 %v4733
          %v4997 = vunpack.c.l.b16 %v4734
          %v4998 = vunpack.c.l.b16 %v4735
          %v4999 = vunpack.c.l.b16 %v4736
          %v5000 = vunpack.c.l.b16 %v4737
          %v5001 = vunpack.c.l.b16 %v4738
          %v5002 = vunpack.c.l.b16 %v4739
          %v5003 = vunpack.c.l.b16 %v4740
          %v5004 = vunpack.c.l.b16 %v4741
          %v5005 = vunpack.c.l.b16 %v4742
          %v5006 = vunpack.c.l.b16 %v4743
          %v5007 = vunpack.c.l.b16 %v4744
          %v5008 = vunpack.c.l.b16 %v4745
          %v5009 = vunpack.c.l.b16 %v4746
          %v5010 = vunpack.c.l.b16 %v4747
          %v5011 = vunpack.c.l.b16 %v4748
          %v5012 = vunpack.c.l.b16 %v4749
          %v5013 = vunpack.c.l.b16 %v4750
          %v5014 = vunpack.c.l.b16 %v4751
          %v5015 = vunpack.c.l.b16 %v4752
          %v5016 = vunpack.c.l.b16 %v4753
          %v5017 = vunpack.c.l.b16 %v4754
          %v5018 = vunpack.c.l.b16 %v4755
          %v5019 = vunpack.c.l.b16 %v4756
          %v5020 = vunpack.c.l.b16 %v4757
          %v5021 = vunpack.c.l.b16 %v4758
          %v5022 = vunpack.c.l.b16 %v4759
          %v5023 = vunpack.c.l.b16 %v4760
          %v5024 = vunpack.c.l.b16 %v4761
          %v5025 = vunpack.c.l.b16 %v4762
          %v5026 = vunpack.c.l.b16 %v4763
          %v5027 = vunpack.c.l.b16 %v4764
          %v5028 = vunpack.c.l.b16 %v4765
          %v5029 = vunpack.c.l.b16 %v4766
          %v5030 = vunpack.c.l.b16 %v4767
          %v5031 = vunpack.c.l.b16 %v4768
          %v5032 = vunpack.c.l.b16 %v4769
          %v5033 = vunpack.c.l.b16 %v4770
          %v5034 = vunpack.c.l.b16 %v4771
          %v5035 = vunpack.c.l.b16 %v4772
          %v5036 = vunpack.c.l.b16 %v4773
          %v5037 = vunpack.c.l.b16 %v4774
          %v5038 = vunpack.c.l.b16 %v4775
          %v5039 = vunpack.c.l.b16 %v4776
          %v5040 = vunpack.c.l.b16 %v4777
          %v5041 = vunpack.c.l.b16 %v4778
          %v5042 = vunpack.c.l.b16 %v4779
          %v5043 = vunpack.c.l.b16 %v4780
          %v5044 = vunpack.c.l.b16 %v4781
          %v5045 = vunpack.c.l.b16 %v4782
          %v5046 = vunpack.c.l.b16 %v4783
          %v5047 = vunpack.c.l.b16 %v4784
          %v5048 = vunpack.c.l.b16 %v4785
          %v5049 = vunpack.c.l.b16 %v4786
          %v5050 = vunpack.c.l.b16 %v4787
          %v5051 = vunpack.c.l.b16 %v4788
          %v5052 = vunpack.c.l.b16 %v4789
          %v5053 = vunpack.c.l.b16 %v4790
          %v5054 = vunpack.c.l.b16 %v4791
          %v5055 = vunpack.c.l.b16 %v4792
          %v5056 = vunpack.c.l.b16 %v4793
          %v5057 = vunpack.c.l.b16 %v4794
          %v5058 = vunpack.c.l.b16 %v4795
          %v5059 = vunpack.c.l.b16 %v4796
          %v5060 = vunpack.c.l.b16 %v4797
          %v5061 = vunpack.c.l.b16 %v4798
          %v5062 = vunpack.c.l.b16 %v4799
          %v5063 = vunpack.c.l.b16 %v4800
          %v5064 = vunpack.c.l.b16 %v4801
          %v5065 = vunpack.c.l.b16 %v4802
          %v5066 = vunpack.c.l.b16 %v4803
          %v5067 = vunpack.c.l.b16 %v4804
          %v5068 = vunpack.c.l.b16 %v4805
          %v5069 = vunpack.c.l.b16 %v4806
          %v5070 = vunpack.c.l.b16 %v4807
          %v5071 = vunpack.c.l.b16 %v4808
          %v5072 = vunpack.c.l.b16 %v4809
          %v5073 = vunpack.c.l.b16 %v4810
          %v5074 = vunpack.c.l.b16 %v4811
          %v5075 = vunpack.c.l.b16 %v4812
          %v5076 = vunpack.c.l.b16 %v4813
          %v5077 = vunpack.c.l.b16 %v4814
          %v5078 = vunpack.c.l.b16 %v4815
          %v5079 = vunpack.c.l.b16 %v4816
          %v5080 = vunpack.c.l.b16 %v4817
          %v5081 = vunpack.c.l.b16 %v4818
          %v5082 = vunpack.c.l.b16 %v4819
          %v5083 = vunpack.c.l.b16 %v4820
          %v5084 = vunpack.c.l.b16 %v4821
          %v5085 = vunpack.c.l.b16 %v4822
          %v5086 = vunpack.c.l.b16 %v4823
          %v5087 = vunpack.c.l.b16 %v4824
          %v5088 = vunpack.c.l.b16 %v4825
          %v5089 = vunpack.c.l.b16 %v4826
          %v5090 = vunpack.c.l.b16 %v4827
          %v5091 = vunpack.c.l.b16 %v4828
          %v5092 = vunpack.c.l.b16 %v4829
          %v5093 = vunpack.c.l.b16 %v4830
          %v5094 = vunpack.c.l.b16 %v4831
          %v5095 = vpack.c.b16 %v4968, %v4967
          %v5096 = vpack.c.b16 %v4970, %v4969
          %v5097 = vpack.c.b16 %v4972, %v4971
          %v5098 = vpack.c.b16 %v4974, %v4973
          %v5099 = vpack.c.b16 %v4976, %v4975
          %v5100 = vpack.c.b16 %v4978, %v4977
          %v5101 = vpack.c.b16 %v4980, %v4979
          %v5102 = vpack.c.b16 %v4982, %v4981
          %v5103 = vpack.c.b16 %v4984, %v4983
          %v5104 = vpack.c.b16 %v4986, %v4985
          %v5105 = vpack.c.b16 %v4988, %v4987
          %v5106 = vpack.c.b16 %v4990, %v4989
          %v5107 = vpack.c.b16 %v4992, %v4991
          %v5108 = vpack.c.b16 %v4994, %v4993
          %v5109 = vpack.c.b16 %v4996, %v4995
          %v5110 = vpack.c.b16 %v4998, %v4997
          %v5111 = vpack.c.b16 %v5000, %v4999
          %v5112 = vpack.c.b16 %v5002, %v5001
          %v5113 = vpack.c.b16 %v5004, %v5003
          %v5114 = vpack.c.b16 %v5006, %v5005
          %v5115 = vpack.c.b16 %v5008, %v5007
          %v5116 = vpack.c.b16 %v5010, %v5009
          %v5117 = vpack.c.b16 %v5012, %v5011
          %v5118 = vpack.c.b16 %v5014, %v5013
          %v5119 = vpack.c.b16 %v5016, %v5015
          %v5120 = vpack.c.b16 %v5018, %v5017
          %v5121 = vpack.c.b16 %v5020, %v5019
          %v5122 = vpack.c.b16 %v5022, %v5021
          %v5123 = vpack.c.b16 %v5024, %v5023
          %v5124 = vpack.c.b16 %v5026, %v5025
          %v5125 = vpack.c.b16 %v5028, %v5027
          %v5126 = vpack.c.b16 %v5030, %v5029
          %v5127 = vpack.c.b16 %v5032, %v5031
          %v5128 = vpack.c.b16 %v5034, %v5033
          %v5129 = vpack.c.b16 %v5036, %v5035
          %v5130 = vpack.c.b16 %v5038, %v5037
          %v5131 = vpack.c.b16 %v5040, %v5039
          %v5132 = vpack.c.b16 %v5042, %v5041
          %v5133 = vpack.c.b16 %v5044, %v5043
          %v5134 = vpack.c.b16 %v5046, %v5045
          %v5135 = vpack.c.b16 %v5048, %v5047
          %v5136 = vpack.c.b16 %v5050, %v5049
          %v5137 = vpack.c.b16 %v5052, %v5051
          %v5138 = vpack.c.b16 %v5054, %v5053
          %v5139 = vpack.c.b16 %v5056, %v5055
          %v5140 = vpack.c.b16 %v5058, %v5057
          %v5141 = vpack.c.b16 %v5060, %v5059
          %v5142 = vpack.c.b16 %v5062, %v5061
          %v5143 = vpack.c.b16 %v5064, %v5063
          %v5144 = vpack.c.b16 %v5066, %v5065
          %v5145 = vpack.c.b16 %v5068, %v5067
          %v5146 = vpack.c.b16 %v5070, %v5069
          %v5147 = vpack.c.b16 %v5072, %v5071
          %v5148 = vpack.c.b16 %v5074, %v5073
          %v5149 = vpack.c.b16 %v5076, %v5075
          %v5150 = vpack.c.b16 %v5078, %v5077
          %v5151 = vpack.c.b16 %v5080, %v5079
          %v5152 = vpack.c.b16 %v5082, %v5081
          %v5153 = vpack.c.b16 %v5084, %v5083
          %v5154 = vpack.c.b16 %v5086, %v5085
          %v5155 = vpack.c.b16 %v5088, %v5087
          %v5156 = vpack.c.b16 %v5090, %v5089
          %v5157 = vpack.c.b16 %v5092, %v5091
          %v5158 = vpack.c.b16 %v5094, %v5093
          %5223 = vmatprep.subr.bf16.mxu0 0
          %5224 = vmatpush1.bf16.msra.mxu0 %v5095
          %5225 = vmatprep.subr.bf16.mxu0 0
          %5226 = vmatpush1.bf16.msra.mxu0 %v5096
          %5227 = vmatprep.subr.bf16.mxu0 0
          %5228 = vmatpush1.bf16.msra.mxu0 %v5097
          %5229 = vmatprep.subr.bf16.mxu0 0
          %5230 = vmatpush1.bf16.msra.mxu0 %v5098
          %5231 = vmatprep.subr.bf16.mxu0 0
          %5232 = vmatpush1.bf16.msra.mxu0 %v5099
          %5233 = vmatprep.subr.bf16.mxu0 0
          %5234 = vmatpush1.bf16.msra.mxu0 %v5100
          %5235 = vmatprep.subr.bf16.mxu0 0
          %5236 = vmatpush1.bf16.msra.mxu0 %v5101
          %5237 = vmatprep.subr.bf16.mxu0 0
          %5238 = vmatpush1.bf16.msra.mxu0 %v5102
          %5239 = vmatprep.subr.bf16.mxu0 0
          %5240 = vmatpush1.bf16.msra.mxu0 %v5103
          %5241 = vmatprep.subr.bf16.mxu0 0
          %5242 = vmatpush1.bf16.msra.mxu0 %v5104
          %5243 = vmatprep.subr.bf16.mxu0 0
          %5244 = vmatpush1.bf16.msra.mxu0 %v5105
          %5245 = vmatprep.subr.bf16.mxu0 0
          %5246 = vmatpush1.bf16.msra.mxu0 %v5106
          %5247 = vmatprep.subr.bf16.mxu0 0
          %5248 = vmatpush1.bf16.msra.mxu0 %v5107
          %5249 = vmatprep.subr.bf16.mxu0 0
          %5250 = vmatpush1.bf16.msra.mxu0 %v5108
          %5251 = vmatprep.subr.bf16.mxu0 0
          %5252 = vmatpush1.bf16.msra.mxu0 %v5109
          %5253 = vmatprep.subr.bf16.mxu0 0
          %5254 = vmatpush1.bf16.msra.mxu0 %v5110
          %5255 = vmatprep.mubr.bf16.mxu0 %v4697
          %5256 = vmatmul.mubr.bf16.gmra.mrb[0].mxu0 %v4696
          %v5257 = vpop.f32.mrb[0].mxu0
          %v5258 = vadd.f32 %v4837, %v5257
          %v5259 = vpop.f32.mrb[0].mxu0
          %v5260 = vpop.f32.mrb[0].mxu0
          %v5261 = vpop.f32.mrb[0].mxu0
          %5262 = vdwg.mxu0
          %5263 = vmatprep.subr.bf16.mxu0 0
          %5264 = vmatpush1.bf16.msra.mxu0 %v5111
          %5265 = vmatprep.subr.bf16.mxu0 0
          %5266 = vmatpush1.bf16.msra.mxu0 %v5112
          %5267 = vmatprep.subr.bf16.mxu0 0
          %5268 = vmatpush1.bf16.msra.mxu0 %v5113
          %5269 = vmatprep.subr.bf16.mxu0 0
          %5270 = vmatpush1.bf16.msra.mxu0 %v5114
          %5271 = vmatprep.subr.bf16.mxu0 0
          %5272 = vmatpush1.bf16.msra.mxu0 %v5115
          %5273 = vmatprep.subr.bf16.mxu0 0
          %5274 = vmatpush1.bf16.msra.mxu0 %v5116
          %5275 = vmatprep.subr.bf16.mxu0 0
          %5276 = vmatpush1.bf16.msra.mxu0 %v5117
          %5277 = vmatprep.subr.bf16.mxu0 0
          %5278 = vmatpush1.bf16.msra.mxu0 %v5118
          %5279 = vmatprep.subr.bf16.mxu0 0
          %5280 = vmatpush1.bf16.msra.mxu0 %v5119
          %5281 = vmatprep.subr.bf16.mxu0 0
          %5282 = vmatpush1.bf16.msra.mxu0 %v5120
          %5283 = vmatprep.subr.bf16.mxu0 0
          %5284 = vmatpush1.bf16.msra.mxu0 %v5121
          %5285 = vmatprep.subr.bf16.mxu0 0
          %5286 = vmatpush1.bf16.msra.mxu0 %v5122
          %5287 = vmatprep.subr.bf16.mxu0 0
          %5288 = vmatpush1.bf16.msra.mxu0 %v5123
          %5289 = vmatprep.subr.bf16.mxu0 0
          %5290 = vmatpush1.bf16.msra.mxu0 %v5124
          %5291 = vmatprep.subr.bf16.mxu0 0
          %5292 = vmatpush1.bf16.msra.mxu0 %v5125
          %5293 = vmatprep.subr.bf16.mxu0 0
          %5294 = vmatpush1.bf16.msra.mxu0 %v5126
          %5295 = vmatprep.mubr.bf16.mxu0 %v4699
          %5296 = vmatmul.mubr.bf16.gmra.mrb[0].mxu0 %v4698
          %v5297 = vpop.f32.mrb[0].mxu0
          %v5298 = vadd.f32 %v5258, %v5297
          %v5299 = vpop.f32.mrb[0].mxu0
          %v5300 = vpop.f32.mrb[0].mxu0
          %v5301 = vpop.f32.mrb[0].mxu0
          %5302 = vdwg.mxu0
          %5303 = vmatprep.subr.bf16.mxu0 0
          %5304 = vmatpush1.bf16.msra.mxu0 %v5127
          %5305 = vmatprep.subr.bf16.mxu0 0
          %5306 = vmatpush1.bf16.msra.mxu0 %v5128
          %5307 = vmatprep.subr.bf16.mxu0 0
          %5308 = vmatpush1.bf16.msra.mxu0 %v5129
          %5309 = vmatprep.subr.bf16.mxu0 0
          %5310 = vmatpush1.bf16.msra.mxu0 %v5130
          %5311 = vmatprep.subr.bf16.mxu0 0
          %5312 = vmatpush1.bf16.msra.mxu0 %v5131
          %5313 = vmatprep.subr.bf16.mxu0 0
          %5314 = vmatpush1.bf16.msra.mxu0 %v5132
          %5315 = vmatprep.subr.bf16.mxu0 0
          %5316 = vmatpush1.bf16.msra.mxu0 %v5133
          %5317 = vmatprep.subr.bf16.mxu0 0
          %5318 = vmatpush1.bf16.msra.mxu0 %v5134
          %5319 = vmatprep.subr.bf16.mxu0 0
          %5320 = vmatpush1.bf16.msra.mxu0 %v5135
          %5321 = vmatprep.subr.bf16.mxu0 0
          %5322 = vmatpush1.bf16.msra.mxu0 %v5136
          %5323 = vmatprep.subr.bf16.mxu0 0
          %5324 = vmatpush1.bf16.msra.mxu0 %v5137
          %5325 = vmatprep.subr.bf16.mxu0 0
          %5326 = vmatpush1.bf16.msra.mxu0 %v5138
          %5327 = vmatprep.subr.bf16.mxu0 0
          %5328 = vmatpush1.bf16.msra.mxu0 %v5139
          %5329 = vmatprep.subr.bf16.mxu0 0
          %5330 = vmatpush1.bf16.msra.mxu0 %v5140
          %5331 = vmatprep.subr.bf16.mxu0 0
          %5332 = vmatpush1.bf16.msra.mxu0 %v5141
          %5333 = vmatprep.subr.bf16.mxu0 0
          %5334 = vmatpush1.bf16.msra.mxu0 %v5142
          %5335 = vmatprep.mubr.bf16.mxu0 %v4701
          %5336 = vmatmul.mubr.bf16.gmra.mrb[0].mxu0 %v4700
          %v5337 = vpop.f32.mrb[0].mxu0
          %v5338 = vadd.f32 %v5298, %v5337
          %v5339 = vpop.f32.mrb[0].mxu0
          %v5340 = vpop.f32.mrb[0].mxu0
          %v5341 = vpop.f32.mrb[0].mxu0
          %5342 = vdwg.mxu0
          %5343 = vmatprep.subr.bf16.mxu0 0
          %5344 = vmatpush1.bf16.msra.mxu0 %v5143
          %5345 = vmatprep.subr.bf16.mxu0 0
          %5346 = vmatpush1.bf16.msra.mxu0 %v5144
          %5347 = vmatprep.subr.bf16.mxu0 0
          %5348 = vmatpush1.bf16.msra.mxu0 %v5145
          %5349 = vmatprep.subr.bf16.mxu0 0
          %5350 = vmatpush1.bf16.msra.mxu0 %v5146
          %5351 = vmatprep.subr.bf16.mxu0 0
          %5352 = vmatpush1.bf16.msra.mxu0 %v5147
          %5353 = vmatprep.subr.bf16.mxu0 0
          %5354 = vmatpush1.bf16.msra.mxu0 %v5148
          %5355 = vmatprep.subr.bf16.mxu0 0
          %5356 = vmatpush1.bf16.msra.mxu0 %v5149
          %5357 = vmatprep.subr.bf16.mxu0 0
          %5358 = vmatpush1.bf16.msra.mxu0 %v5150
          %5359 = vmatprep.subr.bf16.mxu0 0
          %5360 = vmatpush1.bf16.msra.mxu0 %v5151
          %5361 = vmatprep.subr.bf16.mxu0 0
          %5362 = vmatpush1.bf16.msra.mxu0 %v5152
          %5363 = vmatprep.subr.bf16.mxu0 0
          %5364 = vmatpush1.bf16.msra.mxu0 %v5153
          %5365 = vmatprep.subr.bf16.mxu0 0
          %5366 = vmatpush1.bf16.msra.mxu0 %v5154
          %5367 = vmatprep.subr.bf16.mxu0 0
          %5368 = vmatpush1.bf16.msra.mxu0 %v5155
          %5369 = vmatprep.subr.bf16.mxu0 0
          %5370 = vmatpush1.bf16.msra.mxu0 %v5156
          %5371 = vmatprep.subr.bf16.mxu0 0
          %5372 = vmatpush1.bf16.msra.mxu0 %v5157
          %5373 = vmatprep.subr.bf16.mxu0 0
          %5374 = vmatpush1.bf16.msra.mxu0 %v5158
          %5375 = vmatprep.mubr.bf16.mxu0 %v4703
          %5376 = vmatmul.mubr.bf16.gmra.mrb[0].mxu0 %v4702
          %v5377 = vpop.f32.mrb[0].mxu0
          %v5378 = vadd.f32 %v5338, %v5377
          %v5379 = vpop.f32.mrb[0].mxu0
          %v5380 = vpop.f32.mrb[0].mxu0
          %v5381 = vpop.f32.mrb[0].mxu0
          %5382 = vdwg.mxu0
          %5383 = vst [vmem:[#allocation7] sm:$0xff] %v5378
        $region68: #{network_forward.3} parent=47 // pred_fallthru
          _
        // Predicated region
        $region69: #{network_forward.3} parent=47 // pred_check
          %p5384 = pneg %p220
        $region70: #{network_forward.3} parent=47 // pred_check_branch
          %5386 = sbr.rel (%p5384) target = $region72
        $region71: #{network_forward.3} parent=47 // pred_region
          %s5388 = ssub.s32 128, 128
          %5389 = vsyncadd [#allocation6], %s5388
          %s5391 = sshll.u32 [#allocation7], 4
          %s5392 = int_to_ptr.vmem [resolvable:$true] %s5391
          %5394 = dma.vmem_to_hbm [thread:$0]  %s5392, 128, %s7, [#allocation6]
        $region72: #{network_forward.3} parent=47 // pred_fallthru
          _
        // Predicated region
        $region73: #{network_forward.3} parent=47 // pred_check
          %p5395 = pneg %p220
        $region74: #{network_forward.3} parent=47 // pred_check_branch
          %5397 = sbr.rel (%p5395) target = $region76
        $region75: #{network_forward.3} parent=47 // pred_region
          %5398 = dma.done [#allocation6], 128
        $region76: #{network_forward.3} parent=47 // pred_fallthru
          _
      $region48: #{network_forward.3} parent=5 // pred_fallthru
        _
      %p5399 = scmp.le.s32.totalorder 2, %s17
      // Predicated region
      $region77: #{network_forward.3} parent=5 // pred_check
        %p5400 = pneg %p5399
      $region78: #{network_forward.3} parent=5 // pred_check_branch
        %5402 = sbr.rel (%p5400) target = $region80
      $region79: #{network_forward.3} parent=5 // pred_region
        %s5403 = ssub.s32 %s17, 2
      $region80: #{network_forward.3} parent=5 // pred_fallthru
        _
    $region6: #{network_forward.3} parent=1 // loop_footer
      %s21 = sadd.s32 1, %s17
    $region7: #{network_forward.3} parent=1 // loop_footer_branch
      %16 = sbr.rel target = $region3
    $region8: #{network_forward.3} parent=1 // loop_exit
      _
    %5404 = vsyncpa [#allocation5], 1
    %s5405 = scalar_lea.sflag [#allocation5], 1
    %5406 = vsyncpa %s5405, 1
    %5407 = vsyncpa [#allocation6], 1
    %s5408 = scalar_lea.sflag [#allocation6], 1
    %5409 = vsyncpa %s5408, 1

// kernel: network_forward.2
$region0: #{network_forward.2}
  #allocation0 [shape = 'u32[]', space=smem, size = 0x4, offset = 0x4, fixed_abs, tag = 'smem constant byte address 0x4 - core index']
  #allocation1 [shape = 'u32[144,128]{1,0:T(1,128)}', space=vmem, size = 0x12000, scoped, tag = 'internal scratch']
  #allocation2 [shape = 'f32[8,1024]{1,0:T(8,128)}', space=vmem, size = 0x8000, scoped, tag = 'scratch operand']
  %s0 = inlined_call_operand.vmem [shape: f32[8,384], index: 0, kind: input, shape index: {}]
  %s1 = inlined_call_operand.hbm [shape: bf16[5,384,1024], index: 1, kind: input, shape index: {}]
  %s2 = inlined_call_operand.hbm [shape: f32[5,8,1024], index: 2, kind: input, shape index: {}]
  %s3 = inlined_call_operand.hbm [shape: bf16[5,1024,1024], index: 3, kind: input, shape index: {}]
  %s4 = inlined_call_operand.hbm [shape: f32[8,1024], index: 4, kind: input, shape index: {}]
  %s5 = inlined_call_operand.vmem [shape: f32[8,1024], index: 5, kind: output, shape index: {}]
  %s6 = sld [smem:[#allocation0]]
  $region77: #{network_forward.2} parent=0
    _
  %s8 = ssub.s32 1, %s6
  %s9 = scalar_select 0, %s8, %s6
  $region1: #{network_forward.2} parent=0
    #allocation3 [shape = 'u8[1572864]{0}', space=vmem, size = 0x180000, scoped, tag = 'input window, operand 1']
    #allocation4 [shape = 's32[2]{0}', space=sflag, size = 0x8, scoped, tag = 'scoped memory for network_forward.2']
    #allocation5 [shape = 'u8[65536]{0}', space=vmem, size = 0x10000, scoped, tag = 'input window, operand 2']
    #allocation6 [shape = 's32[2]{0}', space=sflag, size = 0x8, scoped, tag = 'scoped memory for network_forward.2']
    #allocation7 [shape = 'u8[4194304]{0}', space=vmem, size = 0x400000, scoped, tag = 'input window, operand 3']
    #allocation8 [shape = 'u8[32768]{0}', space=vmem, size = 0x8000, scoped, tag = 'input window, operand 4, single buffered']
    #allocation9 [shape = 's32[1]{0}', space=sflag, size = 0x4, scoped, tag = 'scoped memory for network_forward.2']
    %10 = vsyncpa [#allocation4], 0
    %s11 = scalar_lea.sflag [#allocation4], 1
    %12 = vsyncpa %s11, 0
    %13 = vsyncpa [#allocation6], 0
    %s14 = scalar_lea.sflag [#allocation6], 1
    %15 = vsyncpa %s14, 0
    %16 = vsyncpa [#allocation9], 0
    loop: start=0, step=1, limit=7
    $region2: #{network_forward.2} parent=1 // loop_pre_header
      _
    $region3: #{network_forward.2} parent=1 // loop_header
      %s18 = sphi 0, %s22
      %p19 = scmp.ge.s32.totalorder %s18, 7
      %s26 = sphi 0, %s26
      %s28 = sphi 0, %s26
      %s29 = sphi 0, %s28
      %s43 = sphi 0, %s29
      %s49 = sphi 0, %s51
      %s52 = sphi 0, %s49
      %s53 = sphi 0, %s52
      %s69 = sphi 0, %s53
      %s75 = sphi 0, %s77
      %s78 = sphi 0, %s75
      %s79 = sphi 0, %s78
      %s95 = sphi 0, %s79
      %s101 = sphi 0, %s103
      %s104 = sphi 0, %s101
      %s105 = sphi 0, %s104
      %s121 = sphi 0, %s105
      %s125 = sphi 0, %s125
      %s127 = sphi 0, %s125
      %s128 = sphi 0, %s127
      %s142 = sphi 0, %s128
      %s146 = sphi 0, %s146
      %s148 = sphi 0, %s146
      %s149 = sphi 0, %s148
      %s163 = sphi 0, %s149
    $region4: #{network_forward.2} parent=1 // loop_header_branch
      %21 = sbr.rel (%p19) target = $region8
    $region5: #{network_forward.2} parent=1 // loop_body
      %s23 = ssub.s32 %s18, 1
      %s24 = ssub.s32 %s18, 2
      %s25 = sadd.s32 %s18, 1
      %s27 = sadd.s32 %s26, 1
      %p30 = scmp.eq.s32.totalorder %s18, 4
      %p31 = scmp.ne.s32.totalorder %s26, %s28
      %p32 = scmp.eq.s32.totalorder %s18, 0
      %p33 = por %p31, %p32
      %p34 = scmp.ne.s32.totalorder %s26, %s28
      %p35 = scmp.eq.s32.totalorder %s23, 4
      %p36 = por %p34, %p35
      %p37 = scmp.ne.s32.totalorder %s28, %s29
      %p38 = scmp.eq.s32.totalorder %s23, 0
      %p39 = por %p37, %p38
      %p40 = scmp.ne.s32.totalorder %s28, %s29
      %p41 = scmp.eq.s32.totalorder %s24, 4
      %p42 = por %p40, %p41
      %p44 = scmp.ne.s32.totalorder %s29, %s43
      %p45 = scmp.eq.s32.totalorder %s24, 0
      %p46 = por %p44, %p45
      %s47 = ssub.s32 %s18, %s25
      %p48 = scmp.eq.s32.totalorder %s47, 0
      %s50 = sadd.s32 %s49, 1
      %s51 = scalar_select %p48, %s49, %s50
      %p54 = pneg %p48
      %p55 = scmp.eq.s32.totalorder %s18, 4
      %p56 = por %p54, %p55
      %p57 = scmp.ne.s32.totalorder %s49, %s52
      %p58 = scmp.eq.s32.totalorder %s18, 0
      %p59 = por %p57, %p58
      %p60 = scmp.ne.s32.totalorder %s49, %s52
      %p61 = scmp.eq.s32.totalorder %s23, 4
      %p62 = por %p60, %p61
      %p63 = scmp.ne.s32.totalorder %s52, %s53
      %p64 = scmp.eq.s32.totalorder %s23, 0
      %p65 = por %p63, %p64
      %p66 = scmp.ne.s32.totalorder %s52, %s53
      %p67 = scmp.eq.s32.totalorder %s24, 4
      %p68 = por %p66, %p67
      %p70 = scmp.ne.s32.totalorder %s53, %s69
      %p71 = scmp.eq.s32.totalorder %s24, 0
      %p72 = por %p70, %p71
      %s73 = ssub.s32 %s18, %s25
      %p74 = scmp.eq.s32.totalorder %s73, 0
      %s76 = sadd.s32 %s75, 1
      %s77 = scalar_select %p74, %s75, %s76
      %p80 = pneg %p74
      %p81 = scmp.eq.s32.totalorder %s18, 4
      %p82 = por %p80, %p81
      %p83 = scmp.ne.s32.totalorder %s75, %s78
      %p84 = scmp.eq.s32.totalorder %s18, 0
      %p85 = por %p83, %p84
      %p86 = scmp.ne.s32.totalorder %s75, %s78
      %p87 = scmp.eq.s32.totalorder %s23, 4
      %p88 = por %p86, %p87
      %p89 = scmp.ne.s32.totalorder %s78, %s79
      %p90 = scmp.eq.s32.totalorder %s23, 0
      %p91 = por %p89, %p90
      %p92 = scmp.ne.s32.totalorder %s78, %s79
      %p93 = scmp.eq.s32.totalorder %s24, 4
      %p94 = por %p92, %p93
      %p96 = scmp.ne.s32.totalorder %s79, %s95
      %p97 = scmp.eq.s32.totalorder %s24, 0
      %p98 = por %p96, %p97
      %s99 = ssub.s32 %s18, %s25
      %p100 = scmp.eq.s32.totalorder %s99, 0
      %s102 = sadd.s32 %s101, 1
      %s103 = scalar_select %p100, %s101, %s102
      %p106 = pneg %p100
      %p107 = scmp.eq.s32.totalorder %s18, 4
      %p108 = por %p106, %p107
      %p109 = scmp.ne.s32.totalorder %s101, %s104
      %p110 = scmp.eq.s32.totalorder %s18, 0
      %p111 = por %p109, %p110
      %p112 = scmp.ne.s32.totalorder %s101, %s104
      %p113 = scmp.eq.s32.totalorder %s23, 4
      %p114 = por %p112, %p113
      %p115 = scmp.ne.s32.totalorder %s104, %s105
      %p116 = scmp.eq.s32.totalorder %s23, 0
      %p117 = por %p115, %p116
      %p118 = scmp.ne.s32.totalorder %s104, %s105
      %p119 = scmp.eq.s32.totalorder %s24, 4
      %p120 = por %p118, %p119
      %p122 = scmp.ne.s32.totalorder %s105, %s121
      %p123 = scmp.eq.s32.totalorder %s24, 0
      %p124 = por %p122, %p123
      %s126 = sadd.s32 %s125, 1
      %p129 = scmp.eq.s32.totalorder %s18, 4
      %p130 = scmp.ne.s32.totalorder %s125, %s127
      %p131 = scmp.eq.s32.totalorder %s18, 0
      %p132 = por %p130, %p131
      %p133 = scmp.ne.s32.totalorder %s125, %s127
      %p134 = scmp.eq.s32.totalorder %s23, 4
      %p135 = por %p133, %p134
      %p136 = scmp.ne.s32.totalorder %s127, %s128
      %p137 = scmp.eq.s32.totalorder %s23, 0
      %p138 = por %p136, %p137
      %p139 = scmp.ne.s32.totalorder %s127, %s128
      %p140 = scmp.eq.s32.totalorder %s24, 4
      %p141 = por %p139, %p140
      %p143 = scmp.ne.s32.totalorder %s128, %s142
      %p144 = scmp.eq.s32.totalorder %s24, 0
      %p145 = por %p143, %p144
      %s147 = sadd.s32 %s146, 1
      %p150 = scmp.eq.s32.totalorder %s18, 4
      %p151 = scmp.ne.s32.totalorder %s146, %s148
      %p152 = scmp.eq.s32.totalorder %s18, 0
      %p153 = por %p151, %p152
      %p154 = scmp.ne.s32.totalorder %s146, %s148
      %p155 = scmp.eq.s32.totalorder %s23, 4
      %p156 = por %p154, %p155
      %p157 = scmp.ne.s32.totalorder %s148, %s149
      %p158 = scmp.eq.s32.totalorder %s23, 0
      %p159 = por %p157, %p158
      %p160 = scmp.ne.s32.totalorder %s148, %s149
      %p161 = scmp.eq.s32.totalorder %s24, 4
      %p162 = por %p160, %p161
      %p164 = scmp.ne.s32.totalorder %s149, %s163
      %p165 = scmp.eq.s32.totalorder %s24, 0
      %p166 = por %p164, %p165
      %p167 = scmp.le.s32.totalorder 1, %s18
      %p168 = scmp.lt.s32.totalorder %s18, 6
      %p169 = pnand %p167, %p168
      %p170 = pneg %p169
      // Predicated region
      $region9: #{network_forward.2} parent=5 // pred_check
        _
      $region10: #{network_forward.2} parent=5 // pred_check_branch
        %172 = sbr.rel (%p169) target = $region12
      $region11: #{network_forward.2} parent=5 // pred_region
        %s173 = ssub.s32 %s18, 1
        // Predicated region
        $region13: #{network_forward.2} parent=11 // pred_check
          %p174 = pneg %p39
        $region14: #{network_forward.2} parent=11 // pred_check_branch
          %176 = sbr.rel (%p174) target = $region16
        $region15: #{network_forward.2} parent=11 // pred_region
          _
        $region16: #{network_forward.2} parent=11 // pred_fallthru
          _
        // Predicated region
        $region17: #{network_forward.2} parent=11 // pred_check
          %p177 = pneg %p138
        $region18: #{network_forward.2} parent=11 // pred_check_branch
          %179 = sbr.rel (%p177) target = $region20
        $region19: #{network_forward.2} parent=11 // pred_region
          %s181 = ssub.s32 1024, 1024
          %182 = vsyncadd [#allocation9], %s181
          %s184 = sshll.u32 [#allocation8], 4
          %s185 = int_to_ptr.vmem [resolvable:$true] %s184
          %187 = dma.hbm_to_vmem [thread:$0]  %s4, 1024, %s185, [#allocation9]
        $region20: #{network_forward.2} parent=11 // pred_fallthru
          _
      $region12: #{network_forward.2} parent=5 // pred_fallthru
        _
      %p188 = scmp.lt.s32.totalorder %s18, 5
      // Predicated region
      $region21: #{network_forward.2} parent=5 // pred_check
        %p189 = pneg %p188
      $region22: #{network_forward.2} parent=5 // pred_check_branch
        %191 = sbr.rel (%p189) target = $region24
      $region23: #{network_forward.2} parent=5 // pred_region
        // Predicated region
        $region25: #{network_forward.2} parent=23 // pred_check
          %p192 = pneg %p59
        $region26: #{network_forward.2} parent=23 // pred_check_branch
          %194 = sbr.rel (%p192) target = $region28
        $region27: #{network_forward.2} parent=23 // pred_region
          %s195 = sand.u32 %s49, 1
          %s196 = scalar_lea.sflag [#allocation4], %s195
          %s197 = sand.u32 %s49, 1
          %s198 = smul.addr %s197, 1536
          %s199 = scalar_lea.vmem [#allocation3], %s198
          %s201 = ssub.s32 24576, 24576
          %202 = vsyncadd %s196, %s201
          %s203 = smul.addr %s18, 384
          %s204 = smul.addr %s203, 64
          %s205 = scalar_lea.hbm %s1, %s204
          %s206 = sshll.u32 %s199, 4
          %s207 = int_to_ptr.vmem [resolvable:$true] %s206
          %212 = dma.hbm_to_vmem [thread:$0]  %s205, 24576, %s207, %s196, 512, 512, 32
        $region28: #{network_forward.2} parent=23 // pred_fallthru
          _
        // Predicated region
        $region29: #{network_forward.2} parent=23 // pred_check
          %p213 = pneg %p85
        $region30: #{network_forward.2} parent=23 // pred_check_branch
          %215 = sbr.rel (%p213) target = $region32
        $region31: #{network_forward.2} parent=23 // pred_region
          %s216 = sand.u32 %s18, 1
          %s217 = scalar_lea.sflag [#allocation6], %s216
          %s218 = sand.u32 %s75, 1
          %s219 = smul.addr %s218, 64
          %s220 = scalar_lea.vmem [#allocation5], %s219
          %s222 = ssub.s32 1024, 1024
          %223 = vsyncadd %s217, %s222
          %s224 = smul.addr %s18, 8
          %s225 = smul.addr %s224, 128
          %s226 = scalar_lea.hbm %s2, %s225
          %s228 = sshll.u32 %s220, 4
          %s229 = int_to_ptr.vmem [resolvable:$true] %s228
          %231 = dma.hbm_to_vmem [thread:$0]  %s226, 1024, %s229, %s217
        $region32: #{network_forward.2} parent=23 // pred_fallthru
          _
        // Predicated region
        $region33: #{network_forward.2} parent=23 // pred_check
          %p232 = pneg %p111
        $region34: #{network_forward.2} parent=23 // pred_check_branch
          %234 = sbr.rel (%p232) target = $region36
        $region35: #{network_forward.2} parent=23 // pred_region
          %s235 = sand.u32 %s18, 1
          %s236 = scalar_lea.sflag [#allocation6], %s235
          %s237 = sand.u32 %s101, 1
          %s238 = smul.addr %s237, 4096
          %s239 = scalar_lea.vmem [#allocation7], %s238
          %s241 = ssub.s32 65536, 65536
          %242 = vsyncadd %s236, %s241
          %s243 = smul.addr %s18, 1024
          %s244 = smul.addr %s243, 64
          %s245 = scalar_lea.hbm %s3, %s244
          %s246 = sshll.u32 %s239, 4
          %s247 = int_to_ptr.vmem [resolvable:$true] %s246
          %252 = dma.hbm_to_vmem [thread:$0]  %s245, 65536, %s247, %s236, 512, 512, 32
        $region36: #{network_forward.2} parent=23 // pred_fallthru
          _
      $region24: #{network_forward.2} parent=5 // pred_fallthru
        _
      %p253 = scmp.le.s32.totalorder 1, %s18
      %p254 = scmp.lt.s32.totalorder %s18, 6
      %p255 = pnand %p253, %p254
      %p256 = pneg %p255
      // Predicated region
      $region37: #{network_forward.2} parent=5 // pred_check
        _
      $region38: #{network_forward.2} parent=5 // pred_check_branch
        %258 = sbr.rel (%p255) target = $region40
      $region39: #{network_forward.2} parent=5 // pred_region
        %s259 = ssub.s32 %s18, 1
        %s260 = sand.u32 %s52, 1
        %s261 = scalar_lea.sflag [#allocation4], %s260
        %s262 = sand.u32 %s52, 1
        %s263 = smul.addr %s262, 1536
        %s264 = scalar_lea.vmem [#allocation3], %s263
        // Predicated region
        $region41: #{network_forward.2} parent=39 // pred_check
          %p265 = pneg %p65
        $region42: #{network_forward.2} parent=39 // pred_check_branch
          %267 = sbr.rel (%p265) target = $region44
        $region43: #{network_forward.2} parent=39 // pred_region
          %268 = dma.done %s261, 24576
        $region44: #{network_forward.2} parent=39 // pred_fallthru
          _
        %s269 = sand.u32 %s23, 1
        %s270 = scalar_lea.sflag [#allocation6], %s269
        %s271 = sand.u32 %s78, 1
        %s272 = smul.addr %s271, 64
        %s273 = scalar_lea.vmem [#allocation5], %s272
        // Predicated region
        $region45: #{network_forward.2} parent=39 // pred_check
          %p274 = pneg %p91
        $region46: #{network_forward.2} parent=39 // pred_check_branch
          %276 = sbr.rel (%p274) target = $region48
        $region47: #{network_forward.2} parent=39 // pred_region
          %277 = dma.done %s270, 1024
        $region48: #{network_forward.2} parent=39 // pred_fallthru
          _
        %s278 = sand.u32 %s23, 1
        %s279 = scalar_lea.sflag [#allocation6], %s278
        %s280 = sand.u32 %s104, 1
        %s281 = smul.addr %s280, 4096
        %s282 = scalar_lea.vmem [#allocation7], %s281
        // Predicated region
        $region49: #{network_forward.2} parent=39 // pred_check
          %p283 = pneg %p117
        $region50: #{network_forward.2} parent=39 // pred_check_branch
          %285 = sbr.rel (%p283) target = $region52
        $region51: #{network_forward.2} parent=39 // pred_region
          %286 = dma.done %s279, 65536
        $region52: #{network_forward.2} parent=39 // pred_fallthru
          _
        // Predicated region
        $region53: #{network_forward.2} parent=39 // pred_check
          %p287 = pneg %p138
        $region54: #{network_forward.2} parent=39 // pred_check_branch
          %289 = sbr.rel (%p287) target = $region56
        $region55: #{network_forward.2} parent=39 // pred_region
          %290 = dma.done [#allocation9], 1024
        $region56: #{network_forward.2} parent=39 // pred_fallthru
          _
        %p291 = pneg %p39
        %p292 = pneg %p36
        %s293 = sand.u32 %s52, 1
        %s294 = scalar_lea.sflag [#allocation4], %s293
        %s295 = sand.u32 %s52, 1
        %s296 = smul.addr %s295, 1536
        %s297 = scalar_lea.vmem [#allocation3], %s296
        %p298 = pneg %p65
        %p299 = pneg %p62
        %s300 = sand.u32 %s23, 1
        %s301 = scalar_lea.sflag [#allocation6], %s300
        %s302 = sand.u32 %s78, 1
        %s303 = smul.addr %s302, 64
        %s304 = scalar_lea.vmem [#allocation5], %s303
        %p305 = pneg %p91
        %p306 = pneg %p88
        %s307 = sand.u32 %s23, 1
        %s308 = scalar_lea.sflag [#allocation6], %s307
        %s309 = sand.u32 %s104, 1
        %s310 = smul.addr %s309, 4096
        %s311 = scalar_lea.vmem [#allocation7], %s310
        %p312 = pneg %p117
        %p313 = pneg %p114
        %p314 = pneg %p138
        %p315 = pneg %p135
        %p316 = pneg %p159
        %p317 = pneg %p156
        %p319 = scmp.eq.s32.totalorder %s23, 0
        // Predicated region
        $region57: #{network_forward.2} parent=39 // pred_check
          %p320 = pneg %p319
        $region58: #{network_forward.2} parent=39 // pred_check_branch
          %322 = sbr.rel (%p320) target = $region60
        $region59: #{network_forward.2} parent=39 // pred_region
          %323 = vst [vmem:[#allocation2] sm:$0xff] 0.0
          %324 = vst [vmem:[#allocation2 + $0x8] sm:$0xff] 0.0
          %325 = vst [vmem:[#allocation2 + $0x10] sm:$0xff] 0.0
          %326 = vst [vmem:[#allocation2 + $0x18] sm:$0xff] 0.0
          %327 = vst [vmem:[#allocation2 + $0x20] sm:$0xff] 0.0
          %328 = vst [vmem:[#allocation2 + $0x28] sm:$0xff] 0.0
          %329 = vst [vmem:[#allocation2 + $0x30] sm:$0xff] 0.0
          %330 = vst [vmem:[#allocation2 + $0x38] sm:$0xff] 0.0
        $region60: #{network_forward.2} parent=39 // pred_fallthru
          _
        %v331 = vld [vmem:[%s0] sm:$0xff]
        %v332 = vld [vmem:[%s0 + $0x8] sm:$0xff]
        %v333 = vld [vmem:[%s0 + $0x10] sm:$0xff]
        %v334 = vpack.c.bf16 %v331, %v331
        %v335 = vpack.c.bf16 %v332, %v332
        %v336 = vpack.c.bf16 %v333, %v333
        %v337 = vld [vmem:[%s264] sm:$0xff]
        %v338 = vld [vmem:[%s264 + $0x8] sm:$0xff]
        %v339 = vld [vmem:[%s264 + $0x10] sm:$0xff]
        %v340 = vld [vmem:[%s264 + $0x18] sm:$0xff]
        %v341 = vld [vmem:[%s264 + $0x20] sm:$0xff]
        %v342 = vld [vmem:[%s264 + $0x28] sm:$0xff]
        %v343 = vld [vmem:[%s264 + $0x30] sm:$0xff]
        %v344 = vld [vmem:[%s264 + $0x38] sm:$0xff]
        %v345 = vld [vmem:[%s264 + $0x40] sm:$0xff]
        %v346 = vld [vmem:[%s264 + $0x48] sm:$0xff]
        %v347 = vld [vmem:[%s264 + $0x50] sm:$0xff]
        %v348 = vld [vmem:[%s264 + $0x58] sm:$0xff]
        %v349 = vld [vmem:[%s264 + $0x60] sm:$0xff]
        %v350 = vld [vmem:[%s264 + $0x68] sm:$0xff]
        %v351 = vld [vmem:[%s264 + $0x70] sm:$0xff]
        %v352 = vld [vmem:[%s264 + $0x78] sm:$0xff]
        %v353 = vld [vmem:[%s264 + $0x80] sm:$0xff]
        %v354 = vld [vmem:[%s264 + $0x88] sm:$0xff]
        %v355 = vld [vmem:[%s264 + $0x90] sm:$0xff]
        %v356 = vld [vmem:[%s264 + $0x98] sm:$0xff]
        %v357 = vld [vmem:[%s264 + $0xa0] sm:$0xff]
        %v358 = vld [vmem:[%s264 + $0xa8] sm:$0xff]
        %v359 = vld [vmem:[%s264 + $0xb0] sm:$0xff]
        %v360 = vld [vmem:[%s264 + $0xb8] sm:$0xff]
        %v361 = vld [vmem:[%s264 + $0xc0] sm:$0xff]
        %v362 = vld [vmem:[%s264 + $0xc8] sm:$0xff]
        %v363 = vld [vmem:[%s264 + $0xd0] sm:$0xff]
        %v364 = vld [vmem:[%s264 + $0xd8] sm:$0xff]
        %v365 = vld [vmem:[%s264 + $0xe0] sm:$0xff]
        %v366 = vld [vmem:[%s264 + $0xe8] sm:$0xff]
        %v367 = vld [vmem:[%s264 + $0xf0] sm:$0xff]
        %v368 = vld [vmem:[%s264 + $0xf8] sm:$0xff]
        %v369 = vld [vmem:[%s264 + $0x100] sm:$0xff]
        %v370 = vld [vmem:[%s264 + $0x108] sm:$0xff]
        %v371 = vld [vmem:[%s264 + $0x110] sm:$0xff]
        %v372 = vld [vmem:[%s264 + $0x118] sm:$0xff]
        %v373 = vld [vmem:[%s264 + $0x120] sm:$0xff]
        %v374 = vld [vmem:[%s264 + $0x128] sm:$0xff]
        %v375 = vld [vmem:[%s264 + $0x130] sm:$0xff]
        %v376 = vld [vmem:[%s264 + $0x138] sm:$0xff]
        %v377 = vld [vmem:[%s264 + $0x140] sm:$0xff]
        %v378 = vld [vmem:[%s264 + $0x148] sm:$0xff]
        %v379 = vld [vmem:[%s264 + $0x150] sm:$0xff]
        %v380 = vld [vmem:[%s264 + $0x158] sm:$0xff]
        %v381 = vld [vmem:[%s264 + $0x160] sm:$0xff]
        %v382 = vld [vmem:[%s264 + $0x168] sm:$0xff]
        %v383 = vld [vmem:[%s264 + $0x170] sm:$0xff]
        %v384 = vld [vmem:[%s264 + $0x178] sm:$0xff]
        %v385 = vld [vmem:[%s264 + $0x180] sm:$0xff]
        %v386 = vld [vmem:[%s264 + $0x188] sm:$0xff]
        %v387 = vld [vmem:[%s264 + $0x190] sm:$0xff]
        %v388 = vld [vmem:[%s264 + $0x198] sm:$0xff]
        %v389 = vld [vmem:[%s264 + $0x1a0] sm:$0xff]
        %v390 = vld [vmem:[%s264 + $0x1a8] sm:$0xff]
        %v391 = vld [vmem:[%s264 + $0x1b0] sm:$0xff]
        %v392 = vld [vmem:[%s264 + $0x1b8] sm:$0xff]
        %v393 = vld [vmem:[%s264 + $0x1c0] sm:$0xff]
        %v394 = vld [vmem:[%s264 + $0x1c8] sm:$0xff]
        %v395 = vld [vmem:[%s264 + $0x1d0] sm:$0xff]
        %v396 = vld [vmem:[%s264 + $0x1d8] sm:$0xff]
        %v397 = vld [vmem:[%s264 + $0x1e0] sm:$0xff]
        %v398 = vld [vmem:[%s264 + $0x1e8] sm:$0xff]
        %v399 = vld [vmem:[%s264 + $0x1f0] sm:$0xff]
        %v400 = vld [vmem:[%s264 + $0x1f8] sm:$0xff]
        %v401 = vld [vmem:[%s264 + $0x200] sm:$0xff]
        %v402 = vld [vmem:[%s264 + $0x208] sm:$0xff]
        %v403 = vld [vmem:[%s264 + $0x210] sm:$0xff]
        %v404 = vld [vmem:[%s264 + $0x218] sm:$0xff]
        %v405 = vld [vmem:[%s264 + $0x220] sm:$0xff]
        %v406 = vld [vmem:[%s264 + $0x228] sm:$0xff]
        %v407 = vld [vmem:[%s264 + $0x230] sm:$0xff]
        %v408 = vld [vmem:[%s264 + $0x238] sm:$0xff]
        %v409 = vld [vmem:[%s264 + $0x240] sm:$0xff]
        %v410 = vld [vmem:[%s264 + $0x248] sm:$0xff]
        %v411 = vld [vmem:[%s264 + $0x250] sm:$0xff]
        %v412 = vld [vmem:[%s264 + $0x258] sm:$0xff]
        %v413 = vld [vmem:[%s264 + $0x260] sm:$0xff]
        %v414 = vld [vmem:[%s264 + $0x268] sm:$0xff]
        %v415 = vld [vmem:[%s264 + $0x270] sm:$0xff]
        %v416 = vld [vmem:[%s264 + $0x278] sm:$0xff]
        %v417 = vld [vmem:[%s264 + $0x280] sm:$0xff]
        %v418 = vld [vmem:[%s264 + $0x288] sm:$0xff]
        %v419 = vld [vmem:[%s264 + $0x290] sm:$0xff]
        %v420 = vld [vmem:[%s264 + $0x298] sm:$0xff]
        %v421 = vld [vmem:[%s264 + $0x2a0] sm:$0xff]
        %v422 = vld [vmem:[%s264 + $0x2a8] sm:$0xff]
        %v423 = vld [vmem:[%s264 + $0x2b0] sm:$0xff]
        %v424 = vld [vmem:[%s264 + $0x2b8] sm:$0xff]
        %v425 = vld [vmem:[%s264 + $0x2c0] sm:$0xff]
        %v426 = vld [vmem:[%s264 + $0x2c8] sm:$0xff]
        %v427 = vld [vmem:[%s264 + $0x2d0] sm:$0xff]
        %v428 = vld [vmem:[%s264 + $0x2d8] sm:$0xff]
        %v429 = vld [vmem:[%s264 + $0x2e0] sm:$0xff]
        %v430 = vld [vmem:[%s264 + $0x2e8] sm:$0xff]
        %v431 = vld [vmem:[%s264 + $0x2f0] sm:$0xff]
        %v432 = vld [vmem:[%s264 + $0x2f8] sm:$0xff]
        %v433 = vld [vmem:[%s264 + $0x300] sm:$0xff]
        %v434 = vld [vmem:[%s264 + $0x308] sm:$0xff]
        %v435 = vld [vmem:[%s264 + $0x310] sm:$0xff]
        %v436 = vld [vmem:[%s264 + $0x318] sm:$0xff]
        %v437 = vld [vmem:[%s264 + $0x320] sm:$0xff]
        %v438 = vld [vmem:[%s264 + $0x328] sm:$0xff]
        %v439 = vld [vmem:[%s264 + $0x330] sm:$0xff]
        %v440 = vld [vmem:[%s264 + $0x338] sm:$0xff]
        %v441 = vld [vmem:[%s264 + $0x340] sm:$0xff]
        %v442 = vld [vmem:[%s264 + $0x348] sm:$0xff]
        %v443 = vld [vmem:[%s264 + $0x350] sm:$0xff]
        %v444 = vld [vmem:[%s264 + $0x358] sm:$0xff]
        %v445 = vld [vmem:[%s264 + $0x360] sm:$0xff]
        %v446 = vld [vmem:[%s264 + $0x368] sm:$0xff]
        %v447 = vld [vmem:[%s264 + $0x370] sm:$0xff]
        %v448 = vld [vmem:[%s264 + $0x378] sm:$0xff]
        %v449 = vld [vmem:[%s264 + $0x380] sm:$0xff]
        %v450 = vld [vmem:[%s264 + $0x388] sm:$0xff]
        %v451 = vld [vmem:[%s264 + $0x390] sm:$0xff]
        %v452 = vld [vmem:[%s264 + $0x398] sm:$0xff]
        %v453 = vld [vmem:[%s264 + $0x3a0] sm:$0xff]
        %v454 = vld [vmem:[%s264 + $0x3a8] sm:$0xff]
        %v455 = vld [vmem:[%s264 + $0x3b0] sm:$0xff]
        %v456 = vld [vmem:[%s264 + $0x3b8] sm:$0xff]
        %v457 = vld [vmem:[%s264 + $0x3c0] sm:$0xff]
        %v458 = vld [vmem:[%s264 + $0x3c8] sm:$0xff]
        %v459 = vld [vmem:[%s264 + $0x3d0] sm:$0xff]
        %v460 = vld [vmem:[%s264 + $0x3d8] sm:$0xff]
        %v461 = vld [vmem:[%s264 + $0x3e0] sm:$0xff]
        %v462 = vld [vmem:[%s264 + $0x3e8] sm:$0xff]
        %v463 = vld [vmem:[%s264 + $0x3f0] sm:$0xff]
        %v464 = vld [vmem:[%s264 + $0x3f8] sm:$0xff]
        %v465 = vld [vmem:[%s264 + $0x400] sm:$0xff]
        %v466 = vld [vmem:[%s264 + $0x408] sm:$0xff]
        %v467 = vld [vmem:[%s264 + $0x410] sm:$0xff]
        %v468 = vld [vmem:[%s264 + $0x418] sm:$0xff]
        %v469 = vld [vmem:[%s264 + $0x420] sm:$0xff]
        %v470 = vld [vmem:[%s264 + $0x428] sm:$0xff]
        %v471 = vld [vmem:[%s264 + $0x430] sm:$0xff]
        %v472 = vld [vmem:[%s264 + $0x438] sm:$0xff]
        %v473 = vld [vmem:[%s264 + $0x440] sm:$0xff]
        %v474 = vld [vmem:[%s264 + $0x448] sm:$0xff]
        %v475 = vld [vmem:[%s264 + $0x450] sm:$0xff]
        %v476 = vld [vmem:[%s264 + $0x458] sm:$0xff]
        %v477 = vld [vmem:[%s264 + $0x460] sm:$0xff]
        %v478 = vld [vmem:[%s264 + $0x468] sm:$0xff]
        %v479 = vld [vmem:[%s264 + $0x470] sm:$0xff]
        %v480 = vld [vmem:[%s264 + $0x478] sm:$0xff]
        %v481 = vld [vmem:[%s264 + $0x480] sm:$0xff]
        %v482 = vld [vmem:[%s264 + $0x488] sm:$0xff]
        %v483 = vld [vmem:[%s264 + $0x490] sm:$0xff]
        %v484 = vld [vmem:[%s264 + $0x498] sm:$0xff]
        %v485 = vld [vmem:[%s264 + $0x4a0] sm:$0xff]
        %v486 = vld [vmem:[%s264 + $0x4a8] sm:$0xff]
        %v487 = vld [vmem:[%s264 + $0x4b0] sm:$0xff]
        %v488 = vld [vmem:[%s264 + $0x4b8] sm:$0xff]
        %v489 = vld [vmem:[%s264 + $0x4c0] sm:$0xff]
        %v490 = vld [vmem:[%s264 + $0x4c8] sm:$0xff]
        %v491 = vld [vmem:[%s264 + $0x4d0] sm:$0xff]
        %v492 = vld [vmem:[%s264 + $0x4d8] sm:$0xff]
        %v493 = vld [vmem:[%s264 + $0x4e0] sm:$0xff]
        %v494 = vld [vmem:[%s264 + $0x4e8] sm:$0xff]
        %v495 = vld [vmem:[%s264 + $0x4f0] sm:$0xff]
        %v496 = vld [vmem:[%s264 + $0x4f8] sm:$0xff]
        %v497 = vld [vmem:[%s264 + $0x500] sm:$0xff]
        %v498 = vld [vmem:[%s264 + $0x508] sm:$0xff]
        %v499 = vld [vmem:[%s264 + $0x510] sm:$0xff]
        %v500 = vld [vmem:[%s264 + $0x518] sm:$0xff]
        %v501 = vld [vmem:[%s264 + $0x520] sm:$0xff]
        %v502 = vld [vmem:[%s264 + $0x528] sm:$0xff]
        %v503 = vld [vmem:[%s264 + $0x530] sm:$0xff]
        %v504 = vld [vmem:[%s264 + $0x538] sm:$0xff]
        %v505 = vld [vmem:[%s264 + $0x540] sm:$0xff]
        %v506 = vld [vmem:[%s264 + $0x548] sm:$0xff]
        %v507 = vld [vmem:[%s264 + $0x550] sm:$0xff]
        %v508 = vld [vmem:[%s264 + $0x558] sm:$0xff]
        %v509 = vld [vmem:[%s264 + $0x560] sm:$0xff]
        %v510 = vld [vmem:[%s264 + $0x568] sm:$0xff]
        %v511 = vld [vmem:[%s264 + $0x570] sm:$0xff]
        %v512 = vld [vmem:[%s264 + $0x578] sm:$0xff]
        %v513 = vld [vmem:[%s264 + $0x580] sm:$0xff]
        %v514 = vld [vmem:[%s264 + $0x588] sm:$0xff]
        %v515 = vld [vmem:[%s264 + $0x590] sm:$0xff]
        %v516 = vld [vmem:[%s264 + $0x598] sm:$0xff]
        %v517 = vld [vmem:[%s264 + $0x5a0] sm:$0xff]
        %v518 = vld [vmem:[%s264 + $0x5a8] sm:$0xff]
        %v519 = vld [vmem:[%s264 + $0x5b0] sm:$0xff]
        %v520 = vld [vmem:[%s264 + $0x5b8] sm:$0xff]
        %v521 = vld [vmem:[%s264 + $0x5c0] sm:$0xff]
        %v522 = vld [vmem:[%s264 + $0x5c8] sm:$0xff]
        %v523 = vld [vmem:[%s264 + $0x5d0] sm:$0xff]
        %v524 = vld [vmem:[%s264 + $0x5d8] sm:$0xff]
        %v525 = vld [vmem:[%s264 + $0x5e0] sm:$0xff]
        %v526 = vld [vmem:[%s264 + $0x5e8] sm:$0xff]
        %v527 = vld [vmem:[%s264 + $0x5f0] sm:$0xff]
        %v528 = vld [vmem:[%s264 + $0x5f8] sm:$0xff]
        %v721 = vunpack.c.l.b16 %v337
        %v722 = vunpack.c.h.b16 %v337
        %v723 = vunpack.c.l.b16 %v338
        %v724 = vunpack.c.h.b16 %v338
        %v725 = vunpack.c.l.b16 %v339
        %v726 = vunpack.c.h.b16 %v339
        %v727 = vunpack.c.l.b16 %v340
        %v728 = vunpack.c.h.b16 %v340
        %v729 = vunpack.c.l.b16 %v341
        %v730 = vunpack.c.h.b16 %v341
        %v731 = vunpack.c.l.b16 %v342
        %v732 = vunpack.c.h.b16 %v342
        %v733 = vunpack.c.l.b16 %v343
        %v734 = vunpack.c.h.b16 %v343
        %v735 = vunpack.c.l.b16 %v344
        %v736 = vunpack.c.h.b16 %v344
        %v737 = vunpack.c.l.b16 %v345
        %v738 = vunpack.c.h.b16 %v345
        %v739 = vunpack.c.l.b16 %v346
        %v740 = vunpack.c.h.b16 %v346
        %v741 = vunpack.c.l.b16 %v347
        %v742 = vunpack.c.h.b16 %v347
        %v743 = vunpack.c.l.b16 %v348
        %v744 = vunpack.c.h.b16 %v348
        %v745 = vunpack.c.l.b16 %v349
        %v746 = vunpack.c.h.b16 %v349
        %v747 = vunpack.c.l.b16 %v350
        %v748 = vunpack.c.h.b16 %v350
        %v749 = vunpack.c.l.b16 %v351
        %v750 = vunpack.c.h.b16 %v351
        %v751 = vunpack.c.l.b16 %v352
        %v752 = vunpack.c.h.b16 %v352
        %v753 = vunpack.c.l.b16 %v353
        %v754 = vunpack.c.h.b16 %v353
        %v755 = vunpack.c.l.b16 %v354
        %v756 = vunpack.c.h.b16 %v354
        %v757 = vunpack.c.l.b16 %v355
        %v758 = vunpack.c.h.b16 %v355
        %v759 = vunpack.c.l.b16 %v356
        %v760 = vunpack.c.h.b16 %v356
        %v761 = vunpack.c.l.b16 %v357
        %v762 = vunpack.c.h.b16 %v357
        %v763 = vunpack.c.l.b16 %v358
        %v764 = vunpack.c.h.b16 %v358
        %v765 = vunpack.c.l.b16 %v359
        %v766 = vunpack.c.h.b16 %v359
        %v767 = vunpack.c.l.b16 %v360
        %v768 = vunpack.c.h.b16 %v360
        %v769 = vunpack.c.l.b16 %v361
        %v770 = vunpack.c.h.b16 %v361
        %v771 = vunpack.c.l.b16 %v362
        %v772 = vunpack.c.h.b16 %v362
        %v773 = vunpack.c.l.b16 %v363
        %v774 = vunpack.c.h.b16 %v363
        %v775 = vunpack.c.l.b16 %v364
        %v776 = vunpack.c.h.b16 %v364
        %v777 = vunpack.c.l.b16 %v365
        %v778 = vunpack.c.h.b16 %v365
        %v779 = vunpack.c.l.b16 %v366
        %v780 = vunpack.c.h.b16 %v366
        %v781 = vunpack.c.l.b16 %v367
        %v782 = vunpack.c.h.b16 %v367
        %v783 = vunpack.c.l.b16 %v368
        %v784 = vunpack.c.h.b16 %v368
        %v785 = vunpack.c.l.b16 %v369
        %v786 = vunpack.c.h.b16 %v369
        %v787 = vunpack.c.l.b16 %v370
        %v788 = vunpack.c.h.b16 %v370
        %v789 = vunpack.c.l.b16 %v371
        %v790 = vunpack.c.h.b16 %v371
        %v791 = vunpack.c.l.b16 %v372
        %v792 = vunpack.c.h.b16 %v372
        %v793 = vunpack.c.l.b16 %v373
        %v794 = vunpack.c.h.b16 %v373
        %v795 = vunpack.c.l.b16 %v374
        %v796 = vunpack.c.h.b16 %v374
        %v797 = vunpack.c.l.b16 %v375
        %v798 = vunpack.c.h.b16 %v375
        %v799 = vunpack.c.l.b16 %v376
        %v800 = vunpack.c.h.b16 %v376
        %v801 = vunpack.c.l.b16 %v377
        %v802 = vunpack.c.h.b16 %v377
        %v803 = vunpack.c.l.b16 %v378
        %v804 = vunpack.c.h.b16 %v378
        %v805 = vunpack.c.l.b16 %v379
        %v806 = vunpack.c.h.b16 %v379
        %v807 = vunpack.c.l.b16 %v380
        %v808 = vunpack.c.h.b16 %v380
        %v809 = vunpack.c.l.b16 %v381
        %v810 = vunpack.c.h.b16 %v381
        %v811 = vunpack.c.l.b16 %v382
        %v812 = vunpack.c.h.b16 %v382
        %v813 = vunpack.c.l.b16 %v383
        %v814 = vunpack.c.h.b16 %v383
        %v815 = vunpack.c.l.b16 %v384
        %v816 = vunpack.c.h.b16 %v384
        %v817 = vunpack.c.l.b16 %v385
        %v818 = vunpack.c.h.b16 %v385
        %v819 = vunpack.c.l.b16 %v386
        %v820 = vunpack.c.h.b16 %v386
        %v821 = vunpack.c.l.b16 %v387
        %v822 = vunpack.c.h.b16 %v387
        %v823 = vunpack.c.l.b16 %v388
        %v824 = vunpack.c.h.b16 %v388
        %v825 = vunpack.c.l.b16 %v389
        %v826 = vunpack.c.h.b16 %v389
        %v827 = vunpack.c.l.b16 %v390
        %v828 = vunpack.c.h.b16 %v390
        %v829 = vunpack.c.l.b16 %v391
        %v830 = vunpack.c.h.b16 %v391
        %v831 = vunpack.c.l.b16 %v392
        %v832 = vunpack.c.h.b16 %v392
        %v833 = vunpack.c.l.b16 %v393
        %v834 = vunpack.c.h.b16 %v393
        %v835 = vunpack.c.l.b16 %v394
        %v836 = vunpack.c.h.b16 %v394
        %v837 = vunpack.c.l.b16 %v395
        %v838 = vunpack.c.h.b16 %v395
        %v839 = vunpack.c.l.b16 %v396
        %v840 = vunpack.c.h.b16 %v396
        %v841 = vunpack.c.l.b16 %v397
        %v842 = vunpack.c.h.b16 %v397
        %v843 = vunpack.c.l.b16 %v398
        %v844 = vunpack.c.h.b16 %v398
        %v845 = vunpack.c.l.b16 %v399
        %v846 = vunpack.c.h.b16 %v399
        %v847 = vunpack.c.l.b16 %v400
        %v848 = vunpack.c.h.b16 %v400
        %v849 = vunpack.c.l.b16 %v401
        %v850 = vunpack.c.h.b16 %v401
        %v851 = vunpack.c.l.b16 %v402
        %v852 = vunpack.c.h.b16 %v402
        %v853 = vunpack.c.l.b16 %v403
        %v854 = vunpack.c.h.b16 %v403
        %v855 = vunpack.c.l.b16 %v404
        %v856 = vunpack.c.h.b16 %v404
        %v857 = vunpack.c.l.b16 %v405
        %v858 = vunpack.c.h.b16 %v405
        %v859 = vunpack.c.l.b16 %v406
        %v860 = vunpack.c.h.b16 %v406
        %v861 = vunpack.c.l.b16 %v407
        %v862 = vunpack.c.h.b16 %v407
        %v863 = vunpack.c.l.b16 %v408
        %v864 = vunpack.c.h.b16 %v408
        %v865 = vunpack.c.l.b16 %v409
        %v866 = vunpack.c.h.b16 %v409
        %v867 = vunpack.c.l.b16 %v410
        %v868 = vunpack.c.h.b16 %v410
        %v869 = vunpack.c.l.b16 %v411
        %v870 = vunpack.c.h.b16 %v411
        %v871 = vunpack.c.l.b16 %v412
        %v872 = vunpack.c.h.b16 %v412
        %v873 = vunpack.c.l.b16 %v413
        %v874 = vunpack.c.h.b16 %v413
        %v875 = vunpack.c.l.b16 %v414
        %v876 = vunpack.c.h.b16 %v414
        %v877 = vunpack.c.l.b16 %v415
        %v878 = vunpack.c.h.b16 %v415
        %v879 = vunpack.c.l.b16 %v416
        %v880 = vunpack.c.h.b16 %v416
        %v881 = vunpack.c.l.b16 %v417
        %v882 = vunpack.c.h.b16 %v417
        %v883 = vunpack.c.l.b16 %v418
        %v884 = vunpack.c.h.b16 %v418
        %v885 = vunpack.c.l.b16 %v419
        %v886 = vunpack.c.h.b16 %v419
        %v887 = vunpack.c.l.b16 %v420
        %v888 = vunpack.c.h.b16 %v420
        %v889 = vunpack.c.l.b16 %v421
        %v890 = vunpack.c.h.b16 %v421
        %v891 = vunpack.c.l.b16 %v422
        %v892 = vunpack.c.h.b16 %v422
        %v893 = vunpack.c.l.b16 %v423
        %v894 = vunpack.c.h.b16 %v423
        %v895 = vunpack.c.l.b16 %v424
        %v896 = vunpack.c.h.b16 %v424
        %v897 = vunpack.c.l.b16 %v425
        %v898 = vunpack.c.h.b16 %v425
        %v899 = vunpack.c.l.b16 %v426
        %v900 = vunpack.c.h.b16 %v426
        %v901 = vunpack.c.l.b16 %v427
        %v902 = vunpack.c.h.b16 %v427
        %v903 = vunpack.c.l.b16 %v428
        %v904 = vunpack.c.h.b16 %v428
        %v905 = vunpack.c.l.b16 %v429
        %v906 = vunpack.c.h.b16 %v429
        %v907 = vunpack.c.l.b16 %v430
        %v908 = vunpack.c.h.b16 %v430
        %v909 = vunpack.c.l.b16 %v431
        %v910 = vunpack.c.h.b16 %v431
        %v911 = vunpack.c.l.b16 %v432
        %v912 = vunpack.c.h.b16 %v432
        %v913 = vunpack.c.l.b16 %v433
        %v914 = vunpack.c.h.b16 %v433
        %v915 = vunpack.c.l.b16 %v434
        %v916 = vunpack.c.h.b16 %v434
        %v917 = vunpack.c.l.b16 %v435
        %v918 = vunpack.c.h.b16 %v435
        %v919 = vunpack.c.l.b16 %v436
        %v920 = vunpack.c.h.b16 %v436
        %v921 = vunpack.c.l.b16 %v437
        %v922 = vunpack.c.h.b16 %v437
        %v923 = vunpack.c.l.b16 %v438
        %v924 = vunpack.c.h.b16 %v438
        %v925 = vunpack.c.l.b16 %v439
        %v926 = vunpack.c.h.b16 %v439
        %v927 = vunpack.c.l.b16 %v440
        %v928 = vunpack.c.h.b16 %v440
        %v929 = vunpack.c.l.b16 %v441
        %v930 = vunpack.c.h.b16 %v441
        %v931 = vunpack.c.l.b16 %v442
        %v932 = vunpack.c.h.b16 %v442
        %v933 = vunpack.c.l.b16 %v443
        %v934 = vunpack.c.h.b16 %v443
        %v935 = vunpack.c.l.b16 %v444
        %v936 = vunpack.c.h.b16 %v444
        %v937 = vunpack.c.l.b16 %v445
        %v938 = vunpack.c.h.b16 %v445
        %v939 = vunpack.c.l.b16 %v446
        %v940 = vunpack.c.h.b16 %v446
        %v941 = vunpack.c.l.b16 %v447
        %v942 = vunpack.c.h.b16 %v447
        %v943 = vunpack.c.l.b16 %v448
        %v944 = vunpack.c.h.b16 %v448
        %v945 = vunpack.c.l.b16 %v449
        %v946 = vunpack.c.h.b16 %v449
        %v947 = vunpack.c.l.b16 %v450
        %v948 = vunpack.c.h.b16 %v450
        %v949 = vunpack.c.l.b16 %v451
        %v950 = vunpack.c.h.b16 %v451
        %v951 = vunpack.c.l.b16 %v452
        %v952 = vunpack.c.h.b16 %v452
        %v953 = vunpack.c.l.b16 %v453
        %v954 = vunpack.c.h.b16 %v453
        %v955 = vunpack.c.l.b16 %v454
        %v956 = vunpack.c.h.b16 %v454
        %v957 = vunpack.c.l.b16 %v455
        %v958 = vunpack.c.h.b16 %v455
        %v959 = vunpack.c.l.b16 %v456
        %v960 = vunpack.c.h.b16 %v456
        %v961 = vunpack.c.l.b16 %v457
        %v962 = vunpack.c.h.b16 %v457
        %v963 = vunpack.c.l.b16 %v458
        %v964 = vunpack.c.h.b16 %v458
        %v965 = vunpack.c.l.b16 %v459
        %v966 = vunpack.c.h.b16 %v459
        %v967 = vunpack.c.l.b16 %v460
        %v968 = vunpack.c.h.b16 %v460
        %v969 = vunpack.c.l.b16 %v461
        %v970 = vunpack.c.h.b16 %v461
        %v971 = vunpack.c.l.b16 %v462
        %v972 = vunpack.c.h.b16 %v462
        %v973 = vunpack.c.l.b16 %v463
        %v974 = vunpack.c.h.b16 %v463
        %v975 = vunpack.c.l.b16 %v464
        %v976 = vunpack.c.h.b16 %v464
        %v977 = vunpack.c.l.b16 %v465
        %v978 = vunpack.c.h.b16 %v465
        %v979 = vunpack.c.l.b16 %v466
        %v980 = vunpack.c.h.b16 %v466
        %v981 = vunpack.c.l.b16 %v467
        %v982 = vunpack.c.h.b16 %v467
        %v983 = vunpack.c.l.b16 %v468
        %v984 = vunpack.c.h.b16 %v468
        %v985 = vunpack.c.l.b16 %v469
        %v986 = vunpack.c.h.b16 %v469
        %v987 = vunpack.c.l.b16 %v470
        %v988 = vunpack.c.h.b16 %v470
        %v989 = vunpack.c.l.b16 %v471
        %v990 = vunpack.c.h.b16 %v471
        %v991 = vunpack.c.l.b16 %v472
        %v992 = vunpack.c.h.b16 %v472
        %v993 = vunpack.c.l.b16 %v473
        %v994 = vunpack.c.h.b16 %v473
        %v995 = vunpack.c.l.b16 %v474
        %v996 = vunpack.c.h.b16 %v474
        %v997 = vunpack.c.l.b16 %v475
        %v998 = vunpack.c.h.b16 %v475
        %v999 = vunpack.c.l.b16 %v476
        %v1000 = vunpack.c.h.b16 %v476
        %v1001 = vunpack.c.l.b16 %v477
        %v1002 = vunpack.c.h.b16 %v477
        %v1003 = vunpack.c.l.b16 %v478
        %v1004 = vunpack.c.h.b16 %v478
        %v1005 = vunpack.c.l.b16 %v479
        %v1006 = vunpack.c.h.b16 %v479
        %v1007 = vunpack.c.l.b16 %v480
        %v1008 = vunpack.c.h.b16 %v480
        %v1009 = vunpack.c.l.b16 %v481
        %v1010 = vunpack.c.h.b16 %v481
        %v1011 = vunpack.c.l.b16 %v482
        %v1012 = vunpack.c.h.b16 %v482
        %v1013 = vunpack.c.l.b16 %v483
        %v1014 = vunpack.c.h.b16 %v483
        %v1015 = vunpack.c.l.b16 %v484
        %v1016 = vunpack.c.h.b16 %v484
        %v1017 = vunpack.c.l.b16 %v485
        %v1018 = vunpack.c.h.b16 %v485
        %v1019 = vunpack.c.l.b16 %v486
        %v1020 = vunpack.c.h.b16 %v486
        %v1021 = vunpack.c.l.b16 %v487
        %v1022 = vunpack.c.h.b16 %v487
        %v1023 = vunpack.c.l.b16 %v488
        %v1024 = vunpack.c.h.b16 %v488
        %v1025 = vunpack.c.l.b16 %v489
        %v1026 = vunpack.c.h.b16 %v489
        %v1027 = vunpack.c.l.b16 %v490
        %v1028 = vunpack.c.h.b16 %v490
        %v1029 = vunpack.c.l.b16 %v491
        %v1030 = vunpack.c.h.b16 %v491
        %v1031 = vunpack.c.l.b16 %v492
        %v1032 = vunpack.c.h.b16 %v492
        %v1033 = vunpack.c.l.b16 %v493
        %v1034 = vunpack.c.h.b16 %v493
        %v1035 = vunpack.c.l.b16 %v494
        %v1036 = vunpack.c.h.b16 %v494
        %v1037 = vunpack.c.l.b16 %v495
        %v1038 = vunpack.c.h.b16 %v495
        %v1039 = vunpack.c.l.b16 %v496
        %v1040 = vunpack.c.h.b16 %v496
        %v1041 = vunpack.c.l.b16 %v497
        %v1042 = vunpack.c.h.b16 %v497
        %v1043 = vunpack.c.l.b16 %v498
        %v1044 = vunpack.c.h.b16 %v498
        %v1045 = vunpack.c.l.b16 %v499
        %v1046 = vunpack.c.h.b16 %v499
        %v1047 = vunpack.c.l.b16 %v500
        %v1048 = vunpack.c.h.b16 %v500
        %v1049 = vunpack.c.l.b16 %v501
        %v1050 = vunpack.c.h.b16 %v501
        %v1051 = vunpack.c.l.b16 %v502
        %v1052 = vunpack.c.h.b16 %v502
        %v1053 = vunpack.c.l.b16 %v503
        %v1054 = vunpack.c.h.b16 %v503
        %v1055 = vunpack.c.l.b16 %v504
        %v1056 = vunpack.c.h.b16 %v504
        %v1057 = vunpack.c.l.b16 %v505
        %v1058 = vunpack.c.h.b16 %v505
        %v1059 = vunpack.c.l.b16 %v506
        %v1060 = vunpack.c.h.b16 %v506
        %v1061 = vunpack.c.l.b16 %v507
        %v1062 = vunpack.c.h.b16 %v507
        %v1063 = vunpack.c.l.b16 %v508
        %v1064 = vunpack.c.h.b16 %v508
        %v1065 = vunpack.c.l.b16 %v509
        %v1066 = vunpack.c.h.b16 %v509
        %v1067 = vunpack.c.l.b16 %v510
        %v1068 = vunpack.c.h.b16 %v510
        %v1069 = vunpack.c.l.b16 %v511
        %v1070 = vunpack.c.h.b16 %v511
        %v1071 = vunpack.c.l.b16 %v512
        %v1072 = vunpack.c.h.b16 %v512
        %v1073 = vunpack.c.l.b16 %v513
        %v1074 = vunpack.c.h.b16 %v513
        %v1075 = vunpack.c.l.b16 %v514
        %v1076 = vunpack.c.h.b16 %v514
        %v1077 = vunpack.c.l.b16 %v515
        %v1078 = vunpack.c.h.b16 %v515
        %v1079 = vunpack.c.l.b16 %v516
        %v1080 = vunpack.c.h.b16 %v516
        %v1081 = vunpack.c.l.b16 %v517
        %v1082 = vunpack.c.h.b16 %v517
        %v1083 = vunpack.c.l.b16 %v518
        %v1084 = vunpack.c.h.b16 %v518
        %v1085 = vunpack.c.l.b16 %v519
        %v1086 = vunpack.c.h.b16 %v519
        %v1087 = vunpack.c.l.b16 %v520
        %v1088 = vunpack.c.h.b16 %v520
        %v1089 = vunpack.c.l.b16 %v521
        %v1090 = vunpack.c.h.b16 %v521
        %v1091 = vunpack.c.l.b16 %v522
        %v1092 = vunpack.c.h.b16 %v522
        %v1093 = vunpack.c.l.b16 %v523
        %v1094 = vunpack.c.h.b16 %v523
        %v1095 = vunpack.c.l.b16 %v524
        %v1096 = vunpack.c.h.b16 %v524
        %v1097 = vunpack.c.l.b16 %v525
        %v1098 = vunpack.c.h.b16 %v525
        %v1099 = vunpack.c.l.b16 %v526
        %v1100 = vunpack.c.h.b16 %v526
        %v1101 = vunpack.c.l.b16 %v527
        %v1102 = vunpack.c.h.b16 %v527
        %v1103 = vunpack.c.l.b16 %v528
        %v1104 = vunpack.c.h.b16 %v528
        %v1105 = vpack.c.b16 %v729, %v721
        %v1106 = vpack.c.b16 %v730, %v722
        %v1107 = vpack.c.b16 %v731, %v723
        %v1108 = vpack.c.b16 %v732, %v724
        %v1109 = vpack.c.b16 %v733, %v725
        %v1110 = vpack.c.b16 %v734, %v726
        %v1111 = vpack.c.b16 %v735, %v727
        %v1112 = vpack.c.b16 %v736, %v728
        %v1113 = vpack.c.b16 %v745, %v737
        %v1114 = vpack.c.b16 %v746, %v738
        %v1115 = vpack.c.b16 %v747, %v739
        %v1116 = vpack.c.b16 %v748, %v740
        %v1117 = vpack.c.b16 %v749, %v741
        %v1118 = vpack.c.b16 %v750, %v742
        %v1119 = vpack.c.b16 %v751, %v743
        %v1120 = vpack.c.b16 %v752, %v744
        %v1121 = vpack.c.b16 %v761, %v753
        %v1122 = vpack.c.b16 %v762, %v754
        %v1123 = vpack.c.b16 %v763, %v755
        %v1124 = vpack.c.b16 %v764, %v756
        %v1125 = vpack.c.b16 %v765, %v757
        %v1126 = vpack.c.b16 %v766, %v758
        %v1127 = vpack.c.b16 %v767, %v759
        %v1128 = vpack.c.b16 %v768, %v760
        %v1129 = vpack.c.b16 %v777, %v769
        %v1130 = vpack.c.b16 %v778, %v770
        %v1131 = vpack.c.b16 %v779, %v771
        %v1132 = vpack.c.b16 %v780, %v772
        %v1133 = vpack.c.b16 %v781, %v773
        %v1134 = vpack.c.b16 %v782, %v774
        %v1135 = vpack.c.b16 %v783, %v775
        %v1136 = vpack.c.b16 %v784, %v776
        %v1137 = vpack.c.b16 %v793, %v785
        %v1138 = vpack.c.b16 %v794, %v786
        %v1139 = vpack.c.b16 %v795, %v787
        %v1140 = vpack.c.b16 %v796, %v788
        %v1141 = vpack.c.b16 %v797, %v789
        %v1142 = vpack.c.b16 %v798, %v790
        %v1143 = vpack.c.b16 %v799, %v791
        %v1144 = vpack.c.b16 %v800, %v792
        %v1145 = vpack.c.b16 %v809, %v801
        %v1146 = vpack.c.b16 %v810, %v802
        %v1147 = vpack.c.b16 %v811, %v803
        %v1148 = vpack.c.b16 %v812, %v804
        %v1149 = vpack.c.b16 %v813, %v805
        %v1150 = vpack.c.b16 %v814, %v806
        %v1151 = vpack.c.b16 %v815, %v807
        %v1152 = vpack.c.b16 %v816, %v808
        %v1153 = vpack.c.b16 %v825, %v817
        %v1154 = vpack.c.b16 %v826, %v818
        %v1155 = vpack.c.b16 %v827, %v819
        %v1156 = vpack.c.b16 %v828, %v820
        %v1157 = vpack.c.b16 %v829, %v821
        %v1158 = vpack.c.b16 %v830, %v822
        %v1159 = vpack.c.b16 %v831, %v823
        %v1160 = vpack.c.b16 %v832, %v824
        %v1161 = vpack.c.b16 %v841, %v833
        %v1162 = vpack.c.b16 %v842, %v834
        %v1163 = vpack.c.b16 %v843, %v835
        %v1164 = vpack.c.b16 %v844, %v836
        %v1165 = vpack.c.b16 %v845, %v837
        %v1166 = vpack.c.b16 %v846, %v838
        %v1167 = vpack.c.b16 %v847, %v839
        %v1168 = vpack.c.b16 %v848, %v840
        %v1169 = vpack.c.b16 %v857, %v849
        %v1170 = vpack.c.b16 %v858, %v850
        %v1171 = vpack.c.b16 %v859, %v851
        %v1172 = vpack.c.b16 %v860, %v852
        %v1173 = vpack.c.b16 %v861, %v853
        %v1174 = vpack.c.b16 %v862, %v854
        %v1175 = vpack.c.b16 %v863, %v855
        %v1176 = vpack.c.b16 %v864, %v856
        %v1177 = vpack.c.b16 %v873, %v865
        %v1178 = vpack.c.b16 %v874, %v866
        %v1179 = vpack.c.b16 %v875, %v867
        %v1180 = vpack.c.b16 %v876, %v868
        %v1181 = vpack.c.b16 %v877, %v869
        %v1182 = vpack.c.b16 %v878, %v870
        %v1183 = vpack.c.b16 %v879, %v871
        %v1184 = vpack.c.b16 %v880, %v872
        %v1185 = vpack.c.b16 %v889, %v881
        %v1186 = vpack.c.b16 %v890, %v882
        %v1187 = vpack.c.b16 %v891, %v883
        %v1188 = vpack.c.b16 %v892, %v884
        %v1189 = vpack.c.b16 %v893, %v885
        %v1190 = vpack.c.b16 %v894, %v886
        %v1191 = vpack.c.b16 %v895, %v887
        %v1192 = vpack.c.b16 %v896, %v888
        %v1193 = vpack.c.b16 %v905, %v897
        %v1194 = vpack.c.b16 %v906, %v898
        %v1195 = vpack.c.b16 %v907, %v899
        %v1196 = vpack.c.b16 %v908, %v900
        %v1197 = vpack.c.b16 %v909, %v901
        %v1198 = vpack.c.b16 %v910, %v902
        %v1199 = vpack.c.b16 %v911, %v903
        %v1200 = vpack.c.b16 %v912, %v904
        %v1201 = vpack.c.b16 %v921, %v913
        %v1202 = vpack.c.b16 %v922, %v914
        %v1203 = vpack.c.b16 %v923, %v915
        %v1204 = vpack.c.b16 %v924, %v916
        %v1205 = vpack.c.b16 %v925, %v917
        %v1206 = vpack.c.b16 %v926, %v918
        %v1207 = vpack.c.b16 %v927, %v919
        %v1208 = vpack.c.b16 %v928, %v920
        %v1209 = vpack.c.b16 %v937, %v929
        %v1210 = vpack.c.b16 %v938, %v930
        %v1211 = vpack.c.b16 %v939, %v931
        %v1212 = vpack.c.b16 %v940, %v932
        %v1213 = vpack.c.b16 %v941, %v933
        %v1214 = vpack.c.b16 %v942, %v934
        %v1215 = vpack.c.b16 %v943, %v935
        %v1216 = vpack.c.b16 %v944, %v936
        %v1217 = vpack.c.b16 %v953, %v945
        %v1218 = vpack.c.b16 %v954, %v946
        %v1219 = vpack.c.b16 %v955, %v947
        %v1220 = vpack.c.b16 %v956, %v948
        %v1221 = vpack.c.b16 %v957, %v949
        %v1222 = vpack.c.b16 %v958, %v950
        %v1223 = vpack.c.b16 %v959, %v951
        %v1224 = vpack.c.b16 %v960, %v952
        %v1225 = vpack.c.b16 %v969, %v961
        %v1226 = vpack.c.b16 %v970, %v962
        %v1227 = vpack.c.b16 %v971, %v963
        %v1228 = vpack.c.b16 %v972, %v964
        %v1229 = vpack.c.b16 %v973, %v965
        %v1230 = vpack.c.b16 %v974, %v966
        %v1231 = vpack.c.b16 %v975, %v967
        %v1232 = vpack.c.b16 %v976, %v968
        %v1233 = vpack.c.b16 %v985, %v977
        %v1234 = vpack.c.b16 %v986, %v978
        %v1235 = vpack.c.b16 %v987, %v979
        %v1236 = vpack.c.b16 %v988, %v980
        %v1237 = vpack.c.b16 %v989, %v981
        %v1238 = vpack.c.b16 %v990, %v982
        %v1239 = vpack.c.b16 %v991, %v983
        %v1240 = vpack.c.b16 %v992, %v984
        %v1241 = vpack.c.b16 %v1001, %v993
        %v1242 = vpack.c.b16 %v1002, %v994
        %v1243 = vpack.c.b16 %v1003, %v995
        %v1244 = vpack.c.b16 %v1004, %v996
        %v1245 = vpack.c.b16 %v1005, %v997
        %v1246 = vpack.c.b16 %v1006, %v998
        %v1247 = vpack.c.b16 %v1007, %v999
        %v1248 = vpack.c.b16 %v1008, %v1000
        %v1249 = vpack.c.b16 %v1017, %v1009
        %v1250 = vpack.c.b16 %v1018, %v1010
        %v1251 = vpack.c.b16 %v1019, %v1011
        %v1252 = vpack.c.b16 %v1020, %v1012
        %v1253 = vpack.c.b16 %v1021, %v1013
        %v1254 = vpack.c.b16 %v1022, %v1014
        %v1255 = vpack.c.b16 %v1023, %v1015
        %v1256 = vpack.c.b16 %v1024, %v1016
        %v1257 = vpack.c.b16 %v1033, %v1025
        %v1258 = vpack.c.b16 %v1034, %v1026
        %v1259 = vpack.c.b16 %v1035, %v1027
        %v1260 = vpack.c.b16 %v1036, %v1028
        %v1261 = vpack.c.b16 %v1037, %v1029
        %v1262 = vpack.c.b16 %v1038, %v1030
        %v1263 = vpack.c.b16 %v1039, %v1031
        %v1264 = vpack.c.b16 %v1040, %v1032
        %v1265 = vpack.c.b16 %v1049, %v1041
        %v1266 = vpack.c.b16 %v1050, %v1042
        %v1267 = vpack.c.b16 %v1051, %v1043
        %v1268 = vpack.c.b16 %v1052, %v1044
        %v1269 = vpack.c.b16 %v1053, %v1045
        %v1270 = vpack.c.b16 %v1054, %v1046
        %v1271 = vpack.c.b16 %v1055, %v1047
        %v1272 = vpack.c.b16 %v1056, %v1048
        %v1273 = vpack.c.b16 %v1065, %v1057
        %v1274 = vpack.c.b16 %v1066, %v1058
        %v1275 = vpack.c.b16 %v1067, %v1059
        %v1276 = vpack.c.b16 %v1068, %v1060
        %v1277 = vpack.c.b16 %v1069, %v1061
        %v1278 = vpack.c.b16 %v1070, %v1062
        %v1279 = vpack.c.b16 %v1071, %v1063
        %v1280 = vpack.c.b16 %v1072, %v1064
        %v1281 = vpack.c.b16 %v1081, %v1073
        %v1282 = vpack.c.b16 %v1082, %v1074
        %v1283 = vpack.c.b16 %v1083, %v1075
        %v1284 = vpack.c.b16 %v1084, %v1076
        %v1285 = vpack.c.b16 %v1085, %v1077
        %v1286 = vpack.c.b16 %v1086, %v1078
        %v1287 = vpack.c.b16 %v1087, %v1079
        %v1288 = vpack.c.b16 %v1088, %v1080
        %v1289 = vpack.c.b16 %v1097, %v1089
        %v1290 = vpack.c.b16 %v1098, %v1090
        %v1291 = vpack.c.b16 %v1099, %v1091
        %v1292 = vpack.c.b16 %v1100, %v1092
        %v1293 = vpack.c.b16 %v1101, %v1093
        %v1294 = vpack.c.b16 %v1102, %v1094
        %v1295 = vpack.c.b16 %v1103, %v1095
        %v1296 = vpack.c.b16 %v1104, %v1096
        %1489 = vmatprep.subr.bf16.mxu0 %v1106
        %1490 = vmatpush1.bf16.msra.mxu0 %v1105
        %1491 = vmatprep.subr.bf16.mxu0 %v1114
        %1492 = vmatpush1.bf16.msra.mxu0 %v1113
        %1493 = vmatprep.subr.bf16.mxu0 %v1122
        %1494 = vmatpush1.bf16.msra.mxu0 %v1121
        %1495 = vmatprep.subr.bf16.mxu0 %v1130
        %1496 = vmatpush1.bf16.msra.mxu0 %v1129
        %1497 = vmatprep.subr.bf16.mxu0 %v1138
        %1498 = vmatpush1.bf16.msra.mxu0 %v1137
        %1499 = vmatprep.subr.bf16.mxu0 %v1146
        %1500 = vmatpush1.bf16.msra.mxu0 %v1145
        %1501 = vmatprep.subr.bf16.mxu0 %v1154
        %1502 = vmatpush1.bf16.msra.mxu0 %v1153
        %1503 = vmatprep.subr.bf16.mxu0 %v1162
        %1504 = vmatpush1.bf16.msra.mxu0 %v1161
        %1505 = vmatprep.subr.bf16.mxu0 %v1170
        %1506 = vmatpush1.bf16.msra.mxu0 %v1169
        %1507 = vmatprep.subr.bf16.mxu0 %v1178
        %1508 = vmatpush1.bf16.msra.mxu0 %v1177
        %1509 = vmatprep.subr.bf16.mxu0 %v1186
        %1510 = vmatpush1.bf16.msra.mxu0 %v1185
        %1511 = vmatprep.subr.bf16.mxu0 %v1194
        %1512 = vmatpush1.bf16.msra.mxu0 %v1193
        %1513 = vmatprep.subr.bf16.mxu0 %v1202
        %1514 = vmatpush1.bf16.msra.mxu0 %v1201
        %1515 = vmatprep.subr.bf16.mxu0 %v1210
        %1516 = vmatpush1.bf16.msra.mxu0 %v1209
        %1517 = vmatprep.subr.bf16.mxu0 %v1218
        %1518 = vmatpush1.bf16.msra.mxu0 %v1217
        %1519 = vmatprep.subr.bf16.mxu0 %v1226
        %1520 = vmatpush1.bf16.msra.mxu0 %v1225
        %1521 = vmatprep.mubr.bf16.mxu0 %v335
        %1522 = vmatmul.mubr.bf16.gmra.mrb[0].mxu0 %v334
        %v1523 = vpop.f32.mrb[0].mxu0
        %v1524 = vadd.f32 0.0, %v1523
        %v1525 = vpop.f32.mrb[0].mxu0
        %v1526 = vadd.f32 0.0, %v1525
        %v1527 = vpop.f32.mrb[0].mxu0
        %v1528 = vpop.f32.mrb[0].mxu0
        %1529 = vdwg.mxu0
        %1530 = vmatprep.subr.bf16.mxu0 %v1234
        %1531 = vmatpush1.bf16.msra.mxu0 %v1233
        %1532 = vmatprep.subr.bf16.mxu0 %v1242
        %1533 = vmatpush1.bf16.msra.mxu0 %v1241
        %1534 = vmatprep.subr.bf16.mxu0 %v1250
        %1535 = vmatpush1.bf16.msra.mxu0 %v1249
        %1536 = vmatprep.subr.bf16.mxu0 %v1258
        %1537 = vmatpush1.bf16.msra.mxu0 %v1257
        %1538 = vmatprep.subr.bf16.mxu0 %v1266
        %1539 = vmatpush1.bf16.msra.mxu0 %v1265
        %1540 = vmatprep.subr.bf16.mxu0 %v1274
        %1541 = vmatpush1.bf16.msra.mxu0 %v1273
        %1542 = vmatprep.subr.bf16.mxu0 %v1282
        %1543 = vmatpush1.bf16.msra.mxu0 %v1281
        %1544 = vmatprep.subr.bf16.mxu0 %v1290
        %1545 = vmatpush1.bf16.msra.mxu0 %v1289
        %1546 = vmatprep.subr.bf16.mxu0 0
        %1547 = vmatpush1.bf16.msra.mxu0 0
        %1548 = vmatprep.subr.bf16.mxu0 0
        %1549 = vmatpush1.bf16.msra.mxu0 0
        %1550 = vmatprep.subr.bf16.mxu0 0
        %1551 = vmatpush1.bf16.msra.mxu0 0
        %1552 = vmatprep.subr.bf16.mxu0 0
        %1553 = vmatpush1.bf16.msra.mxu0 0
        %1554 = vmatprep.subr.bf16.mxu0 0
        %1555 = vmatpush1.bf16.msra.mxu0 0
        %1556 = vmatprep.subr.bf16.mxu0 0
        %1557 = vmatpush1.bf16.msra.mxu0 0
        %1558 = vmatprep.subr.bf16.mxu0 0
        %1559 = vmatpush1.bf16.msra.mxu0 0
        %1560 = vmatprep.subr.bf16.mxu0 0
        %1561 = vmatpush1.bf16.msra.mxu0 0
        %1562 = vmatprep.mubr.bf16.mxu0 0
        %1563 = vmatmul.mubr.bf16.gmra.mrb[0].mxu0 %v336
        %v1564 = vpop.f32.mrb[0].mxu0
        %v1565 = vadd.f32 %v1524, %v1564
        %v1566 = vpop.f32.mrb[0].mxu0
        %v1567 = vadd.f32 %v1526, %v1566
        %v1568 = vpop.f32.mrb[0].mxu0
        %v1569 = vpop.f32.mrb[0].mxu0
        %1570 = vdwg.mxu0
        %1571 = vmatprep.subr.bf16.mxu0 %v1108
        %1572 = vmatpush1.bf16.msra.mxu0 %v1107
        %1573 = vmatprep.subr.bf16.mxu0 %v1116
        %1574 = vmatpush1.bf16.msra.mxu0 %v1115
        %1575 = vmatprep.subr.bf16.mxu0 %v1124
        %1576 = vmatpush1.bf16.msra.mxu0 %v1123
        %1577 = vmatprep.subr.bf16.mxu0 %v1132
        %1578 = vmatpush1.bf16.msra.mxu0 %v1131
        %1579 = vmatprep.subr.bf16.mxu0 %v1140
        %1580 = vmatpush1.bf16.msra.mxu0 %v1139
        %1581 = vmatprep.subr.bf16.mxu0 %v1148
        %1582 = vmatpush1.bf16.msra.mxu0 %v1147
        %1583 = vmatprep.subr.bf16.mxu0 %v1156
        %1584 = vmatpush1.bf16.msra.mxu0 %v1155
        %1585 = vmatprep.subr.bf16.mxu0 %v1164
        %1586 = vmatpush1.bf16.msra.mxu0 %v1163
        %1587 = vmatprep.subr.bf16.mxu0 %v1172
        %1588 = vmatpush1.bf16.msra.mxu0 %v1171
        %1589 = vmatprep.subr.bf16.mxu0 %v1180
        %1590 = vmatpush1.bf16.msra.mxu0 %v1179
        %1591 = vmatprep.subr.bf16.mxu0 %v1188
        %1592 = vmatpush1.bf16.msra.mxu0 %v1187
        %1593 = vmatprep.subr.bf16.mxu0 %v1196
        %1594 = vmatpush1.bf16.msra.mxu0 %v1195
        %1595 = vmatprep.subr.bf16.mxu0 %v1204
        %1596 = vmatpush1.bf16.msra.mxu0 %v1203
        %1597 = vmatprep.subr.bf16.mxu0 %v1212
        %1598 = vmatpush1.bf16.msra.mxu0 %v1211
        %1599 = vmatprep.subr.bf16.mxu0 %v1220
        %1600 = vmatpush1.bf16.msra.mxu0 %v1219
        %1601 = vmatprep.subr.bf16.mxu0 %v1228
        %1602 = vmatpush1.bf16.msra.mxu0 %v1227
        %1603 = vmatprep.mubr.bf16.mxu0 %v335
        %1604 = vmatmul.mubr.bf16.gmra.mrb[0].mxu0 %v334
        %v1605 = vpop.f32.mrb[0].mxu0
        %v1606 = vadd.f32 0.0, %v1605
        %v1607 = vpop.f32.mrb[0].mxu0
        %v1608 = vadd.f32 0.0, %v1607
        %v1609 = vpop.f32.mrb[0].mxu0
        %v1610 = vpop.f32.mrb[0].mxu0
        %1611 = vdwg.mxu0
        %1612 = vmatprep.subr.bf16.mxu0 %v1236
        %1613 = vmatpush1.bf16.msra.mxu0 %v1235
        %1614 = vmatprep.subr.bf16.mxu0 %v1244
        %1615 = vmatpush1.bf16.msra.mxu0 %v1243
        %1616 = vmatprep.subr.bf16.mxu0 %v1252
        %1617 = vmatpush1.bf16.msra.mxu0 %v1251
        %1618 = vmatprep.subr.bf16.mxu0 %v1260
        %1619 = vmatpush1.bf16.msra.mxu0 %v1259
        %1620 = vmatprep.subr.bf16.mxu0 %v1268
        %1621 = vmatpush1.bf16.msra.mxu0 %v1267
        %1622 = vmatprep.subr.bf16.mxu0 %v1276
        %1623 = vmatpush1.bf16.msra.mxu0 %v1275
        %1624 = vmatprep.subr.bf16.mxu0 %v1284
        %1625 = vmatpush1.bf16.msra.mxu0 %v1283
        %1626 = vmatprep.subr.bf16.mxu0 %v1292
        %1627 = vmatpush1.bf16.msra.mxu0 %v1291
        %1628 = vmatprep.subr.bf16.mxu0 0
        %1629 = vmatpush1.bf16.msra.mxu0 0
        %1630 = vmatprep.subr.bf16.mxu0 0
        %1631 = vmatpush1.bf16.msra.mxu0 0
        %1632 = vmatprep.subr.bf16.mxu0 0
        %1633 = vmatpush1.bf16.msra.mxu0 0
        %1634 = vmatprep.subr.bf16.mxu0 0
        %1635 = vmatpush1.bf16.msra.mxu0 0
        %1636 = vmatprep.subr.bf16.mxu0 0
        %1637 = vmatpush1.bf16.msra.mxu0 0
        %1638 = vmatprep.subr.bf16.mxu0 0
        %1639 = vmatpush1.bf16.msra.mxu0 0
        %1640 = vmatprep.subr.bf16.mxu0 0
        %1641 = vmatpush1.bf16.msra.mxu0 0
        %1642 = vmatprep.subr.bf16.mxu0 0
        %1643 = vmatpush1.bf16.msra.mxu0 0
        %1644 = vmatprep.mubr.bf16.mxu0 0
        %1645 = vmatmul.mubr.bf16.gmra.mrb[0].mxu0 %v336
        %v1646 = vpop.f32.mrb[0].mxu0
        %v1647 = vadd.f32 %v1606, %v1646
        %v1648 = vpop.f32.mrb[0].mxu0
        %v1649 = vadd.f32 %v1608, %v1648
        %v1650 = vpop.f32.mrb[0].mxu0
        %v1651 = vpop.f32.mrb[0].mxu0
        %1652 = vdwg.mxu0
        %1653 = vmatprep.subr.bf16.mxu0 %v1110
        %1654 = vmatpush1.bf16.msra.mxu0 %v1109
        %1655 = vmatprep.subr.bf16.mxu0 %v1118
        %1656 = vmatpush1.bf16.msra.mxu0 %v1117
        %1657 = vmatprep.subr.bf16.mxu0 %v1126
        %1658 = vmatpush1.bf16.msra.mxu0 %v1125
        %1659 = vmatprep.subr.bf16.mxu0 %v1134
        %1660 = vmatpush1.bf16.msra.mxu0 %v1133
        %1661 = vmatprep.subr.bf16.mxu0 %v1142
        %1662 = vmatpush1.bf16.msra.mxu0 %v1141
        %1663 = vmatprep.subr.bf16.mxu0 %v1150
        %1664 = vmatpush1.bf16.msra.mxu0 %v1149
        %1665 = vmatprep.subr.bf16.mxu0 %v1158
        %1666 = vmatpush1.bf16.msra.mxu0 %v1157
        %1667 = vmatprep.subr.bf16.mxu0 %v1166
        %1668 = vmatpush1.bf16.msra.mxu0 %v1165
        %1669 = vmatprep.subr.bf16.mxu0 %v1174
        %1670 = vmatpush1.bf16.msra.mxu0 %v1173
        %1671 = vmatprep.subr.bf16.mxu0 %v1182
        %1672 = vmatpush1.bf16.msra.mxu0 %v1181
        %1673 = vmatprep.subr.bf16.mxu0 %v1190
        %1674 = vmatpush1.bf16.msra.mxu0 %v1189
        %1675 = vmatprep.subr.bf16.mxu0 %v1198
        %1676 = vmatpush1.bf16.msra.mxu0 %v1197
        %1677 = vmatprep.subr.bf16.mxu0 %v1206
        %1678 = vmatpush1.bf16.msra.mxu0 %v1205
        %1679 = vmatprep.subr.bf16.mxu0 %v1214
        %1680 = vmatpush1.bf16.msra.mxu0 %v1213
        %1681 = vmatprep.subr.bf16.mxu0 %v1222
        %1682 = vmatpush1.bf16.msra.mxu0 %v1221
        %1683 = vmatprep.subr.bf16.mxu0 %v1230
        %1684 = vmatpush1.bf16.msra.mxu0 %v1229
        %1685 = vmatprep.mubr.bf16.mxu0 %v335
        %1686 = vmatmul.mubr.bf16.gmra.mrb[0].mxu0 %v334
        %v1687 = vpop.f32.mrb[0].mxu0
        %v1688 = vadd.f32 0.0, %v1687
        %v1689 = vpop.f32.mrb[0].mxu0
        %v1690 = vadd.f32 0.0, %v1689
        %v1691 = vpop.f32.mrb[0].mxu0
        %v1692 = vpop.f32.mrb[0].mxu0
        %1693 = vdwg.mxu0
        %1694 = vmatprep.subr.bf16.mxu0 %v1238
        %1695 = vmatpush1.bf16.msra.mxu0 %v1237
        %1696 = vmatprep.subr.bf16.mxu0 %v1246
        %1697 = vmatpush1.bf16.msra.mxu0 %v1245
        %1698 = vmatprep.subr.bf16.mxu0 %v1254
        %1699 = vmatpush1.bf16.msra.mxu0 %v1253
        %1700 = vmatprep.subr.bf16.mxu0 %v1262
        %1701 = vmatpush1.bf16.msra.mxu0 %v1261
        %1702 = vmatprep.subr.bf16.mxu0 %v1270
        %1703 = vmatpush1.bf16.msra.mxu0 %v1269
        %1704 = vmatprep.subr.bf16.mxu0 %v1278
        %1705 = vmatpush1.bf16.msra.mxu0 %v1277
        %1706 = vmatprep.subr.bf16.mxu0 %v1286
        %1707 = vmatpush1.bf16.msra.mxu0 %v1285
        %1708 = vmatprep.subr.bf16.mxu0 %v1294
        %1709 = vmatpush1.bf16.msra.mxu0 %v1293
        %1710 = vmatprep.subr.bf16.mxu0 0
        %1711 = vmatpush1.bf16.msra.mxu0 0
        %1712 = vmatprep.subr.bf16.mxu0 0
        %1713 = vmatpush1.bf16.msra.mxu0 0
        %1714 = vmatprep.subr.bf16.mxu0 0
        %1715 = vmatpush1.bf16.msra.mxu0 0
        %1716 = vmatprep.subr.bf16.mxu0 0
        %1717 = vmatpush1.bf16.msra.mxu0 0
        %1718 = vmatprep.subr.bf16.mxu0 0
        %1719 = vmatpush1.bf16.msra.mxu0 0
        %1720 = vmatprep.subr.bf16.mxu0 0
        %1721 = vmatpush1.bf16.msra.mxu0 0
        %1722 = vmatprep.subr.bf16.mxu0 0
        %1723 = vmatpush1.bf16.msra.mxu0 0
        %1724 = vmatprep.subr.bf16.mxu0 0
        %1725 = vmatpush1.bf16.msra.mxu0 0
        %1726 = vmatprep.mubr.bf16.mxu0 0
        %1727 = vmatmul.mubr.bf16.gmra.mrb[0].mxu0 %v336
        %v1728 = vpop.f32.mrb[0].mxu0
        %v1729 = vadd.f32 %v1688, %v1728
        %v1730 = vpop.f32.mrb[0].mxu0
        %v1731 = vadd.f32 %v1690, %v1730
        %v1732 = vpop.f32.mrb[0].mxu0
        %v1733 = vpop.f32.mrb[0].mxu0
        %1734 = vdwg.mxu0
        %1735 = vmatprep.subr.bf16.mxu0 %v1112
        %1736 = vmatpush1.bf16.msra.mxu0 %v1111
        %1737 = vmatprep.subr.bf16.mxu0 %v1120
        %1738 = vmatpush1.bf16.msra.mxu0 %v1119
        %1739 = vmatprep.subr.bf16.mxu0 %v1128
        %1740 = vmatpush1.bf16.msra.mxu0 %v1127
        %1741 = vmatprep.subr.bf16.mxu0 %v1136
        %1742 = vmatpush1.bf16.msra.mxu0 %v1135
        %1743 = vmatprep.subr.bf16.mxu0 %v1144
        %1744 = vmatpush1.bf16.msra.mxu0 %v1143
        %1745 = vmatprep.subr.bf16.mxu0 %v1152
        %1746 = vmatpush1.bf16.msra.mxu0 %v1151
        %1747 = vmatprep.subr.bf16.mxu0 %v1160
        %1748 = vmatpush1.bf16.msra.mxu0 %v1159
        %1749 = vmatprep.subr.bf16.mxu0 %v1168
        %1750 = vmatpush1.bf16.msra.mxu0 %v1167
        %1751 = vmatprep.subr.bf16.mxu0 %v1176
        %1752 = vmatpush1.bf16.msra.mxu0 %v1175
        %1753 = vmatprep.subr.bf16.mxu0 %v1184
        %1754 = vmatpush1.bf16.msra.mxu0 %v1183
        %1755 = vmatprep.subr.bf16.mxu0 %v1192
        %1756 = vmatpush1.bf16.msra.mxu0 %v1191
        %1757 = vmatprep.subr.bf16.mxu0 %v1200
        %1758 = vmatpush1.bf16.msra.mxu0 %v1199
        %1759 = vmatprep.subr.bf16.mxu0 %v1208
        %1760 = vmatpush1.bf16.msra.mxu0 %v1207
        %1761 = vmatprep.subr.bf16.mxu0 %v1216
        %1762 = vmatpush1.bf16.msra.mxu0 %v1215
        %1763 = vmatprep.subr.bf16.mxu0 %v1224
        %1764 = vmatpush1.bf16.msra.mxu0 %v1223
        %1765 = vmatprep.subr.bf16.mxu0 %v1232
        %1766 = vmatpush1.bf16.msra.mxu0 %v1231
        %1767 = vmatprep.mubr.bf16.mxu0 %v335
        %1768 = vmatmul.mubr.bf16.gmra.mrb[0].mxu0 %v334
        %v1769 = vpop.f32.mrb[0].mxu0
        %v1770 = vadd.f32 0.0, %v1769
        %v1771 = vpop.f32.mrb[0].mxu0
        %v1772 = vadd.f32 0.0, %v1771
        %v1773 = vpop.f32.mrb[0].mxu0
        %v1774 = vpop.f32.mrb[0].mxu0
        %1775 = vdwg.mxu0
        %1776 = vmatprep.subr.bf16.mxu0 %v1240
        %1777 = vmatpush1.bf16.msra.mxu0 %v1239
        %1778 = vmatprep.subr.bf16.mxu0 %v1248
        %1779 = vmatpush1.bf16.msra.mxu0 %v1247
        %1780 = vmatprep.subr.bf16.mxu0 %v1256
        %1781 = vmatpush1.bf16.msra.mxu0 %v1255
        %1782 = vmatprep.subr.bf16.mxu0 %v1264
        %1783 = vmatpush1.bf16.msra.mxu0 %v1263
        %1784 = vmatprep.subr.bf16.mxu0 %v1272
        %1785 = vmatpush1.bf16.msra.mxu0 %v1271
        %1786 = vmatprep.subr.bf16.mxu0 %v1280
        %1787 = vmatpush1.bf16.msra.mxu0 %v1279
        %1788 = vmatprep.subr.bf16.mxu0 %v1288
        %1789 = vmatpush1.bf16.msra.mxu0 %v1287
        %1790 = vmatprep.subr.bf16.mxu0 %v1296
        %1791 = vmatpush1.bf16.msra.mxu0 %v1295
        %1792 = vmatprep.subr.bf16.mxu0 0
        %1793 = vmatpush1.bf16.msra.mxu0 0
        %1794 = vmatprep.subr.bf16.mxu0 0
        %1795 = vmatpush1.bf16.msra.mxu0 0
        %1796 = vmatprep.subr.bf16.mxu0 0
        %1797 = vmatpush1.bf16.msra.mxu0 0
        %1798 = vmatprep.subr.bf16.mxu0 0
        %1799 = vmatpush1.bf16.msra.mxu0 0
        %1800 = vmatprep.subr.bf16.mxu0 0
        %1801 = vmatpush1.bf16.msra.mxu0 0
        %1802 = vmatprep.subr.bf16.mxu0 0
        %1803 = vmatpush1.bf16.msra.mxu0 0
        %1804 = vmatprep.subr.bf16.mxu0 0
        %1805 = vmatpush1.bf16.msra.mxu0 0
        %1806 = vmatprep.subr.bf16.mxu0 0
        %1807 = vmatpush1.bf16.msra.mxu0 0
        %1808 = vmatprep.mubr.bf16.mxu0 0
        %1809 = vmatmul.mubr.bf16.gmra.mrb[0].mxu0 %v336
        %v1810 = vpop.f32.mrb[0].mxu0
        %v1811 = vadd.f32 %v1770, %v1810
        %v1812 = vpop.f32.mrb[0].mxu0
        %v1813 = vadd.f32 %v1772, %v1812
        %v1814 = vpop.f32.mrb[0].mxu0
        %v1815 = vpop.f32.mrb[0].mxu0
        %1816 = vdwg.mxu0
        %v1817 = vld [vmem:[%s273] ss:$8 sm:$0xf]
        %v1818 = vld [vmem:[%s273] ss:$8 sm:$0xf0]
        %v1819 = vor.u32 %v1817, %v1818
        %s1820 = scalar_lea.vmem %s273, 1 [#allocation5]
        %v1821 = vld [vmem:[%s1820] ss:$8 sm:$0xf]
        %v1822 = vld [vmem:[%s1820] ss:$8 sm:$0xf0]
        %v1823 = vor.u32 %v1821, %v1822
        %v1824 = vrot.slane %v1565, 4
        %v1825 = vadd.f32 %v1565, %v1824
        %v1826 = vrot.slane %v1825, 2
        %v1827 = vadd.f32 %v1825, %v1826
        %v1828 = vrot.slane %v1827, 1
        %v1829 = vadd.f32 %v1827, %v1828
        %v1830 = vrot.slane %v1567, 4
        %v1831 = vadd.f32 %v1567, %v1830
        %v1832 = vrot.slane %v1831, 2
        %v1833 = vadd.f32 %v1831, %v1832
        %v1834 = vrot.slane %v1833, 1
        %v1835 = vadd.f32 %v1833, %v1834
        %v1836 = vrot.slane %v1647, 4
        %v1837 = vadd.f32 %v1647, %v1836
        %v1838 = vrot.slane %v1837, 2
        %v1839 = vadd.f32 %v1837, %v1838
        %v1840 = vrot.slane %v1839, 1
        %v1841 = vadd.f32 %v1839, %v1840
        %v1842 = vrot.slane %v1649, 4
        %v1843 = vadd.f32 %v1649, %v1842
        %v1844 = vrot.slane %v1843, 2
        %v1845 = vadd.f32 %v1843, %v1844
        %v1846 = vrot.slane %v1845, 1
        %v1847 = vadd.f32 %v1845, %v1846
        %v1848 = vrot.slane %v1729, 4
        %v1849 = vadd.f32 %v1729, %v1848
        %v1850 = vrot.slane %v1849, 2
        %v1851 = vadd.f32 %v1849, %v1850
        %v1852 = vrot.slane %v1851, 1
        %v1853 = vadd.f32 %v1851, %v1852
        %v1854 = vrot.slane %v1731, 4
        %v1855 = vadd.f32 %v1731, %v1854
        %v1856 = vrot.slane %v1855, 2
        %v1857 = vadd.f32 %v1855, %v1856
        %v1858 = vrot.slane %v1857, 1
        %v1859 = vadd.f32 %v1857, %v1858
        %v1860 = vrot.slane %v1811, 4
        %v1861 = vadd.f32 %v1811, %v1860
        %v1862 = vrot.slane %v1861, 2
        %v1863 = vadd.f32 %v1861, %v1862
        %v1864 = vrot.slane %v1863, 1
        %v1865 = vadd.f32 %v1863, %v1864
        %v1866 = vrot.slane %v1813, 4
        %v1867 = vadd.f32 %v1813, %v1866
        %v1868 = vrot.slane %v1867, 2
        %v1869 = vadd.f32 %v1867, %v1868
        %v1870 = vrot.slane %v1869, 1
        %v1871 = vadd.f32 %v1869, %v1870
        %v1872 = vrcp.pop 8.0
        %v1873 = vmul.f32 %v1829, %v1872
        %v1874 = vmul.f32 %v1835, %v1872
        %v1875 = vmul.f32 %v1841, %v1872
        %v1876 = vmul.f32 %v1847, %v1872
        %v1877 = vmul.f32 %v1853, %v1872
        %v1878 = vmul.f32 %v1859, %v1872
        %v1879 = vmul.f32 %v1865, %v1872
        %v1880 = vmul.f32 %v1871, %v1872
        %v1881 = vsub.f32 %v1565, %v1873
        %v1882 = vsub.f32 %v1567, %v1874
        %v1883 = vsub.f32 %v1647, %v1875
        %v1884 = vsub.f32 %v1649, %v1876
        %v1885 = vsub.f32 %v1729, %v1877
        %v1886 = vsub.f32 %v1731, %v1878
        %v1887 = vsub.f32 %v1811, %v1879
        %v1888 = vsub.f32 %v1813, %v1880
        %v1889 = vmul.f32 %v1881, %v1881
        %v1890 = vmul.f32 %v1882, %v1882
        %v1891 = vmul.f32 %v1883, %v1883
        %v1892 = vmul.f32 %v1884, %v1884
        %v1893 = vmul.f32 %v1885, %v1885
        %v1894 = vmul.f32 %v1886, %v1886
        %v1895 = vmul.f32 %v1887, %v1887
        %v1896 = vmul.f32 %v1888, %v1888
        %v1897 = vrot.slane %v1889, 4
        %v1898 = vadd.f32 %v1889, %v1897
        %v1899 = vrot.slane %v1898, 2
        %v1900 = vadd.f32 %v1898, %v1899
        %v1901 = vrot.slane %v1900, 1
        %v1902 = vadd.f32 %v1900, %v1901
        %v1903 = vrot.slane %v1890, 4
        %v1904 = vadd.f32 %v1890, %v1903
        %v1905 = vrot.slane %v1904, 2
        %v1906 = vadd.f32 %v1904, %v1905
        %v1907 = vrot.slane %v1906, 1
        %v1908 = vadd.f32 %v1906, %v1907
        %v1909 = vrot.slane %v1891, 4
        %v1910 = vadd.f32 %v1891, %v1909
        %v1911 = vrot.slane %v1910, 2
        %v1912 = vadd.f32 %v1910, %v1911
        %v1913 = vrot.slane %v1912, 1
        %v1914 = vadd.f32 %v1912, %v1913
        %v1915 = vrot.slane %v1892, 4
        %v1916 = vadd.f32 %v1892, %v1915
        %v1917 = vrot.slane %v1916, 2
        %v1918 = vadd.f32 %v1916, %v1917
        %v1919 = vrot.slane %v1918, 1
        %v1920 = vadd.f32 %v1918, %v1919
        %v1921 = vrot.slane %v1893, 4
        %v1922 = vadd.f32 %v1893, %v1921
        %v1923 = vrot.slane %v1922, 2
        %v1924 = vadd.f32 %v1922, %v1923
        %v1925 = vrot.slane %v1924, 1
        %v1926 = vadd.f32 %v1924, %v1925
        %v1927 = vrot.slane %v1894, 4
        %v1928 = vadd.f32 %v1894, %v1927
        %v1929 = vrot.slane %v1928, 2
        %v1930 = vadd.f32 %v1928, %v1929
        %v1931 = vrot.slane %v1930, 1
        %v1932 = vadd.f32 %v1930, %v1931
        %v1933 = vrot.slane %v1895, 4
        %v1934 = vadd.f32 %v1895, %v1933
        %v1935 = vrot.slane %v1934, 2
        %v1936 = vadd.f32 %v1934, %v1935
        %v1937 = vrot.slane %v1936, 1
        %v1938 = vadd.f32 %v1936, %v1937
        %v1939 = vrot.slane %v1896, 4
        %v1940 = vadd.f32 %v1896, %v1939
        %v1941 = vrot.slane %v1940, 2
        %v1942 = vadd.f32 %v1940, %v1941
        %v1943 = vrot.slane %v1942, 1
        %v1944 = vadd.f32 %v1942, %v1943
        %v1945 = vmul.f32 %v1902, %v1872
        %v1946 = vmul.f32 %v1908, %v1872
        %v1947 = vmul.f32 %v1914, %v1872
        %v1948 = vmul.f32 %v1920, %v1872
        %v1949 = vmul.f32 %v1926, %v1872
        %v1950 = vmul.f32 %v1932, %v1872
        %v1951 = vmul.f32 %v1938, %v1872
        %v1952 = vmul.f32 %v1944, %v1872
        %v1953 = vadd.f32 %v1945, 1e-05
        %v1954 = vadd.f32 %v1946, 1e-05
        %v1955 = vadd.f32 %v1947, 1e-05
        %v1956 = vadd.f32 %v1948, 1e-05
        %v1957 = vadd.f32 %v1949, 1e-05
        %v1958 = vadd.f32 %v1950, 1e-05
        %v1959 = vadd.f32 %v1951, 1e-05
        %v1960 = vadd.f32 %v1952, 1e-05
        %v1961 = vrsqrt.pop %v1953
        %v1962 = vrsqrt.pop %v1954
        %v1963 = vrsqrt.pop %v1955
        %v1964 = vrsqrt.pop %v1956
        %v1965 = vrsqrt.pop %v1957
        %v1966 = vrsqrt.pop %v1958
        %v1967 = vrsqrt.pop %v1959
        %v1968 = vrsqrt.pop %v1960
        %v1969 = vmul.f32 %v1881, %v1961
        %v1970 = vmul.f32 %v1882, %v1962
        %v1971 = vmul.f32 %v1883, %v1963
        %v1972 = vmul.f32 %v1884, %v1964
        %v1973 = vmul.f32 %v1885, %v1965
        %v1974 = vmul.f32 %v1886, %v1966
        %v1975 = vmul.f32 %v1887, %v1967
        %v1976 = vmul.f32 %v1888, %v1968
        %v1978 = vlaneseq
        %v1979 = vshrl.u32 %v1978, 7
        %v1980 = vsub.s32 0, %v1979
        %v1981 = vrot.slane %v1819, %v1980
        %v1982 = vlaneseq
        %v1983 = vshrl.u32 %v1982, 7
        %v1984 = vsub.s32 1, %v1983
        %v1985 = vrot.slane %v1819, %v1984
        %v1986 = vlaneseq
        %v1987 = vshrl.u32 %v1986, 7
        %v1988 = vsub.s32 2, %v1987
        %v1989 = vrot.slane %v1819, %v1988
        %v1990 = vlaneseq
        %v1991 = vshrl.u32 %v1990, 7
        %v1992 = vsub.s32 3, %v1991
        %v1993 = vrot.slane %v1819, %v1992
        %v1994 = vlaneseq
        %v1995 = vshrl.u32 %v1994, 7
        %v1996 = vsub.s32 4, %v1995
        %v1997 = vrot.slane %v1819, %v1996
        %v1998 = vlaneseq
        %v1999 = vshrl.u32 %v1998, 7
        %v2000 = vsub.s32 5, %v1999
        %v2001 = vrot.slane %v1819, %v2000
        %v2002 = vlaneseq
        %v2003 = vshrl.u32 %v2002, 7
        %v2004 = vsub.s32 6, %v2003
        %v2005 = vrot.slane %v1819, %v2004
        %v2006 = vlaneseq
        %v2007 = vshrl.u32 %v2006, 7
        %v2008 = vsub.s32 7, %v2007
        %v2009 = vrot.slane %v1819, %v2008
        %v2018 = vmul.f32 %v1969, %v1981
        %v2019 = vmul.f32 %v1970, %v1985
        %v2020 = vmul.f32 %v1971, %v1989
        %v2021 = vmul.f32 %v1972, %v1993
        %v2022 = vmul.f32 %v1973, %v1997
        %v2023 = vmul.f32 %v1974, %v2001
        %v2024 = vmul.f32 %v1975, %v2005
        %v2025 = vmul.f32 %v1976, %v2009
        %v2027 = vlaneseq
        %v2028 = vshrl.u32 %v2027, 7
        %v2029 = vsub.s32 0, %v2028
        %v2030 = vrot.slane %v1823, %v2029
        %v2031 = vlaneseq
        %v2032 = vshrl.u32 %v2031, 7
        %v2033 = vsub.s32 1, %v2032
        %v2034 = vrot.slane %v1823, %v2033
        %v2035 = vlaneseq
        %v2036 = vshrl.u32 %v2035, 7
        %v2037 = vsub.s32 2, %v2036
        %v2038 = vrot.slane %v1823, %v2037
        %v2039 = vlaneseq
        %v2040 = vshrl.u32 %v2039, 7
        %v2041 = vsub.s32 3, %v2040
        %v2042 = vrot.slane %v1823, %v2041
        %v2043 = vlaneseq
        %v2044 = vshrl.u32 %v2043, 7
        %v2045 = vsub.s32 4, %v2044
        %v2046 = vrot.slane %v1823, %v2045
        %v2047 = vlaneseq
        %v2048 = vshrl.u32 %v2047, 7
        %v2049 = vsub.s32 5, %v2048
        %v2050 = vrot.slane %v1823, %v2049
        %v2051 = vlaneseq
        %v2052 = vshrl.u32 %v2051, 7
        %v2053 = vsub.s32 6, %v2052
        %v2054 = vrot.slane %v1823, %v2053
        %v2055 = vlaneseq
        %v2056 = vshrl.u32 %v2055, 7
        %v2057 = vsub.s32 7, %v2056
        %v2058 = vrot.slane %v1823, %v2057
        %v2067 = vadd.f32 %v2018, %v2030
        %v2068 = vadd.f32 %v2019, %v2034
        %v2069 = vadd.f32 %v2020, %v2038
        %v2070 = vadd.f32 %v2021, %v2042
        %v2071 = vadd.f32 %v2022, %v2046
        %v2072 = vadd.f32 %v2023, %v2050
        %v2073 = vadd.f32 %v2024, %v2054
        %v2074 = vadd.f32 %v2025, %v2058
        %v2075 = vmax.f32 %v2067, 0.0
        %v2076 = vmax.f32 %v2068, 0.0
        %v2077 = vmax.f32 %v2069, 0.0
        %v2078 = vmax.f32 %v2070, 0.0
        %v2079 = vmax.f32 %v2071, 0.0
        %v2080 = vmax.f32 %v2072, 0.0
        %v2081 = vmax.f32 %v2073, 0.0
        %v2082 = vmax.f32 %v2074, 0.0
        %v2083 = vld [vmem:[#allocation2] sm:$0xff]
        %v2084 = vld [vmem:[#allocation2 + $0x8] sm:$0xff]
        %v2085 = vld [vmem:[#allocation2 + $0x10] sm:$0xff]
        %v2086 = vld [vmem:[#allocation2 + $0x18] sm:$0xff]
        %v2087 = vld [vmem:[#allocation2 + $0x20] sm:$0xff]
        %v2088 = vld [vmem:[#allocation2 + $0x28] sm:$0xff]
        %v2089 = vld [vmem:[#allocation2 + $0x30] sm:$0xff]
        %v2090 = vld [vmem:[#allocation2 + $0x38] sm:$0xff]
        %v2091 = vpack.c.bf16 %v2075, %v2075
        %v2092 = vpack.c.bf16 %v2076, %v2076
        %v2093 = vpack.c.bf16 %v2077, %v2077
        %v2094 = vpack.c.bf16 %v2078, %v2078
        %v2095 = vpack.c.bf16 %v2079, %v2079
        %v2096 = vpack.c.bf16 %v2080, %v2080
        %v2097 = vpack.c.bf16 %v2081, %v2081
        %v2098 = vpack.c.bf16 %v2082, %v2082
        %v2099 = vld [vmem:[%s282] sm:$0xff]
        %v2100 = vld [vmem:[%s282 + $0x8] sm:$0xff]
        %v2101 = vld [vmem:[%s282 + $0x10] sm:$0xff]
        %v2102 = vld [vmem:[%s282 + $0x18] sm:$0xff]
        %v2103 = vld [vmem:[%s282 + $0x20] sm:$0xff]
        %v2104 = vld [vmem:[%s282 + $0x28] sm:$0xff]
        %v2105 = vld [vmem:[%s282 + $0x30] sm:$0xff]
        %v2106 = vld [vmem:[%s282 + $0x38] sm:$0xff]
        %v2107 = vld [vmem:[%s282 + $0x40] sm:$0xff]
        %v2108 = vld [vmem:[%s282 + $0x48] sm:$0xff]
        %v2109 = vld [vmem:[%s282 + $0x50] sm:$0xff]
        %v2110 = vld [vmem:[%s282 + $0x58] sm:$0xff]
        %v2111 = vld [vmem:[%s282 + $0x60] sm:$0xff]
        %v2112 = vld [vmem:[%s282 + $0x68] sm:$0xff]
        %v2113 = vld [vmem:[%s282 + $0x70] sm:$0xff]
        %v2114 = vld [vmem:[%s282 + $0x78] sm:$0xff]
        %v2115 = vld [vmem:[%s282 + $0x80] sm:$0xff]
        %v2116 = vld [vmem:[%s282 + $0x88] sm:$0xff]
        %v2117 = vld [vmem:[%s282 + $0x90] sm:$0xff]
        %v2118 = vld [vmem:[%s282 + $0x98] sm:$0xff]
        %v2119 = vld [vmem:[%s282 + $0xa0] sm:$0xff]
        %v2120 = vld [vmem:[%s282 + $0xa8] sm:$0xff]
        %v2121 = vld [vmem:[%s282 + $0xb0] sm:$0xff]
        %v2122 = vld [vmem:[%s282 + $0xb8] sm:$0xff]
        %v2123 = vld [vmem:[%s282 + $0xc0] sm:$0xff]
        %v2124 = vld [vmem:[%s282 + $0xc8] sm:$0xff]
        %v2125 = vld [vmem:[%s282 + $0xd0] sm:$0xff]
        %v2126 = vld [vmem:[%s282 + $0xd8] sm:$0xff]
        %v2127 = vld [vmem:[%s282 + $0xe0] sm:$0xff]
        %v2128 = vld [vmem:[%s282 + $0xe8] sm:$0xff]
        %v2129 = vld [vmem:[%s282 + $0xf0] sm:$0xff]
        %v2130 = vld [vmem:[%s282 + $0xf8] sm:$0xff]
        %v2131 = vld [vmem:[%s282 + $0x100] sm:$0xff]
        %v2132 = vld [vmem:[%s282 + $0x108] sm:$0xff]
        %v2133 = vld [vmem:[%s282 + $0x110] sm:$0xff]
        %v2134 = vld [vmem:[%s282 + $0x118] sm:$0xff]
        %v2135 = vld [vmem:[%s282 + $0x120] sm:$0xff]
        %v2136 = vld [vmem:[%s282 + $0x128] sm:$0xff]
        %v2137 = vld [vmem:[%s282 + $0x130] sm:$0xff]
        %v2138 = vld [vmem:[%s282 + $0x138] sm:$0xff]
        %v2139 = vld [vmem:[%s282 + $0x140] sm:$0xff]
        %v2140 = vld [vmem:[%s282 + $0x148] sm:$0xff]
        %v2141 = vld [vmem:[%s282 + $0x150] sm:$0xff]
        %v2142 = vld [vmem:[%s282 + $0x158] sm:$0xff]
        %v2143 = vld [vmem:[%s282 + $0x160] sm:$0xff]
        %v2144 = vld [vmem:[%s282 + $0x168] sm:$0xff]
        %v2145 = vld [vmem:[%s282 + $0x170] sm:$0xff]
        %v2146 = vld [vmem:[%s282 + $0x178] sm:$0xff]
        %v2147 = vld [vmem:[%s282 + $0x180] sm:$0xff]
        %v2148 = vld [vmem:[%s282 + $0x188] sm:$0xff]
        %v2149 = vld [vmem:[%s282 + $0x190] sm:$0xff]
        %v2150 = vld [vmem:[%s282 + $0x198] sm:$0xff]
        %v2151 = vld [vmem:[%s282 + $0x1a0] sm:$0xff]
        %v2152 = vld [vmem:[%s282 + $0x1a8] sm:$0xff]
        %v2153 = vld [vmem:[%s282 + $0x1b0] sm:$0xff]
        %v2154 = vld [vmem:[%s282 + $0x1b8] sm:$0xff]
        %v2155 = vld [vmem:[%s282 + $0x1c0] sm:$0xff]
        %v2156 = vld [vmem:[%s282 + $0x1c8] sm:$0xff]
        %v2157 = vld [vmem:[%s282 + $0x1d0] sm:$0xff]
        %v2158 = vld [vmem:[%s282 + $0x1d8] sm:$0xff]
        %v2159 = vld [vmem:[%s282 + $0x1e0] sm:$0xff]
        %v2160 = vld [vmem:[%s282 + $0x1e8] sm:$0xff]
        %v2161 = vld [vmem:[%s282 + $0x1f0] sm:$0xff]
        %v2162 = vld [vmem:[%s282 + $0x1f8] sm:$0xff]
        %v2163 = vld [vmem:[%s282 + $0x200] sm:$0xff]
        %v2164 = vld [vmem:[%s282 + $0x208] sm:$0xff]
        %v2165 = vld [vmem:[%s282 + $0x210] sm:$0xff]
        %v2166 = vld [vmem:[%s282 + $0x218] sm:$0xff]
        %v2167 = vld [vmem:[%s282 + $0x220] sm:$0xff]
        %v2168 = vld [vmem:[%s282 + $0x228] sm:$0xff]
        %v2169 = vld [vmem:[%s282 + $0x230] sm:$0xff]
        %v2170 = vld [vmem:[%s282 + $0x238] sm:$0xff]
        %v2171 = vld [vmem:[%s282 + $0x240] sm:$0xff]
        %v2172 = vld [vmem:[%s282 + $0x248] sm:$0xff]
        %v2173 = vld [vmem:[%s282 + $0x250] sm:$0xff]
        %v2174 = vld [vmem:[%s282 + $0x258] sm:$0xff]
        %v2175 = vld [vmem:[%s282 + $0x260] sm:$0xff]
        %v2176 = vld [vmem:[%s282 + $0x268] sm:$0xff]
        %v2177 = vld [vmem:[%s282 + $0x270] sm:$0xff]
        %v2178 = vld [vmem:[%s282 + $0x278] sm:$0xff]
        %v2179 = vld [vmem:[%s282 + $0x280] sm:$0xff]
        %v2180 = vld [vmem:[%s282 + $0x288] sm:$0xff]
        %v2181 = vld [vmem:[%s282 + $0x290] sm:$0xff]
        %v2182 = vld [vmem:[%s282 + $0x298] sm:$0xff]
        %v2183 = vld [vmem:[%s282 + $0x2a0] sm:$0xff]
        %v2184 = vld [vmem:[%s282 + $0x2a8] sm:$0xff]
        %v2185 = vld [vmem:[%s282 + $0x2b0] sm:$0xff]
        %v2186 = vld [vmem:[%s282 + $0x2b8] sm:$0xff]
        %v2187 = vld [vmem:[%s282 + $0x2c0] sm:$0xff]
        %v2188 = vld [vmem:[%s282 + $0x2c8] sm:$0xff]
        %v2189 = vld [vmem:[%s282 + $0x2d0] sm:$0xff]
        %v2190 = vld [vmem:[%s282 + $0x2d8] sm:$0xff]
        %v2191 = vld [vmem:[%s282 + $0x2e0] sm:$0xff]
        %v2192 = vld [vmem:[%s282 + $0x2e8] sm:$0xff]
        %v2193 = vld [vmem:[%s282 + $0x2f0] sm:$0xff]
        %v2194 = vld [vmem:[%s282 + $0x2f8] sm:$0xff]
        %v2195 = vld [vmem:[%s282 + $0x300] sm:$0xff]
        %v2196 = vld [vmem:[%s282 + $0x308] sm:$0xff]
        %v2197 = vld [vmem:[%s282 + $0x310] sm:$0xff]
        %v2198 = vld [vmem:[%s282 + $0x318] sm:$0xff]
        %v2199 = vld [vmem:[%s282 + $0x320] sm:$0xff]
        %v2200 = vld [vmem:[%s282 + $0x328] sm:$0xff]
        %v2201 = vld [vmem:[%s282 + $0x330] sm:$0xff]
        %v2202 = vld [vmem:[%s282 + $0x338] sm:$0xff]
        %v2203 = vld [vmem:[%s282 + $0x340] sm:$0xff]
        %v2204 = vld [vmem:[%s282 + $0x348] sm:$0xff]
        %v2205 = vld [vmem:[%s282 + $0x350] sm:$0xff]
        %v2206 = vld [vmem:[%s282 + $0x358] sm:$0xff]
        %v2207 = vld [vmem:[%s282 + $0x360] sm:$0xff]
        %v2208 = vld [vmem:[%s282 + $0x368] sm:$0xff]
        %v2209 = vld [vmem:[%s282 + $0x370] sm:$0xff]
        %v2210 = vld [vmem:[%s282 + $0x378] sm:$0xff]
        %v2211 = vld [vmem:[%s282 + $0x380] sm:$0xff]
        %v2212 = vld [vmem:[%s282 + $0x388] sm:$0xff]
        %v2213 = vld [vmem:[%s282 + $0x390] sm:$0xff]
        %v2214 = vld [vmem:[%s282 + $0x398] sm:$0xff]
        %v2215 = vld [vmem:[%s282 + $0x3a0] sm:$0xff]
        %v2216 = vld [vmem:[%s282 + $0x3a8] sm:$0xff]
        %v2217 = vld [vmem:[%s282 + $0x3b0] sm:$0xff]
        %v2218 = vld [vmem:[%s282 + $0x3b8] sm:$0xff]
        %v2219 = vld [vmem:[%s282 + $0x3c0] sm:$0xff]
        %v2220 = vld [vmem:[%s282 + $0x3c8] sm:$0xff]
        %v2221 = vld [vmem:[%s282 + $0x3d0] sm:$0xff]
        %v2222 = vld [vmem:[%s282 + $0x3d8] sm:$0xff]
        %v2223 = vld [vmem:[%s282 + $0x3e0] sm:$0xff]
        %v2224 = vld [vmem:[%s282 + $0x3e8] sm:$0xff]
        %v2225 = vld [vmem:[%s282 + $0x3f0] sm:$0xff]
        %v2226 = vld [vmem:[%s282 + $0x3f8] sm:$0xff]
        %v2227 = vld [vmem:[%s282 + $0x400] sm:$0xff]
        %v2228 = vld [vmem:[%s282 + $0x408] sm:$0xff]
        %v2229 = vld [vmem:[%s282 + $0x410] sm:$0xff]
        %v2230 = vld [vmem:[%s282 + $0x418] sm:$0xff]
        %v2231 = vld [vmem:[%s282 + $0x420] sm:$0xff]
        %v2232 = vld [vmem:[%s282 + $0x428] sm:$0xff]
        %v2233 = vld [vmem:[%s282 + $0x430] sm:$0xff]
        %v2234 = vld [vmem:[%s282 + $0x438] sm:$0xff]
        %v2235 = vld [vmem:[%s282 + $0x440] sm:$0xff]
        %v2236 = vld [vmem:[%s282 + $0x448] sm:$0xff]
        %v2237 = vld [vmem:[%s282 + $0x450] sm:$0xff]
        %v2238 = vld [vmem:[%s282 + $0x458] sm:$0xff]
        %v2239 = vld [vmem:[%s282 + $0x460] sm:$0xff]
        %v2240 = vld [vmem:[%s282 + $0x468] sm:$0xff]
        %v2241 = vld [vmem:[%s282 + $0x470] sm:$0xff]
        %v2242 = vld [vmem:[%s282 + $0x478] sm:$0xff]
        %v2243 = vld [vmem:[%s282 + $0x480] sm:$0xff]
        %v2244 = vld [vmem:[%s282 + $0x488] sm:$0xff]
        %v2245 = vld [vmem:[%s282 + $0x490] sm:$0xff]
        %v2246 = vld [vmem:[%s282 + $0x498] sm:$0xff]
        %v2247 = vld [vmem:[%s282 + $0x4a0] sm:$0xff]
        %v2248 = vld [vmem:[%s282 + $0x4a8] sm:$0xff]
        %v2249 = vld [vmem:[%s282 + $0x4b0] sm:$0xff]
        %v2250 = vld [vmem:[%s282 + $0x4b8] sm:$0xff]
        %v2251 = vld [vmem:[%s282 + $0x4c0] sm:$0xff]
        %v2252 = vld [vmem:[%s282 + $0x4c8] sm:$0xff]
        %v2253 = vld [vmem:[%s282 + $0x4d0] sm:$0xff]
        %v2254 = vld [vmem:[%s282 + $0x4d8] sm:$0xff]
        %v2255 = vld [vmem:[%s282 + $0x4e0] sm:$0xff]
        %v2256 = vld [vmem:[%s282 + $0x4e8] sm:$0xff]
        %v2257 = vld [vmem:[%s282 + $0x4f0] sm:$0xff]
        %v2258 = vld [vmem:[%s282 + $0x4f8] sm:$0xff]
        %v2259 = vld [vmem:[%s282 + $0x500] sm:$0xff]
        %v2260 = vld [vmem:[%s282 + $0x508] sm:$0xff]
        %v2261 = vld [vmem:[%s282 + $0x510] sm:$0xff]
        %v2262 = vld [vmem:[%s282 + $0x518] sm:$0xff]
        %v2263 = vld [vmem:[%s282 + $0x520] sm:$0xff]
        %v2264 = vld [vmem:[%s282 + $0x528] sm:$0xff]
        %v2265 = vld [vmem:[%s282 + $0x530] sm:$0xff]
        %v2266 = vld [vmem:[%s282 + $0x538] sm:$0xff]
        %v2267 = vld [vmem:[%s282 + $0x540] sm:$0xff]
        %v2268 = vld [vmem:[%s282 + $0x548] sm:$0xff]
        %v2269 = vld [vmem:[%s282 + $0x550] sm:$0xff]
        %v2270 = vld [vmem:[%s282 + $0x558] sm:$0xff]
        %v2271 = vld [vmem:[%s282 + $0x560] sm:$0xff]
        %v2272 = vld [vmem:[%s282 + $0x568] sm:$0xff]
        %v2273 = vld [vmem:[%s282 + $0x570] sm:$0xff]
        %v2274 = vld [vmem:[%s282 + $0x578] sm:$0xff]
        %v2275 = vld [vmem:[%s282 + $0x580] sm:$0xff]
        %v2276 = vld [vmem:[%s282 + $0x588] sm:$0xff]
        %v2277 = vld [vmem:[%s282 + $0x590] sm:$0xff]
        %v2278 = vld [vmem:[%s282 + $0x598] sm:$0xff]
        %v2279 = vld [vmem:[%s282 + $0x5a0] sm:$0xff]
        %v2280 = vld [vmem:[%s282 + $0x5a8] sm:$0xff]
        %v2281 = vld [vmem:[%s282 + $0x5b0] sm:$0xff]
        %v2282 = vld [vmem:[%s282 + $0x5b8] sm:$0xff]
        %v2283 = vld [vmem:[%s282 + $0x5c0] sm:$0xff]
        %v2284 = vld [vmem:[%s282 + $0x5c8] sm:$0xff]
        %v2285 = vld [vmem:[%s282 + $0x5d0] sm:$0xff]
        %v2286 = vld [vmem:[%s282 + $0x5d8] sm:$0xff]
        %v2287 = vld [vmem:[%s282 + $0x5e0] sm:$0xff]
        %v2288 = vld [vmem:[%s282 + $0x5e8] sm:$0xff]
        %v2289 = vld [vmem:[%s282 + $0x5f0] sm:$0xff]
        %v2290 = vld [vmem:[%s282 + $0x5f8] sm:$0xff]
        %v2291 = vld [vmem:[%s282 + $0x600] sm:$0xff]
        %v2292 = vld [vmem:[%s282 + $0x608] sm:$0xff]
        %v2293 = vld [vmem:[%s282 + $0x610] sm:$0xff]
        %v2294 = vld [vmem:[%s282 + $0x618] sm:$0xff]
        %v2295 = vld [vmem:[%s282 + $0x620] sm:$0xff]
        %v2296 = vld [vmem:[%s282 + $0x628] sm:$0xff]
        %v2297 = vld [vmem:[%s282 + $0x630] sm:$0xff]
        %v2298 = vld [vmem:[%s282 + $0x638] sm:$0xff]
        %v2299 = vld [vmem:[%s282 + $0x640] sm:$0xff]
        %v2300 = vld [vmem:[%s282 + $0x648] sm:$0xff]
        %v2301 = vld [vmem:[%s282 + $0x650] sm:$0xff]
        %v2302 = vld [vmem:[%s282 + $0x658] sm:$0xff]
        %v2303 = vld [vmem:[%s282 + $0x660] sm:$0xff]
        %v2304 = vld [vmem:[%s282 + $0x668] sm:$0xff]
        %v2305 = vld [vmem:[%s282 + $0x670] sm:$0xff]
        %v2306 = vld [vmem:[%s282 + $0x678] sm:$0xff]
        %v2307 = vld [vmem:[%s282 + $0x680] sm:$0xff]
        %v2308 = vld [vmem:[%s282 + $0x688] sm:$0xff]
        %v2309 = vld [vmem:[%s282 + $0x690] sm:$0xff]
        %v2310 = vld [vmem:[%s282 + $0x698] sm:$0xff]
        %v2311 = vld [vmem:[%s282 + $0x6a0] sm:$0xff]
        %v2312 = vld [vmem:[%s282 + $0x6a8] sm:$0xff]
        %v2313 = vld [vmem:[%s282 + $0x6b0] sm:$0xff]
        %v2314 = vld [vmem:[%s282 + $0x6b8] sm:$0xff]
        %v2315 = vld [vmem:[%s282 + $0x6c0] sm:$0xff]
        %v2316 = vld [vmem:[%s282 + $0x6c8] sm:$0xff]
        %v2317 = vld [vmem:[%s282 + $0x6d0] sm:$0xff]
        %v2318 = vld [vmem:[%s282 + $0x6d8] sm:$0xff]
        %v2319 = vld [vmem:[%s282 + $0x6e0] sm:$0xff]
        %v2320 = vld [vmem:[%s282 + $0x6e8] sm:$0xff]
        %v2321 = vld [vmem:[%s282 + $0x6f0] sm:$0xff]
        %v2322 = vld [vmem:[%s282 + $0x6f8] sm:$0xff]
        %v2323 = vld [vmem:[%s282 + $0x700] sm:$0xff]
        %v2324 = vld [vmem:[%s282 + $0x708] sm:$0xff]
        %v2325 = vld [vmem:[%s282 + $0x710] sm:$0xff]
        %v2326 = vld [vmem:[%s282 + $0x718] sm:$0xff]
        %v2327 = vld [vmem:[%s282 + $0x720] sm:$0xff]
        %v2328 = vld [vmem:[%s282 + $0x728] sm:$0xff]
        %v2329 = vld [vmem:[%s282 + $0x730] sm:$0xff]
        %v2330 = vld [vmem:[%s282 + $0x738] sm:$0xff]
        %v2331 = vld [vmem:[%s282 + $0x740] sm:$0xff]
        %v2332 = vld [vmem:[%s282 + $0x748] sm:$0xff]
        %v2333 = vld [vmem:[%s282 + $0x750] sm:$0xff]
        %v2334 = vld [vmem:[%s282 + $0x758] sm:$0xff]
        %v2335 = vld [vmem:[%s282 + $0x760] sm:$0xff]
        %v2336 = vld [vmem:[%s282 + $0x768] sm:$0xff]
        %v2337 = vld [vmem:[%s282 + $0x770] sm:$0xff]
        %v2338 = vld [vmem:[%s282 + $0x778] sm:$0xff]
        %v2339 = vld [vmem:[%s282 + $0x780] sm:$0xff]
        %v2340 = vld [vmem:[%s282 + $0x788] sm:$0xff]
        %v2341 = vld [vmem:[%s282 + $0x790] sm:$0xff]
        %v2342 = vld [vmem:[%s282 + $0x798] sm:$0xff]
        %v2343 = vld [vmem:[%s282 + $0x7a0] sm:$0xff]
        %v2344 = vld [vmem:[%s282 + $0x7a8] sm:$0xff]
        %v2345 = vld [vmem:[%s282 + $0x7b0] sm:$0xff]
        %v2346 = vld [vmem:[%s282 + $0x7b8] sm:$0xff]
        %v2347 = vld [vmem:[%s282 + $0x7c0] sm:$0xff]
        %v2348 = vld [vmem:[%s282 + $0x7c8] sm:$0xff]
        %v2349 = vld [vmem:[%s282 + $0x7d0] sm:$0xff]
        %v2350 = vld [vmem:[%s282 + $0x7d8] sm:$0xff]
        %v2351 = vld [vmem:[%s282 + $0x7e0] sm:$0xff]
        %v2352 = vld [vmem:[%s282 + $0x7e8] sm:$0xff]
        %v2353 = vld [vmem:[%s282 + $0x7f0] sm:$0xff]
        %v2354 = vld [vmem:[%s282 + $0x7f8] sm:$0xff]
        %v2355 = vld [vmem:[%s282 + $0x800] sm:$0xff]
        %v2356 = vld [vmem:[%s282 + $0x808] sm:$0xff]
        %v2357 = vld [vmem:[%s282 + $0x810] sm:$0xff]
        %v2358 = vld [vmem:[%s282 + $0x818] sm:$0xff]
        %v2359 = vld [vmem:[%s282 + $0x820] sm:$0xff]
        %v2360 = vld [vmem:[%s282 + $0x828] sm:$0xff]
        %v2361 = vld [vmem:[%s282 + $0x830] sm:$0xff]
        %v2362 = vld [vmem:[%s282 + $0x838] sm:$0xff]
        %v2363 = vld [vmem:[%s282 + $0x840] sm:$0xff]
        %v2364 = vld [vmem:[%s282 + $0x848] sm:$0xff]
        %v2365 = vld [vmem:[%s282 + $0x850] sm:$0xff]
        %v2366 = vld [vmem:[%s282 + $0x858] sm:$0xff]
        %v2367 = vld [vmem:[%s282 + $0x860] sm:$0xff]
        %v2368 = vld [vmem:[%s282 + $0x868] sm:$0xff]
        %v2369 = vld [vmem:[%s282 + $0x870] sm:$0xff]
        %v2370 = vld [vmem:[%s282 + $0x878] sm:$0xff]
        %v2371 = vld [vmem:[%s282 + $0x880] sm:$0xff]
        %v2372 = vld [vmem:[%s282 + $0x888] sm:$0xff]
        %v2373 = vld [vmem:[%s282 + $0x890] sm:$0xff]
        %v2374 = vld [vmem:[%s282 + $0x898] sm:$0xff]
        %v2375 = vld [vmem:[%s282 + $0x8a0] sm:$0xff]
        %v2376 = vld [vmem:[%s282 + $0x8a8] sm:$0xff]
        %v2377 = vld [vmem:[%s282 + $0x8b0] sm:$0xff]
        %v2378 = vld [vmem:[%s282 + $0x8b8] sm:$0xff]
        %v2379 = vld [vmem:[%s282 + $0x8c0] sm:$0xff]
        %v2380 = vld [vmem:[%s282 + $0x8c8] sm:$0xff]
        %v2381 = vld [vmem:[%s282 + $0x8d0] sm:$0xff]
        %v2382 = vld [vmem:[%s282 + $0x8d8] sm:$0xff]
        %v2383 = vld [vmem:[%s282 + $0x8e0] sm:$0xff]
        %v2384 = vld [vmem:[%s282 + $0x8e8] sm:$0xff]
        %v2385 = vld [vmem:[%s282 + $0x8f0] sm:$0xff]
        %v2386 = vld [vmem:[%s282 + $0x8f8] sm:$0xff]
        %v2387 = vld [vmem:[%s282 + $0x900] sm:$0xff]
        %v2388 = vld [vmem:[%s282 + $0x908] sm:$0xff]
        %v2389 = vld [vmem:[%s282 + $0x910] sm:$0xff]
        %v2390 = vld [vmem:[%s282 + $0x918] sm:$0xff]
        %v2391 = vld [vmem:[%s282 + $0x920] sm:$0xff]
        %v2392 = vld [vmem:[%s282 + $0x928] sm:$0xff]
        %v2393 = vld [vmem:[%s282 + $0x930] sm:$0xff]
        %v2394 = vld [vmem:[%s282 + $0x938] sm:$0xff]
        %v2395 = vld [vmem:[%s282 + $0x940] sm:$0xff]
        %v2396 = vld [vmem:[%s282 + $0x948] sm:$0xff]
        %v2397 = vld [vmem:[%s282 + $0x950] sm:$0xff]
        %v2398 = vld [vmem:[%s282 + $0x958] sm:$0xff]
        %v2399 = vld [vmem:[%s282 + $0x960] sm:$0xff]
        %v2400 = vld [vmem:[%s282 + $0x968] sm:$0xff]
        %v2401 = vld [vmem:[%s282 + $0x970] sm:$0xff]
        %v2402 = vld [vmem:[%s282 + $0x978] sm:$0xff]
        %v2403 = vld [vmem:[%s282 + $0x980] sm:$0xff]
        %v2404 = vld [vmem:[%s282 + $0x988] sm:$0xff]
        %v2405 = vld [vmem:[%s282 + $0x990] sm:$0xff]
        %v2406 = vld [vmem:[%s282 + $0x998] sm:$0xff]
        %v2407 = vld [vmem:[%s282 + $0x9a0] sm:$0xff]
        %v2408 = vld [vmem:[%s282 + $0x9a8] sm:$0xff]
        %v2409 = vld [vmem:[%s282 + $0x9b0] sm:$0xff]
        %v2410 = vld [vmem:[%s282 + $0x9b8] sm:$0xff]
        %v2411 = vld [vmem:[%s282 + $0x9c0] sm:$0xff]
        %v2412 = vld [vmem:[%s282 + $0x9c8] sm:$0xff]
        %v2413 = vld [vmem:[%s282 + $0x9d0] sm:$0xff]
        %v2414 = vld [vmem:[%s282 + $0x9d8] sm:$0xff]
        %v2415 = vld [vmem:[%s282 + $0x9e0] sm:$0xff]
        %v2416 = vld [vmem:[%s282 + $0x9e8] sm:$0xff]
        %v2417 = vld [vmem:[%s282 + $0x9f0] sm:$0xff]
        %v2418 = vld [vmem:[%s282 + $0x9f8] sm:$0xff]
        %v2419 = vld [vmem:[%s282 + $0xa00] sm:$0xff]
        %v2420 = vld [vmem:[%s282 + $0xa08] sm:$0xff]
        %v2421 = vld [vmem:[%s282 + $0xa10] sm:$0xff]
        %v2422 = vld [vmem:[%s282 + $0xa18] sm:$0xff]
        %v2423 = vld [vmem:[%s282 + $0xa20] sm:$0xff]
        %v2424 = vld [vmem:[%s282 + $0xa28] sm:$0xff]
        %v2425 = vld [vmem:[%s282 + $0xa30] sm:$0xff]
        %v2426 = vld [vmem:[%s282 + $0xa38] sm:$0xff]
        %v2427 = vld [vmem:[%s282 + $0xa40] sm:$0xff]
        %v2428 = vld [vmem:[%s282 + $0xa48] sm:$0xff]
        %v2429 = vld [vmem:[%s282 + $0xa50] sm:$0xff]
        %v2430 = vld [vmem:[%s282 + $0xa58] sm:$0xff]
        %v2431 = vld [vmem:[%s282 + $0xa60] sm:$0xff]
        %v2432 = vld [vmem:[%s282 + $0xa68] sm:$0xff]
        %v2433 = vld [vmem:[%s282 + $0xa70] sm:$0xff]
        %v2434 = vld [vmem:[%s282 + $0xa78] sm:$0xff]
        %v2435 = vld [vmem:[%s282 + $0xa80] sm:$0xff]
        %v2436 = vld [vmem:[%s282 + $0xa88] sm:$0xff]
        %v2437 = vld [vmem:[%s282 + $0xa90] sm:$0xff]
        %v2438 = vld [vmem:[%s282 + $0xa98] sm:$0xff]
        %v2439 = vld [vmem:[%s282 + $0xaa0] sm:$0xff]
        %v2440 = vld [vmem:[%s282 + $0xaa8] sm:$0xff]
        %v2441 = vld [vmem:[%s282 + $0xab0] sm:$0xff]
        %v2442 = vld [vmem:[%s282 + $0xab8] sm:$0xff]
        %v2443 = vld [vmem:[%s282 + $0xac0] sm:$0xff]
        %v2444 = vld [vmem:[%s282 + $0xac8] sm:$0xff]
        %v2445 = vld [vmem:[%s282 + $0xad0] sm:$0xff]
        %v2446 = vld [vmem:[%s282 + $0xad8] sm:$0xff]
        %v2447 = vld [vmem:[%s282 + $0xae0] sm:$0xff]
        %v2448 = vld [vmem:[%s282 + $0xae8] sm:$0xff]
        %v2449 = vld [vmem:[%s282 + $0xaf0] sm:$0xff]
        %v2450 = vld [vmem:[%s282 + $0xaf8] sm:$0xff]
        %v2451 = vld [vmem:[%s282 + $0xb00] sm:$0xff]
        %v2452 = vld [vmem:[%s282 + $0xb08] sm:$0xff]
        %v2453 = vld [vmem:[%s282 + $0xb10] sm:$0xff]
        %v2454 = vld [vmem:[%s282 + $0xb18] sm:$0xff]
        %v2455 = vld [vmem:[%s282 + $0xb20] sm:$0xff]
        %v2456 = vld [vmem:[%s282 + $0xb28] sm:$0xff]
        %v2457 = vld [vmem:[%s282 + $0xb30] sm:$0xff]
        %v2458 = vld [vmem:[%s282 + $0xb38] sm:$0xff]
        %v2459 = vld [vmem:[%s282 + $0xb40] sm:$0xff]
        %v2460 = vld [vmem:[%s282 + $0xb48] sm:$0xff]
        %v2461 = vld [vmem:[%s282 + $0xb50] sm:$0xff]
        %v2462 = vld [vmem:[%s282 + $0xb58] sm:$0xff]
        %v2463 = vld [vmem:[%s282 + $0xb60] sm:$0xff]
        %v2464 = vld [vmem:[%s282 + $0xb68] sm:$0xff]
        %v2465 = vld [vmem:[%s282 + $0xb70] sm:$0xff]
        %v2466 = vld [vmem:[%s282 + $0xb78] sm:$0xff]
        %v2467 = vld [vmem:[%s282 + $0xb80] sm:$0xff]
        %v2468 = vld [vmem:[%s282 + $0xb88] sm:$0xff]
        %v2469 = vld [vmem:[%s282 + $0xb90] sm:$0xff]
        %v2470 = vld [vmem:[%s282 + $0xb98] sm:$0xff]
        %v2471 = vld [vmem:[%s282 + $0xba0] sm:$0xff]
        %v2472 = vld [vmem:[%s282 + $0xba8] sm:$0xff]
        %v2473 = vld [vmem:[%s282 + $0xbb0] sm:$0xff]
        %v2474 = vld [vmem:[%s282 + $0xbb8] sm:$0xff]
        %v2475 = vld [vmem:[%s282 + $0xbc0] sm:$0xff]
        %v2476 = vld [vmem:[%s282 + $0xbc8] sm:$0xff]
        %v2477 = vld [vmem:[%s282 + $0xbd0] sm:$0xff]
        %v2478 = vld [vmem:[%s282 + $0xbd8] sm:$0xff]
        %v2479 = vld [vmem:[%s282 + $0xbe0] sm:$0xff]
        %v2480 = vld [vmem:[%s282 + $0xbe8] sm:$0xff]
        %v2481 = vld [vmem:[%s282 + $0xbf0] sm:$0xff]
        %v2482 = vld [vmem:[%s282 + $0xbf8] sm:$0xff]
        %v2483 = vld [vmem:[%s282 + $0xc00] sm:$0xff]
        %v2484 = vld [vmem:[%s282 + $0xc08] sm:$0xff]
        %v2485 = vld [vmem:[%s282 + $0xc10] sm:$0xff]
        %v2486 = vld [vmem:[%s282 + $0xc18] sm:$0xff]
        %v2487 = vld [vmem:[%s282 + $0xc20] sm:$0xff]
        %v2488 = vld [vmem:[%s282 + $0xc28] sm:$0xff]
        %v2489 = vld [vmem:[%s282 + $0xc30] sm:$0xff]
        %v2490 = vld [vmem:[%s282 + $0xc38] sm:$0xff]
        %v2491 = vld [vmem:[%s282 + $0xc40] sm:$0xff]
        %v2492 = vld [vmem:[%s282 + $0xc48] sm:$0xff]
        %v2493 = vld [vmem:[%s282 + $0xc50] sm:$0xff]
        %v2494 = vld [vmem:[%s282 + $0xc58] sm:$0xff]
        %v2495 = vld [vmem:[%s282 + $0xc60] sm:$0xff]
        %v2496 = vld [vmem:[%s282 + $0xc68] sm:$0xff]
        %v2497 = vld [vmem:[%s282 + $0xc70] sm:$0xff]
        %v2498 = vld [vmem:[%s282 + $0xc78] sm:$0xff]
        %v2499 = vld [vmem:[%s282 + $0xc80] sm:$0xff]
        %v2500 = vld [vmem:[%s282 + $0xc88] sm:$0xff]
        %v2501 = vld [vmem:[%s282 + $0xc90] sm:$0xff]
        %v2502 = vld [vmem:[%s282 + $0xc98] sm:$0xff]
        %v2503 = vld [vmem:[%s282 + $0xca0] sm:$0xff]
        %v2504 = vld [vmem:[%s282 + $0xca8] sm:$0xff]
        %v2505 = vld [vmem:[%s282 + $0xcb0] sm:$0xff]
        %v2506 = vld [vmem:[%s282 + $0xcb8] sm:$0xff]
        %v2507 = vld [vmem:[%s282 + $0xcc0] sm:$0xff]
        %v2508 = vld [vmem:[%s282 + $0xcc8] sm:$0xff]
        %v2509 = vld [vmem:[%s282 + $0xcd0] sm:$0xff]
        %v2510 = vld [vmem:[%s282 + $0xcd8] sm:$0xff]
        %v2511 = vld [vmem:[%s282 + $0xce0] sm:$0xff]
        %v2512 = vld [vmem:[%s282 + $0xce8] sm:$0xff]
        %v2513 = vld [vmem:[%s282 + $0xcf0] sm:$0xff]
        %v2514 = vld [vmem:[%s282 + $0xcf8] sm:$0xff]
        %v2515 = vld [vmem:[%s282 + $0xd00] sm:$0xff]
        %v2516 = vld [vmem:[%s282 + $0xd08] sm:$0xff]
        %v2517 = vld [vmem:[%s282 + $0xd10] sm:$0xff]
        %v2518 = vld [vmem:[%s282 + $0xd18] sm:$0xff]
        %v2519 = vld [vmem:[%s282 + $0xd20] sm:$0xff]
        %v2520 = vld [vmem:[%s282 + $0xd28] sm:$0xff]
        %v2521 = vld [vmem:[%s282 + $0xd30] sm:$0xff]
        %v2522 = vld [vmem:[%s282 + $0xd38] sm:$0xff]
        %v2523 = vld [vmem:[%s282 + $0xd40] sm:$0xff]
        %v2524 = vld [vmem:[%s282 + $0xd48] sm:$0xff]
        %v2525 = vld [vmem:[%s282 + $0xd50] sm:$0xff]
        %v2526 = vld [vmem:[%s282 + $0xd58] sm:$0xff]
        %v2527 = vld [vmem:[%s282 + $0xd60] sm:$0xff]
        %v2528 = vld [vmem:[%s282 + $0xd68] sm:$0xff]
        %v2529 = vld [vmem:[%s282 + $0xd70] sm:$0xff]
        %v2530 = vld [vmem:[%s282 + $0xd78] sm:$0xff]
        %v2531 = vld [vmem:[%s282 + $0xd80] sm:$0xff]
        %v2532 = vld [vmem:[%s282 + $0xd88] sm:$0xff]
        %v2533 = vld [vmem:[%s282 + $0xd90] sm:$0xff]
        %v2534 = vld [vmem:[%s282 + $0xd98] sm:$0xff]
        %v2535 = vld [vmem:[%s282 + $0xda0] sm:$0xff]
        %v2536 = vld [vmem:[%s282 + $0xda8] sm:$0xff]
        %v2537 = vld [vmem:[%s282 + $0xdb0] sm:$0xff]
        %v2538 = vld [vmem:[%s282 + $0xdb8] sm:$0xff]
        %v2539 = vld [vmem:[%s282 + $0xdc0] sm:$0xff]
        %v2540 = vld [vmem:[%s282 + $0xdc8] sm:$0xff]
        %v2541 = vld [vmem:[%s282 + $0xdd0] sm:$0xff]
        %v2542 = vld [vmem:[%s282 + $0xdd8] sm:$0xff]
        %v2543 = vld [vmem:[%s282 + $0xde0] sm:$0xff]
        %v2544 = vld [vmem:[%s282 + $0xde8] sm:$0xff]
        %v2545 = vld [vmem:[%s282 + $0xdf0] sm:$0xff]
        %v2546 = vld [vmem:[%s282 + $0xdf8] sm:$0xff]
        %v2547 = vld [vmem:[%s282 + $0xe00] sm:$0xff]
        %v2548 = vld [vmem:[%s282 + $0xe08] sm:$0xff]
        %v2549 = vld [vmem:[%s282 + $0xe10] sm:$0xff]
        %v2550 = vld [vmem:[%s282 + $0xe18] sm:$0xff]
        %v2551 = vld [vmem:[%s282 + $0xe20] sm:$0xff]
        %v2552 = vld [vmem:[%s282 + $0xe28] sm:$0xff]
        %v2553 = vld [vmem:[%s282 + $0xe30] sm:$0xff]
        %v2554 = vld [vmem:[%s282 + $0xe38] sm:$0xff]
        %v2555 = vld [vmem:[%s282 + $0xe40] sm:$0xff]
        %v2556 = vld [vmem:[%s282 + $0xe48] sm:$0xff]
        %v2557 = vld [vmem:[%s282 + $0xe50] sm:$0xff]
        %v2558 = vld [vmem:[%s282 + $0xe58] sm:$0xff]
        %v2559 = vld [vmem:[%s282 + $0xe60] sm:$0xff]
        %v2560 = vld [vmem:[%s282 + $0xe68] sm:$0xff]
        %v2561 = vld [vmem:[%s282 + $0xe70] sm:$0xff]
        %v2562 = vld [vmem:[%s282 + $0xe78] sm:$0xff]
        %v2563 = vld [vmem:[%s282 + $0xe80] sm:$0xff]
        %v2564 = vld [vmem:[%s282 + $0xe88] sm:$0xff]
        %v2565 = vld [vmem:[%s282 + $0xe90] sm:$0xff]
        %v2566 = vld [vmem:[%s282 + $0xe98] sm:$0xff]
        %v2567 = vld [vmem:[%s282 + $0xea0] sm:$0xff]
        %v2568 = vld [vmem:[%s282 + $0xea8] sm:$0xff]
        %v2569 = vld [vmem:[%s282 + $0xeb0] sm:$0xff]
        %v2570 = vld [vmem:[%s282 + $0xeb8] sm:$0xff]
        %v2571 = vld [vmem:[%s282 + $0xec0] sm:$0xff]
        %v2572 = vld [vmem:[%s282 + $0xec8] sm:$0xff]
        %v2573 = vld [vmem:[%s282 + $0xed0] sm:$0xff]
        %v2574 = vld [vmem:[%s282 + $0xed8] sm:$0xff]
        %v2575 = vld [vmem:[%s282 + $0xee0] sm:$0xff]
        %v2576 = vld [vmem:[%s282 + $0xee8] sm:$0xff]
        %v2577 = vld [vmem:[%s282 + $0xef0] sm:$0xff]
        %v2578 = vld [vmem:[%s282 + $0xef8] sm:$0xff]
        %v2579 = vld [vmem:[%s282 + $0xf00] sm:$0xff]
        %v2580 = vld [vmem:[%s282 + $0xf08] sm:$0xff]
        %v2581 = vld [vmem:[%s282 + $0xf10] sm:$0xff]
        %v2582 = vld [vmem:[%s282 + $0xf18] sm:$0xff]
        %v2583 = vld [vmem:[%s282 + $0xf20] sm:$0xff]
        %v2584 = vld [vmem:[%s282 + $0xf28] sm:$0xff]
        %v2585 = vld [vmem:[%s282 + $0xf30] sm:$0xff]
        %v2586 = vld [vmem:[%s282 + $0xf38] sm:$0xff]
        %v2587 = vld [vmem:[%s282 + $0xf40] sm:$0xff]
        %v2588 = vld [vmem:[%s282 + $0xf48] sm:$0xff]
        %v2589 = vld [vmem:[%s282 + $0xf50] sm:$0xff]
        %v2590 = vld [vmem:[%s282 + $0xf58] sm:$0xff]
        %v2591 = vld [vmem:[%s282 + $0xf60] sm:$0xff]
        %v2592 = vld [vmem:[%s282 + $0xf68] sm:$0xff]
        %v2593 = vld [vmem:[%s282 + $0xf70] sm:$0xff]
        %v2594 = vld [vmem:[%s282 + $0xf78] sm:$0xff]
        %v2595 = vld [vmem:[%s282 + $0xf80] sm:$0xff]
        %v2596 = vld [vmem:[%s282 + $0xf88] sm:$0xff]
        %v2597 = vld [vmem:[%s282 + $0xf90] sm:$0xff]
        %v2598 = vld [vmem:[%s282 + $0xf98] sm:$0xff]
        %v2599 = vld [vmem:[%s282 + $0xfa0] sm:$0xff]
        %v2600 = vld [vmem:[%s282 + $0xfa8] sm:$0xff]
        %v2601 = vld [vmem:[%s282 + $0xfb0] sm:$0xff]
        %v2602 = vld [vmem:[%s282 + $0xfb8] sm:$0xff]
        %v2603 = vld [vmem:[%s282 + $0xfc0] sm:$0xff]
        %v2604 = vld [vmem:[%s282 + $0xfc8] sm:$0xff]
        %v2605 = vld [vmem:[%s282 + $0xfd0] sm:$0xff]
        %v2606 = vld [vmem:[%s282 + $0xfd8] sm:$0xff]
        %v2607 = vld [vmem:[%s282 + $0xfe0] sm:$0xff]
        %v2608 = vld [vmem:[%s282 + $0xfe8] sm:$0xff]
        %v2609 = vld [vmem:[%s282 + $0xff0] sm:$0xff]
        %v2610 = vld [vmem:[%s282 + $0xff8] sm:$0xff]
        %v3123 = vunpack.c.l.b16 %v2099
        %v3124 = vunpack.c.h.b16 %v2099
        %v3125 = vunpack.c.l.b16 %v2100
        %v3126 = vunpack.c.h.b16 %v2100
        %v3127 = vunpack.c.l.b16 %v2101
        %v3128 = vunpack.c.h.b16 %v2101
        %v3129 = vunpack.c.l.b16 %v2102
        %v3130 = vunpack.c.h.b16 %v2102
        %v3131 = vunpack.c.l.b16 %v2103
        %v3132 = vunpack.c.h.b16 %v2103
        %v3133 = vunpack.c.l.b16 %v2104
        %v3134 = vunpack.c.h.b16 %v2104
        %v3135 = vunpack.c.l.b16 %v2105
        %v3136 = vunpack.c.h.b16 %v2105
        %v3137 = vunpack.c.l.b16 %v2106
        %v3138 = vunpack.c.h.b16 %v2106
        %v3139 = vunpack.c.l.b16 %v2107
        %v3140 = vunpack.c.h.b16 %v2107
        %v3141 = vunpack.c.l.b16 %v2108
        %v3142 = vunpack.c.h.b16 %v2108
        %v3143 = vunpack.c.l.b16 %v2109
        %v3144 = vunpack.c.h.b16 %v2109
        %v3145 = vunpack.c.l.b16 %v2110
        %v3146 = vunpack.c.h.b16 %v2110
        %v3147 = vunpack.c.l.b16 %v2111
        %v3148 = vunpack.c.h.b16 %v2111
        %v3149 = vunpack.c.l.b16 %v2112
        %v3150 = vunpack.c.h.b16 %v2112
        %v3151 = vunpack.c.l.b16 %v2113
        %v3152 = vunpack.c.h.b16 %v2113
        %v3153 = vunpack.c.l.b16 %v2114
        %v3154 = vunpack.c.h.b16 %v2114
        %v3155 = vunpack.c.l.b16 %v2115
        %v3156 = vunpack.c.h.b16 %v2115
        %v3157 = vunpack.c.l.b16 %v2116
        %v3158 = vunpack.c.h.b16 %v2116
        %v3159 = vunpack.c.l.b16 %v2117
        %v3160 = vunpack.c.h.b16 %v2117
        %v3161 = vunpack.c.l.b16 %v2118
        %v3162 = vunpack.c.h.b16 %v2118
        %v3163 = vunpack.c.l.b16 %v2119
        %v3164 = vunpack.c.h.b16 %v2119
        %v3165 = vunpack.c.l.b16 %v2120
        %v3166 = vunpack.c.h.b16 %v2120
        %v3167 = vunpack.c.l.b16 %v2121
        %v3168 = vunpack.c.h.b16 %v2121
        %v3169 = vunpack.c.l.b16 %v2122
        %v3170 = vunpack.c.h.b16 %v2122
        %v3171 = vunpack.c.l.b16 %v2123
        %v3172 = vunpack.c.h.b16 %v2123
        %v3173 = vunpack.c.l.b16 %v2124
        %v3174 = vunpack.c.h.b16 %v2124
        %v3175 = vunpack.c.l.b16 %v2125
        %v3176 = vunpack.c.h.b16 %v2125
        %v3177 = vunpack.c.l.b16 %v2126
        %v3178 = vunpack.c.h.b16 %v2126
        %v3179 = vunpack.c.l.b16 %v2127
        %v3180 = vunpack.c.h.b16 %v2127
        %v3181 = vunpack.c.l.b16 %v2128
        %v3182 = vunpack.c.h.b16 %v2128
        %v3183 = vunpack.c.l.b16 %v2129
        %v3184 = vunpack.c.h.b16 %v2129
        %v3185 = vunpack.c.l.b16 %v2130
        %v3186 = vunpack.c.h.b16 %v2130
        %v3187 = vunpack.c.l.b16 %v2131
        %v3188 = vunpack.c.h.b16 %v2131
        %v3189 = vunpack.c.l.b16 %v2132
        %v3190 = vunpack.c.h.b16 %v2132
        %v3191 = vunpack.c.l.b16 %v2133
        %v3192 = vunpack.c.h.b16 %v2133
        %v3193 = vunpack.c.l.b16 %v2134
        %v3194 = vunpack.c.h.b16 %v2134
        %v3195 = vunpack.c.l.b16 %v2135
        %v3196 = vunpack.c.h.b16 %v2135
        %v3197 = vunpack.c.l.b16 %v2136
        %v3198 = vunpack.c.h.b16 %v2136
        %v3199 = vunpack.c.l.b16 %v2137
        %v3200 = vunpack.c.h.b16 %v2137
        %v3201 = vunpack.c.l.b16 %v2138
        %v3202 = vunpack.c.h.b16 %v2138
        %v3203 = vunpack.c.l.b16 %v2139
        %v3204 = vunpack.c.h.b16 %v2139
        %v3205 = vunpack.c.l.b16 %v2140
        %v3206 = vunpack.c.h.b16 %v2140
        %v3207 = vunpack.c.l.b16 %v2141
        %v3208 = vunpack.c.h.b16 %v2141
        %v3209 = vunpack.c.l.b16 %v2142
        %v3210 = vunpack.c.h.b16 %v2142
        %v3211 = vunpack.c.l.b16 %v2143
        %v3212 = vunpack.c.h.b16 %v2143
        %v3213 = vunpack.c.l.b16 %v2144
        %v3214 = vunpack.c.h.b16 %v2144
        %v3215 = vunpack.c.l.b16 %v2145
        %v3216 = vunpack.c.h.b16 %v2145
        %v3217 = vunpack.c.l.b16 %v2146
        %v3218 = vunpack.c.h.b16 %v2146
        %v3219 = vunpack.c.l.b16 %v2147
        %v3220 = vunpack.c.h.b16 %v2147
        %v3221 = vunpack.c.l.b16 %v2148
        %v3222 = vunpack.c.h.b16 %v2148
        %v3223 = vunpack.c.l.b16 %v2149
        %v3224 = vunpack.c.h.b16 %v2149
        %v3225 = vunpack.c.l.b16 %v2150
        %v3226 = vunpack.c.h.b16 %v2150
        %v3227 = vunpack.c.l.b16 %v2151
        %v3228 = vunpack.c.h.b16 %v2151
        %v3229 = vunpack.c.l.b16 %v2152
        %v3230 = vunpack.c.h.b16 %v2152
        %v3231 = vunpack.c.l.b16 %v2153
        %v3232 = vunpack.c.h.b16 %v2153
        %v3233 = vunpack.c.l.b16 %v2154
        %v3234 = vunpack.c.h.b16 %v2154
        %v3235 = vunpack.c.l.b16 %v2155
        %v3236 = vunpack.c.h.b16 %v2155
        %v3237 = vunpack.c.l.b16 %v2156
        %v3238 = vunpack.c.h.b16 %v2156
        %v3239 = vunpack.c.l.b16 %v2157
        %v3240 = vunpack.c.h.b16 %v2157
        %v3241 = vunpack.c.l.b16 %v2158
        %v3242 = vunpack.c.h.b16 %v2158
        %v3243 = vunpack.c.l.b16 %v2159
        %v3244 = vunpack.c.h.b16 %v2159
        %v3245 = vunpack.c.l.b16 %v2160
        %v3246 = vunpack.c.h.b16 %v2160
        %v3247 = vunpack.c.l.b16 %v2161
        %v3248 = vunpack.c.h.b16 %v2161
        %v3249 = vunpack.c.l.b16 %v2162
        %v3250 = vunpack.c.h.b16 %v2162
        %v3251 = vunpack.c.l.b16 %v2163
        %v3252 = vunpack.c.h.b16 %v2163
        %v3253 = vunpack.c.l.b16 %v2164
        %v3254 = vunpack.c.h.b16 %v2164
        %v3255 = vunpack.c.l.b16 %v2165
        %v3256 = vunpack.c.h.b16 %v2165
        %v3257 = vunpack.c.l.b16 %v2166
        %v3258 = vunpack.c.h.b16 %v2166
        %v3259 = vunpack.c.l.b16 %v2167
        %v3260 = vunpack.c.h.b16 %v2167
        %v3261 = vunpack.c.l.b16 %v2168
        %v3262 = vunpack.c.h.b16 %v2168
        %v3263 = vunpack.c.l.b16 %v2169
        %v3264 = vunpack.c.h.b16 %v2169
        %v3265 = vunpack.c.l.b16 %v2170
        %v3266 = vunpack.c.h.b16 %v2170
        %v3267 = vunpack.c.l.b16 %v2171
        %v3268 = vunpack.c.h.b16 %v2171
        %v3269 = vunpack.c.l.b16 %v2172
        %v3270 = vunpack.c.h.b16 %v2172
        %v3271 = vunpack.c.l.b16 %v2173
        %v3272 = vunpack.c.h.b16 %v2173
        %v3273 = vunpack.c.l.b16 %v2174
        %v3274 = vunpack.c.h.b16 %v2174
        %v3275 = vunpack.c.l.b16 %v2175
        %v3276 = vunpack.c.h.b16 %v2175
        %v3277 = vunpack.c.l.b16 %v2176
        %v3278 = vunpack.c.h.b16 %v2176
        %v3279 = vunpack.c.l.b16 %v2177
        %v3280 = vunpack.c.h.b16 %v2177
        %v3281 = vunpack.c.l.b16 %v2178
        %v3282 = vunpack.c.h.b16 %v2178
        %v3283 = vunpack.c.l.b16 %v2179
        %v3284 = vunpack.c.h.b16 %v2179
        %v3285 = vunpack.c.l.b16 %v2180
        %v3286 = vunpack.c.h.b16 %v2180
        %v3287 = vunpack.c.l.b16 %v2181
        %v3288 = vunpack.c.h.b16 %v2181
        %v3289 = vunpack.c.l.b16 %v2182
        %v3290 = vunpack.c.h.b16 %v2182
        %v3291 = vunpack.c.l.b16 %v2183
        %v3292 = vunpack.c.h.b16 %v2183
        %v3293 = vunpack.c.l.b16 %v2184
        %v3294 = vunpack.c.h.b16 %v2184
        %v3295 = vunpack.c.l.b16 %v2185
        %v3296 = vunpack.c.h.b16 %v2185
        %v3297 = vunpack.c.l.b16 %v2186
        %v3298 = vunpack.c.h.b16 %v2186
        %v3299 = vunpack.c.l.b16 %v2187
        %v3300 = vunpack.c.h.b16 %v2187
        %v3301 = vunpack.c.l.b16 %v2188
        %v3302 = vunpack.c.h.b16 %v2188
        %v3303 = vunpack.c.l.b16 %v2189
        %v3304 = vunpack.c.h.b16 %v2189
        %v3305 = vunpack.c.l.b16 %v2190
        %v3306 = vunpack.c.h.b16 %v2190
        %v3307 = vunpack.c.l.b16 %v2191
        %v3308 = vunpack.c.h.b16 %v2191
        %v3309 = vunpack.c.l.b16 %v2192
        %v3310 = vunpack.c.h.b16 %v2192
        %v3311 = vunpack.c.l.b16 %v2193
        %v3312 = vunpack.c.h.b16 %v2193
        %v3313 = vunpack.c.l.b16 %v2194
        %v3314 = vunpack.c.h.b16 %v2194
        %v3315 = vunpack.c.l.b16 %v2195
        %v3316 = vunpack.c.h.b16 %v2195
        %v3317 = vunpack.c.l.b16 %v2196
        %v3318 = vunpack.c.h.b16 %v2196
        %v3319 = vunpack.c.l.b16 %v2197
        %v3320 = vunpack.c.h.b16 %v2197
        %v3321 = vunpack.c.l.b16 %v2198
        %v3322 = vunpack.c.h.b16 %v2198
        %v3323 = vunpack.c.l.b16 %v2199
        %v3324 = vunpack.c.h.b16 %v2199
        %v3325 = vunpack.c.l.b16 %v2200
        %v3326 = vunpack.c.h.b16 %v2200
        %v3327 = vunpack.c.l.b16 %v2201
        %v3328 = vunpack.c.h.b16 %v2201
        %v3329 = vunpack.c.l.b16 %v2202
        %v3330 = vunpack.c.h.b16 %v2202
        %v3331 = vunpack.c.l.b16 %v2203
        %v3332 = vunpack.c.h.b16 %v2203
        %v3333 = vunpack.c.l.b16 %v2204
        %v3334 = vunpack.c.h.b16 %v2204
        %v3335 = vunpack.c.l.b16 %v2205
        %v3336 = vunpack.c.h.b16 %v2205
        %v3337 = vunpack.c.l.b16 %v2206
        %v3338 = vunpack.c.h.b16 %v2206
        %v3339 = vunpack.c.l.b16 %v2207
        %v3340 = vunpack.c.h.b16 %v2207
        %v3341 = vunpack.c.l.b16 %v2208
        %v3342 = vunpack.c.h.b16 %v2208
        %v3343 = vunpack.c.l.b16 %v2209
        %v3344 = vunpack.c.h.b16 %v2209
        %v3345 = vunpack.c.l.b16 %v2210
        %v3346 = vunpack.c.h.b16 %v2210
        %v3347 = vunpack.c.l.b16 %v2211
        %v3348 = vunpack.c.h.b16 %v2211
        %v3349 = vunpack.c.l.b16 %v2212
        %v3350 = vunpack.c.h.b16 %v2212
        %v3351 = vunpack.c.l.b16 %v2213
        %v3352 = vunpack.c.h.b16 %v2213
        %v3353 = vunpack.c.l.b16 %v2214
        %v3354 = vunpack.c.h.b16 %v2214
        %v3355 = vunpack.c.l.b16 %v2215
        %v3356 = vunpack.c.h.b16 %v2215
        %v3357 = vunpack.c.l.b16 %v2216
        %v3358 = vunpack.c.h.b16 %v2216
        %v3359 = vunpack.c.l.b16 %v2217
        %v3360 = vunpack.c.h.b16 %v2217
        %v3361 = vunpack.c.l.b16 %v2218
        %v3362 = vunpack.c.h.b16 %v2218
        %v3363 = vunpack.c.l.b16 %v2219
        %v3364 = vunpack.c.h.b16 %v2219
        %v3365 = vunpack.c.l.b16 %v2220
        %v3366 = vunpack.c.h.b16 %v2220
        %v3367 = vunpack.c.l.b16 %v2221
        %v3368 = vunpack.c.h.b16 %v2221
        %v3369 = vunpack.c.l.b16 %v2222
        %v3370 = vunpack.c.h.b16 %v2222
        %v3371 = vunpack.c.l.b16 %v2223
        %v3372 = vunpack.c.h.b16 %v2223
        %v3373 = vunpack.c.l.b16 %v2224
        %v3374 = vunpack.c.h.b16 %v2224
        %v3375 = vunpack.c.l.b16 %v2225
        %v3376 = vunpack.c.h.b16 %v2225
        %v3377 = vunpack.c.l.b16 %v2226
        %v3378 = vunpack.c.h.b16 %v2226
        %v3379 = vunpack.c.l.b16 %v2227
        %v3380 = vunpack.c.h.b16 %v2227
        %v3381 = vunpack.c.l.b16 %v2228
        %v3382 = vunpack.c.h.b16 %v2228
        %v3383 = vunpack.c.l.b16 %v2229
        %v3384 = vunpack.c.h.b16 %v2229
        %v3385 = vunpack.c.l.b16 %v2230
        %v3386 = vunpack.c.h.b16 %v2230
        %v3387 = vunpack.c.l.b16 %v2231
        %v3388 = vunpack.c.h.b16 %v2231
        %v3389 = vunpack.c.l.b16 %v2232
        %v3390 = vunpack.c.h.b16 %v2232
        %v3391 = vunpack.c.l.b16 %v2233
        %v3392 = vunpack.c.h.b16 %v2233
        %v3393 = vunpack.c.l.b16 %v2234
        %v3394 = vunpack.c.h.b16 %v2234
        %v3395 = vunpack.c.l.b16 %v2235
        %v3396 = vunpack.c.h.b16 %v2235
        %v3397 = vunpack.c.l.b16 %v2236
        %v3398 = vunpack.c.h.b16 %v2236
        %v3399 = vunpack.c.l.b16 %v2237
        %v3400 = vunpack.c.h.b16 %v2237
        %v3401 = vunpack.c.l.b16 %v2238
        %v3402 = vunpack.c.h.b16 %v2238
        %v3403 = vunpack.c.l.b16 %v2239
        %v3404 = vunpack.c.h.b16 %v2239
        %v3405 = vunpack.c.l.b16 %v2240
        %v3406 = vunpack.c.h.b16 %v2240
        %v3407 = vunpack.c.l.b16 %v2241
        %v3408 = vunpack.c.h.b16 %v2241
        %v3409 = vunpack.c.l.b16 %v2242
        %v3410 = vunpack.c.h.b16 %v2242
        %v3411 = vunpack.c.l.b16 %v2243
        %v3412 = vunpack.c.h.b16 %v2243
        %v3413 = vunpack.c.l.b16 %v2244
        %v3414 = vunpack.c.h.b16 %v2244
        %v3415 = vunpack.c.l.b16 %v2245
        %v3416 = vunpack.c.h.b16 %v2245
        %v3417 = vunpack.c.l.b16 %v2246
        %v3418 = vunpack.c.h.b16 %v2246
        %v3419 = vunpack.c.l.b16 %v2247
        %v3420 = vunpack.c.h.b16 %v2247
        %v3421 = vunpack.c.l.b16 %v2248
        %v3422 = vunpack.c.h.b16 %v2248
        %v3423 = vunpack.c.l.b16 %v2249
        %v3424 = vunpack.c.h.b16 %v2249
        %v3425 = vunpack.c.l.b16 %v2250
        %v3426 = vunpack.c.h.b16 %v2250
        %v3427 = vunpack.c.l.b16 %v2251
        %v3428 = vunpack.c.h.b16 %v2251
        %v3429 = vunpack.c.l.b16 %v2252
        %v3430 = vunpack.c.h.b16 %v2252
        %v3431 = vunpack.c.l.b16 %v2253
        %v3432 = vunpack.c.h.b16 %v2253
        %v3433 = vunpack.c.l.b16 %v2254
        %v3434 = vunpack.c.h.b16 %v2254
        %v3435 = vunpack.c.l.b16 %v2255
        %v3436 = vunpack.c.h.b16 %v2255
        %v3437 = vunpack.c.l.b16 %v2256
        %v3438 = vunpack.c.h.b16 %v2256
        %v3439 = vunpack.c.l.b16 %v2257
        %v3440 = vunpack.c.h.b16 %v2257
        %v3441 = vunpack.c.l.b16 %v2258
        %v3442 = vunpack.c.h.b16 %v2258
        %v3443 = vunpack.c.l.b16 %v2259
        %v3444 = vunpack.c.h.b16 %v2259
        %v3445 = vunpack.c.l.b16 %v2260
        %v3446 = vunpack.c.h.b16 %v2260
        %v3447 = vunpack.c.l.b16 %v2261
        %v3448 = vunpack.c.h.b16 %v2261
        %v3449 = vunpack.c.l.b16 %v2262
        %v3450 = vunpack.c.h.b16 %v2262
        %v3451 = vunpack.c.l.b16 %v2263
        %v3452 = vunpack.c.h.b16 %v2263
        %v3453 = vunpack.c.l.b16 %v2264
        %v3454 = vunpack.c.h.b16 %v2264
        %v3455 = vunpack.c.l.b16 %v2265
        %v3456 = vunpack.c.h.b16 %v2265
        %v3457 = vunpack.c.l.b16 %v2266
        %v3458 = vunpack.c.h.b16 %v2266
        %v3459 = vunpack.c.l.b16 %v2267
        %v3460 = vunpack.c.h.b16 %v2267
        %v3461 = vunpack.c.l.b16 %v2268
        %v3462 = vunpack.c.h.b16 %v2268
        %v3463 = vunpack.c.l.b16 %v2269
        %v3464 = vunpack.c.h.b16 %v2269
        %v3465 = vunpack.c.l.b16 %v2270
        %v3466 = vunpack.c.h.b16 %v2270
        %v3467 = vunpack.c.l.b16 %v2271
        %v3468 = vunpack.c.h.b16 %v2271
        %v3469 = vunpack.c.l.b16 %v2272
        %v3470 = vunpack.c.h.b16 %v2272
        %v3471 = vunpack.c.l.b16 %v2273
        %v3472 = vunpack.c.h.b16 %v2273
        %v3473 = vunpack.c.l.b16 %v2274
        %v3474 = vunpack.c.h.b16 %v2274
        %v3475 = vunpack.c.l.b16 %v2275
        %v3476 = vunpack.c.h.b16 %v2275
        %v3477 = vunpack.c.l.b16 %v2276
        %v3478 = vunpack.c.h.b16 %v2276
        %v3479 = vunpack.c.l.b16 %v2277
        %v3480 = vunpack.c.h.b16 %v2277
        %v3481 = vunpack.c.l.b16 %v2278
        %v3482 = vunpack.c.h.b16 %v2278
        %v3483 = vunpack.c.l.b16 %v2279
        %v3484 = vunpack.c.h.b16 %v2279
        %v3485 = vunpack.c.l.b16 %v2280
        %v3486 = vunpack.c.h.b16 %v2280
        %v3487 = vunpack.c.l.b16 %v2281
        %v3488 = vunpack.c.h.b16 %v2281
        %v3489 = vunpack.c.l.b16 %v2282
        %v3490 = vunpack.c.h.b16 %v2282
        %v3491 = vunpack.c.l.b16 %v2283
        %v3492 = vunpack.c.h.b16 %v2283
        %v3493 = vunpack.c.l.b16 %v2284
        %v3494 = vunpack.c.h.b16 %v2284
        %v3495 = vunpack.c.l.b16 %v2285
        %v3496 = vunpack.c.h.b16 %v2285
        %v3497 = vunpack.c.l.b16 %v2286
        %v3498 = vunpack.c.h.b16 %v2286
        %v3499 = vunpack.c.l.b16 %v2287
        %v3500 = vunpack.c.h.b16 %v2287
        %v3501 = vunpack.c.l.b16 %v2288
        %v3502 = vunpack.c.h.b16 %v2288
        %v3503 = vunpack.c.l.b16 %v2289
        %v3504 = vunpack.c.h.b16 %v2289
        %v3505 = vunpack.c.l.b16 %v2290
        %v3506 = vunpack.c.h.b16 %v2290
        %v3507 = vunpack.c.l.b16 %v2291
        %v3508 = vunpack.c.h.b16 %v2291
        %v3509 = vunpack.c.l.b16 %v2292
        %v3510 = vunpack.c.h.b16 %v2292
        %v3511 = vunpack.c.l.b16 %v2293
        %v3512 = vunpack.c.h.b16 %v2293
        %v3513 = vunpack.c.l.b16 %v2294
        %v3514 = vunpack.c.h.b16 %v2294
        %v3515 = vunpack.c.l.b16 %v2295
        %v3516 = vunpack.c.h.b16 %v2295
        %v3517 = vunpack.c.l.b16 %v2296
        %v3518 = vunpack.c.h.b16 %v2296
        %v3519 = vunpack.c.l.b16 %v2297
        %v3520 = vunpack.c.h.b16 %v2297
        %v3521 = vunpack.c.l.b16 %v2298
        %v3522 = vunpack.c.h.b16 %v2298
        %v3523 = vunpack.c.l.b16 %v2299
        %v3524 = vunpack.c.h.b16 %v2299
        %v3525 = vunpack.c.l.b16 %v2300
        %v3526 = vunpack.c.h.b16 %v2300
        %v3527 = vunpack.c.l.b16 %v2301
        %v3528 = vunpack.c.h.b16 %v2301
        %v3529 = vunpack.c.l.b16 %v2302
        %v3530 = vunpack.c.h.b16 %v2302
        %v3531 = vunpack.c.l.b16 %v2303
        %v3532 = vunpack.c.h.b16 %v2303
        %v3533 = vunpack.c.l.b16 %v2304
        %v3534 = vunpack.c.h.b16 %v2304
        %v3535 = vunpack.c.l.b16 %v2305
        %v3536 = vunpack.c.h.b16 %v2305
        %v3537 = vunpack.c.l.b16 %v2306
        %v3538 = vunpack.c.h.b16 %v2306
        %v3539 = vunpack.c.l.b16 %v2307
        %v3540 = vunpack.c.h.b16 %v2307
        %v3541 = vunpack.c.l.b16 %v2308
        %v3542 = vunpack.c.h.b16 %v2308
        %v3543 = vunpack.c.l.b16 %v2309
        %v3544 = vunpack.c.h.b16 %v2309
        %v3545 = vunpack.c.l.b16 %v2310
        %v3546 = vunpack.c.h.b16 %v2310
        %v3547 = vunpack.c.l.b16 %v2311
        %v3548 = vunpack.c.h.b16 %v2311
        %v3549 = vunpack.c.l.b16 %v2312
        %v3550 = vunpack.c.h.b16 %v2312
        %v3551 = vunpack.c.l.b16 %v2313
        %v3552 = vunpack.c.h.b16 %v2313
        %v3553 = vunpack.c.l.b16 %v2314
        %v3554 = vunpack.c.h.b16 %v2314
        %v3555 = vunpack.c.l.b16 %v2315
        %v3556 = vunpack.c.h.b16 %v2315
        %v3557 = vunpack.c.l.b16 %v2316
        %v3558 = vunpack.c.h.b16 %v2316
        %v3559 = vunpack.c.l.b16 %v2317
        %v3560 = vunpack.c.h.b16 %v2317
        %v3561 = vunpack.c.l.b16 %v2318
        %v3562 = vunpack.c.h.b16 %v2318
        %v3563 = vunpack.c.l.b16 %v2319
        %v3564 = vunpack.c.h.b16 %v2319
        %v3565 = vunpack.c.l.b16 %v2320
        %v3566 = vunpack.c.h.b16 %v2320
        %v3567 = vunpack.c.l.b16 %v2321
        %v3568 = vunpack.c.h.b16 %v2321
        %v3569 = vunpack.c.l.b16 %v2322
        %v3570 = vunpack.c.h.b16 %v2322
        %v3571 = vunpack.c.l.b16 %v2323
        %v3572 = vunpack.c.h.b16 %v2323
        %v3573 = vunpack.c.l.b16 %v2324
        %v3574 = vunpack.c.h.b16 %v2324
        %v3575 = vunpack.c.l.b16 %v2325
        %v3576 = vunpack.c.h.b16 %v2325
        %v3577 = vunpack.c.l.b16 %v2326
        %v3578 = vunpack.c.h.b16 %v2326
        %v3579 = vunpack.c.l.b16 %v2327
        %v3580 = vunpack.c.h.b16 %v2327
        %v3581 = vunpack.c.l.b16 %v2328
        %v3582 = vunpack.c.h.b16 %v2328
        %v3583 = vunpack.c.l.b16 %v2329
        %v3584 = vunpack.c.h.b16 %v2329
        %v3585 = vunpack.c.l.b16 %v2330
        %v3586 = vunpack.c.h.b16 %v2330
        %v3587 = vunpack.c.l.b16 %v2331
        %v3588 = vunpack.c.h.b16 %v2331
        %v3589 = vunpack.c.l.b16 %v2332
        %v3590 = vunpack.c.h.b16 %v2332
        %v3591 = vunpack.c.l.b16 %v2333
        %v3592 = vunpack.c.h.b16 %v2333
        %v3593 = vunpack.c.l.b16 %v2334
        %v3594 = vunpack.c.h.b16 %v2334
        %v3595 = vunpack.c.l.b16 %v2335
        %v3596 = vunpack.c.h.b16 %v2335
        %v3597 = vunpack.c.l.b16 %v2336
        %v3598 = vunpack.c.h.b16 %v2336
        %v3599 = vunpack.c.l.b16 %v2337
        %v3600 = vunpack.c.h.b16 %v2337
        %v3601 = vunpack.c.l.b16 %v2338
        %v3602 = vunpack.c.h.b16 %v2338
        %v3603 = vunpack.c.l.b16 %v2339
        %v3604 = vunpack.c.h.b16 %v2339
        %v3605 = vunpack.c.l.b16 %v2340
        %v3606 = vunpack.c.h.b16 %v2340
        %v3607 = vunpack.c.l.b16 %v2341
        %v3608 = vunpack.c.h.b16 %v2341
        %v3609 = vunpack.c.l.b16 %v2342
        %v3610 = vunpack.c.h.b16 %v2342
        %v3611 = vunpack.c.l.b16 %v2343
        %v3612 = vunpack.c.h.b16 %v2343
        %v3613 = vunpack.c.l.b16 %v2344
        %v3614 = vunpack.c.h.b16 %v2344
        %v3615 = vunpack.c.l.b16 %v2345
        %v3616 = vunpack.c.h.b16 %v2345
        %v3617 = vunpack.c.l.b16 %v2346
        %v3618 = vunpack.c.h.b16 %v2346
        %v3619 = vunpack.c.l.b16 %v2347
        %v3620 = vunpack.c.h.b16 %v2347
        %v3621 = vunpack.c.l.b16 %v2348
        %v3622 = vunpack.c.h.b16 %v2348
        %v3623 = vunpack.c.l.b16 %v2349
        %v3624 = vunpack.c.h.b16 %v2349
        %v3625 = vunpack.c.l.b16 %v2350
        %v3626 = vunpack.c.h.b16 %v2350
        %v3627 = vunpack.c.l.b16 %v2351
        %v3628 = vunpack.c.h.b16 %v2351
        %v3629 = vunpack.c.l.b16 %v2352
        %v3630 = vunpack.c.h.b16 %v2352
        %v3631 = vunpack.c.l.b16 %v2353
        %v3632 = vunpack.c.h.b16 %v2353
        %v3633 = vunpack.c.l.b16 %v2354
        %v3634 = vunpack.c.h.b16 %v2354
        %v3635 = vunpack.c.l.b16 %v2355
        %v3636 = vunpack.c.h.b16 %v2355
        %v3637 = vunpack.c.l.b16 %v2356
        %v3638 = vunpack.c.h.b16 %v2356
        %v3639 = vunpack.c.l.b16 %v2357
        %v3640 = vunpack.c.h.b16 %v2357
        %v3641 = vunpack.c.l.b16 %v2358
        %v3642 = vunpack.c.h.b16 %v2358
        %v3643 = vunpack.c.l.b16 %v2359
        %v3644 = vunpack.c.h.b16 %v2359
        %v3645 = vunpack.c.l.b16 %v2360
        %v3646 = vunpack.c.h.b16 %v2360
        %v3647 = vunpack.c.l.b16 %v2361
        %v3648 = vunpack.c.h.b16 %v2361
        %v3649 = vunpack.c.l.b16 %v2362
        %v3650 = vunpack.c.h.b16 %v2362
        %v3651 = vunpack.c.l.b16 %v2363
        %v3652 = vunpack.c.h.b16 %v2363
        %v3653 = vunpack.c.l.b16 %v2364
        %v3654 = vunpack.c.h.b16 %v2364
        %v3655 = vunpack.c.l.b16 %v2365
        %v3656 = vunpack.c.h.b16 %v2365
        %v3657 = vunpack.c.l.b16 %v2366
        %v3658 = vunpack.c.h.b16 %v2366
        %v3659 = vunpack.c.l.b16 %v2367
        %v3660 = vunpack.c.h.b16 %v2367
        %v3661 = vunpack.c.l.b16 %v2368
        %v3662 = vunpack.c.h.b16 %v2368
        %v3663 = vunpack.c.l.b16 %v2369
        %v3664 = vunpack.c.h.b16 %v2369
        %v3665 = vunpack.c.l.b16 %v2370
        %v3666 = vunpack.c.h.b16 %v2370
        %v3667 = vunpack.c.l.b16 %v2371
        %v3668 = vunpack.c.h.b16 %v2371
        %v3669 = vunpack.c.l.b16 %v2372
        %v3670 = vunpack.c.h.b16 %v2372
        %v3671 = vunpack.c.l.b16 %v2373
        %v3672 = vunpack.c.h.b16 %v2373
        %v3673 = vunpack.c.l.b16 %v2374
        %v3674 = vunpack.c.h.b16 %v2374
        %v3675 = vunpack.c.l.b16 %v2375
        %v3676 = vunpack.c.h.b16 %v2375
        %v3677 = vunpack.c.l.b16 %v2376
        %v3678 = vunpack.c.h.b16 %v2376
        %v3679 = vunpack.c.l.b16 %v2377
        %v3680 = vunpack.c.h.b16 %v2377
        %v3681 = vunpack.c.l.b16 %v2378
        %v3682 = vunpack.c.h.b16 %v2378
        %v3683 = vunpack.c.l.b16 %v2379
        %v3684 = vunpack.c.h.b16 %v2379
        %v3685 = vunpack.c.l.b16 %v2380
        %v3686 = vunpack.c.h.b16 %v2380
        %v3687 = vunpack.c.l.b16 %v2381
        %v3688 = vunpack.c.h.b16 %v2381
        %v3689 = vunpack.c.l.b16 %v2382
        %v3690 = vunpack.c.h.b16 %v2382
        %v3691 = vunpack.c.l.b16 %v2383
        %v3692 = vunpack.c.h.b16 %v2383
        %v3693 = vunpack.c.l.b16 %v2384
        %v3694 = vunpack.c.h.b16 %v2384
        %v3695 = vunpack.c.l.b16 %v2385
        %v3696 = vunpack.c.h.b16 %v2385
        %v3697 = vunpack.c.l.b16 %v2386
        %v3698 = vunpack.c.h.b16 %v2386
        %v3699 = vunpack.c.l.b16 %v2387
        %v3700 = vunpack.c.h.b16 %v2387
        %v3701 = vunpack.c.l.b16 %v2388
        %v3702 = vunpack.c.h.b16 %v2388
        %v3703 = vunpack.c.l.b16 %v2389
        %v3704 = vunpack.c.h.b16 %v2389
        %v3705 = vunpack.c.l.b16 %v2390
        %v3706 = vunpack.c.h.b16 %v2390
        %v3707 = vunpack.c.l.b16 %v2391
        %v3708 = vunpack.c.h.b16 %v2391
        %v3709 = vunpack.c.l.b16 %v2392
        %v3710 = vunpack.c.h.b16 %v2392
        %v3711 = vunpack.c.l.b16 %v2393
        %v3712 = vunpack.c.h.b16 %v2393
        %v3713 = vunpack.c.l.b16 %v2394
        %v3714 = vunpack.c.h.b16 %v2394
        %v3715 = vunpack.c.l.b16 %v2395
        %v3716 = vunpack.c.h.b16 %v2395
        %v3717 = vunpack.c.l.b16 %v2396
        %v3718 = vunpack.c.h.b16 %v2396
        %v3719 = vunpack.c.l.b16 %v2397
        %v3720 = vunpack.c.h.b16 %v2397
        %v3721 = vunpack.c.l.b16 %v2398
        %v3722 = vunpack.c.h.b16 %v2398
        %v3723 = vunpack.c.l.b16 %v2399
        %v3724 = vunpack.c.h.b16 %v2399
        %v3725 = vunpack.c.l.b16 %v2400
        %v3726 = vunpack.c.h.b16 %v2400
        %v3727 = vunpack.c.l.b16 %v2401
        %v3728 = vunpack.c.h.b16 %v2401
        %v3729 = vunpack.c.l.b16 %v2402
        %v3730 = vunpack.c.h.b16 %v2402
        %v3731 = vunpack.c.l.b16 %v2403
        %v3732 = vunpack.c.h.b16 %v2403
        %v3733 = vunpack.c.l.b16 %v2404
        %v3734 = vunpack.c.h.b16 %v2404
        %v3735 = vunpack.c.l.b16 %v2405
        %v3736 = vunpack.c.h.b16 %v2405
        %v3737 = vunpack.c.l.b16 %v2406
        %v3738 = vunpack.c.h.b16 %v2406
        %v3739 = vunpack.c.l.b16 %v2407
        %v3740 = vunpack.c.h.b16 %v2407
        %v3741 = vunpack.c.l.b16 %v2408
        %v3742 = vunpack.c.h.b16 %v2408
        %v3743 = vunpack.c.l.b16 %v2409
        %v3744 = vunpack.c.h.b16 %v2409
        %v3745 = vunpack.c.l.b16 %v2410
        %v3746 = vunpack.c.h.b16 %v2410
        %v3747 = vunpack.c.l.b16 %v2411
        %v3748 = vunpack.c.h.b16 %v2411
        %v3749 = vunpack.c.l.b16 %v2412
        %v3750 = vunpack.c.h.b16 %v2412
        %v3751 = vunpack.c.l.b16 %v2413
        %v3752 = vunpack.c.h.b16 %v2413
        %v3753 = vunpack.c.l.b16 %v2414
        %v3754 = vunpack.c.h.b16 %v2414
        %v3755 = vunpack.c.l.b16 %v2415
        %v3756 = vunpack.c.h.b16 %v2415
        %v3757 = vunpack.c.l.b16 %v2416
        %v3758 = vunpack.c.h.b16 %v2416
        %v3759 = vunpack.c.l.b16 %v2417
        %v3760 = vunpack.c.h.b16 %v2417
        %v3761 = vunpack.c.l.b16 %v2418
        %v3762 = vunpack.c.h.b16 %v2418
        %v3763 = vunpack.c.l.b16 %v2419
        %v3764 = vunpack.c.h.b16 %v2419
        %v3765 = vunpack.c.l.b16 %v2420
        %v3766 = vunpack.c.h.b16 %v2420
        %v3767 = vunpack.c.l.b16 %v2421
        %v3768 = vunpack.c.h.b16 %v2421
        %v3769 = vunpack.c.l.b16 %v2422
        %v3770 = vunpack.c.h.b16 %v2422
        %v3771 = vunpack.c.l.b16 %v2423
        %v3772 = vunpack.c.h.b16 %v2423
        %v3773 = vunpack.c.l.b16 %v2424
        %v3774 = vunpack.c.h.b16 %v2424
        %v3775 = vunpack.c.l.b16 %v2425
        %v3776 = vunpack.c.h.b16 %v2425
        %v3777 = vunpack.c.l.b16 %v2426
        %v3778 = vunpack.c.h.b16 %v2426
        %v3779 = vunpack.c.l.b16 %v2427
        %v3780 = vunpack.c.h.b16 %v2427
        %v3781 = vunpack.c.l.b16 %v2428
        %v3782 = vunpack.c.h.b16 %v2428
        %v3783 = vunpack.c.l.b16 %v2429
        %v3784 = vunpack.c.h.b16 %v2429
        %v3785 = vunpack.c.l.b16 %v2430
        %v3786 = vunpack.c.h.b16 %v2430
        %v3787 = vunpack.c.l.b16 %v2431
        %v3788 = vunpack.c.h.b16 %v2431
        %v3789 = vunpack.c.l.b16 %v2432
        %v3790 = vunpack.c.h.b16 %v2432
        %v3791 = vunpack.c.l.b16 %v2433
        %v3792 = vunpack.c.h.b16 %v2433
        %v3793 = vunpack.c.l.b16 %v2434
        %v3794 = vunpack.c.h.b16 %v2434
        %v3795 = vunpack.c.l.b16 %v2435
        %v3796 = vunpack.c.h.b16 %v2435
        %v3797 = vunpack.c.l.b16 %v2436
        %v3798 = vunpack.c.h.b16 %v2436
        %v3799 = vunpack.c.l.b16 %v2437
        %v3800 = vunpack.c.h.b16 %v2437
        %v3801 = vunpack.c.l.b16 %v2438
        %v3802 = vunpack.c.h.b16 %v2438
        %v3803 = vunpack.c.l.b16 %v2439
        %v3804 = vunpack.c.h.b16 %v2439
        %v3805 = vunpack.c.l.b16 %v2440
        %v3806 = vunpack.c.h.b16 %v2440
        %v3807 = vunpack.c.l.b16 %v2441
        %v3808 = vunpack.c.h.b16 %v2441
        %v3809 = vunpack.c.l.b16 %v2442
        %v3810 = vunpack.c.h.b16 %v2442
        %v3811 = vunpack.c.l.b16 %v2443
        %v3812 = vunpack.c.h.b16 %v2443
        %v3813 = vunpack.c.l.b16 %v2444
        %v3814 = vunpack.c.h.b16 %v2444
        %v3815 = vunpack.c.l.b16 %v2445
        %v3816 = vunpack.c.h.b16 %v2445
        %v3817 = vunpack.c.l.b16 %v2446
        %v3818 = vunpack.c.h.b16 %v2446
        %v3819 = vunpack.c.l.b16 %v2447
        %v3820 = vunpack.c.h.b16 %v2447
        %v3821 = vunpack.c.l.b16 %v2448
        %v3822 = vunpack.c.h.b16 %v2448
        %v3823 = vunpack.c.l.b16 %v2449
        %v3824 = vunpack.c.h.b16 %v2449
        %v3825 = vunpack.c.l.b16 %v2450
        %v3826 = vunpack.c.h.b16 %v2450
        %v3827 = vunpack.c.l.b16 %v2451
        %v3828 = vunpack.c.h.b16 %v2451
        %v3829 = vunpack.c.l.b16 %v2452
        %v3830 = vunpack.c.h.b16 %v2452
        %v3831 = vunpack.c.l.b16 %v2453
        %v3832 = vunpack.c.h.b16 %v2453
        %v3833 = vunpack.c.l.b16 %v2454
        %v3834 = vunpack.c.h.b16 %v2454
        %v3835 = vunpack.c.l.b16 %v2455
        %v3836 = vunpack.c.h.b16 %v2455
        %v3837 = vunpack.c.l.b16 %v2456
        %v3838 = vunpack.c.h.b16 %v2456
        %v3839 = vunpack.c.l.b16 %v2457
        %v3840 = vunpack.c.h.b16 %v2457
        %v3841 = vunpack.c.l.b16 %v2458
        %v3842 = vunpack.c.h.b16 %v2458
        %v3843 = vunpack.c.l.b16 %v2459
        %v3844 = vunpack.c.h.b16 %v2459
        %v3845 = vunpack.c.l.b16 %v2460
        %v3846 = vunpack.c.h.b16 %v2460
        %v3847 = vunpack.c.l.b16 %v2461
        %v3848 = vunpack.c.h.b16 %v2461
        %v3849 = vunpack.c.l.b16 %v2462
        %v3850 = vunpack.c.h.b16 %v2462
        %v3851 = vunpack.c.l.b16 %v2463
        %v3852 = vunpack.c.h.b16 %v2463
        %v3853 = vunpack.c.l.b16 %v2464
        %v3854 = vunpack.c.h.b16 %v2464
        %v3855 = vunpack.c.l.b16 %v2465
        %v3856 = vunpack.c.h.b16 %v2465
        %v3857 = vunpack.c.l.b16 %v2466
        %v3858 = vunpack.c.h.b16 %v2466
        %v3859 = vunpack.c.l.b16 %v2467
        %v3860 = vunpack.c.h.b16 %v2467
        %v3861 = vunpack.c.l.b16 %v2468
        %v3862 = vunpack.c.h.b16 %v2468
        %v3863 = vunpack.c.l.b16 %v2469
        %v3864 = vunpack.c.h.b16 %v2469
        %v3865 = vunpack.c.l.b16 %v2470
        %v3866 = vunpack.c.h.b16 %v2470
        %v3867 = vunpack.c.l.b16 %v2471
        %v3868 = vunpack.c.h.b16 %v2471
        %v3869 = vunpack.c.l.b16 %v2472
        %v3870 = vunpack.c.h.b16 %v2472
        %v3871 = vunpack.c.l.b16 %v2473
        %v3872 = vunpack.c.h.b16 %v2473
        %v3873 = vunpack.c.l.b16 %v2474
        %v3874 = vunpack.c.h.b16 %v2474
        %v3875 = vunpack.c.l.b16 %v2475
        %v3876 = vunpack.c.h.b16 %v2475
        %v3877 = vunpack.c.l.b16 %v2476
        %v3878 = vunpack.c.h.b16 %v2476
        %v3879 = vunpack.c.l.b16 %v2477
        %v3880 = vunpack.c.h.b16 %v2477
        %v3881 = vunpack.c.l.b16 %v2478
        %v3882 = vunpack.c.h.b16 %v2478
        %v3883 = vunpack.c.l.b16 %v2479
        %v3884 = vunpack.c.h.b16 %v2479
        %v3885 = vunpack.c.l.b16 %v2480
        %v3886 = vunpack.c.h.b16 %v2480
        %v3887 = vunpack.c.l.b16 %v2481
        %v3888 = vunpack.c.h.b16 %v2481
        %v3889 = vunpack.c.l.b16 %v2482
        %v3890 = vunpack.c.h.b16 %v2482
        %v3891 = vunpack.c.l.b16 %v2483
        %v3892 = vunpack.c.h.b16 %v2483
        %v3893 = vunpack.c.l.b16 %v2484
        %v3894 = vunpack.c.h.b16 %v2484
        %v3895 = vunpack.c.l.b16 %v2485
        %v3896 = vunpack.c.h.b16 %v2485
        %v3897 = vunpack.c.l.b16 %v2486
        %v3898 = vunpack.c.h.b16 %v2486
        %v3899 = vunpack.c.l.b16 %v2487
        %v3900 = vunpack.c.h.b16 %v2487
        %v3901 = vunpack.c.l.b16 %v2488
        %v3902 = vunpack.c.h.b16 %v2488
        %v3903 = vunpack.c.l.b16 %v2489
        %v3904 = vunpack.c.h.b16 %v2489
        %v3905 = vunpack.c.l.b16 %v2490
        %v3906 = vunpack.c.h.b16 %v2490
        %v3907 = vunpack.c.l.b16 %v2491
        %v3908 = vunpack.c.h.b16 %v2491
        %v3909 = vunpack.c.l.b16 %v2492
        %v3910 = vunpack.c.h.b16 %v2492
        %v3911 = vunpack.c.l.b16 %v2493
        %v3912 = vunpack.c.h.b16 %v2493
        %v3913 = vunpack.c.l.b16 %v2494
        %v3914 = vunpack.c.h.b16 %v2494
        %v3915 = vunpack.c.l.b16 %v2495
        %v3916 = vunpack.c.h.b16 %v2495
        %v3917 = vunpack.c.l.b16 %v2496
        %v3918 = vunpack.c.h.b16 %v2496
        %v3919 = vunpack.c.l.b16 %v2497
        %v3920 = vunpack.c.h.b16 %v2497
        %v3921 = vunpack.c.l.b16 %v2498
        %v3922 = vunpack.c.h.b16 %v2498
        %v3923 = vunpack.c.l.b16 %v2499
        %v3924 = vunpack.c.h.b16 %v2499
        %v3925 = vunpack.c.l.b16 %v2500
        %v3926 = vunpack.c.h.b16 %v2500
        %v3927 = vunpack.c.l.b16 %v2501
        %v3928 = vunpack.c.h.b16 %v2501
        %v3929 = vunpack.c.l.b16 %v2502
        %v3930 = vunpack.c.h.b16 %v2502
        %v3931 = vunpack.c.l.b16 %v2503
        %v3932 = vunpack.c.h.b16 %v2503
        %v3933 = vunpack.c.l.b16 %v2504
        %v3934 = vunpack.c.h.b16 %v2504
        %v3935 = vunpack.c.l.b16 %v2505
        %v3936 = vunpack.c.h.b16 %v2505
        %v3937 = vunpack.c.l.b16 %v2506
        %v3938 = vunpack.c.h.b16 %v2506
        %v3939 = vunpack.c.l.b16 %v2507
        %v3940 = vunpack.c.h.b16 %v2507
        %v3941 = vunpack.c.l.b16 %v2508
        %v3942 = vunpack.c.h.b16 %v2508
        %v3943 = vunpack.c.l.b16 %v2509
        %v3944 = vunpack.c.h.b16 %v2509
        %v3945 = vunpack.c.l.b16 %v2510
        %v3946 = vunpack.c.h.b16 %v2510
        %v3947 = vunpack.c.l.b16 %v2511
        %v3948 = vunpack.c.h.b16 %v2511
        %v3949 = vunpack.c.l.b16 %v2512
        %v3950 = vunpack.c.h.b16 %v2512
        %v3951 = vunpack.c.l.b16 %v2513
        %v3952 = vunpack.c.h.b16 %v2513
        %v3953 = vunpack.c.l.b16 %v2514
        %v3954 = vunpack.c.h.b16 %v2514
        %v3955 = vunpack.c.l.b16 %v2515
        %v3956 = vunpack.c.h.b16 %v2515
        %v3957 = vunpack.c.l.b16 %v2516
        %v3958 = vunpack.c.h.b16 %v2516
        %v3959 = vunpack.c.l.b16 %v2517
        %v3960 = vunpack.c.h.b16 %v2517
        %v3961 = vunpack.c.l.b16 %v2518
        %v3962 = vunpack.c.h.b16 %v2518
        %v3963 = vunpack.c.l.b16 %v2519
        %v3964 = vunpack.c.h.b16 %v2519
        %v3965 = vunpack.c.l.b16 %v2520
        %v3966 = vunpack.c.h.b16 %v2520
        %v3967 = vunpack.c.l.b16 %v2521
        %v3968 = vunpack.c.h.b16 %v2521
        %v3969 = vunpack.c.l.b16 %v2522
        %v3970 = vunpack.c.h.b16 %v2522
        %v3971 = vunpack.c.l.b16 %v2523
        %v3972 = vunpack.c.h.b16 %v2523
        %v3973 = vunpack.c.l.b16 %v2524
        %v3974 = vunpack.c.h.b16 %v2524
        %v3975 = vunpack.c.l.b16 %v2525
        %v3976 = vunpack.c.h.b16 %v2525
        %v3977 = vunpack.c.l.b16 %v2526
        %v3978 = vunpack.c.h.b16 %v2526
        %v3979 = vunpack.c.l.b16 %v2527
        %v3980 = vunpack.c.h.b16 %v2527
        %v3981 = vunpack.c.l.b16 %v2528
        %v3982 = vunpack.c.h.b16 %v2528
        %v3983 = vunpack.c.l.b16 %v2529
        %v3984 = vunpack.c.h.b16 %v2529
        %v3985 = vunpack.c.l.b16 %v2530
        %v3986 = vunpack.c.h.b16 %v2530
        %v3987 = vunpack.c.l.b16 %v2531
        %v3988 = vunpack.c.h.b16 %v2531
        %v3989 = vunpack.c.l.b16 %v2532
        %v3990 = vunpack.c.h.b16 %v2532
        %v3991 = vunpack.c.l.b16 %v2533
        %v3992 = vunpack.c.h.b16 %v2533
        %v3993 = vunpack.c.l.b16 %v2534
        %v3994 = vunpack.c.h.b16 %v2534
        %v3995 = vunpack.c.l.b16 %v2535
        %v3996 = vunpack.c.h.b16 %v2535
        %v3997 = vunpack.c.l.b16 %v2536
        %v3998 = vunpack.c.h.b16 %v2536
        %v3999 = vunpack.c.l.b16 %v2537
        %v4000 = vunpack.c.h.b16 %v2537
        %v4001 = vunpack.c.l.b16 %v2538
        %v4002 = vunpack.c.h.b16 %v2538
        %v4003 = vunpack.c.l.b16 %v2539
        %v4004 = vunpack.c.h.b16 %v2539
        %v4005 = vunpack.c.l.b16 %v2540
        %v4006 = vunpack.c.h.b16 %v2540
        %v4007 = vunpack.c.l.b16 %v2541
        %v4008 = vunpack.c.h.b16 %v2541
        %v4009 = vunpack.c.l.b16 %v2542
        %v4010 = vunpack.c.h.b16 %v2542
        %v4011 = vunpack.c.l.b16 %v2543
        %v4012 = vunpack.c.h.b16 %v2543
        %v4013 = vunpack.c.l.b16 %v2544
        %v4014 = vunpack.c.h.b16 %v2544
        %v4015 = vunpack.c.l.b16 %v2545
        %v4016 = vunpack.c.h.b16 %v2545
        %v4017 = vunpack.c.l.b16 %v2546
        %v4018 = vunpack.c.h.b16 %v2546
        %v4019 = vunpack.c.l.b16 %v2547
        %v4020 = vunpack.c.h.b16 %v2547
        %v4021 = vunpack.c.l.b16 %v2548
        %v4022 = vunpack.c.h.b16 %v2548
        %v4023 = vunpack.c.l.b16 %v2549
        %v4024 = vunpack.c.h.b16 %v2549
        %v4025 = vunpack.c.l.b16 %v2550
        %v4026 = vunpack.c.h.b16 %v2550
        %v4027 = vunpack.c.l.b16 %v2551
        %v4028 = vunpack.c.h.b16 %v2551
        %v4029 = vunpack.c.l.b16 %v2552
        %v4030 = vunpack.c.h.b16 %v2552
        %v4031 = vunpack.c.l.b16 %v2553
        %v4032 = vunpack.c.h.b16 %v2553
        %v4033 = vunpack.c.l.b16 %v2554
        %v4034 = vunpack.c.h.b16 %v2554
        %v4035 = vunpack.c.l.b16 %v2555
        %v4036 = vunpack.c.h.b16 %v2555
        %v4037 = vunpack.c.l.b16 %v2556
        %v4038 = vunpack.c.h.b16 %v2556
        %v4039 = vunpack.c.l.b16 %v2557
        %v4040 = vunpack.c.h.b16 %v2557
        %v4041 = vunpack.c.l.b16 %v2558
        %v4042 = vunpack.c.h.b16 %v2558
        %v4043 = vunpack.c.l.b16 %v2559
        %v4044 = vunpack.c.h.b16 %v2559
        %v4045 = vunpack.c.l.b16 %v2560
        %v4046 = vunpack.c.h.b16 %v2560
        %v4047 = vunpack.c.l.b16 %v2561
        %v4048 = vunpack.c.h.b16 %v2561
        %v4049 = vunpack.c.l.b16 %v2562
        %v4050 = vunpack.c.h.b16 %v2562
        %v4051 = vunpack.c.l.b16 %v2563
        %v4052 = vunpack.c.h.b16 %v2563
        %v4053 = vunpack.c.l.b16 %v2564
        %v4054 = vunpack.c.h.b16 %v2564
        %v4055 = vunpack.c.l.b16 %v2565
        %v4056 = vunpack.c.h.b16 %v2565
        %v4057 = vunpack.c.l.b16 %v2566
        %v4058 = vunpack.c.h.b16 %v2566
        %v4059 = vunpack.c.l.b16 %v2567
        %v4060 = vunpack.c.h.b16 %v2567
        %v4061 = vunpack.c.l.b16 %v2568
        %v4062 = vunpack.c.h.b16 %v2568
        %v4063 = vunpack.c.l.b16 %v2569
        %v4064 = vunpack.c.h.b16 %v2569
        %v4065 = vunpack.c.l.b16 %v2570
        %v4066 = vunpack.c.h.b16 %v2570
        %v4067 = vunpack.c.l.b16 %v2571
        %v4068 = vunpack.c.h.b16 %v2571
        %v4069 = vunpack.c.l.b16 %v2572
        %v4070 = vunpack.c.h.b16 %v2572
        %v4071 = vunpack.c.l.b16 %v2573
        %v4072 = vunpack.c.h.b16 %v2573
        %v4073 = vunpack.c.l.b16 %v2574
        %v4074 = vunpack.c.h.b16 %v2574
        %v4075 = vunpack.c.l.b16 %v2575
        %v4076 = vunpack.c.h.b16 %v2575
        %v4077 = vunpack.c.l.b16 %v2576
        %v4078 = vunpack.c.h.b16 %v2576
        %v4079 = vunpack.c.l.b16 %v2577
        %v4080 = vunpack.c.h.b16 %v2577
        %v4081 = vunpack.c.l.b16 %v2578
        %v4082 = vunpack.c.h.b16 %v2578
        %v4083 = vunpack.c.l.b16 %v2579
        %v4084 = vunpack.c.h.b16 %v2579
        %v4085 = vunpack.c.l.b16 %v2580
        %v4086 = vunpack.c.h.b16 %v2580
        %v4087 = vunpack.c.l.b16 %v2581
        %v4088 = vunpack.c.h.b16 %v2581
        %v4089 = vunpack.c.l.b16 %v2582
        %v4090 = vunpack.c.h.b16 %v2582
        %v4091 = vunpack.c.l.b16 %v2583
        %v4092 = vunpack.c.h.b16 %v2583
        %v4093 = vunpack.c.l.b16 %v2584
        %v4094 = vunpack.c.h.b16 %v2584
        %v4095 = vunpack.c.l.b16 %v2585
        %v4096 = vunpack.c.h.b16 %v2585
        %v4097 = vunpack.c.l.b16 %v2586
        %v4098 = vunpack.c.h.b16 %v2586
        %v4099 = vunpack.c.l.b16 %v2587
        %v4100 = vunpack.c.h.b16 %v2587
        %v4101 = vunpack.c.l.b16 %v2588
        %v4102 = vunpack.c.h.b16 %v2588
        %v4103 = vunpack.c.l.b16 %v2589
        %v4104 = vunpack.c.h.b16 %v2589
        %v4105 = vunpack.c.l.b16 %v2590
        %v4106 = vunpack.c.h.b16 %v2590
        %v4107 = vunpack.c.l.b16 %v2591
        %v4108 = vunpack.c.h.b16 %v2591
        %v4109 = vunpack.c.l.b16 %v2592
        %v4110 = vunpack.c.h.b16 %v2592
        %v4111 = vunpack.c.l.b16 %v2593
        %v4112 = vunpack.c.h.b16 %v2593
        %v4113 = vunpack.c.l.b16 %v2594
        %v4114 = vunpack.c.h.b16 %v2594
        %v4115 = vunpack.c.l.b16 %v2595
        %v4116 = vunpack.c.h.b16 %v2595
        %v4117 = vunpack.c.l.b16 %v2596
        %v4118 = vunpack.c.h.b16 %v2596
        %v4119 = vunpack.c.l.b16 %v2597
        %v4120 = vunpack.c.h.b16 %v2597
        %v4121 = vunpack.c.l.b16 %v2598
        %v4122 = vunpack.c.h.b16 %v2598
        %v4123 = vunpack.c.l.b16 %v2599
        %v4124 = vunpack.c.h.b16 %v2599
        %v4125 = vunpack.c.l.b16 %v2600
        %v4126 = vunpack.c.h.b16 %v2600
        %v4127 = vunpack.c.l.b16 %v2601
        %v4128 = vunpack.c.h.b16 %v2601
        %v4129 = vunpack.c.l.b16 %v2602
        %v4130 = vunpack.c.h.b16 %v2602
        %v4131 = vunpack.c.l.b16 %v2603
        %v4132 = vunpack.c.h.b16 %v2603
        %v4133 = vunpack.c.l.b16 %v2604
        %v4134 = vunpack.c.h.b16 %v2604
        %v4135 = vunpack.c.l.b16 %v2605
        %v4136 = vunpack.c.h.b16 %v2605
        %v4137 = vunpack.c.l.b16 %v2606
        %v4138 = vunpack.c.h.b16 %v2606
        %v4139 = vunpack.c.l.b16 %v2607
        %v4140 = vunpack.c.h.b16 %v2607
        %v4141 = vunpack.c.l.b16 %v2608
        %v4142 = vunpack.c.h.b16 %v2608
        %v4143 = vunpack.c.l.b16 %v2609
        %v4144 = vunpack.c.h.b16 %v2609
        %v4145 = vunpack.c.l.b16 %v2610
        %v4146 = vunpack.c.h.b16 %v2610
        %v4147 = vpack.c.b16 %v3131, %v3123
        %v4148 = vpack.c.b16 %v3132, %v3124
        %v4149 = vpack.c.b16 %v3133, %v3125
        %v4150 = vpack.c.b16 %v3134, %v3126
        %v4151 = vpack.c.b16 %v3135, %v3127
        %v4152 = vpack.c.b16 %v3136, %v3128
        %v4153 = vpack.c.b16 %v3137, %v3129
        %v4154 = vpack.c.b16 %v3138, %v3130
        %v4155 = vpack.c.b16 %v3147, %v3139
        %v4156 = vpack.c.b16 %v3148, %v3140
        %v4157 = vpack.c.b16 %v3149, %v3141
        %v4158 = vpack.c.b16 %v3150, %v3142
        %v4159 = vpack.c.b16 %v3151, %v3143
        %v4160 = vpack.c.b16 %v3152, %v3144
        %v4161 = vpack.c.b16 %v3153, %v3145
        %v4162 = vpack.c.b16 %v3154, %v3146
        %v4163 = vpack.c.b16 %v3163, %v3155
        %v4164 = vpack.c.b16 %v3164, %v3156
        %v4165 = vpack.c.b16 %v3165, %v3157
        %v4166 = vpack.c.b16 %v3166, %v3158
        %v4167 = vpack.c.b16 %v3167, %v3159
        %v4168 = vpack.c.b16 %v3168, %v3160
        %v4169 = vpack.c.b16 %v3169, %v3161
        %v4170 = vpack.c.b16 %v3170, %v3162
        %v4171 = vpack.c.b16 %v3179, %v3171
        %v4172 = vpack.c.b16 %v3180, %v3172
        %v4173 = vpack.c.b16 %v3181, %v3173
        %v4174 = vpack.c.b16 %v3182, %v3174
        %v4175 = vpack.c.b16 %v3183, %v3175
        %v4176 = vpack.c.b16 %v3184, %v3176
        %v4177 = vpack.c.b16 %v3185, %v3177
        %v4178 = vpack.c.b16 %v3186, %v3178
        %v4179 = vpack.c.b16 %v3195, %v3187
        %v4180 = vpack.c.b16 %v3196, %v3188
        %v4181 = vpack.c.b16 %v3197, %v3189
        %v4182 = vpack.c.b16 %v3198, %v3190
        %v4183 = vpack.c.b16 %v3199, %v3191
        %v4184 = vpack.c.b16 %v3200, %v3192
        %v4185 = vpack.c.b16 %v3201, %v3193
        %v4186 = vpack.c.b16 %v3202, %v3194
        %v4187 = vpack.c.b16 %v3211, %v3203
        %v4188 = vpack.c.b16 %v3212, %v3204
        %v4189 = vpack.c.b16 %v3213, %v3205
        %v4190 = vpack.c.b16 %v3214, %v3206
        %v4191 = vpack.c.b16 %v3215, %v3207
        %v4192 = vpack.c.b16 %v3216, %v3208
        %v4193 = vpack.c.b16 %v3217, %v3209
        %v4194 = vpack.c.b16 %v3218, %v3210
        %v4195 = vpack.c.b16 %v3227, %v3219
        %v4196 = vpack.c.b16 %v3228, %v3220
        %v4197 = vpack.c.b16 %v3229, %v3221
        %v4198 = vpack.c.b16 %v3230, %v3222
        %v4199 = vpack.c.b16 %v3231, %v3223
        %v4200 = vpack.c.b16 %v3232, %v3224
        %v4201 = vpack.c.b16 %v3233, %v3225
        %v4202 = vpack.c.b16 %v3234, %v3226
        %v4203 = vpack.c.b16 %v3243, %v3235
        %v4204 = vpack.c.b16 %v3244, %v3236
        %v4205 = vpack.c.b16 %v3245, %v3237
        %v4206 = vpack.c.b16 %v3246, %v3238
        %v4207 = vpack.c.b16 %v3247, %v3239
        %v4208 = vpack.c.b16 %v3248, %v3240
        %v4209 = vpack.c.b16 %v3249, %v3241
        %v4210 = vpack.c.b16 %v3250, %v3242
        %v4211 = vpack.c.b16 %v3259, %v3251
        %v4212 = vpack.c.b16 %v3260, %v3252
        %v4213 = vpack.c.b16 %v3261, %v3253
        %v4214 = vpack.c.b16 %v3262, %v3254
        %v4215 = vpack.c.b16 %v3263, %v3255
        %v4216 = vpack.c.b16 %v3264, %v3256
        %v4217 = vpack.c.b16 %v3265, %v3257
        %v4218 = vpack.c.b16 %v3266, %v3258
        %v4219 = vpack.c.b16 %v3275, %v3267
        %v4220 = vpack.c.b16 %v3276, %v3268
        %v4221 = vpack.c.b16 %v3277, %v3269
        %v4222 = vpack.c.b16 %v3278, %v3270
        %v4223 = vpack.c.b16 %v3279, %v3271
        %v4224 = vpack.c.b16 %v3280, %v3272
        %v4225 = vpack.c.b16 %v3281, %v3273
        %v4226 = vpack.c.b16 %v3282, %v3274
        %v4227 = vpack.c.b16 %v3291, %v3283
        %v4228 = vpack.c.b16 %v3292, %v3284
        %v4229 = vpack.c.b16 %v3293, %v3285
        %v4230 = vpack.c.b16 %v3294, %v3286
        %v4231 = vpack.c.b16 %v3295, %v3287
        %v4232 = vpack.c.b16 %v3296, %v3288
        %v4233 = vpack.c.b16 %v3297, %v3289
        %v4234 = vpack.c.b16 %v3298, %v3290
        %v4235 = vpack.c.b16 %v3307, %v3299
        %v4236 = vpack.c.b16 %v3308, %v3300
        %v4237 = vpack.c.b16 %v3309, %v3301
        %v4238 = vpack.c.b16 %v3310, %v3302
        %v4239 = vpack.c.b16 %v3311, %v3303
        %v4240 = vpack.c.b16 %v3312, %v3304
        %v4241 = vpack.c.b16 %v3313, %v3305
        %v4242 = vpack.c.b16 %v3314, %v3306
        %v4243 = vpack.c.b16 %v3323, %v3315
        %v4244 = vpack.c.b16 %v3324, %v3316
        %v4245 = vpack.c.b16 %v3325, %v3317
        %v4246 = vpack.c.b16 %v3326, %v3318
        %v4247 = vpack.c.b16 %v3327, %v3319
        %v4248 = vpack.c.b16 %v3328, %v3320
        %v4249 = vpack.c.b16 %v3329, %v3321
        %v4250 = vpack.c.b16 %v3330, %v3322
        %v4251 = vpack.c.b16 %v3339, %v3331
        %v4252 = vpack.c.b16 %v3340, %v3332
        %v4253 = vpack.c.b16 %v3341, %v3333
        %v4254 = vpack.c.b16 %v3342, %v3334
        %v4255 = vpack.c.b16 %v3343, %v3335
        %v4256 = vpack.c.b16 %v3344, %v3336
        %v4257 = vpack.c.b16 %v3345, %v3337
        %v4258 = vpack.c.b16 %v3346, %v3338
        %v4259 = vpack.c.b16 %v3355, %v3347
        %v4260 = vpack.c.b16 %v3356, %v3348
        %v4261 = vpack.c.b16 %v3357, %v3349
        %v4262 = vpack.c.b16 %v3358, %v3350
        %v4263 = vpack.c.b16 %v3359, %v3351
        %v4264 = vpack.c.b16 %v3360, %v3352
        %v4265 = vpack.c.b16 %v3361, %v3353
        %v4266 = vpack.c.b16 %v3362, %v3354
        %v4267 = vpack.c.b16 %v3371, %v3363
        %v4268 = vpack.c.b16 %v3372, %v3364
        %v4269 = vpack.c.b16 %v3373, %v3365
        %v4270 = vpack.c.b16 %v3374, %v3366
        %v4271 = vpack.c.b16 %v3375, %v3367
        %v4272 = vpack.c.b16 %v3376, %v3368
        %v4273 = vpack.c.b16 %v3377, %v3369
        %v4274 = vpack.c.b16 %v3378, %v3370
        %v4275 = vpack.c.b16 %v3387, %v3379
        %v4276 = vpack.c.b16 %v3388, %v3380
        %v4277 = vpack.c.b16 %v3389, %v3381
        %v4278 = vpack.c.b16 %v3390, %v3382
        %v4279 = vpack.c.b16 %v3391, %v3383
        %v4280 = vpack.c.b16 %v3392, %v3384
        %v4281 = vpack.c.b16 %v3393, %v3385
        %v4282 = vpack.c.b16 %v3394, %v3386
        %v4283 = vpack.c.b16 %v3403, %v3395
        %v4284 = vpack.c.b16 %v3404, %v3396
        %v4285 = vpack.c.b16 %v3405, %v3397
        %v4286 = vpack.c.b16 %v3406, %v3398
        %v4287 = vpack.c.b16 %v3407, %v3399
        %v4288 = vpack.c.b16 %v3408, %v3400
        %v4289 = vpack.c.b16 %v3409, %v3401
        %v4290 = vpack.c.b16 %v3410, %v3402
        %v4291 = vpack.c.b16 %v3419, %v3411
        %v4292 = vpack.c.b16 %v3420, %v3412
        %v4293 = vpack.c.b16 %v3421, %v3413
        %v4294 = vpack.c.b16 %v3422, %v3414
        %v4295 = vpack.c.b16 %v3423, %v3415
        %v4296 = vpack.c.b16 %v3424, %v3416
        %v4297 = vpack.c.b16 %v3425, %v3417
        %v4298 = vpack.c.b16 %v3426, %v3418
        %v4299 = vpack.c.b16 %v3435, %v3427
        %v4300 = vpack.c.b16 %v3436, %v3428
        %v4301 = vpack.c.b16 %v3437, %v3429
        %v4302 = vpack.c.b16 %v3438, %v3430
        %v4303 = vpack.c.b16 %v3439, %v3431
        %v4304 = vpack.c.b16 %v3440, %v3432
        %v4305 = vpack.c.b16 %v3441, %v3433
        %v4306 = vpack.c.b16 %v3442, %v3434
        %v4307 = vpack.c.b16 %v3451, %v3443
        %v4308 = vpack.c.b16 %v3452, %v3444
        %v4309 = vpack.c.b16 %v3453, %v3445
        %v4310 = vpack.c.b16 %v3454, %v3446
        %v4311 = vpack.c.b16 %v3455, %v3447
        %v4312 = vpack.c.b16 %v3456, %v3448
        %v4313 = vpack.c.b16 %v3457, %v3449
        %v4314 = vpack.c.b16 %v3458, %v3450
        %v4315 = vpack.c.b16 %v3467, %v3459
        %v4316 = vpack.c.b16 %v3468, %v3460
        %v4317 = vpack.c.b16 %v3469, %v3461
        %v4318 = vpack.c.b16 %v3470, %v3462
        %v4319 = vpack.c.b16 %v3471, %v3463
        %v4320 = vpack.c.b16 %v3472, %v3464
        %v4321 = vpack.c.b16 %v3473, %v3465
        %v4322 = vpack.c.b16 %v3474, %v3466
        %v4323 = vpack.c.b16 %v3483, %v3475
        %v4324 = vpack.c.b16 %v3484, %v3476
        %v4325 = vpack.c.b16 %v3485, %v3477
        %v4326 = vpack.c.b16 %v3486, %v3478
        %v4327 = vpack.c.b16 %v3487, %v3479
        %v4328 = vpack.c.b16 %v3488, %v3480
        %v4329 = vpack.c.b16 %v3489, %v3481
        %v4330 = vpack.c.b16 %v3490, %v3482
        %v4331 = vpack.c.b16 %v3499, %v3491
        %v4332 = vpack.c.b16 %v3500, %v3492
        %v4333 = vpack.c.b16 %v3501, %v3493
        %v4334 = vpack.c.b16 %v3502, %v3494
        %v4335 = vpack.c.b16 %v3503, %v3495
        %v4336 = vpack.c.b16 %v3504, %v3496
        %v4337 = vpack.c.b16 %v3505, %v3497
        %v4338 = vpack.c.b16 %v3506, %v3498
        %v4339 = vpack.c.b16 %v3515, %v3507
        %v4340 = vpack.c.b16 %v3516, %v3508
        %v4341 = vpack.c.b16 %v3517, %v3509
        %v4342 = vpack.c.b16 %v3518, %v3510
        %v4343 = vpack.c.b16 %v3519, %v3511
        %v4344 = vpack.c.b16 %v3520, %v3512
        %v4345 = vpack.c.b16 %v3521, %v3513
        %v4346 = vpack.c.b16 %v3522, %v3514
        %v4347 = vpack.c.b16 %v3531, %v3523
        %v4348 = vpack.c.b16 %v3532, %v3524
        %v4349 = vpack.c.b16 %v3533, %v3525
        %v4350 = vpack.c.b16 %v3534, %v3526
        %v4351 = vpack.c.b16 %v3535, %v3527
        %v4352 = vpack.c.b16 %v3536, %v3528
        %v4353 = vpack.c.b16 %v3537, %v3529
        %v4354 = vpack.c.b16 %v3538, %v3530
        %v4355 = vpack.c.b16 %v3547, %v3539
        %v4356 = vpack.c.b16 %v3548, %v3540
        %v4357 = vpack.c.b16 %v3549, %v3541
        %v4358 = vpack.c.b16 %v3550, %v3542
        %v4359 = vpack.c.b16 %v3551, %v3543
        %v4360 = vpack.c.b16 %v3552, %v3544
        %v4361 = vpack.c.b16 %v3553, %v3545
        %v4362 = vpack.c.b16 %v3554, %v3546
        %v4363 = vpack.c.b16 %v3563, %v3555
        %v4364 = vpack.c.b16 %v3564, %v3556
        %v4365 = vpack.c.b16 %v3565, %v3557
        %v4366 = vpack.c.b16 %v3566, %v3558
        %v4367 = vpack.c.b16 %v3567, %v3559
        %v4368 = vpack.c.b16 %v3568, %v3560
        %v4369 = vpack.c.b16 %v3569, %v3561
        %v4370 = vpack.c.b16 %v3570, %v3562
        %v4371 = vpack.c.b16 %v3579, %v3571
        %v4372 = vpack.c.b16 %v3580, %v3572
        %v4373 = vpack.c.b16 %v3581, %v3573
        %v4374 = vpack.c.b16 %v3582, %v3574
        %v4375 = vpack.c.b16 %v3583, %v3575
        %v4376 = vpack.c.b16 %v3584, %v3576
        %v4377 = vpack.c.b16 %v3585, %v3577
        %v4378 = vpack.c.b16 %v3586, %v3578
        %v4379 = vpack.c.b16 %v3595, %v3587
        %v4380 = vpack.c.b16 %v3596, %v3588
        %v4381 = vpack.c.b16 %v3597, %v3589
        %v4382 = vpack.c.b16 %v3598, %v3590
        %v4383 = vpack.c.b16 %v3599, %v3591
        %v4384 = vpack.c.b16 %v3600, %v3592
        %v4385 = vpack.c.b16 %v3601, %v3593
        %v4386 = vpack.c.b16 %v3602, %v3594
        %v4387 = vpack.c.b16 %v3611, %v3603
        %v4388 = vpack.c.b16 %v3612, %v3604
        %v4389 = vpack.c.b16 %v3613, %v3605
        %v4390 = vpack.c.b16 %v3614, %v3606
        %v4391 = vpack.c.b16 %v3615, %v3607
        %v4392 = vpack.c.b16 %v3616, %v3608
        %v4393 = vpack.c.b16 %v3617, %v3609
        %v4394 = vpack.c.b16 %v3618, %v3610
        %v4395 = vpack.c.b16 %v3627, %v3619
        %v4396 = vpack.c.b16 %v3628, %v3620
        %v4397 = vpack.c.b16 %v3629, %v3621
        %v4398 = vpack.c.b16 %v3630, %v3622
        %v4399 = vpack.c.b16 %v3631, %v3623
        %v4400 = vpack.c.b16 %v3632, %v3624
        %v4401 = vpack.c.b16 %v3633, %v3625
        %v4402 = vpack.c.b16 %v3634, %v3626
        %v4403 = vpack.c.b16 %v3643, %v3635
        %v4404 = vpack.c.b16 %v3644, %v3636
        %v4405 = vpack.c.b16 %v3645, %v3637
        %v4406 = vpack.c.b16 %v3646, %v3638
        %v4407 = vpack.c.b16 %v3647, %v3639
        %v4408 = vpack.c.b16 %v3648, %v3640
        %v4409 = vpack.c.b16 %v3649, %v3641
        %v4410 = vpack.c.b16 %v3650, %v3642
        %v4411 = vpack.c.b16 %v3659, %v3651
        %v4412 = vpack.c.b16 %v3660, %v3652
        %v4413 = vpack.c.b16 %v3661, %v3653
        %v4414 = vpack.c.b16 %v3662, %v3654
        %v4415 = vpack.c.b16 %v3663, %v3655
        %v4416 = vpack.c.b16 %v3664, %v3656
        %v4417 = vpack.c.b16 %v3665, %v3657
        %v4418 = vpack.c.b16 %v3666, %v3658
        %v4419 = vpack.c.b16 %v3675, %v3667
        %v4420 = vpack.c.b16 %v3676, %v3668
        %v4421 = vpack.c.b16 %v3677, %v3669
        %v4422 = vpack.c.b16 %v3678, %v3670
        %v4423 = vpack.c.b16 %v3679, %v3671
        %v4424 = vpack.c.b16 %v3680, %v3672
        %v4425 = vpack.c.b16 %v3681, %v3673
        %v4426 = vpack.c.b16 %v3682, %v3674
        %v4427 = vpack.c.b16 %v3691, %v3683
        %v4428 = vpack.c.b16 %v3692, %v3684
        %v4429 = vpack.c.b16 %v3693, %v3685
        %v4430 = vpack.c.b16 %v3694, %v3686
        %v4431 = vpack.c.b16 %v3695, %v3687
        %v4432 = vpack.c.b16 %v3696, %v3688
        %v4433 = vpack.c.b16 %v3697, %v3689
        %v4434 = vpack.c.b16 %v3698, %v3690
        %v4435 = vpack.c.b16 %v3707, %v3699
        %v4436 = vpack.c.b16 %v3708, %v3700
        %v4437 = vpack.c.b16 %v3709, %v3701
        %v4438 = vpack.c.b16 %v3710, %v3702
        %v4439 = vpack.c.b16 %v3711, %v3703
        %v4440 = vpack.c.b16 %v3712, %v3704
        %v4441 = vpack.c.b16 %v3713, %v3705
        %v4442 = vpack.c.b16 %v3714, %v3706
        %v4443 = vpack.c.b16 %v3723, %v3715
        %v4444 = vpack.c.b16 %v3724, %v3716
        %v4445 = vpack.c.b16 %v3725, %v3717
        %v4446 = vpack.c.b16 %v3726, %v3718
        %v4447 = vpack.c.b16 %v3727, %v3719
        %v4448 = vpack.c.b16 %v3728, %v3720
        %v4449 = vpack.c.b16 %v3729, %v3721
        %v4450 = vpack.c.b16 %v3730, %v3722
        %v4451 = vpack.c.b16 %v3739, %v3731
        %v4452 = vpack.c.b16 %v3740, %v3732
        %v4453 = vpack.c.b16 %v3741, %v3733
        %v4454 = vpack.c.b16 %v3742, %v3734
        %v4455 = vpack.c.b16 %v3743, %v3735
        %v4456 = vpack.c.b16 %v3744, %v3736
        %v4457 = vpack.c.b16 %v3745, %v3737
        %v4458 = vpack.c.b16 %v3746, %v3738
        %v4459 = vpack.c.b16 %v3755, %v3747
        %v4460 = vpack.c.b16 %v3756, %v3748
        %v4461 = vpack.c.b16 %v3757, %v3749
        %v4462 = vpack.c.b16 %v3758, %v3750
        %v4463 = vpack.c.b16 %v3759, %v3751
        %v4464 = vpack.c.b16 %v3760, %v3752
        %v4465 = vpack.c.b16 %v3761, %v3753
        %v4466 = vpack.c.b16 %v3762, %v3754
        %v4467 = vpack.c.b16 %v3771, %v3763
        %v4468 = vpack.c.b16 %v3772, %v3764
        %v4469 = vpack.c.b16 %v3773, %v3765
        %v4470 = vpack.c.b16 %v3774, %v3766
        %v4471 = vpack.c.b16 %v3775, %v3767
        %v4472 = vpack.c.b16 %v3776, %v3768
        %v4473 = vpack.c.b16 %v3777, %v3769
        %v4474 = vpack.c.b16 %v3778, %v3770
        %v4475 = vpack.c.b16 %v3787, %v3779
        %v4476 = vpack.c.b16 %v3788, %v3780
        %v4477 = vpack.c.b16 %v3789, %v3781
        %v4478 = vpack.c.b16 %v3790, %v3782
        %v4479 = vpack.c.b16 %v3791, %v3783
        %v4480 = vpack.c.b16 %v3792, %v3784
        %v4481 = vpack.c.b16 %v3793, %v3785
        %v4482 = vpack.c.b16 %v3794, %v3786
        %v4483 = vpack.c.b16 %v3803, %v3795
        %v4484 = vpack.c.b16 %v3804, %v3796
        %v4485 = vpack.c.b16 %v3805, %v3797
        %v4486 = vpack.c.b16 %v3806, %v3798
        %v4487 = vpack.c.b16 %v3807, %v3799
        %v4488 = vpack.c.b16 %v3808, %v3800
        %v4489 = vpack.c.b16 %v3809, %v3801
        %v4490 = vpack.c.b16 %v3810, %v3802
        %v4491 = vpack.c.b16 %v3819, %v3811
        %v4492 = vpack.c.b16 %v3820, %v3812
        %v4493 = vpack.c.b16 %v3821, %v3813
        %v4494 = vpack.c.b16 %v3822, %v3814
        %v4495 = vpack.c.b16 %v3823, %v3815
        %v4496 = vpack.c.b16 %v3824, %v3816
        %v4497 = vpack.c.b16 %v3825, %v3817
        %v4498 = vpack.c.b16 %v3826, %v3818
        %v4499 = vpack.c.b16 %v3835, %v3827
        %v4500 = vpack.c.b16 %v3836, %v3828
        %v4501 = vpack.c.b16 %v3837, %v3829
        %v4502 = vpack.c.b16 %v3838, %v3830
        %v4503 = vpack.c.b16 %v3839, %v3831
        %v4504 = vpack.c.b16 %v3840, %v3832
        %v4505 = vpack.c.b16 %v3841, %v3833
        %v4506 = vpack.c.b16 %v3842, %v3834
        %v4507 = vpack.c.b16 %v3851, %v3843
        %v4508 = vpack.c.b16 %v3852, %v3844
        %v4509 = vpack.c.b16 %v3853, %v3845
        %v4510 = vpack.c.b16 %v3854, %v3846
        %v4511 = vpack.c.b16 %v3855, %v3847
        %v4512 = vpack.c.b16 %v3856, %v3848
        %v4513 = vpack.c.b16 %v3857, %v3849
        %v4514 = vpack.c.b16 %v3858, %v3850
        %v4515 = vpack.c.b16 %v3867, %v3859
        %v4516 = vpack.c.b16 %v3868, %v3860
        %v4517 = vpack.c.b16 %v3869, %v3861
        %v4518 = vpack.c.b16 %v3870, %v3862
        %v4519 = vpack.c.b16 %v3871, %v3863
        %v4520 = vpack.c.b16 %v3872, %v3864
        %v4521 = vpack.c.b16 %v3873, %v3865
        %v4522 = vpack.c.b16 %v3874, %v3866
        %v4523 = vpack.c.b16 %v3883, %v3875
        %v4524 = vpack.c.b16 %v3884, %v3876
        %v4525 = vpack.c.b16 %v3885, %v3877
        %v4526 = vpack.c.b16 %v3886, %v3878
        %v4527 = vpack.c.b16 %v3887, %v3879
        %v4528 = vpack.c.b16 %v3888, %v3880
        %v4529 = vpack.c.b16 %v3889, %v3881
        %v4530 = vpack.c.b16 %v3890, %v3882
        %v4531 = vpack.c.b16 %v3899, %v3891
        %v4532 = vpack.c.b16 %v3900, %v3892
        %v4533 = vpack.c.b16 %v3901, %v3893
        %v4534 = vpack.c.b16 %v3902, %v3894
        %v4535 = vpack.c.b16 %v3903, %v3895
        %v4536 = vpack.c.b16 %v3904, %v3896
        %v4537 = vpack.c.b16 %v3905, %v3897
        %v4538 = vpack.c.b16 %v3906, %v3898
        %v4539 = vpack.c.b16 %v3915, %v3907
        %v4540 = vpack.c.b16 %v3916, %v3908
        %v4541 = vpack.c.b16 %v3917, %v3909
        %v4542 = vpack.c.b16 %v3918, %v3910
        %v4543 = vpack.c.b16 %v3919, %v3911
        %v4544 = vpack.c.b16 %v3920, %v3912
        %v4545 = vpack.c.b16 %v3921, %v3913
        %v4546 = vpack.c.b16 %v3922, %v3914
        %v4547 = vpack.c.b16 %v3931, %v3923
        %v4548 = vpack.c.b16 %v3932, %v3924
        %v4549 = vpack.c.b16 %v3933, %v3925
        %v4550 = vpack.c.b16 %v3934, %v3926
        %v4551 = vpack.c.b16 %v3935, %v3927
        %v4552 = vpack.c.b16 %v3936, %v3928
        %v4553 = vpack.c.b16 %v3937, %v3929
        %v4554 = vpack.c.b16 %v3938, %v3930
        %v4555 = vpack.c.b16 %v3947, %v3939
        %v4556 = vpack.c.b16 %v3948, %v3940
        %v4557 = vpack.c.b16 %v3949, %v3941
        %v4558 = vpack.c.b16 %v3950, %v3942
        %v4559 = vpack.c.b16 %v3951, %v3943
        %v4560 = vpack.c.b16 %v3952, %v3944
        %v4561 = vpack.c.b16 %v3953, %v3945
        %v4562 = vpack.c.b16 %v3954, %v3946
        %v4563 = vpack.c.b16 %v3963, %v3955
        %v4564 = vpack.c.b16 %v3964, %v3956
        %v4565 = vpack.c.b16 %v3965, %v3957
        %v4566 = vpack.c.b16 %v3966, %v3958
        %v4567 = vpack.c.b16 %v3967, %v3959
        %v4568 = vpack.c.b16 %v3968, %v3960
        %v4569 = vpack.c.b16 %v3969, %v3961
        %v4570 = vpack.c.b16 %v3970, %v3962
        %v4571 = vpack.c.b16 %v3979, %v3971
        %v4572 = vpack.c.b16 %v3980, %v3972
        %v4573 = vpack.c.b16 %v3981, %v3973
        %v4574 = vpack.c.b16 %v3982, %v3974
        %v4575 = vpack.c.b16 %v3983, %v3975
        %v4576 = vpack.c.b16 %v3984, %v3976
        %v4577 = vpack.c.b16 %v3985, %v3977
        %v4578 = vpack.c.b16 %v3986, %v3978
        %v4579 = vpack.c.b16 %v3995, %v3987
        %v4580 = vpack.c.b16 %v3996, %v3988
        %v4581 = vpack.c.b16 %v3997, %v3989
        %v4582 = vpack.c.b16 %v3998, %v3990
        %v4583 = vpack.c.b16 %v3999, %v3991
        %v4584 = vpack.c.b16 %v4000, %v3992
        %v4585 = vpack.c.b16 %v4001, %v3993
        %v4586 = vpack.c.b16 %v4002, %v3994
        %v4587 = vpack.c.b16 %v4011, %v4003
        %v4588 = vpack.c.b16 %v4012, %v4004
        %v4589 = vpack.c.b16 %v4013, %v4005
        %v4590 = vpack.c.b16 %v4014, %v4006
        %v4591 = vpack.c.b16 %v4015, %v4007
        %v4592 = vpack.c.b16 %v4016, %v4008
        %v4593 = vpack.c.b16 %v4017, %v4009
        %v4594 = vpack.c.b16 %v4018, %v4010
        %v4595 = vpack.c.b16 %v4027, %v4019
        %v4596 = vpack.c.b16 %v4028, %v4020
        %v4597 = vpack.c.b16 %v4029, %v4021
        %v4598 = vpack.c.b16 %v4030, %v4022
        %v4599 = vpack.c.b16 %v4031, %v4023
        %v4600 = vpack.c.b16 %v4032, %v4024
        %v4601 = vpack.c.b16 %v4033, %v4025
        %v4602 = vpack.c.b16 %v4034, %v4026
        %v4603 = vpack.c.b16 %v4043, %v4035
        %v4604 = vpack.c.b16 %v4044, %v4036
        %v4605 = vpack.c.b16 %v4045, %v4037
        %v4606 = vpack.c.b16 %v4046, %v4038
        %v4607 = vpack.c.b16 %v4047, %v4039
        %v4608 = vpack.c.b16 %v4048, %v4040
        %v4609 = vpack.c.b16 %v4049, %v4041
        %v4610 = vpack.c.b16 %v4050, %v4042
        %v4611 = vpack.c.b16 %v4059, %v4051
        %v4612 = vpack.c.b16 %v4060, %v4052
        %v4613 = vpack.c.b16 %v4061, %v4053
        %v4614 = vpack.c.b16 %v4062, %v4054
        %v4615 = vpack.c.b16 %v4063, %v4055
        %v4616 = vpack.c.b16 %v4064, %v4056
        %v4617 = vpack.c.b16 %v4065, %v4057
        %v4618 = vpack.c.b16 %v4066, %v4058
        %v4619 = vpack.c.b16 %v4075, %v4067
        %v4620 = vpack.c.b16 %v4076, %v4068
        %v4621 = vpack.c.b16 %v4077, %v4069
        %v4622 = vpack.c.b16 %v4078, %v4070
        %v4623 = vpack.c.b16 %v4079, %v4071
        %v4624 = vpack.c.b16 %v4080, %v4072
        %v4625 = vpack.c.b16 %v4081, %v4073
        %v4626 = vpack.c.b16 %v4082, %v4074
        %v4627 = vpack.c.b16 %v4091, %v4083
        %v4628 = vpack.c.b16 %v4092, %v4084
        %v4629 = vpack.c.b16 %v4093, %v4085
        %v4630 = vpack.c.b16 %v4094, %v4086
        %v4631 = vpack.c.b16 %v4095, %v4087
        %v4632 = vpack.c.b16 %v4096, %v4088
        %v4633 = vpack.c.b16 %v4097, %v4089
        %v4634 = vpack.c.b16 %v4098, %v4090
        %v4635 = vpack.c.b16 %v4107, %v4099
        %v4636 = vpack.c.b16 %v4108, %v4100
        %v4637 = vpack.c.b16 %v4109, %v4101
        %v4638 = vpack.c.b16 %v4110, %v4102
        %v4639 = vpack.c.b16 %v4111, %v4103
        %v4640 = vpack.c.b16 %v4112, %v4104
        %v4641 = vpack.c.b16 %v4113, %v4105
        %v4642 = vpack.c.b16 %v4114, %v4106
        %v4643 = vpack.c.b16 %v4123, %v4115
        %v4644 = vpack.c.b16 %v4124, %v4116
        %v4645 = vpack.c.b16 %v4125, %v4117
        %v4646 = vpack.c.b16 %v4126, %v4118
        %v4647 = vpack.c.b16 %v4127, %v4119
        %v4648 = vpack.c.b16 %v4128, %v4120
        %v4649 = vpack.c.b16 %v4129, %v4121
        %v4650 = vpack.c.b16 %v4130, %v4122
        %v4651 = vpack.c.b16 %v4139, %v4131
        %v4652 = vpack.c.b16 %v4140, %v4132
        %v4653 = vpack.c.b16 %v4141, %v4133
        %v4654 = vpack.c.b16 %v4142, %v4134
        %v4655 = vpack.c.b16 %v4143, %v4135
        %v4656 = vpack.c.b16 %v4144, %v4136
        %v4657 = vpack.c.b16 %v4145, %v4137
        %v4658 = vpack.c.b16 %v4146, %v4138
        %5171 = vmatprep.subr.bf16.mxu0 %v4148
        %5172 = vmatpush1.bf16.msra.mxu0 %v4147
        %5173 = vmatprep.subr.bf16.mxu0 %v4156
        %5174 = vmatpush1.bf16.msra.mxu0 %v4155
        %5175 = vmatprep.subr.bf16.mxu0 %v4164
        %5176 = vmatpush1.bf16.msra.mxu0 %v4163
        %5177 = vmatprep.subr.bf16.mxu0 %v4172
        %5178 = vmatpush1.bf16.msra.mxu0 %v4171
        %5179 = vmatprep.subr.bf16.mxu0 %v4180
        %5180 = vmatpush1.bf16.msra.mxu0 %v4179
        %5181 = vmatprep.subr.bf16.mxu0 %v4188
        %5182 = vmatpush1.bf16.msra.mxu0 %v4187
        %5183 = vmatprep.subr.bf16.mxu0 %v4196
        %5184 = vmatpush1.bf16.msra.mxu0 %v4195
        %5185 = vmatprep.subr.bf16.mxu0 %v4204
        %5186 = vmatpush1.bf16.msra.mxu0 %v4203
        %5187 = vmatprep.subr.bf16.mxu0 %v4212
        %5188 = vmatpush1.bf16.msra.mxu0 %v4211
        %5189 = vmatprep.subr.bf16.mxu0 %v4220
        %5190 = vmatpush1.bf16.msra.mxu0 %v4219
        %5191 = vmatprep.subr.bf16.mxu0 %v4228
        %5192 = vmatpush1.bf16.msra.mxu0 %v4227
        %5193 = vmatprep.subr.bf16.mxu0 %v4236
        %5194 = vmatpush1.bf16.msra.mxu0 %v4235
        %5195 = vmatprep.subr.bf16.mxu0 %v4244
        %5196 = vmatpush1.bf16.msra.mxu0 %v4243
        %5197 = vmatprep.subr.bf16.mxu0 %v4252
        %5198 = vmatpush1.bf16.msra.mxu0 %v4251
        %5199 = vmatprep.subr.bf16.mxu0 %v4260
        %5200 = vmatpush1.bf16.msra.mxu0 %v4259
        %5201 = vmatprep.subr.bf16.mxu0 %v4268
        %5202 = vmatpush1.bf16.msra.mxu0 %v4267
        %5203 = vmatprep.mubr.bf16.mxu0 %v2092
        %5204 = vmatmul.mubr.bf16.gmra.mrb[0].mxu0 %v2091
        %v5205 = vpop.f32.mrb[0].mxu0
        %v5206 = vadd.f32 0.0, %v5205
        %v5207 = vpop.f32.mrb[0].mxu0
        %v5208 = vadd.f32 0.0, %v5207
        %v5209 = vpop.f32.mrb[0].mxu0
        %v5210 = vpop.f32.mrb[0].mxu0
        %5211 = vdwg.mxu0
        %5212 = vmatprep.subr.bf16.mxu0 %v4276
        %5213 = vmatpush1.bf16.msra.mxu0 %v4275
        %5214 = vmatprep.subr.bf16.mxu0 %v4284
        %5215 = vmatpush1.bf16.msra.mxu0 %v4283
        %5216 = vmatprep.subr.bf16.mxu0 %v4292
        %5217 = vmatpush1.bf16.msra.mxu0 %v4291
        %5218 = vmatprep.subr.bf16.mxu0 %v4300
        %5219 = vmatpush1.bf16.msra.mxu0 %v4299
        %5220 = vmatprep.subr.bf16.mxu0 %v4308
        %5221 = vmatpush1.bf16.msra.mxu0 %v4307
        %5222 = vmatprep.subr.bf16.mxu0 %v4316
        %5223 = vmatpush1.bf16.msra.mxu0 %v4315
        %5224 = vmatprep.subr.bf16.mxu0 %v4324
        %5225 = vmatpush1.bf16.msra.mxu0 %v4323
        %5226 = vmatprep.subr.bf16.mxu0 %v4332
        %5227 = vmatpush1.bf16.msra.mxu0 %v4331
        %5228 = vmatprep.subr.bf16.mxu0 %v4340
        %5229 = vmatpush1.bf16.msra.mxu0 %v4339
        %5230 = vmatprep.subr.bf16.mxu0 %v4348
        %5231 = vmatpush1.bf16.msra.mxu0 %v4347
        %5232 = vmatprep.subr.bf16.mxu0 %v4356
        %5233 = vmatpush1.bf16.msra.mxu0 %v4355
        %5234 = vmatprep.subr.bf16.mxu0 %v4364
        %5235 = vmatpush1.bf16.msra.mxu0 %v4363
        %5236 = vmatprep.subr.bf16.mxu0 %v4372
        %5237 = vmatpush1.bf16.msra.mxu0 %v4371
        %5238 = vmatprep.subr.bf16.mxu0 %v4380
        %5239 = vmatpush1.bf16.msra.mxu0 %v4379
        %5240 = vmatprep.subr.bf16.mxu0 %v4388
        %5241 = vmatpush1.bf16.msra.mxu0 %v4387
        %5242 = vmatprep.subr.bf16.mxu0 %v4396
        %5243 = vmatpush1.bf16.msra.mxu0 %v4395
        %5244 = vmatprep.mubr.bf16.mxu0 %v2094
        %5245 = vmatmul.mubr.bf16.gmra.mrb[0].mxu0 %v2093
        %v5246 = vpop.f32.mrb[0].mxu0
        %v5247 = vadd.f32 %v5206, %v5246
        %v5248 = vpop.f32.mrb[0].mxu0
        %v5249 = vadd.f32 %v5208, %v5248
        %v5250 = vpop.f32.mrb[0].mxu0
        %v5251 = vpop.f32.mrb[0].mxu0
        %5252 = vdwg.mxu0
        %5253 = vmatprep.subr.bf16.mxu0 %v4404
        %5254 = vmatpush1.bf16.msra.mxu0 %v4403
        %5255 = vmatprep.subr.bf16.mxu0 %v4412
        %5256 = vmatpush1.bf16.msra.mxu0 %v4411
        %5257 = vmatprep.subr.bf16.mxu0 %v4420
        %5258 = vmatpush1.bf16.msra.mxu0 %v4419
        %5259 = vmatprep.subr.bf16.mxu0 %v4428
        %5260 = vmatpush1.bf16.msra.mxu0 %v4427
        %5261 = vmatprep.subr.bf16.mxu0 %v4436
        %5262 = vmatpush1.bf16.msra.mxu0 %v4435
        %5263 = vmatprep.subr.bf16.mxu0 %v4444
        %5264 = vmatpush1.bf16.msra.mxu0 %v4443
        %5265 = vmatprep.subr.bf16.mxu0 %v4452
        %5266 = vmatpush1.bf16.msra.mxu0 %v4451
        %5267 = vmatprep.subr.bf16.mxu0 %v4460
        %5268 = vmatpush1.bf16.msra.mxu0 %v4459
        %5269 = vmatprep.subr.bf16.mxu0 %v4468
        %5270 = vmatpush1.bf16.msra.mxu0 %v4467
        %5271 = vmatprep.subr.bf16.mxu0 %v4476
        %5272 = vmatpush1.bf16.msra.mxu0 %v4475
        %5273 = vmatprep.subr.bf16.mxu0 %v4484
        %5274 = vmatpush1.bf16.msra.mxu0 %v4483
        %5275 = vmatprep.subr.bf16.mxu0 %v4492
        %5276 = vmatpush1.bf16.msra.mxu0 %v4491
        %5277 = vmatprep.subr.bf16.mxu0 %v4500
        %5278 = vmatpush1.bf16.msra.mxu0 %v4499
        %5279 = vmatprep.subr.bf16.mxu0 %v4508
        %5280 = vmatpush1.bf16.msra.mxu0 %v4507
        %5281 = vmatprep.subr.bf16.mxu0 %v4516
        %5282 = vmatpush1.bf16.msra.mxu0 %v4515
        %5283 = vmatprep.subr.bf16.mxu0 %v4524
        %5284 = vmatpush1.bf16.msra.mxu0 %v4523
        %5285 = vmatprep.mubr.bf16.mxu0 %v2096
        %5286 = vmatmul.mubr.bf16.gmra.mrb[0].mxu0 %v2095
        %v5287 = vpop.f32.mrb[0].mxu0
        %v5288 = vadd.f32 %v5247, %v5287
        %v5289 = vpop.f32.mrb[0].mxu0
        %v5290 = vadd.f32 %v5249, %v5289
        %v5291 = vpop.f32.mrb[0].mxu0
        %v5292 = vpop.f32.mrb[0].mxu0
        %5293 = vdwg.mxu0
        %5294 = vmatprep.subr.bf16.mxu0 %v4532
        %5295 = vmatpush1.bf16.msra.mxu0 %v4531
        %5296 = vmatprep.subr.bf16.mxu0 %v4540
        %5297 = vmatpush1.bf16.msra.mxu0 %v4539
        %5298 = vmatprep.subr.bf16.mxu0 %v4548
        %5299 = vmatpush1.bf16.msra.mxu0 %v4547
        %5300 = vmatprep.subr.bf16.mxu0 %v4556
        %5301 = vmatpush1.bf16.msra.mxu0 %v4555
        %5302 = vmatprep.subr.bf16.mxu0 %v4564
        %5303 = vmatpush1.bf16.msra.mxu0 %v4563
        %5304 = vmatprep.subr.bf16.mxu0 %v4572
        %5305 = vmatpush1.bf16.msra.mxu0 %v4571
        %5306 = vmatprep.subr.bf16.mxu0 %v4580
        %5307 = vmatpush1.bf16.msra.mxu0 %v4579
        %5308 = vmatprep.subr.bf16.mxu0 %v4588
        %5309 = vmatpush1.bf16.msra.mxu0 %v4587
        %5310 = vmatprep.subr.bf16.mxu0 %v4596
        %5311 = vmatpush1.bf16.msra.mxu0 %v4595
        %5312 = vmatprep.subr.bf16.mxu0 %v4604
        %5313 = vmatpush1.bf16.msra.mxu0 %v4603
        %5314 = vmatprep.subr.bf16.mxu0 %v4612
        %5315 = vmatpush1.bf16.msra.mxu0 %v4611
        %5316 = vmatprep.subr.bf16.mxu0 %v4620
        %5317 = vmatpush1.bf16.msra.mxu0 %v4619
        %5318 = vmatprep.subr.bf16.mxu0 %v4628
        %5319 = vmatpush1.bf16.msra.mxu0 %v4627
        %5320 = vmatprep.subr.bf16.mxu0 %v4636
        %5321 = vmatpush1.bf16.msra.mxu0 %v4635
        %5322 = vmatprep.subr.bf16.mxu0 %v4644
        %5323 = vmatpush1.bf16.msra.mxu0 %v4643
        %5324 = vmatprep.subr.bf16.mxu0 %v4652
        %5325 = vmatpush1.bf16.msra.mxu0 %v4651
        %5326 = vmatprep.mubr.bf16.mxu0 %v2098
        %5327 = vmatmul.mubr.bf16.gmra.mrb[0].mxu0 %v2097
        %v5328 = vpop.f32.mrb[0].mxu0
        %v5329 = vadd.f32 %v5288, %v5328
        %v5330 = vpop.f32.mrb[0].mxu0
        %v5331 = vadd.f32 %v5290, %v5330
        %v5332 = vpop.f32.mrb[0].mxu0
        %v5333 = vpop.f32.mrb[0].mxu0
        %5334 = vdwg.mxu0
        %5335 = vmatprep.subr.bf16.mxu0 %v4150
        %5336 = vmatpush1.bf16.msra.mxu0 %v4149
        %5337 = vmatprep.subr.bf16.mxu0 %v4158
        %5338 = vmatpush1.bf16.msra.mxu0 %v4157
        %5339 = vmatprep.subr.bf16.mxu0 %v4166
        %5340 = vmatpush1.bf16.msra.mxu0 %v4165
        %5341 = vmatprep.subr.bf16.mxu0 %v4174
        %5342 = vmatpush1.bf16.msra.mxu0 %v4173
        %5343 = vmatprep.subr.bf16.mxu0 %v4182
        %5344 = vmatpush1.bf16.msra.mxu0 %v4181
        %5345 = vmatprep.subr.bf16.mxu0 %v4190
        %5346 = vmatpush1.bf16.msra.mxu0 %v4189
        %5347 = vmatprep.subr.bf16.mxu0 %v4198
        %5348 = vmatpush1.bf16.msra.mxu0 %v4197
        %5349 = vmatprep.subr.bf16.mxu0 %v4206
        %5350 = vmatpush1.bf16.msra.mxu0 %v4205
        %5351 = vmatprep.subr.bf16.mxu0 %v4214
        %5352 = vmatpush1.bf16.msra.mxu0 %v4213
        %5353 = vmatprep.subr.bf16.mxu0 %v4222
        %5354 = vmatpush1.bf16.msra.mxu0 %v4221
        %5355 = vmatprep.subr.bf16.mxu0 %v4230
        %5356 = vmatpush1.bf16.msra.mxu0 %v4229
        %5357 = vmatprep.subr.bf16.mxu0 %v4238
        %5358 = vmatpush1.bf16.msra.mxu0 %v4237
        %5359 = vmatprep.subr.bf16.mxu0 %v4246
        %5360 = vmatpush1.bf16.msra.mxu0 %v4245
        %5361 = vmatprep.subr.bf16.mxu0 %v4254
        %5362 = vmatpush1.bf16.msra.mxu0 %v4253
        %5363 = vmatprep.subr.bf16.mxu0 %v4262
        %5364 = vmatpush1.bf16.msra.mxu0 %v4261
        %5365 = vmatprep.subr.bf16.mxu0 %v4270
        %5366 = vmatpush1.bf16.msra.mxu0 %v4269
        %5367 = vmatprep.mubr.bf16.mxu0 %v2092
        %5368 = vmatmul.mubr.bf16.gmra.mrb[0].mxu0 %v2091
        %v5369 = vpop.f32.mrb[0].mxu0
        %v5370 = vadd.f32 0.0, %v5369
        %v5371 = vpop.f32.mrb[0].mxu0
        %v5372 = vadd.f32 0.0, %v5371
        %v5373 = vpop.f32.mrb[0].mxu0
        %v5374 = vpop.f32.mrb[0].mxu0
        %5375 = vdwg.mxu0
        %5376 = vmatprep.subr.bf16.mxu0 %v4278
        %5377 = vmatpush1.bf16.msra.mxu0 %v4277
        %5378 = vmatprep.subr.bf16.mxu0 %v4286
        %5379 = vmatpush1.bf16.msra.mxu0 %v4285
        %5380 = vmatprep.subr.bf16.mxu0 %v4294
        %5381 = vmatpush1.bf16.msra.mxu0 %v4293
        %5382 = vmatprep.subr.bf16.mxu0 %v4302
        %5383 = vmatpush1.bf16.msra.mxu0 %v4301
        %5384 = vmatprep.subr.bf16.mxu0 %v4310
        %5385 = vmatpush1.bf16.msra.mxu0 %v4309
        %5386 = vmatprep.subr.bf16.mxu0 %v4318
        %5387 = vmatpush1.bf16.msra.mxu0 %v4317
        %5388 = vmatprep.subr.bf16.mxu0 %v4326
        %5389 = vmatpush1.bf16.msra.mxu0 %v4325
        %5390 = vmatprep.subr.bf16.mxu0 %v4334
        %5391 = vmatpush1.bf16.msra.mxu0 %v4333
        %5392 = vmatprep.subr.bf16.mxu0 %v4342
        %5393 = vmatpush1.bf16.msra.mxu0 %v4341
        %5394 = vmatprep.subr.bf16.mxu0 %v4350
        %5395 = vmatpush1.bf16.msra.mxu0 %v4349
        %5396 = vmatprep.subr.bf16.mxu0 %v4358
        %5397 = vmatpush1.bf16.msra.mxu0 %v4357
        %5398 = vmatprep.subr.bf16.mxu0 %v4366
        %5399 = vmatpush1.bf16.msra.mxu0 %v4365
        %5400 = vmatprep.subr.bf16.mxu0 %v4374
        %5401 = vmatpush1.bf16.msra.mxu0 %v4373
        %5402 = vmatprep.subr.bf16.mxu0 %v4382
        %5403 = vmatpush1.bf16.msra.mxu0 %v4381
        %5404 = vmatprep.subr.bf16.mxu0 %v4390
        %5405 = vmatpush1.bf16.msra.mxu0 %v4389
        %5406 = vmatprep.subr.bf16.mxu0 %v4398
        %5407 = vmatpush1.bf16.msra.mxu0 %v4397
        %5408 = vmatprep.mubr.bf16.mxu0 %v2094
        %5409 = vmatmul.mubr.bf16.gmra.mrb[0].mxu0 %v2093
        %v5410 = vpop.f32.mrb[0].mxu0
        %v5411 = vadd.f32 %v5370, %v5410
        %v5412 = vpop.f32.mrb[0].mxu0
        %v5413 = vadd.f32 %v5372, %v5412
        %v5414 = vpop.f32.mrb[0].mxu0
        %v5415 = vpop.f32.mrb[0].mxu0
        %5416 = vdwg.mxu0
        %5417 = vmatprep.subr.bf16.mxu0 %v4406
        %5418 = vmatpush1.bf16.msra.mxu0 %v4405
        %5419 = vmatprep.subr.bf16.mxu0 %v4414
        %5420 = vmatpush1.bf16.msra.mxu0 %v4413
        %5421 = vmatprep.subr.bf16.mxu0 %v4422
        %5422 = vmatpush1.bf16.msra.mxu0 %v4421
        %5423 = vmatprep.subr.bf16.mxu0 %v4430
        %5424 = vmatpush1.bf16.msra.mxu0 %v4429
        %5425 = vmatprep.subr.bf16.mxu0 %v4438
        %5426 = vmatpush1.bf16.msra.mxu0 %v4437
        %5427 = vmatprep.subr.bf16.mxu0 %v4446
        %5428 = vmatpush1.bf16.msra.mxu0 %v4445
        %5429 = vmatprep.subr.bf16.mxu0 %v4454
        %5430 = vmatpush1.bf16.msra.mxu0 %v4453
        %5431 = vmatprep.subr.bf16.mxu0 %v4462
        %5432 = vmatpush1.bf16.msra.mxu0 %v4461
        %5433 = vmatprep.subr.bf16.mxu0 %v4470
        %5434 = vmatpush1.bf16.msra.mxu0 %v4469
        %5435 = vmatprep.subr.bf16.mxu0 %v4478
        %5436 = vmatpush1.bf16.msra.mxu0 %v4477
        %5437 = vmatprep.subr.bf16.mxu0 %v4486
        %5438 = vmatpush1.bf16.msra.mxu0 %v4485
        %5439 = vmatprep.subr.bf16.mxu0 %v4494
        %5440 = vmatpush1.bf16.msra.mxu0 %v4493
        %5441 = vmatprep.subr.bf16.mxu0 %v4502
        %5442 = vmatpush1.bf16.msra.mxu0 %v4501
        %5443 = vmatprep.subr.bf16.mxu0 %v4510
        %5444 = vmatpush1.bf16.msra.mxu0 %v4509
        %5445 = vmatprep.subr.bf16.mxu0 %v4518
        %5446 = vmatpush1.bf16.msra.mxu0 %v4517
        %5447 = vmatprep.subr.bf16.mxu0 %v4526
        %5448 = vmatpush1.bf16.msra.mxu0 %v4525
        %5449 = vmatprep.mubr.bf16.mxu0 %v2096
        %5450 = vmatmul.mubr.bf16.gmra.mrb[0].mxu0 %v2095
        %v5451 = vpop.f32.mrb[0].mxu0
        %v5452 = vadd.f32 %v5411, %v5451
        %v5453 = vpop.f32.mrb[0].mxu0
        %v5454 = vadd.f32 %v5413, %v5453
        %v5455 = vpop.f32.mrb[0].mxu0
        %v5456 = vpop.f32.mrb[0].mxu0
        %5457 = vdwg.mxu0
        %5458 = vmatprep.subr.bf16.mxu0 %v4534
        %5459 = vmatpush1.bf16.msra.mxu0 %v4533
        %5460 = vmatprep.subr.bf16.mxu0 %v4542
        %5461 = vmatpush1.bf16.msra.mxu0 %v4541
        %5462 = vmatprep.subr.bf16.mxu0 %v4550
        %5463 = vmatpush1.bf16.msra.mxu0 %v4549
        %5464 = vmatprep.subr.bf16.mxu0 %v4558
        %5465 = vmatpush1.bf16.msra.mxu0 %v4557
        %5466 = vmatprep.subr.bf16.mxu0 %v4566
        %5467 = vmatpush1.bf16.msra.mxu0 %v4565
        %5468 = vmatprep.subr.bf16.mxu0 %v4574
        %5469 = vmatpush1.bf16.msra.mxu0 %v4573
        %5470 = vmatprep.subr.bf16.mxu0 %v4582
        %5471 = vmatpush1.bf16.msra.mxu0 %v4581
        %5472 = vmatprep.subr.bf16.mxu0 %v4590
        %5473 = vmatpush1.bf16.msra.mxu0 %v4589
        %5474 = vmatprep.subr.bf16.mxu0 %v4598
        %5475 = vmatpush1.bf16.msra.mxu0 %v4597
        %5476 = vmatprep.subr.bf16.mxu0 %v4606
        %5477 = vmatpush1.bf16.msra.mxu0 %v4605
        %5478 = vmatprep.subr.bf16.mxu0 %v4614
        %5479 = vmatpush1.bf16.msra.mxu0 %v4613
        %5480 = vmatprep.subr.bf16.mxu0 %v4622
        %5481 = vmatpush1.bf16.msra.mxu0 %v4621
        %5482 = vmatprep.subr.bf16.mxu0 %v4630
        %5483 = vmatpush1.bf16.msra.mxu0 %v4629
        %5484 = vmatprep.subr.bf16.mxu0 %v4638
        %5485 = vmatpush1.bf16.msra.mxu0 %v4637
        %5486 = vmatprep.subr.bf16.mxu0 %v4646
        %5487 = vmatpush1.bf16.msra.mxu0 %v4645
        %5488 = vmatprep.subr.bf16.mxu0 %v4654
        %5489 = vmatpush1.bf16.msra.mxu0 %v4653
        %5490 = vmatprep.mubr.bf16.mxu0 %v2098
        %5491 = vmatmul.mubr.bf16.gmra.mrb[0].mxu0 %v2097
        %v5492 = vpop.f32.mrb[0].mxu0
        %v5493 = vadd.f32 %v5452, %v5492
        %v5494 = vpop.f32.mrb[0].mxu0
        %v5495 = vadd.f32 %v5454, %v5494
        %v5496 = vpop.f32.mrb[0].mxu0
        %v5497 = vpop.f32.mrb[0].mxu0
        %5498 = vdwg.mxu0
        %5499 = vmatprep.subr.bf16.mxu0 %v4152
        %5500 = vmatpush1.bf16.msra.mxu0 %v4151
        %5501 = vmatprep.subr.bf16.mxu0 %v4160
        %5502 = vmatpush1.bf16.msra.mxu0 %v4159
        %5503 = vmatprep.subr.bf16.mxu0 %v4168
        %5504 = vmatpush1.bf16.msra.mxu0 %v4167
        %5505 = vmatprep.subr.bf16.mxu0 %v4176
        %5506 = vmatpush1.bf16.msra.mxu0 %v4175
        %5507 = vmatprep.subr.bf16.mxu0 %v4184
        %5508 = vmatpush1.bf16.msra.mxu0 %v4183
        %5509 = vmatprep.subr.bf16.mxu0 %v4192
        %5510 = vmatpush1.bf16.msra.mxu0 %v4191
        %5511 = vmatprep.subr.bf16.mxu0 %v4200
        %5512 = vmatpush1.bf16.msra.mxu0 %v4199
        %5513 = vmatprep.subr.bf16.mxu0 %v4208
        %5514 = vmatpush1.bf16.msra.mxu0 %v4207
        %5515 = vmatprep.subr.bf16.mxu0 %v4216
        %5516 = vmatpush1.bf16.msra.mxu0 %v4215
        %5517 = vmatprep.subr.bf16.mxu0 %v4224
        %5518 = vmatpush1.bf16.msra.mxu0 %v4223
        %5519 = vmatprep.subr.bf16.mxu0 %v4232
        %5520 = vmatpush1.bf16.msra.mxu0 %v4231
        %5521 = vmatprep.subr.bf16.mxu0 %v4240
        %5522 = vmatpush1.bf16.msra.mxu0 %v4239
        %5523 = vmatprep.subr.bf16.mxu0 %v4248
        %5524 = vmatpush1.bf16.msra.mxu0 %v4247
        %5525 = vmatprep.subr.bf16.mxu0 %v4256
        %5526 = vmatpush1.bf16.msra.mxu0 %v4255
        %5527 = vmatprep.subr.bf16.mxu0 %v4264
        %5528 = vmatpush1.bf16.msra.mxu0 %v4263
        %5529 = vmatprep.subr.bf16.mxu0 %v4272
        %5530 = vmatpush1.bf16.msra.mxu0 %v4271
        %5531 = vmatprep.mubr.bf16.mxu0 %v2092
        %5532 = vmatmul.mubr.bf16.gmra.mrb[0].mxu0 %v2091
        %v5533 = vpop.f32.mrb[0].mxu0
        %v5534 = vadd.f32 0.0, %v5533
        %v5535 = vpop.f32.mrb[0].mxu0
        %v5536 = vadd.f32 0.0, %v5535
        %v5537 = vpop.f32.mrb[0].mxu0
        %v5538 = vpop.f32.mrb[0].mxu0
        %5539 = vdwg.mxu0
        %5540 = vmatprep.subr.bf16.mxu0 %v4280
        %5541 = vmatpush1.bf16.msra.mxu0 %v4279
        %5542 = vmatprep.subr.bf16.mxu0 %v4288
        %5543 = vmatpush1.bf16.msra.mxu0 %v4287
        %5544 = vmatprep.subr.bf16.mxu0 %v4296
        %5545 = vmatpush1.bf16.msra.mxu0 %v4295
        %5546 = vmatprep.subr.bf16.mxu0 %v4304
        %5547 = vmatpush1.bf16.msra.mxu0 %v4303
        %5548 = vmatprep.subr.bf16.mxu0 %v4312
        %5549 = vmatpush1.bf16.msra.mxu0 %v4311
        %5550 = vmatprep.subr.bf16.mxu0 %v4320
        %5551 = vmatpush1.bf16.msra.mxu0 %v4319
        %5552 = vmatprep.subr.bf16.mxu0 %v4328
        %5553 = vmatpush1.bf16.msra.mxu0 %v4327
        %5554 = vmatprep.subr.bf16.mxu0 %v4336
        %5555 = vmatpush1.bf16.msra.mxu0 %v4335
        %5556 = vmatprep.subr.bf16.mxu0 %v4344
        %5557 = vmatpush1.bf16.msra.mxu0 %v4343
        %5558 = vmatprep.subr.bf16.mxu0 %v4352
        %5559 = vmatpush1.bf16.msra.mxu0 %v4351
        %5560 = vmatprep.subr.bf16.mxu0 %v4360
        %5561 = vmatpush1.bf16.msra.mxu0 %v4359
        %5562 = vmatprep.subr.bf16.mxu0 %v4368
        %5563 = vmatpush1.bf16.msra.mxu0 %v4367
        %5564 = vmatprep.subr.bf16.mxu0 %v4376
        %5565 = vmatpush1.bf16.msra.mxu0 %v4375
        %5566 = vmatprep.subr.bf16.mxu0 %v4384
        %5567 = vmatpush1.bf16.msra.mxu0 %v4383
        %5568 = vmatprep.subr.bf16.mxu0 %v4392
        %5569 = vmatpush1.bf16.msra.mxu0 %v4391
        %5570 = vmatprep.subr.bf16.mxu0 %v4400
        %5571 = vmatpush1.bf16.msra.mxu0 %v4399
        %5572 = vmatprep.mubr.bf16.mxu0 %v2094
        %5573 = vmatmul.mubr.bf16.gmra.mrb[0].mxu0 %v2093
        %v5574 = vpop.f32.mrb[0].mxu0
        %v5575 = vadd.f32 %v5534, %v5574
        %v5576 = vpop.f32.mrb[0].mxu0
        %v5577 = vadd.f32 %v5536, %v5576
        %v5578 = vpop.f32.mrb[0].mxu0
        %v5579 = vpop.f32.mrb[0].mxu0
        %5580 = vdwg.mxu0
        %5581 = vmatprep.subr.bf16.mxu0 %v4408
        %5582 = vmatpush1.bf16.msra.mxu0 %v4407
        %5583 = vmatprep.subr.bf16.mxu0 %v4416
        %5584 = vmatpush1.bf16.msra.mxu0 %v4415
        %5585 = vmatprep.subr.bf16.mxu0 %v4424
        %5586 = vmatpush1.bf16.msra.mxu0 %v4423
        %5587 = vmatprep.subr.bf16.mxu0 %v4432
        %5588 = vmatpush1.bf16.msra.mxu0 %v4431
        %5589 = vmatprep.subr.bf16.mxu0 %v4440
        %5590 = vmatpush1.bf16.msra.mxu0 %v4439
        %5591 = vmatprep.subr.bf16.mxu0 %v4448
        %5592 = vmatpush1.bf16.msra.mxu0 %v4447
        %5593 = vmatprep.subr.bf16.mxu0 %v4456
        %5594 = vmatpush1.bf16.msra.mxu0 %v4455
        %5595 = vmatprep.subr.bf16.mxu0 %v4464
        %5596 = vmatpush1.bf16.msra.mxu0 %v4463
        %5597 = vmatprep.subr.bf16.mxu0 %v4472
        %5598 = vmatpush1.bf16.msra.mxu0 %v4471
        %5599 = vmatprep.subr.bf16.mxu0 %v4480
        %5600 = vmatpush1.bf16.msra.mxu0 %v4479
        %5601 = vmatprep.subr.bf16.mxu0 %v4488
        %5602 = vmatpush1.bf16.msra.mxu0 %v4487
        %5603 = vmatprep.subr.bf16.mxu0 %v4496
        %5604 = vmatpush1.bf16.msra.mxu0 %v4495
        %5605 = vmatprep.subr.bf16.mxu0 %v4504
        %5606 = vmatpush1.bf16.msra.mxu0 %v4503
        %5607 = vmatprep.subr.bf16.mxu0 %v4512
        %5608 = vmatpush1.bf16.msra.mxu0 %v4511
        %5609 = vmatprep.subr.bf16.mxu0 %v4520
        %5610 = vmatpush1.bf16.msra.mxu0 %v4519
        %5611 = vmatprep.subr.bf16.mxu0 %v4528
        %5612 = vmatpush1.bf16.msra.mxu0 %v4527
        %5613 = vmatprep.mubr.bf16.mxu0 %v2096
        %5614 = vmatmul.mubr.bf16.gmra.mrb[0].mxu0 %v2095
        %v5615 = vpop.f32.mrb[0].mxu0
        %v5616 = vadd.f32 %v5575, %v5615
        %v5617 = vpop.f32.mrb[0].mxu0
        %v5618 = vadd.f32 %v5577, %v5617
        %v5619 = vpop.f32.mrb[0].mxu0
        %v5620 = vpop.f32.mrb[0].mxu0
        %5621 = vdwg.mxu0
        %5622 = vmatprep.subr.bf16.mxu0 %v4536
        %5623 = vmatpush1.bf16.msra.mxu0 %v4535
        %5624 = vmatprep.subr.bf16.mxu0 %v4544
        %5625 = vmatpush1.bf16.msra.mxu0 %v4543
        %5626 = vmatprep.subr.bf16.mxu0 %v4552
        %5627 = vmatpush1.bf16.msra.mxu0 %v4551
        %5628 = vmatprep.subr.bf16.mxu0 %v4560
        %5629 = vmatpush1.bf16.msra.mxu0 %v4559
        %5630 = vmatprep.subr.bf16.mxu0 %v4568
        %5631 = vmatpush1.bf16.msra.mxu0 %v4567
        %5632 = vmatprep.subr.bf16.mxu0 %v4576
        %5633 = vmatpush1.bf16.msra.mxu0 %v4575
        %5634 = vmatprep.subr.bf16.mxu0 %v4584
        %5635 = vmatpush1.bf16.msra.mxu0 %v4583
        %5636 = vmatprep.subr.bf16.mxu0 %v4592
        %5637 = vmatpush1.bf16.msra.mxu0 %v4591
        %5638 = vmatprep.subr.bf16.mxu0 %v4600
        %5639 = vmatpush1.bf16.msra.mxu0 %v4599
        %5640 = vmatprep.subr.bf16.mxu0 %v4608
        %5641 = vmatpush1.bf16.msra.mxu0 %v4607
        %5642 = vmatprep.subr.bf16.mxu0 %v4616
        %5643 = vmatpush1.bf16.msra.mxu0 %v4615
        %5644 = vmatprep.subr.bf16.mxu0 %v4624
        %5645 = vmatpush1.bf16.msra.mxu0 %v4623
        %5646 = vmatprep.subr.bf16.mxu0 %v4632
        %5647 = vmatpush1.bf16.msra.mxu0 %v4631
        %5648 = vmatprep.subr.bf16.mxu0 %v4640
        %5649 = vmatpush1.bf16.msra.mxu0 %v4639
        %5650 = vmatprep.subr.bf16.mxu0 %v4648
        %5651 = vmatpush1.bf16.msra.mxu0 %v4647
        %5652 = vmatprep.subr.bf16.mxu0 %v4656
        %5653 = vmatpush1.bf16.msra.mxu0 %v4655
        %5654 = vmatprep.mubr.bf16.mxu0 %v2098
        %5655 = vmatmul.mubr.bf16.gmra.mrb[0].mxu0 %v2097
        %v5656 = vpop.f32.mrb[0].mxu0
        %v5657 = vadd.f32 %v5616, %v5656
        %v5658 = vpop.f32.mrb[0].mxu0
        %v5659 = vadd.f32 %v5618, %v5658
        %v5660 = vpop.f32.mrb[0].mxu0
        %v5661 = vpop.f32.mrb[0].mxu0
        %5662 = vdwg.mxu0
        %5663 = vmatprep.subr.bf16.mxu0 %v4154
        %5664 = vmatpush1.bf16.msra.mxu0 %v4153
        %5665 = vmatprep.subr.bf16.mxu0 %v4162
        %5666 = vmatpush1.bf16.msra.mxu0 %v4161
        %5667 = vmatprep.subr.bf16.mxu0 %v4170
        %5668 = vmatpush1.bf16.msra.mxu0 %v4169
        %5669 = vmatprep.subr.bf16.mxu0 %v4178
        %5670 = vmatpush1.bf16.msra.mxu0 %v4177
        %5671 = vmatprep.subr.bf16.mxu0 %v4186
        %5672 = vmatpush1.bf16.msra.mxu0 %v4185
        %5673 = vmatprep.subr.bf16.mxu0 %v4194
        %5674 = vmatpush1.bf16.msra.mxu0 %v4193
        %5675 = vmatprep.subr.bf16.mxu0 %v4202
        %5676 = vmatpush1.bf16.msra.mxu0 %v4201
        %5677 = vmatprep.subr.bf16.mxu0 %v4210
        %5678 = vmatpush1.bf16.msra.mxu0 %v4209
        %5679 = vmatprep.subr.bf16.mxu0 %v4218
        %5680 = vmatpush1.bf16.msra.mxu0 %v4217
        %5681 = vmatprep.subr.bf16.mxu0 %v4226
        %5682 = vmatpush1.bf16.msra.mxu0 %v4225
        %5683 = vmatprep.subr.bf16.mxu0 %v4234
        %5684 = vmatpush1.bf16.msra.mxu0 %v4233
        %5685 = vmatprep.subr.bf16.mxu0 %v4242
        %5686 = vmatpush1.bf16.msra.mxu0 %v4241
        %5687 = vmatprep.subr.bf16.mxu0 %v4250
        %5688 = vmatpush1.bf16.msra.mxu0 %v4249
        %5689 = vmatprep.subr.bf16.mxu0 %v4258
        %5690 = vmatpush1.bf16.msra.mxu0 %v4257
        %5691 = vmatprep.subr.bf16.mxu0 %v4266
        %5692 = vmatpush1.bf16.msra.mxu0 %v4265
        %5693 = vmatprep.subr.bf16.mxu0 %v4274
        %5694 = vmatpush1.bf16.msra.mxu0 %v4273
        %5695 = vmatprep.mubr.bf16.mxu0 %v2092
        %5696 = vmatmul.mubr.bf16.gmra.mrb[0].mxu0 %v2091
        %v5697 = vpop.f32.mrb[0].mxu0
        %v5698 = vadd.f32 0.0, %v5697
        %v5699 = vpop.f32.mrb[0].mxu0
        %v5700 = vadd.f32 0.0, %v5699
        %v5701 = vpop.f32.mrb[0].mxu0
        %v5702 = vpop.f32.mrb[0].mxu0
        %5703 = vdwg.mxu0
        %5704 = vmatprep.subr.bf16.mxu0 %v4282
        %5705 = vmatpush1.bf16.msra.mxu0 %v4281
        %5706 = vmatprep.subr.bf16.mxu0 %v4290
        %5707 = vmatpush1.bf16.msra.mxu0 %v4289
        %5708 = vmatprep.subr.bf16.mxu0 %v4298
        %5709 = vmatpush1.bf16.msra.mxu0 %v4297
        %5710 = vmatprep.subr.bf16.mxu0 %v4306
        %5711 = vmatpush1.bf16.msra.mxu0 %v4305
        %5712 = vmatprep.subr.bf16.mxu0 %v4314
        %5713 = vmatpush1.bf16.msra.mxu0 %v4313
        %5714 = vmatprep.subr.bf16.mxu0 %v4322
        %5715 = vmatpush1.bf16.msra.mxu0 %v4321
        %5716 = vmatprep.subr.bf16.mxu0 %v4330
        %5717 = vmatpush1.bf16.msra.mxu0 %v4329
        %5718 = vmatprep.subr.bf16.mxu0 %v4338
        %5719 = vmatpush1.bf16.msra.mxu0 %v4337
        %5720 = vmatprep.subr.bf16.mxu0 %v4346
        %5721 = vmatpush1.bf16.msra.mxu0 %v4345
        %5722 = vmatprep.subr.bf16.mxu0 %v4354
        %5723 = vmatpush1.bf16.msra.mxu0 %v4353
        %5724 = vmatprep.subr.bf16.mxu0 %v4362
        %5725 = vmatpush1.bf16.msra.mxu0 %v4361
        %5726 = vmatprep.subr.bf16.mxu0 %v4370
        %5727 = vmatpush1.bf16.msra.mxu0 %v4369
        %5728 = vmatprep.subr.bf16.mxu0 %v4378
        %5729 = vmatpush1.bf16.msra.mxu0 %v4377
        %5730 = vmatprep.subr.bf16.mxu0 %v4386
        %5731 = vmatpush1.bf16.msra.mxu0 %v4385
        %5732 = vmatprep.subr.bf16.mxu0 %v4394
        %5733 = vmatpush1.bf16.msra.mxu0 %v4393
        %5734 = vmatprep.subr.bf16.mxu0 %v4402
        %5735 = vmatpush1.bf16.msra.mxu0 %v4401
        %5736 = vmatprep.mubr.bf16.mxu0 %v2094
        %5737 = vmatmul.mubr.bf16.gmra.mrb[0].mxu0 %v2093
        %v5738 = vpop.f32.mrb[0].mxu0
        %v5739 = vadd.f32 %v5698, %v5738
        %v5740 = vpop.f32.mrb[0].mxu0
        %v5741 = vadd.f32 %v5700, %v5740
        %v5742 = vpop.f32.mrb[0].mxu0
        %v5743 = vpop.f32.mrb[0].mxu0
        %5744 = vdwg.mxu0
        %5745 = vmatprep.subr.bf16.mxu0 %v4410
        %5746 = vmatpush1.bf16.msra.mxu0 %v4409
        %5747 = vmatprep.subr.bf16.mxu0 %v4418
        %5748 = vmatpush1.bf16.msra.mxu0 %v4417
        %5749 = vmatprep.subr.bf16.mxu0 %v4426
        %5750 = vmatpush1.bf16.msra.mxu0 %v4425
        %5751 = vmatprep.subr.bf16.mxu0 %v4434
        %5752 = vmatpush1.bf16.msra.mxu0 %v4433
        %5753 = vmatprep.subr.bf16.mxu0 %v4442
        %5754 = vmatpush1.bf16.msra.mxu0 %v4441
        %5755 = vmatprep.subr.bf16.mxu0 %v4450
        %5756 = vmatpush1.bf16.msra.mxu0 %v4449
        %5757 = vmatprep.subr.bf16.mxu0 %v4458
        %5758 = vmatpush1.bf16.msra.mxu0 %v4457
        %5759 = vmatprep.subr.bf16.mxu0 %v4466
        %5760 = vmatpush1.bf16.msra.mxu0 %v4465
        %5761 = vmatprep.subr.bf16.mxu0 %v4474
        %5762 = vmatpush1.bf16.msra.mxu0 %v4473
        %5763 = vmatprep.subr.bf16.mxu0 %v4482
        %5764 = vmatpush1.bf16.msra.mxu0 %v4481
        %5765 = vmatprep.subr.bf16.mxu0 %v4490
        %5766 = vmatpush1.bf16.msra.mxu0 %v4489
        %5767 = vmatprep.subr.bf16.mxu0 %v4498
        %5768 = vmatpush1.bf16.msra.mxu0 %v4497
        %5769 = vmatprep.subr.bf16.mxu0 %v4506
        %5770 = vmatpush1.bf16.msra.mxu0 %v4505
        %5771 = vmatprep.subr.bf16.mxu0 %v4514
        %5772 = vmatpush1.bf16.msra.mxu0 %v4513
        %5773 = vmatprep.subr.bf16.mxu0 %v4522
        %5774 = vmatpush1.bf16.msra.mxu0 %v4521
        %5775 = vmatprep.subr.bf16.mxu0 %v4530
        %5776 = vmatpush1.bf16.msra.mxu0 %v4529
        %5777 = vmatprep.mubr.bf16.mxu0 %v2096
        %5778 = vmatmul.mubr.bf16.gmra.mrb[0].mxu0 %v2095
        %v5779 = vpop.f32.mrb[0].mxu0
        %v5780 = vadd.f32 %v5739, %v5779
        %v5781 = vpop.f32.mrb[0].mxu0
        %v5782 = vadd.f32 %v5741, %v5781
        %v5783 = vpop.f32.mrb[0].mxu0
        %v5784 = vpop.f32.mrb[0].mxu0
        %5785 = vdwg.mxu0
        %5786 = vmatprep.subr.bf16.mxu0 %v4538
        %5787 = vmatpush1.bf16.msra.mxu0 %v4537
        %5788 = vmatprep.subr.bf16.mxu0 %v4546
        %5789 = vmatpush1.bf16.msra.mxu0 %v4545
        %5790 = vmatprep.subr.bf16.mxu0 %v4554
        %5791 = vmatpush1.bf16.msra.mxu0 %v4553
        %5792 = vmatprep.subr.bf16.mxu0 %v4562
        %5793 = vmatpush1.bf16.msra.mxu0 %v4561
        %5794 = vmatprep.subr.bf16.mxu0 %v4570
        %5795 = vmatpush1.bf16.msra.mxu0 %v4569
        %5796 = vmatprep.subr.bf16.mxu0 %v4578
        %5797 = vmatpush1.bf16.msra.mxu0 %v4577
        %5798 = vmatprep.subr.bf16.mxu0 %v4586
        %5799 = vmatpush1.bf16.msra.mxu0 %v4585
        %5800 = vmatprep.subr.bf16.mxu0 %v4594
        %5801 = vmatpush1.bf16.msra.mxu0 %v4593
        %5802 = vmatprep.subr.bf16.mxu0 %v4602
        %5803 = vmatpush1.bf16.msra.mxu0 %v4601
        %5804 = vmatprep.subr.bf16.mxu0 %v4610
        %5805 = vmatpush1.bf16.msra.mxu0 %v4609
        %5806 = vmatprep.subr.bf16.mxu0 %v4618
        %5807 = vmatpush1.bf16.msra.mxu0 %v4617
        %5808 = vmatprep.subr.bf16.mxu0 %v4626
        %5809 = vmatpush1.bf16.msra.mxu0 %v4625
        %5810 = vmatprep.subr.bf16.mxu0 %v4634
        %5811 = vmatpush1.bf16.msra.mxu0 %v4633
        %5812 = vmatprep.subr.bf16.mxu0 %v4642
        %5813 = vmatpush1.bf16.msra.mxu0 %v4641
        %5814 = vmatprep.subr.bf16.mxu0 %v4650
        %5815 = vmatpush1.bf16.msra.mxu0 %v4649
        %5816 = vmatprep.subr.bf16.mxu0 %v4658
        %5817 = vmatpush1.bf16.msra.mxu0 %v4657
        %5818 = vmatprep.mubr.bf16.mxu0 %v2098
        %5819 = vmatmul.mubr.bf16.gmra.mrb[0].mxu0 %v2097
        %v5820 = vpop.f32.mrb[0].mxu0
        %v5821 = vadd.f32 %v5780, %v5820
        %v5822 = vpop.f32.mrb[0].mxu0
        %v5823 = vadd.f32 %v5782, %v5822
        %v5824 = vpop.f32.mrb[0].mxu0
        %v5825 = vpop.f32.mrb[0].mxu0
        %5826 = vdwg.mxu0
        %v5827 = vadd.f32 %v2083, %v5329
        %v5828 = vadd.f32 %v2084, %v5331
        %v5829 = vadd.f32 %v2085, %v5493
        %v5830 = vadd.f32 %v2086, %v5495
        %v5831 = vadd.f32 %v2087, %v5657
        %v5832 = vadd.f32 %v2088, %v5659
        %v5833 = vadd.f32 %v2089, %v5821
        %v5834 = vadd.f32 %v2090, %v5823
        %5835 = vst [vmem:[#allocation2] sm:$0xff] %v5827
        %5836 = vst [vmem:[#allocation2 + $0x8] sm:$0xff] %v5828
        %5837 = vst [vmem:[#allocation2 + $0x10] sm:$0xff] %v5829
        %5838 = vst [vmem:[#allocation2 + $0x18] sm:$0xff] %v5830
        %5839 = vst [vmem:[#allocation2 + $0x20] sm:$0xff] %v5831
        %5840 = vst [vmem:[#allocation2 + $0x28] sm:$0xff] %v5832
        %5841 = vst [vmem:[#allocation2 + $0x30] sm:$0xff] %v5833
        %5842 = vst [vmem:[#allocation2 + $0x38] sm:$0xff] %v5834
        %p5843 = scmp.eq.s32.totalorder %s23, 4
        // Predicated region
        $region61: #{network_forward.2} parent=39 // pred_check
          %p5844 = pneg %p5843
        $region62: #{network_forward.2} parent=39 // pred_check_branch
          %5846 = sbr.rel (%p5844) target = $region64
        $region63: #{network_forward.2} parent=39 // pred_region
          %v5847 = vld [vmem:[#allocation2] sm:$0xff]
          %v5848 = vld [vmem:[#allocation2 + $0x8] sm:$0xff]
          %v5849 = vld [vmem:[#allocation2 + $0x10] sm:$0xff]
          %v5850 = vld [vmem:[#allocation2 + $0x18] sm:$0xff]
          %v5851 = vld [vmem:[#allocation2 + $0x20] sm:$0xff]
          %v5852 = vld [vmem:[#allocation2 + $0x28] sm:$0xff]
          %v5853 = vld [vmem:[#allocation2 + $0x30] sm:$0xff]
          %v5854 = vld [vmem:[#allocation2 + $0x38] sm:$0xff]
          %v5855 = vld [vmem:[#allocation8] ss:$8 sm:$0xf]
          %v5856 = vld [vmem:[#allocation8] ss:$8 sm:$0xf0]
          %v5857 = vor.u32 %v5855, %v5856
          %s5858 = scalar_lea.vmem [#allocation8], 1
          %v5859 = vld [vmem:[%s5858] ss:$8 sm:$0xf]
          %v5860 = vld [vmem:[%s5858] ss:$8 sm:$0xf0]
          %v5861 = vor.u32 %v5859, %v5860
          %v5862 = vrot.slane %v5847, 4
          %v5863 = vadd.f32 %v5847, %v5862
          %v5864 = vrot.slane %v5863, 2
          %v5865 = vadd.f32 %v5863, %v5864
          %v5866 = vrot.slane %v5865, 1
          %v5867 = vadd.f32 %v5865, %v5866
          %v5868 = vrot.slane %v5848, 4
          %v5869 = vadd.f32 %v5848, %v5868
          %v5870 = vrot.slane %v5869, 2
          %v5871 = vadd.f32 %v5869, %v5870
          %v5872 = vrot.slane %v5871, 1
          %v5873 = vadd.f32 %v5871, %v5872
          %v5874 = vrot.slane %v5849, 4
          %v5875 = vadd.f32 %v5849, %v5874
          %v5876 = vrot.slane %v5875, 2
          %v5877 = vadd.f32 %v5875, %v5876
          %v5878 = vrot.slane %v5877, 1
          %v5879 = vadd.f32 %v5877, %v5878
          %v5880 = vrot.slane %v5850, 4
          %v5881 = vadd.f32 %v5850, %v5880
          %v5882 = vrot.slane %v5881, 2
          %v5883 = vadd.f32 %v5881, %v5882
          %v5884 = vrot.slane %v5883, 1
          %v5885 = vadd.f32 %v5883, %v5884
          %v5886 = vrot.slane %v5851, 4
          %v5887 = vadd.f32 %v5851, %v5886
          %v5888 = vrot.slane %v5887, 2
          %v5889 = vadd.f32 %v5887, %v5888
          %v5890 = vrot.slane %v5889, 1
          %v5891 = vadd.f32 %v5889, %v5890
          %v5892 = vrot.slane %v5852, 4
          %v5893 = vadd.f32 %v5852, %v5892
          %v5894 = vrot.slane %v5893, 2
          %v5895 = vadd.f32 %v5893, %v5894
          %v5896 = vrot.slane %v5895, 1
          %v5897 = vadd.f32 %v5895, %v5896
          %v5898 = vrot.slane %v5853, 4
          %v5899 = vadd.f32 %v5853, %v5898
          %v5900 = vrot.slane %v5899, 2
          %v5901 = vadd.f32 %v5899, %v5900
          %v5902 = vrot.slane %v5901, 1
          %v5903 = vadd.f32 %v5901, %v5902
          %v5904 = vrot.slane %v5854, 4
          %v5905 = vadd.f32 %v5854, %v5904
          %v5906 = vrot.slane %v5905, 2
          %v5907 = vadd.f32 %v5905, %v5906
          %v5908 = vrot.slane %v5907, 1
          %v5909 = vadd.f32 %v5907, %v5908
          %v5910 = vmul.f32 %v5867, %v1872
          %v5911 = vmul.f32 %v5873, %v1872
          %v5912 = vmul.f32 %v5879, %v1872
          %v5913 = vmul.f32 %v5885, %v1872
          %v5914 = vmul.f32 %v5891, %v1872
          %v5915 = vmul.f32 %v5897, %v1872
          %v5916 = vmul.f32 %v5903, %v1872
          %v5917 = vmul.f32 %v5909, %v1872
          %v5918 = vsub.f32 %v5847, %v5910
          %v5919 = vsub.f32 %v5848, %v5911
          %v5920 = vsub.f32 %v5849, %v5912
          %v5921 = vsub.f32 %v5850, %v5913
          %v5922 = vsub.f32 %v5851, %v5914
          %v5923 = vsub.f32 %v5852, %v5915
          %v5924 = vsub.f32 %v5853, %v5916
          %v5925 = vsub.f32 %v5854, %v5917
          %v5926 = vmul.f32 %v5918, %v5918
          %v5927 = vmul.f32 %v5919, %v5919
          %v5928 = vmul.f32 %v5920, %v5920
          %v5929 = vmul.f32 %v5921, %v5921
          %v5930 = vmul.f32 %v5922, %v5922
          %v5931 = vmul.f32 %v5923, %v5923
          %v5932 = vmul.f32 %v5924, %v5924
          %v5933 = vmul.f32 %v5925, %v5925
          %v5934 = vrot.slane %v5926, 4
          %v5935 = vadd.f32 %v5926, %v5934
          %v5936 = vrot.slane %v5935, 2
          %v5937 = vadd.f32 %v5935, %v5936
          %v5938 = vrot.slane %v5937, 1
          %v5939 = vadd.f32 %v5937, %v5938
          %v5940 = vrot.slane %v5927, 4
          %v5941 = vadd.f32 %v5927, %v5940
          %v5942 = vrot.slane %v5941, 2
          %v5943 = vadd.f32 %v5941, %v5942
          %v5944 = vrot.slane %v5943, 1
          %v5945 = vadd.f32 %v5943, %v5944
          %v5946 = vrot.slane %v5928, 4
          %v5947 = vadd.f32 %v5928, %v5946
          %v5948 = vrot.slane %v5947, 2
          %v5949 = vadd.f32 %v5947, %v5948
          %v5950 = vrot.slane %v5949, 1
          %v5951 = vadd.f32 %v5949, %v5950
          %v5952 = vrot.slane %v5929, 4
          %v5953 = vadd.f32 %v5929, %v5952
          %v5954 = vrot.slane %v5953, 2
          %v5955 = vadd.f32 %v5953, %v5954
          %v5956 = vrot.slane %v5955, 1
          %v5957 = vadd.f32 %v5955, %v5956
          %v5958 = vrot.slane %v5930, 4
          %v5959 = vadd.f32 %v5930, %v5958
          %v5960 = vrot.slane %v5959, 2
          %v5961 = vadd.f32 %v5959, %v5960
          %v5962 = vrot.slane %v5961, 1
          %v5963 = vadd.f32 %v5961, %v5962
          %v5964 = vrot.slane %v5931, 4
          %v5965 = vadd.f32 %v5931, %v5964
          %v5966 = vrot.slane %v5965, 2
          %v5967 = vadd.f32 %v5965, %v5966
          %v5968 = vrot.slane %v5967, 1
          %v5969 = vadd.f32 %v5967, %v5968
          %v5970 = vrot.slane %v5932, 4
          %v5971 = vadd.f32 %v5932, %v5970
          %v5972 = vrot.slane %v5971, 2
          %v5973 = vadd.f32 %v5971, %v5972
          %v5974 = vrot.slane %v5973, 1
          %v5975 = vadd.f32 %v5973, %v5974
          %v5976 = vrot.slane %v5933, 4
          %v5977 = vadd.f32 %v5933, %v5976
          %v5978 = vrot.slane %v5977, 2
          %v5979 = vadd.f32 %v5977, %v5978
          %v5980 = vrot.slane %v5979, 1
          %v5981 = vadd.f32 %v5979, %v5980
          %v5982 = vmul.f32 %v5939, %v1872
          %v5983 = vmul.f32 %v5945, %v1872
          %v5984 = vmul.f32 %v5951, %v1872
          %v5985 = vmul.f32 %v5957, %v1872
          %v5986 = vmul.f32 %v5963, %v1872
          %v5987 = vmul.f32 %v5969, %v1872
          %v5988 = vmul.f32 %v5975, %v1872
          %v5989 = vmul.f32 %v5981, %v1872
          %v5990 = vadd.f32 %v5982, 1e-05
          %v5991 = vadd.f32 %v5983, 1e-05
          %v5992 = vadd.f32 %v5984, 1e-05
          %v5993 = vadd.f32 %v5985, 1e-05
          %v5994 = vadd.f32 %v5986, 1e-05
          %v5995 = vadd.f32 %v5987, 1e-05
          %v5996 = vadd.f32 %v5988, 1e-05
          %v5997 = vadd.f32 %v5989, 1e-05
          %v5998 = vrsqrt.pop %v5990
          %v5999 = vrsqrt.pop %v5991
          %v6000 = vrsqrt.pop %v5992
          %v6001 = vrsqrt.pop %v5993
          %v6002 = vrsqrt.pop %v5994
          %v6003 = vrsqrt.pop %v5995
          %v6004 = vrsqrt.pop %v5996
          %v6005 = vrsqrt.pop %v5997
          %v6006 = vmul.f32 %v5918, %v5998
          %v6007 = vmul.f32 %v5919, %v5999
          %v6008 = vmul.f32 %v5920, %v6000
          %v6009 = vmul.f32 %v5921, %v6001
          %v6010 = vmul.f32 %v5922, %v6002
          %v6011 = vmul.f32 %v5923, %v6003
          %v6012 = vmul.f32 %v5924, %v6004
          %v6013 = vmul.f32 %v5925, %v6005
          %v6015 = vlaneseq
          %v6016 = vshrl.u32 %v6015, 7
          %v6017 = vsub.s32 0, %v6016
          %v6018 = vrot.slane %v5857, %v6017
          %v6019 = vlaneseq
          %v6020 = vshrl.u32 %v6019, 7
          %v6021 = vsub.s32 1, %v6020
          %v6022 = vrot.slane %v5857, %v6021
          %v6023 = vlaneseq
          %v6024 = vshrl.u32 %v6023, 7
          %v6025 = vsub.s32 2, %v6024
          %v6026 = vrot.slane %v5857, %v6025
          %v6027 = vlaneseq
          %v6028 = vshrl.u32 %v6027, 7
          %v6029 = vsub.s32 3, %v6028
          %v6030 = vrot.slane %v5857, %v6029
          %v6031 = vlaneseq
          %v6032 = vshrl.u32 %v6031, 7
          %v6033 = vsub.s32 4, %v6032
          %v6034 = vrot.slane %v5857, %v6033
          %v6035 = vlaneseq
          %v6036 = vshrl.u32 %v6035, 7
          %v6037 = vsub.s32 5, %v6036
          %v6038 = vrot.slane %v5857, %v6037
          %v6039 = vlaneseq
          %v6040 = vshrl.u32 %v6039, 7
          %v6041 = vsub.s32 6, %v6040
          %v6042 = vrot.slane %v5857, %v6041
          %v6043 = vlaneseq
          %v6044 = vshrl.u32 %v6043, 7
          %v6045 = vsub.s32 7, %v6044
          %v6046 = vrot.slane %v5857, %v6045
          %v6055 = vmul.f32 %v6006, %v6018
          %v6056 = vmul.f32 %v6007, %v6022
          %v6057 = vmul.f32 %v6008, %v6026
          %v6058 = vmul.f32 %v6009, %v6030
          %v6059 = vmul.f32 %v6010, %v6034
          %v6060 = vmul.f32 %v6011, %v6038
          %v6061 = vmul.f32 %v6012, %v6042
          %v6062 = vmul.f32 %v6013, %v6046
          %v6064 = vlaneseq
          %v6065 = vshrl.u32 %v6064, 7
          %v6066 = vsub.s32 0, %v6065
          %v6067 = vrot.slane %v5861, %v6066
          %v6068 = vlaneseq
          %v6069 = vshrl.u32 %v6068, 7
          %v6070 = vsub.s32 1, %v6069
          %v6071 = vrot.slane %v5861, %v6070
          %v6072 = vlaneseq
          %v6073 = vshrl.u32 %v6072, 7
          %v6074 = vsub.s32 2, %v6073
          %v6075 = vrot.slane %v5861, %v6074
          %v6076 = vlaneseq
          %v6077 = vshrl.u32 %v6076, 7
          %v6078 = vsub.s32 3, %v6077
          %v6079 = vrot.slane %v5861, %v6078
          %v6080 = vlaneseq
          %v6081 = vshrl.u32 %v6080, 7
          %v6082 = vsub.s32 4, %v6081
          %v6083 = vrot.slane %v5861, %v6082
          %v6084 = vlaneseq
          %v6085 = vshrl.u32 %v6084, 7
          %v6086 = vsub.s32 5, %v6085
          %v6087 = vrot.slane %v5861, %v6086
          %v6088 = vlaneseq
          %v6089 = vshrl.u32 %v6088, 7
          %v6090 = vsub.s32 6, %v6089
          %v6091 = vrot.slane %v5861, %v6090
          %v6092 = vlaneseq
          %v6093 = vshrl.u32 %v6092, 7
          %v6094 = vsub.s32 7, %v6093
          %v6095 = vrot.slane %v5861, %v6094
          %v6104 = vadd.f32 %v6055, %v6067
          %v6105 = vadd.f32 %v6056, %v6071
          %v6106 = vadd.f32 %v6057, %v6075
          %v6107 = vadd.f32 %v6058, %v6079
          %v6108 = vadd.f32 %v6059, %v6083
          %v6109 = vadd.f32 %v6060, %v6087
          %v6110 = vadd.f32 %v6061, %v6091
          %v6111 = vadd.f32 %v6062, %v6095
          %v6112 = vmax.f32 %v6104, 0.0
          %v6113 = vmax.f32 %v6105, 0.0
          %v6114 = vmax.f32 %v6106, 0.0
          %v6115 = vmax.f32 %v6107, 0.0
          %v6116 = vmax.f32 %v6108, 0.0
          %v6117 = vmax.f32 %v6109, 0.0
          %v6118 = vmax.f32 %v6110, 0.0
          %v6119 = vmax.f32 %v6111, 0.0
          %6120 = vst [vmem:[%s5] sm:$0xff] %v6112
          %6121 = vst [vmem:[%s5 + $0x8] sm:$0xff] %v6113
          %6122 = vst [vmem:[%s5 + $0x10] sm:$0xff] %v6114
          %6123 = vst [vmem:[%s5 + $0x18] sm:$0xff] %v6115
          %6124 = vst [vmem:[%s5 + $0x20] sm:$0xff] %v6116
          %6125 = vst [vmem:[%s5 + $0x28] sm:$0xff] %v6117
          %6126 = vst [vmem:[%s5 + $0x30] sm:$0xff] %v6118
          %6127 = vst [vmem:[%s5 + $0x38] sm:$0xff] %v6119
        $region64: #{network_forward.2} parent=39 // pred_fallthru
          _
        // Predicated region
        $region65: #{network_forward.2} parent=39 // pred_check
          %p6128 = pneg %p156
        $region66: #{network_forward.2} parent=39 // pred_check_branch
          %6130 = sbr.rel (%p6128) target = $region68
        $region67: #{network_forward.2} parent=39 // pred_region
          _
        $region68: #{network_forward.2} parent=39 // pred_fallthru
          _
        // Predicated region
        $region69: #{network_forward.2} parent=39 // pred_check
          %p6131 = pneg %p156
        $region70: #{network_forward.2} parent=39 // pred_check_branch
          %6133 = sbr.rel (%p6131) target = $region72
        $region71: #{network_forward.2} parent=39 // pred_region
          _
        $region72: #{network_forward.2} parent=39 // pred_fallthru
          _
      $region40: #{network_forward.2} parent=5 // pred_fallthru
        _
      %p6134 = scmp.le.s32.totalorder 2, %s18
      // Predicated region
      $region73: #{network_forward.2} parent=5 // pred_check
        %p6135 = pneg %p6134
      $region74: #{network_forward.2} parent=5 // pred_check_branch
        %6137 = sbr.rel (%p6135) target = $region76
      $region75: #{network_forward.2} parent=5 // pred_region
        %s6138 = ssub.s32 %s18, 2
      $region76: #{network_forward.2} parent=5 // pred_fallthru
        _
    $region6: #{network_forward.2} parent=1 // loop_footer
      %s22 = sadd.s32 1, %s18
    $region7: #{network_forward.2} parent=1 // loop_footer_branch
      %17 = sbr.rel target = $region3
    $region8: #{network_forward.2} parent=1 // loop_exit
      _
    %6139 = vsyncpa [#allocation4], 1
    %s6140 = scalar_lea.sflag [#allocation4], 1
    %6141 = vsyncpa %s6140, 1
    %6142 = vsyncpa [#allocation6], 1
    %s6143 = scalar_lea.sflag [#allocation6], 1
    %6144 = vsyncpa %s6143, 1
    %6145 = vsyncpa [#allocation9], 1

</llo_original>
